<compile_context>
chip_gen: v6e
topology: v6e:2x2x1
jax: 0.10.0
libtpu: 0.0.40
codegen_flags: <defaults>
</compile_context>

<pallas_src>
import jax
import jax.numpy as jnp
from jax.experimental import pallas as pl
from jax.experimental.pallas import tpu as pltpu


# ----- Conv geometry implied by nn.Linear(in_features=7744) with 96x96 inputs -------------
H_IN = 96
CONV1_K, CONV1_S, CONV1_C = 5, 4, 32          # 96 -> 23
CONV2_K, CONV2_S, CONV2_C = 3, 2, 64          # 23 -> 11
H1 = (H_IN - CONV1_K) // CONV1_S + 1          # 23
H2 = (H1 - CONV2_K) // CONV2_S + 1            # 11
H1P = (H1 + 1) // 2                           # 12 : per-phase padded grid (stride-2 conv2)
NPOS1 = 4 * H1P * H1P                         # 576 phase-separated conv1 output positions
NPOS2 = H1P * H1P                             # 144 padded conv2 output positions (121 valid)
FLAT_PAD = NPOS2 * CONV2_C                    # 9216 padded flatten (7744 valid)


# ----------------------------- parameter preparation (one-time) ---------------------------

def init_params(key, history_length=0, out_features=4):
    """Raw parameters in PyTorch layout (as nn.Module would hold them)."""
    c_in = history_length + 1
    ks = jax.random.split(key, 8)
    scale = 0.05
    return {
        "conv1_w": scale * jax.random.normal(ks[0], (32, c_in, 5, 5), jnp.float32),
        "conv1_b": scale * jax.random.normal(ks[1], (32,), jnp.float32),
        "conv2_w": scale * jax.random.normal(ks[2], (64, 32, 3, 3), jnp.float32),
        "conv2_b": scale * jax.random.normal(ks[3], (64,), jnp.float32),
        "fc1_w":   scale * jax.random.normal(ks[4], (256, 7744), jnp.float32),
        "fc1_b":   scale * jax.random.normal(ks[5], (256,), jnp.float32),
        "fc2_w":   scale * jax.random.normal(ks[6], (out_features, 256), jnp.float32),
        "fc2_b":   scale * jax.random.normal(ks[7], (out_features,), jnp.float32),
    }


def prepare_params(params):
    """One-time weight munging: transposes, flatten-order permutation, padding, bf16 casts."""
    c_in = params["conv1_w"].shape[1]
    k1 = c_in * CONV1_K * CONV1_K
    k1_pad = -(-k1 // 8) * 8                                   # 25 -> 32 for c_in=1

    # conv1: (32, C, 5, 5) -> (k1_pad, 32); patch element order (C, kh, kw).
    w1 = params["conv1_w"].reshape(CONV1_C, k1)
    w1 = jnp.pad(w1, ((0, 0), (0, k1_pad - k1))).T.astype(jnp.bfloat16)

    # conv2: (64, 32, 3, 3) -> 9 slabs (kh*3+kw, 32_in, 64_out), kept f32 (tiny).
    w2 = jnp.transpose(params["conv2_w"], (2, 3, 1, 0)).reshape(
        CONV2_K * CONV2_K, CONV1_C, CONV2_C).astype(jnp.float32)

    # fc1: (256, 7744), column order = PyTorch NCHW flatten (c*121 + ho*11 + wo).
    # Re-index to the kernel's flatten order ((ho*12 + wo)*64 + c), zero rows at the
    # padded ho/wo = 11 positions, transpose to (9216, 256).
    n_hidden = params["fc1_w"].shape[0]
    wf1 = params["fc1_w"].reshape(n_hidden, CONV2_C, H2, H2)   # (n, c, ho, wo)
    wf1 = jnp.transpose(wf1, (2, 3, 1, 0))                     # (ho, wo, c, n)
    wf1 = jnp.pad(wf1, ((0, H1P - H2), (0, H1P - H2), (0, 0), (0, 0)))
    wf1 = wf1.reshape(FLAT_PAD, n_hidden).astype(jnp.bfloat16)

    wf2 = params["fc2_w"].T.astype(jnp.bfloat16)               # (256, out)

    return {
        "w1": w1, "b1": params["conv1_b"].reshape(1, -1).astype(jnp.float32),
        "w2": w2, "b2": params["conv2_b"].reshape(1, -1).astype(jnp.float32),
        "wf1": wf1, "bf1": params["fc1_b"].reshape(1, -1).astype(jnp.float32),
        "wf2": wf2, "bf2": params["fc2_b"].reshape(1, -1).astype(jnp.float32),
    }


# ------------------------------ plain-JAX glue (tiny tensors) ------------------------------

def _conv1_patches_phased(x_nhwc, k1_pad):
    """im2col for conv1 with rows pre-ordered into stride-2 phase blocks for conv2.

    Returns (B, 576, k1_pad) bf16 with row index
        (ho1 % 2 * 2 + wo1 % 2) * 144 + (ho1 // 2) * 12 + (wo1 // 2)
    so that inside the kernel every conv2 (kh, kw) tap reads one contiguous 144-row run.
    """
    B, H, W, C = x_nhwc.shape
    assert H == H_IN and W == H_IN, (H, W)
    k, s = CONV1_K, CONV1_S
    rows = []
    for i in range(k):
        cols = []
        for j in range(k):
            cols.append(x_nhwc[:, i:i + s * H1:s, j:j + s * H1:s, :])   # (B, 23, 23, C)
        rows.append(jnp.stack(cols, axis=-1))                           # (B, 23, 23, C, kw)
    p = jnp.stack(rows, axis=-2)                                        # (B, 23, 23, C, kh, kw)
    p = p.reshape(B, H1, H1, C * k * k)
    p = jnp.pad(p, ((0, 0), (0, 2 * H1P - H1), (0, 2 * H1P - H1),
                    (0, k1_pad - C * k * k)))                           # (B, 24, 24, k1_pad)
    p = p.reshape(B, H1P, 2, H1P, 2, k1_pad)                            # (B, r, pi, c, pj, K)
    p = jnp.transpose(p, (0, 2, 4, 1, 3, 5))                            # (B, pi, pj, r, c, K)
    return p.reshape(B, NPOS1, k1_pad).astype(jnp.bfloat16)


# ---------------------------- kernel 1: conv1 + conv2 fused --------------------------------

def _conv_fused_kernel(p1_ref, w1_ref, b1_ref, w2_ref, b2_ref, y2_ref, y1_scr):
    # conv1: (576, K1)@(K1, 32) + b1, ReLU.  Done per phase block (144 rows) to keep vreg
    # pressure low; result stays in VMEM scratch (phase-separated layout).
    for p in range(4):
        lo = p * NPOS2
        a = jnp.dot(p1_ref[0, lo:lo + NPOS2, :], w1_ref[...],
                    preferred_element_type=jnp.float32)
        y1_scr[lo:lo + NPOS2, :] = jnp.maximum(a + b1_ref[...], 0.0)

    # conv2 (3x3, stride 2) as 9 accumulated matmuls over contiguous y1 slices: the phase
    # layout turns each (kh, kw) tap's strided 2-D window into one 144-row contiguous run.
    acc = jnp.zeros((NPOS2, CONV2_C), jnp.float32)
    for i in range(CONV2_K):
        for j in range(CONV2_K):
            phase = (i % 2) * 2 + (j % 2)
            base = phase * NPOS2 + (i // 2) * H1P + (j // 2)
            slab = y1_scr[base:base + NPOS2, :]                          # (144, 32) f32
            acc = acc + jnp.dot(slab, w2_ref[i * CONV2_K + j],
                                preferred_element_type=jnp.float32)
    y2_ref[0] = jnp.maximum(acc + b2_ref[...], 0.0).astype(jnp.bfloat16)


def _conv_stage(p1, w1, b1, w2, b2):
    B, _, k1_pad = p1.shape
    return pl.pallas_call(
        _conv_fused_kernel,
        out_shape=jax.ShapeDtypeStruct((B, NPOS2, CONV2_C), jnp.bfloat16),
        grid=(B,),
        in_specs=[
            pl.BlockSpec((1, NPOS1, k1_pad), lambda b: (b, 0, 0)),
            pl.BlockSpec((k1_pad, CONV1_C), lambda b: (0, 0)),
            pl.BlockSpec((1, CONV1_C), lambda b: (0, 0)),
            pl.BlockSpec((CONV2_K * CONV2_K, CONV1_C, CONV2_C), lambda b: (0, 0, 0)),
            pl.BlockSpec((1, CONV2_C), lambda b: (0, 0)),
        ],
        out_specs=pl.BlockSpec((1, NPOS2, CONV2_C), lambda b: (b, 0, 0)),
        scratch_shapes=[pltpu.VMEM((NPOS1, CONV1_C), jnp.float32)],
        compiler_params=pltpu.CompilerParams(dimension_semantics=("parallel",)),
    )(p1, w1, b1, w2, b2)


# ------------------------------ kernel 2: fc1 + fc2 fused ----------------------------------

def _fc_fused_kernel(x_ref, w1_ref, b1_ref, w2_ref, b2_ref, o_ref):
    h = jnp.dot(x_ref[...], w1_ref[...], preferred_element_type=jnp.float32)
    h = jnp.maximum(h + b1_ref[...], 0.0).astype(jnp.bfloat16)
    o = jnp.dot(h, w2_ref[...], preferred_element_type=jnp.float32)
    o_ref[...] = o + b2_ref[...]


def _fc_stage(flat, wf1, bf1, wf2, bf2):
    B, K = flat.shape
    N1 = wf1.shape[1]
    NO = wf2.shape[1]
    tm = 256 if B >= 256 else -(-B // 8) * 8            # sublane-aligned batch tile
    b_pad = -(-B // tm) * tm
    if b_pad != B:
        flat = jnp.pad(flat, ((0, b_pad - B), (0, 0)))
    out = pl.pallas_call(
        _fc_fused_kernel,
        out_shape=jax.ShapeDtypeStruct((b_pad, NO), jnp.float32),
        grid=(b_pad // tm,),
        in_specs=[
            pl.BlockSpec((tm, K), lambda m: (m, 0)),
            pl.BlockSpec((K, N1), lambda m: (0, 0)),     # weight resident across M steps
            pl.BlockSpec((1, N1), lambda m: (0, 0)),
            pl.BlockSpec((N1, NO), lambda m: (0, 0)),
            pl.BlockSpec((1, NO), lambda m: (0, 0)),
        ],
        out_specs=pl.BlockSpec((tm, NO), lambda m: (m, 0)),
        compiler_params=pltpu.CompilerParams(dimension_semantics=("parallel",)),
    )(flat, wf1, bf1, wf2, bf2)
    return out[:B] if b_pad != B else out


# ------------------------------------- forward ---------------------------------------------

def cnn_forward(x_nchw, prep):
    B = x_nchw.shape[0]
    x = jnp.transpose(x_nchw, (0, 2, 3, 1))              # NCHW -> NHWC (free for C=1)
    p1 = _conv1_patches_phased(x, prep["w1"].shape[0])   # (B, 576, 32) bf16
    y2 = _conv_stage(p1, prep["w1"], prep["b1"], prep["w2"], prep["b2"])   # (B, 144, 64) bf16
    flat = y2.reshape(B, FLAT_PAD)                       # free minor-dim merge
    return _fc_stage(flat, prep["wf1"], prep["bf1"], prep["wf2"], prep["bf2"])


# --------------------------------- reference (pure JAX) ------------------------------------

def cnn_reference(x, params):
    y = jax.lax.conv(x, params["conv1_w"], (4, 4), "VALID")
    y = jnp.maximum(y + params["conv1_b"][None, :, None, None], 0.0)
    y = jax.lax.conv(y, params["conv2_w"], (2, 2), "VALID")
    y = jnp.maximum(y + params["conv2_b"][None, :, None, None], 0.0)
    f = y.reshape(y.shape[0], -1)
    h = jnp.maximum(f @ params["fc1_w"].T + params["fc1_b"], 0.0)
    return h @ params["fc2_w"].T + params["fc2_b"]


if __name__ == "__main__":
    key = jax.random.PRNGKey(0)
    x = jax.random.normal(key, (2, 1, 96, 96), dtype=jnp.float32)   # NCHW, history_length=0
    params = init_params(jax.random.PRNGKey(1), history_length=0, out_features=4)
    prep = prepare_params(params)

    fwd = jax.jit(cnn_forward)
    out = jax.block_until_ready(fwd(x, prep))

    assert out.shape == (2, 4), out.shape
    assert out.dtype == jnp.float32
    assert bool(jnp.all(jnp.isfinite(out)))

    # bf16 weights/activations on the MXU -> loose tolerance vs f32 reference.
    ref = cnn_reference(x, params)
    assert bool(jnp.max(jnp.abs(out - ref)) < 5e-2), float(jnp.max(jnp.abs(out - ref)))

    print("KERNEL_OK")
</pallas_src>

<mosaic_0001>
module attributes {stable_mosaic.version = 11 : i64} {
  func.func @_conv_fused_kernel(%arg0: i32, %arg1: memref<1x576x32xbf16, #tpu.memory_space<vmem>>, %arg2: memref<32x32xbf16, #tpu.memory_space<vmem>>, %arg3: memref<1x32xf32, #tpu.memory_space<vmem>>, %arg4: memref<9x32x64xf32, #tpu.memory_space<vmem>>, %arg5: memref<1x64xf32, #tpu.memory_space<vmem>>, %arg6: memref<1x144x64xbf16, #tpu.memory_space<vmem>>, %arg7: memref<576x32xf32, #tpu.memory_space<vmem>>) attributes {dimension_semantics = [#tpu.dimension_semantics<parallel>], iteration_bounds = array<i64: 2>, scalar_prefetch = 0 : i64, scratch_operands = 1 : i64, tpu.core_type = #tpu.core_type<tc>, window_params = [{transform_indices = @transform_0, window_bounds = array<i64: 1, 576, 32>}, {pipeline_mode = #tpu.pipeline_mode<synchronous>, transform_indices = @transform_1, window_bounds = array<i64: 32, 32>}, {pipeline_mode = #tpu.pipeline_mode<synchronous>, transform_indices = @transform_2, window_bounds = array<i64: 1, 32>}, {pipeline_mode = #tpu.pipeline_mode<synchronous>, transform_indices = @transform_3, window_bounds = array<i64: 9, 32, 64>}, {pipeline_mode = #tpu.pipeline_mode<synchronous>, transform_indices = @transform_4, window_bounds = array<i64: 1, 64>}, {transform_indices = @transform_5, window_bounds = array<i64: 1, 144, 64>}]} {
    %c0 = arith.constant 0 : index
    %c0_0 = arith.constant 0 : index
    %c0_1 = arith.constant 0 : index
    %0 = vector.load %arg1[%c0, %c0_0, %c0_1] : memref<1x576x32xbf16, #tpu.memory_space<vmem>>, vector<1x144x32xbf16>
    %1 = vector.shape_cast %0 : vector<1x144x32xbf16> to vector<144x32xbf16>
    %c0_2 = arith.constant 0 : index
    %c0_3 = arith.constant 0 : index
    %2 = vector.load %arg2[%c0_2, %c0_3] : memref<32x32xbf16, #tpu.memory_space<vmem>>, vector<32x32xbf16>
    %cst = arith.constant dense<0.000000e+00> : vector<144x32xf32>
    %3 = tpu.matmul %1, %2, %cst {dimension_numbers = #tpu.dot_dimension_numbers<[1], [0], [0], [1], [0, 0, 1, 1], [], []>} : vector<144x32xbf16>, vector<32x32xbf16>, vector<144x32xf32> -> vector<144x32xf32>
    %c0_4 = arith.constant 0 : index
    %c0_5 = arith.constant 0 : index
    %4 = vector.load %arg3[%c0_4, %c0_5] : memref<1x32xf32, #tpu.memory_space<vmem>>, vector<1x32xf32>
    %5 = vector.broadcast %4 : vector<1x32xf32> to vector<144x32xf32>
    %6 = arith.addf %3, %5 : vector<144x32xf32>
    %cst_6 = arith.constant 0.000000e+00 : f32
    %7 = vector.broadcast %cst_6 : f32 to vector<144x32xf32>
    %8 = arith.maximumf %6, %7 : vector<144x32xf32>
    %c0_7 = arith.constant 0 : index
    %c0_8 = arith.constant 0 : index
    %9 = vector.load %arg7[%c0_7, %c0_8] : memref<576x32xf32, #tpu.memory_space<vmem>>, vector<144x32xf32>
    tpu.vector_store %arg7[%c0_7, %c0_8], %8 {strides = array<i32>} : memref<576x32xf32, #tpu.memory_space<vmem>>, vector<144x32xf32>,
    %c0_9 = arith.constant 0 : index
    %c144 = arith.constant 144 : index
    %c0_10 = arith.constant 0 : index
    %10 = vector.load %arg1[%c0_9, %c144, %c0_10] : memref<1x576x32xbf16, #tpu.memory_space<vmem>>, vector<1x144x32xbf16>
    %11 = vector.shape_cast %10 : vector<1x144x32xbf16> to vector<144x32xbf16>
    %c0_11 = arith.constant 0 : index
    %c0_12 = arith.constant 0 : index
    %12 = vector.load %arg2[%c0_11, %c0_12] : memref<32x32xbf16, #tpu.memory_space<vmem>>, vector<32x32xbf16>
    %cst_13 = arith.constant dense<0.000000e+00> : vector<144x32xf32>
    %13 = tpu.matmul %11, %12, %cst_13 {dimension_numbers = #tpu.dot_dimension_numbers<[1], [0], [0], [1], [0, 0, 1, 1], [], []>} : vector<144x32xbf16>, vector<32x32xbf16>, vector<144x32xf32> -> vector<144x32xf32>
    %c0_14 = arith.constant 0 : index
    %c0_15 = arith.constant 0 : index
    %14 = vector.load %arg3[%c0_14, %c0_15] : memref<1x32xf32, #tpu.memory_space<vmem>>, vector<1x32xf32>
    %15 = vector.broadcast %14 : vector<1x32xf32> to vector<144x32xf32>
    %16 = arith.addf %13, %15 : vector<144x32xf32>
    %cst_16 = arith.constant 0.000000e+00 : f32
    %17 = vector.broadcast %cst_16 : f32 to vector<144x32xf32>
    %18 = arith.maximumf %16, %17 : vector<144x32xf32>
    %c144_17 = arith.constant 144 : index
    %c0_18 = arith.constant 0 : index
    %19 = vector.load %arg7[%c144_17, %c0_18] : memref<576x32xf32, #tpu.memory_space<vmem>>, vector<144x32xf32>
    tpu.vector_store %arg7[%c144_17, %c0_18], %18 {strides = array<i32>} : memref<576x32xf32, #tpu.memory_space<vmem>>, vector<144x32xf32>,
    %c0_19 = arith.constant 0 : index
    %c288 = arith.constant 288 : index
    %c0_20 = arith.constant 0 : index
    %20 = vector.load %arg1[%c0_19, %c288, %c0_20] : memref<1x576x32xbf16, #tpu.memory_space<vmem>>, vector<1x144x32xbf16>
    %21 = vector.shape_cast %20 : vector<1x144x32xbf16> to vector<144x32xbf16>
    %c0_21 = arith.constant 0 : index
    %c0_22 = arith.constant 0 : index
    %22 = vector.load %arg2[%c0_21, %c0_22] : memref<32x32xbf16, #tpu.memory_space<vmem>>, vector<32x32xbf16>
    %cst_23 = arith.constant dense<0.000000e+00> : vector<144x32xf32>
    %23 = tpu.matmul %21, %22, %cst_23 {dimension_numbers = #tpu.dot_dimension_numbers<[1], [0], [0], [1], [0, 0, 1, 1], [], []>} : vector<144x32xbf16>, vector<32x32xbf16>, vector<144x32xf32> -> vector<144x32xf32>
    %c0_24 = arith.constant 0 : index
    %c0_25 = arith.constant 0 : index
    %24 = vector.load %arg3[%c0_24, %c0_25] : memref<1x32xf32, #tpu.memory_space<vmem>>, vector<1x32xf32>
    %25 = vector.broadcast %24 : vector<1x32xf32> to vector<144x32xf32>
    %26 = arith.addf %23, %25 : vector<144x32xf32>
    %cst_26 = arith.constant 0.000000e+00 : f32
    %27 = vector.broadcast %cst_26 : f32 to vector<144x32xf32>
    %28 = arith.maximumf %26, %27 : vector<144x32xf32>
    %c288_27 = arith.constant 288 : index
    %c0_28 = arith.constant 0 : index
    %29 = vector.load %arg7[%c288_27, %c0_28] : memref<576x32xf32, #tpu.memory_space<vmem>>, vector<144x32xf32>
    tpu.vector_store %arg7[%c288_27, %c0_28], %28 {strides = array<i32>} : memref<576x32xf32, #tpu.memory_space<vmem>>, vector<144x32xf32>,
    %c0_29 = arith.constant 0 : index
    %c432 = arith.constant 432 : index
    %c0_30 = arith.constant 0 : index
    %30 = vector.load %arg1[%c0_29, %c432, %c0_30] : memref<1x576x32xbf16, #tpu.memory_space<vmem>>, vector<1x144x32xbf16>
    %31 = vector.shape_cast %30 : vector<1x144x32xbf16> to vector<144x32xbf16>
    %c0_31 = arith.constant 0 : index
    %c0_32 = arith.constant 0 : index
    %32 = vector.load %arg2[%c0_31, %c0_32] : memref<32x32xbf16, #tpu.memory_space<vmem>>, vector<32x32xbf16>
    %cst_33 = arith.constant dense<0.000000e+00> : vector<144x32xf32>
    %33 = tpu.matmul %31, %32, %cst_33 {dimension_numbers = #tpu.dot_dimension_numbers<[1], [0], [0], [1], [0, 0, 1, 1], [], []>} : vector<144x32xbf16>, vector<32x32xbf16>, vector<144x32xf32> -> vector<144x32xf32>
    %c0_34 = arith.constant 0 : index
    %c0_35 = arith.constant 0 : index
    %34 = vector.load %arg3[%c0_34, %c0_35] : memref<1x32xf32, #tpu.memory_space<vmem>>, vector<1x32xf32>
    %35 = vector.broadcast %34 : vector<1x32xf32> to vector<144x32xf32>
    %36 = arith.addf %33, %35 : vector<144x32xf32>
    %cst_36 = arith.constant 0.000000e+00 : f32
    %37 = vector.broadcast %cst_36 : f32 to vector<144x32xf32>
    %38 = arith.maximumf %36, %37 : vector<144x32xf32>
    %c432_37 = arith.constant 432 : index
    %c0_38 = arith.constant 0 : index
    %39 = vector.load %arg7[%c432_37, %c0_38] : memref<576x32xf32, #tpu.memory_space<vmem>>, vector<144x32xf32>
    tpu.vector_store %arg7[%c432_37, %c0_38], %38 {strides = array<i32>} : memref<576x32xf32, #tpu.memory_space<vmem>>, vector<144x32xf32>,
    %cst_39 = arith.constant 0.000000e+00 : f32
    %40 = vector.broadcast %cst_39 : f32 to vector<144x64xf32>
    %c0_40 = arith.constant 0 : index
    %c0_41 = arith.constant 0 : index
    %41 = vector.load %arg7[%c0_40, %c0_41] : memref<576x32xf32, #tpu.memory_space<vmem>>, vector<144x32xf32>
    %c0_42 = arith.constant 0 : index
    %c0_43 = arith.constant 0 : index
    %c0_44 = arith.constant 0 : index
    %42 = vector.load %arg4[%c0_42, %c0_43, %c0_44] : memref<9x32x64xf32, #tpu.memory_space<vmem>>, vector<1x32x64xf32>
    %43 = vector.shape_cast %42 : vector<1x32x64xf32> to vector<32x64xf32>
    %cst_45 = arith.constant dense<0.000000e+00> : vector<144x64xf32>
    %44 = tpu.matmul %41, %43, %cst_45 {dimension_numbers = #tpu.dot_dimension_numbers<[1], [0], [0], [1], [0, 0, 1, 1], [], []>} : vector<144x32xf32>, vector<32x64xf32>, vector<144x64xf32> -> vector<144x64xf32>
    %45 = arith.addf %40, %44 : vector<144x64xf32>
    %c144_46 = arith.constant 144 : index
    %c0_47 = arith.constant 0 : index
    %46 = vector.load %arg7[%c144_46, %c0_47] : memref<576x32xf32, #tpu.memory_space<vmem>>, vector<144x32xf32>
    %c1 = arith.constant 1 : index
    %c0_48 = arith.constant 0 : index
    %c0_49 = arith.constant 0 : index
    %47 = vector.load %arg4[%c1, %c0_48, %c0_49] : memref<9x32x64xf32, #tpu.memory_space<vmem>>, vector<1x32x64xf32>
    %48 = vector.shape_cast %47 : vector<1x32x64xf32> to vector<32x64xf32>
    %cst_50 = arith.constant dense<0.000000e+00> : vector<144x64xf32>
    %49 = tpu.matmul %46, %48, %cst_50 {dimension_numbers = #tpu.dot_dimension_numbers<[1], [0], [0], [1], [0, 0, 1, 1], [], []>} : vector<144x32xf32>, vector<32x64xf32>, vector<144x64xf32> -> vector<144x64xf32>
    %50 = arith.addf %45, %49 : vector<144x64xf32>
    %c1_51 = arith.constant 1 : index
    %c0_52 = arith.constant 0 : index
    %51 = vector.load %arg7[%c1_51, %c0_52] : memref<576x32xf32, #tpu.memory_space<vmem>>, vector<144x32xf32>
    %c2 = arith.constant 2 : index
    %c0_53 = arith.constant 0 : index
    %c0_54 = arith.constant 0 : index
    %52 = vector.load %arg4[%c2, %c0_53, %c0_54] : memref<9x32x64xf32, #tpu.memory_space<vmem>>, vector<1x32x64xf32>
    %53 = vector.shape_cast %52 : vector<1x32x64xf32> to vector<32x64xf32>
    %cst_55 = arith.constant dense<0.000000e+00> : vector<144x64xf32>
    %54 = tpu.matmul %51, %53, %cst_55 {dimension_numbers = #tpu.dot_dimension_numbers<[1], [0], [0], [1], [0, 0, 1, 1], [], []>} : vector<144x32xf32>, vector<32x64xf32>, vector<144x64xf32> -> vector<144x64xf32>
    %55 = arith.addf %50, %54 : vector<144x64xf32>
    %c288_56 = arith.constant 288 : index
    %c0_57 = arith.constant 0 : index
    %56 = vector.load %arg7[%c288_56, %c0_57] : memref<576x32xf32, #tpu.memory_space<vmem>>, vector<144x32xf32>
    %c3 = arith.constant 3 : index
    %c0_58 = arith.constant 0 : index
    %c0_59 = arith.constant 0 : index
    %57 = vector.load %arg4[%c3, %c0_58, %c0_59] : memref<9x32x64xf32, #tpu.memory_space<vmem>>, vector<1x32x64xf32>
    %58 = vector.shape_cast %57 : vector<1x32x64xf32> to vector<32x64xf32>
    %cst_60 = arith.constant dense<0.000000e+00> : vector<144x64xf32>
    %59 = tpu.matmul %56, %58, %cst_60 {dimension_numbers = #tpu.dot_dimension_numbers<[1], [0], [0], [1], [0, 0, 1, 1], [], []>} : vector<144x32xf32>, vector<32x64xf32>, vector<144x64xf32> -> vector<144x64xf32>
    %60 = arith.addf %55, %59 : vector<144x64xf32>
    %c432_61 = arith.constant 432 : index
    %c0_62 = arith.constant 0 : index
    %61 = vector.load %arg7[%c432_61, %c0_62] : memref<576x32xf32, #tpu.memory_space<vmem>>, vector<144x32xf32>
    %c4 = arith.constant 4 : index
    %c0_63 = arith.constant 0 : index
    %c0_64 = arith.constant 0 : index
    %62 = vector.load %arg4[%c4, %c0_63, %c0_64] : memref<9x32x64xf32, #tpu.memory_space<vmem>>, vector<1x32x64xf32>
    %63 = vector.shape_cast %62 : vector<1x32x64xf32> to vector<32x64xf32>
    %cst_65 = arith.constant dense<0.000000e+00> : vector<144x64xf32>
    %64 = tpu.matmul %61, %63, %cst_65 {dimension_numbers = #tpu.dot_dimension_numbers<[1], [0], [0], [1], [0, 0, 1, 1], [], []>} : vector<144x32xf32>, vector<32x64xf32>, vector<144x64xf32> -> vector<144x64xf32>
    %65 = arith.addf %60, %64 : vector<144x64xf32>
    %c289 = arith.constant 289 : index
    %c0_66 = arith.constant 0 : index
    %66 = vector.load %arg7[%c289, %c0_66] : memref<576x32xf32, #tpu.memory_space<vmem>>, vector<144x32xf32>
    %c5 = arith.constant 5 : index
    %c0_67 = arith.constant 0 : index
    %c0_68 = arith.constant 0 : index
    %67 = vector.load %arg4[%c5, %c0_67, %c0_68] : memref<9x32x64xf32, #tpu.memory_space<vmem>>, vector<1x32x64xf32>
    %68 = vector.shape_cast %67 : vector<1x32x64xf32> to vector<32x64xf32>
    %cst_69 = arith.constant dense<0.000000e+00> : vector<144x64xf32>
    %69 = tpu.matmul %66, %68, %cst_69 {dimension_numbers = #tpu.dot_dimension_numbers<[1], [0], [0], [1], [0, 0, 1, 1], [], []>} : vector<144x32xf32>, vector<32x64xf32>, vector<144x64xf32> -> vector<144x64xf32>
    %70 = arith.addf %65, %69 : vector<144x64xf32>
    %c12 = arith.constant 12 : index
    %c0_70 = arith.constant 0 : index
    %71 = vector.load %arg7[%c12, %c0_70] : memref<576x32xf32, #tpu.memory_space<vmem>>, vector<144x32xf32>
    %c6 = arith.constant 6 : index
    %c0_71 = arith.constant 0 : index
    %c0_72 = arith.constant 0 : index
    %72 = vector.load %arg4[%c6, %c0_71, %c0_72] : memref<9x32x64xf32, #tpu.memory_space<vmem>>, vector<1x32x64xf32>
    %73 = vector.shape_cast %72 : vector<1x32x64xf32> to vector<32x64xf32>
    %cst_73 = arith.constant dense<0.000000e+00> : vector<144x64xf32>
    %74 = tpu.matmul %71, %73, %cst_73 {dimension_numbers = #tpu.dot_dimension_numbers<[1], [0], [0], [1], [0, 0, 1, 1], [], []>} : vector<144x32xf32>, vector<32x64xf32>, vector<144x64xf32> -> vector<144x64xf32>
    %75 = arith.addf %70, %74 : vector<144x64xf32>
    %c156 = arith.constant 156 : index
    %c0_74 = arith.constant 0 : index
    %76 = vector.load %arg7[%c156, %c0_74] : memref<576x32xf32, #tpu.memory_space<vmem>>, vector<144x32xf32>
    %c7 = arith.constant 7 : index
    %c0_75 = arith.constant 0 : index
    %c0_76 = arith.constant 0 : index
    %77 = vector.load %arg4[%c7, %c0_75, %c0_76] : memref<9x32x64xf32, #tpu.memory_space<vmem>>, vector<1x32x64xf32>
    %78 = vector.shape_cast %77 : vector<1x32x64xf32> to vector<32x64xf32>
    %cst_77 = arith.constant dense<0.000000e+00> : vector<144x64xf32>
    %79 = tpu.matmul %76, %78, %cst_77 {dimension_numbers = #tpu.dot_dimension_numbers<[1], [0], [0], [1], [0, 0, 1, 1], [], []>} : vector<144x32xf32>, vector<32x64xf32>, vector<144x64xf32> -> vector<144x64xf32>
    %80 = arith.addf %75, %79 : vector<144x64xf32>
    %c13 = arith.constant 13 : index
    %c0_78 = arith.constant 0 : index
    %81 = vector.load %arg7[%c13, %c0_78] : memref<576x32xf32, #tpu.memory_space<vmem>>, vector<144x32xf32>
    %c8 = arith.constant 8 : index
    %c0_79 = arith.constant 0 : index
    %c0_80 = arith.constant 0 : index
    %82 = vector.load %arg4[%c8, %c0_79, %c0_80] : memref<9x32x64xf32, #tpu.memory_space<vmem>>, vector<1x32x64xf32>
    %83 = vector.shape_cast %82 : vector<1x32x64xf32> to vector<32x64xf32>
    %cst_81 = arith.constant dense<0.000000e+00> : vector<144x64xf32>
    %84 = tpu.matmul %81, %83, %cst_81 {dimension_numbers = #tpu.dot_dimension_numbers<[1], [0], [0], [1], [0, 0, 1, 1], [], []>} : vector<144x32xf32>, vector<32x64xf32>, vector<144x64xf32> -> vector<144x64xf32>
    %85 = arith.addf %80, %84 : vector<144x64xf32>
    %c0_82 = arith.constant 0 : index
    %c0_83 = arith.constant 0 : index
    %86 = vector.load %arg5[%c0_82, %c0_83] : memref<1x64xf32, #tpu.memory_space<vmem>>, vector<1x64xf32>
    %87 = vector.broadcast %86 : vector<1x64xf32> to vector<144x64xf32>
    %88 = arith.addf %85, %87 : vector<144x64xf32>
    %cst_84 = arith.constant 0.000000e+00 : f32
    %89 = vector.broadcast %cst_84 : f32 to vector<144x64xf32>
    %90 = arith.maximumf %88, %89 : vector<144x64xf32>
    %91 = arith.truncf %90 : vector<144x64xf32> to vector<144x64xbf16>
    %c0_85 = arith.constant 0 : index
    %c0_86 = arith.constant 0 : index
    %c0_87 = arith.constant 0 : index
    %92 = vector.load %arg6[%c0_85, %c0_86, %c0_87] : memref<1x144x64xbf16, #tpu.memory_space<vmem>>, vector<1x144x64xbf16>
    %93 = vector.shape_cast %92 : vector<1x144x64xbf16> to vector<144x64xbf16>
    %94 = vector.shape_cast %91 : vector<144x64xbf16> to vector<1x144x64xbf16>
    tpu.vector_store %arg6[%c0_85, %c0_86, %c0_87], %94 {strides = array<i32>} : memref<1x144x64xbf16, #tpu.memory_space<vmem>>, vector<1x144x64xbf16>,
    return
  }
  func.func @transform_0(%arg0: i32) -> (i32, i32, i32) {
    %c0_i32 = arith.constant 0 : i32
    %c0_i32_0 = arith.constant 0 : i32
    %c0_i32_1 = arith.constant 0 : i32
    return %arg0, %c0_i32, %c0_i32_0 : i32, i32, i32
  }
  func.func @transform_1(%arg0: i32) -> (i32, i32) {
    %c0_i32 = arith.constant 0 : i32
    %c0_i32_0 = arith.constant 0 : i32
    %c0_i32_1 = arith.constant 0 : i32
    return %c0_i32, %c0_i32_0 : i32, i32
  }
  func.func @transform_2(%arg0: i32) -> (i32, i32) {
    %c0_i32 = arith.constant 0 : i32
    %c0_i32_0 = arith.constant 0 : i32
    %c0_i32_1 = arith.constant 0 : i32
    return %c0_i32, %c0_i32_0 : i32, i32
  }
  func.func @transform_3(%arg0: i32) -> (i32, i32, i32) {
    %c0_i32 = arith.constant 0 : i32
    %c0_i32_0 = arith.constant 0 : i32
    %c0_i32_1 = arith.constant 0 : i32
    %c0_i32_2 = arith.constant 0 : i32
    return %c0_i32, %c0_i32_0, %c0_i32_1 : i32, i32, i32
  }
  func.func @transform_4(%arg0: i32) -> (i32, i32) {
    %c0_i32 = arith.constant 0 : i32
    %c0_i32_0 = arith.constant 0 : i32
    %c0_i32_1 = arith.constant 0 : i32
    return %c0_i32, %c0_i32_0 : i32, i32
  }
  func.func @transform_5(%arg0: i32) -> (i32, i32, i32) {
    %c0_i32 = arith.constant 0 : i32
    %c0_i32_0 = arith.constant 0 : i32
    %c0_i32_1 = arith.constant 0 : i32
    return %arg0, %c0_i32, %c0_i32_0 : i32, i32, i32
  }
}

module attributes {stable_mosaic.version = 11 : i64} {
  func.func @_fc_fused_kernel(%arg0: i32, %arg1: memref<8x9216xbf16, #tpu.memory_space<vmem>>, %arg2: memref<9216x256xbf16, #tpu.memory_space<vmem>>, %arg3: memref<1x256xf32, #tpu.memory_space<vmem>>, %arg4: memref<256x4xbf16, #tpu.memory_space<vmem>>, %arg5: memref<1x4xf32, #tpu.memory_space<vmem>>, %arg6: memref<8x4xf32, #tpu.memory_space<vmem>>) attributes {dimension_semantics = [#tpu.dimension_semantics<parallel>], iteration_bounds = array<i64: 1>, scalar_prefetch = 0 : i64, scratch_operands = 0 : i64, tpu.core_type = #tpu.core_type<tc>, window_params = [{transform_indices = @transform_0, window_bounds = array<i64: 8, 9216>}, {pipeline_mode = #tpu.pipeline_mode<synchronous>, transform_indices = @transform_1, window_bounds = array<i64: 9216, 256>}, {pipeline_mode = #tpu.pipeline_mode<synchronous>, transform_indices = @transform_2, window_bounds = array<i64: 1, 256>}, {pipeline_mode = #tpu.pipeline_mode<synchronous>, transform_indices = @transform_3, window_bounds = array<i64: 256, 4>}, {pipeline_mode = #tpu.pipeline_mode<synchronous>, transform_indices = @transform_4, window_bounds = array<i64: 1, 4>}, {transform_indices = @transform_5, window_bounds = array<i64: 8, 4>}]} {
    %c0 = arith.constant 0 : index
    %c0_0 = arith.constant 0 : index
    %0 = vector.load %arg1[%c0, %c0_0] : memref<8x9216xbf16, #tpu.memory_space<vmem>>, vector<8x9216xbf16>
    %c0_1 = arith.constant 0 : index
    %c0_2 = arith.constant 0 : index
    %1 = vector.load %arg2[%c0_1, %c0_2] : memref<9216x256xbf16, #tpu.memory_space<vmem>>, vector<9216x256xbf16>
    %cst = arith.constant dense<0.000000e+00> : vector<8x256xf32>
    %2 = tpu.matmul %0, %1, %cst {dimension_numbers = #tpu.dot_dimension_numbers<[1], [0], [0], [1], [0, 0, 1, 1], [], []>} : vector<8x9216xbf16>, vector<9216x256xbf16>, vector<8x256xf32> -> vector<8x256xf32>
    %c0_3 = arith.constant 0 : index
    %c0_4 = arith.constant 0 : index
    %3 = vector.load %arg3[%c0_3, %c0_4] : memref<1x256xf32, #tpu.memory_space<vmem>>, vector<1x256xf32>
    %4 = vector.broadcast %3 : vector<1x256xf32> to vector<8x256xf32>
    %5 = arith.addf %2, %4 : vector<8x256xf32>
    %cst_5 = arith.constant 0.000000e+00 : f32
    %6 = vector.broadcast %cst_5 : f32 to vector<8x256xf32>
    %7 = arith.maximumf %5, %6 : vector<8x256xf32>
    %8 = arith.truncf %7 : vector<8x256xf32> to vector<8x256xbf16>
    %c0_6 = arith.constant 0 : index
    %c0_7 = arith.constant 0 : index
    %9 = vector.load %arg4[%c0_6, %c0_7] : memref<256x4xbf16, #tpu.memory_space<vmem>>, vector<256x4xbf16>
    %cst_8 = arith.constant dense<0.000000e+00> : vector<8x4xf32>
    %10 = tpu.matmul %8, %9, %cst_8 {dimension_numbers = #tpu.dot_dimension_numbers<[1], [0], [0], [1], [0, 0, 1, 1], [], []>} : vector<8x256xbf16>, vector<256x4xbf16>, vector<8x4xf32> -> vector<8x4xf32>
    %c0_9 = arith.constant 0 : index
    %c0_10 = arith.constant 0 : index
    %11 = vector.load %arg5[%c0_9, %c0_10] : memref<1x4xf32, #tpu.memory_space<vmem>>, vector<1x4xf32>
    %12 = vector.broadcast %11 : vector<1x4xf32> to vector<8x4xf32>
    %13 = arith.addf %10, %12 : vector<8x4xf32>
    %c0_11 = arith.constant 0 : index
    %c0_12 = arith.constant 0 : index
    %14 = vector.load %arg6[%c0_11, %c0_12] : memref<8x4xf32, #tpu.memory_space<vmem>>, vector<8x4xf32>
    tpu.vector_store %arg6[%c0_11, %c0_12], %13 {strides = array<i32>} : memref<8x4xf32, #tpu.memory_space<vmem>>, vector<8x4xf32>,
    return
  }
  func.func @transform_0(%arg0: i32) -> (i32, i32) {
    %c0_i32 = arith.constant 0 : i32
    %c0_i32_0 = arith.constant 0 : i32
    return %arg0, %c0_i32 : i32, i32
  }
  func.func @transform_1(%arg0: i32) -> (i32, i32) {
    %c0_i32 = arith.constant 0 : i32
    %c0_i32_0 = arith.constant 0 : i32
    %c0_i32_1 = arith.constant 0 : i32
    return %c0_i32, %c0_i32_0 : i32, i32
  }
  func.func @transform_2(%arg0: i32) -> (i32, i32) {
    %c0_i32 = arith.constant 0 : i32
    %c0_i32_0 = arith.constant 0 : i32
    %c0_i32_1 = arith.constant 0 : i32
    return %c0_i32, %c0_i32_0 : i32, i32
  }
  func.func @transform_3(%arg0: i32) -> (i32, i32) {
    %c0_i32 = arith.constant 0 : i32
    %c0_i32_0 = arith.constant 0 : i32
    %c0_i32_1 = arith.constant 0 : i32
    return %c0_i32, %c0_i32_0 : i32, i32
  }
  func.func @transform_4(%arg0: i32) -> (i32, i32) {
    %c0_i32 = arith.constant 0 : i32
    %c0_i32_0 = arith.constant 0 : i32
    %c0_i32_1 = arith.constant 0 : i32
    return %c0_i32, %c0_i32_0 : i32, i32
  }
  func.func @transform_5(%arg0: i32) -> (i32, i32) {
    %c0_i32 = arith.constant 0 : i32
    %c0_i32_0 = arith.constant 0 : i32
    return %arg0, %c0_i32 : i32, i32
  }
}

</mosaic_0001>

<llo_original>
// kernel: cnn_forward.2
$region0: #{cnn_forward.2}
  #allocation0 [shape = 'u32[]', space=smem, size = 0x4, offset = 0x4, fixed_abs, tag = 'smem constant byte address 0x4 - core index']
  #allocation1 [shape = 'u32[144,128]{1,0:T(1,128)}', space=vmem, size = 0x12000, scoped, tag = 'internal scratch']
  #allocation2 [shape = 'f32[576,32]{1,0:T(8,128)}', space=vmem, size = 0x48000, scoped, tag = 'scratch operand']
  %s0 = inlined_call_operand.vmem [shape: bf16[2,576,32], index: 0, kind: input, shape index: {}]
  %s1 = inlined_call_operand.hbm [shape: bf16[32,32], index: 1, kind: input, shape index: {}]
  %s2 = inlined_call_operand.hbm [shape: f32[1,32], index: 2, kind: input, shape index: {}]
  %s3 = inlined_call_operand.hbm [shape: f32[9,32,64], index: 3, kind: input, shape index: {}]
  %s4 = inlined_call_operand.hbm [shape: f32[1,64], index: 4, kind: input, shape index: {}]
  %s5 = inlined_call_operand.vmem [shape: bf16[2,144,64], index: 5, kind: output, shape index: {}]
  %s6 = sld [smem:[#allocation0]]
  $region69: #{cnn_forward.2} parent=0
    _
  %s8 = ssub.s32 1, %s6
  %s9 = scalar_select 0, %s8, %s6
  $region1: #{cnn_forward.2} parent=0
    #allocation3 [shape = 'u8[8192]{0}', space=vmem, size = 0x2000, scoped, tag = 'input window, operand 1, single buffered']
    #allocation4 [shape = 's32[2]{0}', space=sflag, size = 0x8, scoped, tag = 'scoped memory for cnn_forward.2']
    #allocation5 [shape = 'u8[512]{0}', space=vmem, size = 0x400, scoped, tag = 'input window, operand 2, single buffered']
    #allocation6 [shape = 's32[1]{0}', space=sflag, size = 0x4, scoped, tag = 'scoped memory for cnn_forward.2']
    #allocation7 [shape = 'u8[147456]{0}', space=vmem, size = 0x24000, scoped, tag = 'input window, operand 3, single buffered']
    #allocation8 [shape = 'u8[512]{0}', space=vmem, size = 0x400, scoped, tag = 'input window, operand 4, single buffered']
    #allocation9 [shape = 's32[1]{0}', space=sflag, size = 0x4, scoped, tag = 'scoped memory for cnn_forward.2']
    %10 = vsyncpa [#allocation4], 0
    %11 = vsyncpa [#allocation6], 0
    %12 = vsyncpa [#allocation9], 0
    loop: start=0, step=1, limit=4
    $region2: #{cnn_forward.2} parent=1 // loop_pre_header
      _
    $region3: #{cnn_forward.2} parent=1 // loop_header
      %s14 = sphi 0, %s18
      %p15 = scmp.ge.s32.totalorder %s14, 4
      %s24 = sphi 0, %s26
      %s27 = sphi 0, %s24
      %s28 = sphi 0, %s27
      %s44 = sphi 0, %s28
      %s48 = sphi 0, %s48
      %s50 = sphi 0, %s48
      %s51 = sphi 0, %s50
      %s65 = sphi 0, %s51
      %s69 = sphi 0, %s69
      %s71 = sphi 0, %s69
      %s72 = sphi 0, %s71
      %s86 = sphi 0, %s72
      %s90 = sphi 0, %s90
      %s92 = sphi 0, %s90
      %s93 = sphi 0, %s92
      %s107 = sphi 0, %s93
      %s111 = sphi 0, %s111
      %s113 = sphi 0, %s111
      %s114 = sphi 0, %s113
      %s128 = sphi 0, %s114
      %s134 = sphi 0, %s136
      %s137 = sphi 0, %s134
      %s138 = sphi 0, %s137
      %s154 = sphi 0, %s138
    $region4: #{cnn_forward.2} parent=1 // loop_header_branch
      %17 = sbr.rel (%p15) target = $region8
    $region5: #{cnn_forward.2} parent=1 // loop_body
      %s19 = ssub.s32 %s14, 1
      %s20 = ssub.s32 %s14, 2
      %s21 = sadd.s32 %s14, 1
      %s22 = ssub.s32 %s14, %s21
      %p23 = scmp.eq.s32.totalorder %s22, 0
      %s25 = sadd.s32 %s24, 1
      %s26 = scalar_select %p23, %s24, %s25
      %p29 = pneg %p23
      %p30 = scmp.eq.s32.totalorder %s14, 1
      %p31 = por %p29, %p30
      %p32 = scmp.ne.s32.totalorder %s24, %s27
      %p33 = scmp.eq.s32.totalorder %s14, 0
      %p34 = por %p32, %p33
      %p35 = scmp.ne.s32.totalorder %s24, %s27
      %p36 = scmp.eq.s32.totalorder %s19, 1
      %p37 = por %p35, %p36
      %p38 = scmp.ne.s32.totalorder %s27, %s28
      %p39 = scmp.eq.s32.totalorder %s19, 0
      %p40 = por %p38, %p39
      %p41 = scmp.ne.s32.totalorder %s27, %s28
      %p42 = scmp.eq.s32.totalorder %s20, 1
      %p43 = por %p41, %p42
      %p45 = scmp.ne.s32.totalorder %s28, %s44
      %p46 = scmp.eq.s32.totalorder %s20, 0
      %p47 = por %p45, %p46
      %s49 = sadd.s32 %s48, 1
      %p52 = scmp.eq.s32.totalorder %s14, 1
      %p53 = scmp.ne.s32.totalorder %s48, %s50
      %p54 = scmp.eq.s32.totalorder %s14, 0
      %p55 = por %p53, %p54
      %p56 = scmp.ne.s32.totalorder %s48, %s50
      %p57 = scmp.eq.s32.totalorder %s19, 1
      %p58 = por %p56, %p57
      %p59 = scmp.ne.s32.totalorder %s50, %s51
      %p60 = scmp.eq.s32.totalorder %s19, 0
      %p61 = por %p59, %p60
      %p62 = scmp.ne.s32.totalorder %s50, %s51
      %p63 = scmp.eq.s32.totalorder %s20, 1
      %p64 = por %p62, %p63
      %p66 = scmp.ne.s32.totalorder %s51, %s65
      %p67 = scmp.eq.s32.totalorder %s20, 0
      %p68 = por %p66, %p67
      %s70 = sadd.s32 %s69, 1
      %p73 = scmp.eq.s32.totalorder %s14, 1
      %p74 = scmp.ne.s32.totalorder %s69, %s71
      %p75 = scmp.eq.s32.totalorder %s14, 0
      %p76 = por %p74, %p75
      %p77 = scmp.ne.s32.totalorder %s69, %s71
      %p78 = scmp.eq.s32.totalorder %s19, 1
      %p79 = por %p77, %p78
      %p80 = scmp.ne.s32.totalorder %s71, %s72
      %p81 = scmp.eq.s32.totalorder %s19, 0
      %p82 = por %p80, %p81
      %p83 = scmp.ne.s32.totalorder %s71, %s72
      %p84 = scmp.eq.s32.totalorder %s20, 1
      %p85 = por %p83, %p84
      %p87 = scmp.ne.s32.totalorder %s72, %s86
      %p88 = scmp.eq.s32.totalorder %s20, 0
      %p89 = por %p87, %p88
      %s91 = sadd.s32 %s90, 1
      %p94 = scmp.eq.s32.totalorder %s14, 1
      %p95 = scmp.ne.s32.totalorder %s90, %s92
      %p96 = scmp.eq.s32.totalorder %s14, 0
      %p97 = por %p95, %p96
      %p98 = scmp.ne.s32.totalorder %s90, %s92
      %p99 = scmp.eq.s32.totalorder %s19, 1
      %p100 = por %p98, %p99
      %p101 = scmp.ne.s32.totalorder %s92, %s93
      %p102 = scmp.eq.s32.totalorder %s19, 0
      %p103 = por %p101, %p102
      %p104 = scmp.ne.s32.totalorder %s92, %s93
      %p105 = scmp.eq.s32.totalorder %s20, 1
      %p106 = por %p104, %p105
      %p108 = scmp.ne.s32.totalorder %s93, %s107
      %p109 = scmp.eq.s32.totalorder %s20, 0
      %p110 = por %p108, %p109
      %s112 = sadd.s32 %s111, 1
      %p115 = scmp.eq.s32.totalorder %s14, 1
      %p116 = scmp.ne.s32.totalorder %s111, %s113
      %p117 = scmp.eq.s32.totalorder %s14, 0
      %p118 = por %p116, %p117
      %p119 = scmp.ne.s32.totalorder %s111, %s113
      %p120 = scmp.eq.s32.totalorder %s19, 1
      %p121 = por %p119, %p120
      %p122 = scmp.ne.s32.totalorder %s113, %s114
      %p123 = scmp.eq.s32.totalorder %s19, 0
      %p124 = por %p122, %p123
      %p125 = scmp.ne.s32.totalorder %s113, %s114
      %p126 = scmp.eq.s32.totalorder %s20, 1
      %p127 = por %p125, %p126
      %p129 = scmp.ne.s32.totalorder %s114, %s128
      %p130 = scmp.eq.s32.totalorder %s20, 0
      %p131 = por %p129, %p130
      %s132 = ssub.s32 %s14, %s21
      %p133 = scmp.eq.s32.totalorder %s132, 0
      %s135 = sadd.s32 %s134, 1
      %s136 = scalar_select %p133, %s134, %s135
      %p139 = pneg %p133
      %p140 = scmp.eq.s32.totalorder %s14, 1
      %p141 = por %p139, %p140
      %p142 = scmp.ne.s32.totalorder %s134, %s137
      %p143 = scmp.eq.s32.totalorder %s14, 0
      %p144 = por %p142, %p143
      %p145 = scmp.ne.s32.totalorder %s134, %s137
      %p146 = scmp.eq.s32.totalorder %s19, 1
      %p147 = por %p145, %p146
      %p148 = scmp.ne.s32.totalorder %s137, %s138
      %p149 = scmp.eq.s32.totalorder %s19, 0
      %p150 = por %p148, %p149
      %p151 = scmp.ne.s32.totalorder %s137, %s138
      %p152 = scmp.eq.s32.totalorder %s20, 1
      %p153 = por %p151, %p152
      %p155 = scmp.ne.s32.totalorder %s138, %s154
      %p156 = scmp.eq.s32.totalorder %s20, 0
      %p157 = por %p155, %p156
      %p158 = scmp.le.s32.totalorder 1, %s14
      %p159 = scmp.lt.s32.totalorder %s14, 3
      %p160 = pnand %p158, %p159
      %p161 = pneg %p160
      // Predicated region
      $region9: #{cnn_forward.2} parent=5 // pred_check
        _
      $region10: #{cnn_forward.2} parent=5 // pred_check_branch
        %163 = sbr.rel (%p160) target = $region12
      $region11: #{cnn_forward.2} parent=5 // pred_region
        %s164 = ssub.s32 %s14, 1
        // Predicated region
        $region13: #{cnn_forward.2} parent=11 // pred_check
          %p165 = pneg %p61
        $region14: #{cnn_forward.2} parent=11 // pred_check_branch
          %167 = sbr.rel (%p165) target = $region16
        $region15: #{cnn_forward.2} parent=11 // pred_region
          %s169 = ssub.s32 256, 256
          %170 = vsyncadd [#allocation4], %s169
          %s171 = sshll.u32 [#allocation3], 4
          %s172 = int_to_ptr.vmem [resolvable:$true] %s171
          %177 = dma.hbm_to_vmem [thread:$0]  %s1, 256, %s172, [#allocation4], 64, 64, 4
        $region16: #{cnn_forward.2} parent=11 // pred_fallthru
          _
        // Predicated region
        $region17: #{cnn_forward.2} parent=11 // pred_check
          %p178 = pneg %p82
        $region18: #{cnn_forward.2} parent=11 // pred_check_branch
          %180 = sbr.rel (%p178) target = $region20
        $region19: #{cnn_forward.2} parent=11 // pred_region
          %s182 = ssub.s32 16, 16
          %183 = vsyncadd [#allocation6], %s182
          %s185 = sshll.u32 [#allocation5], 4
          %s186 = int_to_ptr.vmem [resolvable:$true] %s185
          %188 = dma.hbm_to_vmem [thread:$0]  %s2, 16, %s186, [#allocation6]
        $region20: #{cnn_forward.2} parent=11 // pred_fallthru
          _
        // Predicated region
        $region21: #{cnn_forward.2} parent=11 // pred_check
          %p189 = pneg %p103
        $region22: #{cnn_forward.2} parent=11 // pred_check_branch
          %191 = sbr.rel (%p189) target = $region24
        $region23: #{cnn_forward.2} parent=11 // pred_region
          %s193 = ssub.s32 4608, 4608
          %194 = vsyncadd [#allocation6], %s193
          %s195 = sshll.u32 [#allocation7], 4
          %s196 = int_to_ptr.vmem [resolvable:$true] %s195
          %201 = dma.hbm_to_vmem [thread:$0]  %s3, 4608, %s196, [#allocation6], 128, 128, 8
        $region24: #{cnn_forward.2} parent=11 // pred_fallthru
          _
        // Predicated region
        $region25: #{cnn_forward.2} parent=11 // pred_check
          %p202 = pneg %p124
        $region26: #{cnn_forward.2} parent=11 // pred_check_branch
          %204 = sbr.rel (%p202) target = $region28
        $region27: #{cnn_forward.2} parent=11 // pred_region
          %s206 = ssub.s32 16, 16
          %207 = vsyncadd [#allocation9], %s206
          %s209 = sshll.u32 [#allocation8], 4
          %s210 = int_to_ptr.vmem [resolvable:$true] %s209
          %212 = dma.hbm_to_vmem [thread:$0]  %s4, 16, %s210, [#allocation9]
        $region28: #{cnn_forward.2} parent=11 // pred_fallthru
          _
      $region12: #{cnn_forward.2} parent=5 // pred_fallthru
        _
      %p213 = scmp.lt.s32.totalorder %s14, 2
      // Predicated region
      $region29: #{cnn_forward.2} parent=5 // pred_check
        %p214 = pneg %p213
      $region30: #{cnn_forward.2} parent=5 // pred_check_branch
        %216 = sbr.rel (%p214) target = $region32
      $region31: #{cnn_forward.2} parent=5 // pred_region
        // Predicated region
        $region33: #{cnn_forward.2} parent=31 // pred_check
          %p217 = pneg %p34
        $region34: #{cnn_forward.2} parent=31 // pred_check_branch
          %219 = sbr.rel (%p217) target = $region36
        $region35: #{cnn_forward.2} parent=31 // pred_region
          %p220 = scmp.lt.s32.totalorder %s14, 1
          %s221 = scalar_select %p220, %s14, 1
          %s222 = smul.addr %s221, 72
          %s223 = smul.addr %s222, 4
          %s224 = scalar_lea.vmem %s0, %s223
        $region36: #{cnn_forward.2} parent=31 // pred_fallthru
          _
      $region32: #{cnn_forward.2} parent=5 // pred_fallthru
        _
      %p225 = scmp.le.s32.totalorder 1, %s14
      %p226 = scmp.lt.s32.totalorder %s14, 3
      %p227 = pnand %p225, %p226
      %p228 = pneg %p227
      // Predicated region
      $region37: #{cnn_forward.2} parent=5 // pred_check
        _
      $region38: #{cnn_forward.2} parent=5 // pred_check_branch
        %230 = sbr.rel (%p227) target = $region40
      $region39: #{cnn_forward.2} parent=5 // pred_region
        %s231 = ssub.s32 %s14, 1
        // Predicated region
        $region41: #{cnn_forward.2} parent=39 // pred_check
          %p232 = pneg %p61
        $region42: #{cnn_forward.2} parent=39 // pred_check_branch
          %234 = sbr.rel (%p232) target = $region44
        $region43: #{cnn_forward.2} parent=39 // pred_region
          %235 = dma.done [#allocation4], 256
        $region44: #{cnn_forward.2} parent=39 // pred_fallthru
          _
        // Predicated region
        $region45: #{cnn_forward.2} parent=39 // pred_check
          %p236 = pneg %p82
        $region46: #{cnn_forward.2} parent=39 // pred_check_branch
          %238 = sbr.rel (%p236) target = $region48
        $region47: #{cnn_forward.2} parent=39 // pred_region
          %239 = dma.done [#allocation6], 16
        $region48: #{cnn_forward.2} parent=39 // pred_fallthru
          _
        // Predicated region
        $region49: #{cnn_forward.2} parent=39 // pred_check
          %p240 = pneg %p103
        $region50: #{cnn_forward.2} parent=39 // pred_check_branch
          %242 = sbr.rel (%p240) target = $region52
        $region51: #{cnn_forward.2} parent=39 // pred_region
          %243 = dma.done [#allocation6], 4608
        $region52: #{cnn_forward.2} parent=39 // pred_fallthru
          _
        // Predicated region
        $region53: #{cnn_forward.2} parent=39 // pred_check
          %p244 = pneg %p124
        $region54: #{cnn_forward.2} parent=39 // pred_check_branch
          %246 = sbr.rel (%p244) target = $region56
        $region55: #{cnn_forward.2} parent=39 // pred_region
          %247 = dma.done [#allocation9], 16
        $region56: #{cnn_forward.2} parent=39 // pred_fallthru
          _
        %p248 = scmp.lt.s32.totalorder %s19, 1
        %s249 = scalar_select %p248, %s19, 1
        %s250 = smul.addr %s249, 72
        %s251 = smul.addr %s250, 4
        %s252 = scalar_lea.vmem %s0, %s251
        %p253 = pneg %p40
        %p254 = pneg %p37
        %p255 = pneg %p61
        %p256 = pneg %p58
        %p257 = pneg %p82
        %p258 = pneg %p79
        %p259 = pneg %p103
        %p260 = pneg %p100
        %p261 = pneg %p124
        %p262 = pneg %p121
        %p263 = pneg %p150
        %p264 = pneg %p147
        %p265 = scmp.lt.s32.totalorder %s19, 1
        %s266 = scalar_select %p265, %s19, 1
        %s267 = smul.addr %s266, 18
        %s268 = smul.addr %s267, 4
        %s269 = scalar_lea.vmem %s5, %s268
        %p270 = scmp.lt.s32.totalorder %s19, 1
        %s271 = scalar_select %p270, %s19, 1
        %s272 = smul.addr %s271, 72
        %s273 = smul.addr %s272, 4
        %s274 = scalar_lea.vmem %s0, %s273
        %p275 = scmp.lt.s32.totalorder %s19, 1
        %s276 = scalar_select %p275, %s19, 1
        %s277 = smul.addr %s276, 18
        %s278 = smul.addr %s277, 4
        %s279 = scalar_lea.vmem %s5, %s278
        %v281 = vld [vmem:[%s274] sm:$0xf]
        %v282 = vld [vmem:[%s274 + $0x4] sm:$0xf]
        %v283 = vld [vmem:[%s274 + $0x8] sm:$0xf]
        %v284 = vld [vmem:[%s274 + $0xc] sm:$0xf]
        %v285 = vld [vmem:[%s274 + $0x10] sm:$0xf]
        %v286 = vld [vmem:[%s274 + $0x14] sm:$0xf]
        %v287 = vld [vmem:[%s274 + $0x18] sm:$0xf]
        %v288 = vld [vmem:[%s274 + $0x1c] sm:$0xf]
        %v289 = vld [vmem:[%s274 + $0x20] sm:$0xf]
        %v290 = vld [vmem:[%s274 + $0x24] sm:$0xf]
        %v291 = vld [vmem:[%s274 + $0x28] sm:$0xf]
        %v292 = vld [vmem:[%s274 + $0x2c] sm:$0xf]
        %v293 = vld [vmem:[%s274 + $0x30] sm:$0xf]
        %v294 = vld [vmem:[%s274 + $0x34] sm:$0xf]
        %v295 = vld [vmem:[%s274 + $0x38] sm:$0xf]
        %v296 = vld [vmem:[%s274 + $0x3c] sm:$0xf]
        %v297 = vld [vmem:[%s274 + $0x40] sm:$0xf]
        %v298 = vld [vmem:[%s274 + $0x44] sm:$0xf]
        %v299 = vld [vmem:[#allocation3] sm:$0xf]
        %v300 = vld [vmem:[#allocation3 + $0x4] sm:$0xf]
        %v301 = vld [vmem:[#allocation3 + $0x8] sm:$0xf]
        %v302 = vld [vmem:[#allocation3 + $0xc] sm:$0xf]
        %v303 = vld [vmem:[#allocation5] sm:$0x1]
        %v305 = vlaneseq
        %v306 = vshrl.u32 %v305, 7
        %v307 = vsub.s32 0, %v306
        %v308 = vrot.slane %v303, %v307
        %v328 = vunpack.c.l.b16 %v281
        %v329 = vunpack.c.l.b16 %v282
        %v330 = vunpack.c.l.b16 %v283
        %v331 = vunpack.c.l.b16 %v284
        %v332 = vunpack.c.l.b16 %v285
        %v333 = vunpack.c.l.b16 %v286
        %v334 = vunpack.c.l.b16 %v287
        %v335 = vunpack.c.l.b16 %v288
        %v336 = vunpack.c.l.b16 %v289
        %v337 = vunpack.c.l.b16 %v290
        %v338 = vunpack.c.l.b16 %v291
        %v339 = vunpack.c.l.b16 %v292
        %v340 = vunpack.c.l.b16 %v293
        %v341 = vunpack.c.l.b16 %v294
        %v342 = vunpack.c.l.b16 %v295
        %v343 = vunpack.c.l.b16 %v296
        %v344 = vunpack.c.l.b16 %v297
        %v345 = vunpack.c.l.b16 %v298
        %v346 = vpack.c.b16 %v329, %v328
        %v347 = vpack.c.b16 %v331, %v330
        %v348 = vpack.c.b16 %v333, %v332
        %v349 = vpack.c.b16 %v335, %v334
        %v350 = vpack.c.b16 %v337, %v336
        %v351 = vpack.c.b16 %v339, %v338
        %v352 = vpack.c.b16 %v341, %v340
        %v353 = vpack.c.b16 %v343, %v342
        %v354 = vpack.c.b16 %v345, %v344
        %v359 = vunpack.c.l.b16 %v299
        %v360 = vunpack.c.l.b16 %v300
        %v361 = vunpack.c.l.b16 %v301
        %v362 = vunpack.c.l.b16 %v302
        %v363 = vpack.c.b16 %v360, %v359
        %v364 = vpack.c.b16 %v362, %v361
        %vm367 = vcmask 261120
        %v369 = vsel %vm367, %v346, 0
        %v372 = vsel %vm367, %v347, 0
        %v375 = vsel %vm367, %v348, 0
        %v378 = vsel %vm367, %v349, 0
        %v381 = vsel %vm367, %v350, 0
        %v384 = vsel %vm367, %v351, 0
        %v387 = vsel %vm367, %v352, 0
        %v390 = vsel %vm367, %v353, 0
        %v393 = vsel %vm367, %v354, 0
        %395 = vmatprep.subr.bf16.mxu0 0
        %396 = vmatpush1.bf16.msra.mxu0 0
        %397 = vmatprep.subr.bf16.mxu0 0
        %398 = vmatpush1.bf16.msra.mxu0 0
        %399 = vmatprep.subr.bf16.mxu0 0
        %400 = vmatpush1.bf16.msra.mxu0 0
        %401 = vmatprep.subr.bf16.mxu0 0
        %402 = vmatpush1.bf16.msra.mxu0 0
        %403 = vmatprep.subr.bf16.mxu0 0
        %404 = vmatpush1.bf16.msra.mxu0 0
        %405 = vmatprep.subr.bf16.mxu0 0
        %406 = vmatpush1.bf16.msra.mxu0 0
        %407 = vmatprep.subr.bf16.mxu0 0
        %408 = vmatpush1.bf16.msra.mxu0 %v364
        %409 = vmatprep.subr.bf16.mxu0 0
        %410 = vmatpush1.bf16.msra.mxu0 %v363
        %411 = vmatprep.subr.bf16.mxu0 0
        %412 = vmatpush2.bf16.msra.mxu0 0
        %413 = vmatprep.subr.bf16.mxu0 0
        %414 = vmatpush2.bf16.msra.mxu0 0
        %415 = vmatprep.subr.bf16.mxu0 0
        %416 = vmatpush2.bf16.msra.mxu0 0
        %417 = vmatprep.subr.bf16.mxu0 0
        %418 = vmatpush2.bf16.msra.mxu0 0
        %419 = vmatprep.subr.bf16.mxu0 0
        %420 = vmatpush2.bf16.msra.mxu0 0
        %421 = vmatprep.subr.bf16.mxu0 0
        %422 = vmatpush2.bf16.msra.mxu0 0
        %423 = vmatprep.subr.bf16.mxu0 0
        %424 = vmatpush2.bf16.msra.mxu0 0
        %425 = vmatprep.subr.bf16.mxu0 0
        %426 = vmatpush2.bf16.msra.mxu0 0
        %427 = vmatprep.mubr.bf16.mxu0 0
        %428 = vmatmul.mubr.bf16.gmra.mxu0 %v369
        %v429 = vpop.f32.mrf.mxu0
        %v430 = vadd.f32 %v308, %v429
        %v431 = vpop.f32.mrf.mxu0
        %v432 = vpop.f32.mrf.mxu0
        %v433 = vadd.f32 %v308, %v432
        %v434 = vpop.f32.mrf.mxu0
        %435 = vmatprep.mubr.bf16.mxu0 0
        %436 = vmatmul.mubr.bf16.gmra.mxu0 %v372
        %v437 = vpop.f32.mrf.mxu0
        %v438 = vadd.f32 %v308, %v437
        %v439 = vpop.f32.mrf.mxu0
        %v440 = vpop.f32.mrf.mxu0
        %v441 = vadd.f32 %v308, %v440
        %v442 = vpop.f32.mrf.mxu0
        %443 = vmatprep.mubr.bf16.mxu0 0
        %444 = vmatmul.mubr.bf16.gmra.mxu0 %v375
        %v445 = vpop.f32.mrf.mxu0
        %v446 = vadd.f32 %v308, %v445
        %v447 = vpop.f32.mrf.mxu0
        %v448 = vpop.f32.mrf.mxu0
        %v449 = vadd.f32 %v308, %v448
        %v450 = vpop.f32.mrf.mxu0
        %451 = vmatprep.mubr.bf16.mxu0 0
        %452 = vmatmul.mubr.bf16.gmra.mxu0 %v378
        %v453 = vpop.f32.mrf.mxu0
        %v454 = vadd.f32 %v308, %v453
        %v455 = vpop.f32.mrf.mxu0
        %v456 = vpop.f32.mrf.mxu0
        %v457 = vadd.f32 %v308, %v456
        %v458 = vpop.f32.mrf.mxu0
        %459 = vmatprep.mubr.bf16.mxu0 0
        %460 = vmatmul.mubr.bf16.gmra.mxu0 %v381
        %v461 = vpop.f32.mrf.mxu0
        %v462 = vadd.f32 %v308, %v461
        %v463 = vpop.f32.mrf.mxu0
        %v464 = vpop.f32.mrf.mxu0
        %v465 = vadd.f32 %v308, %v464
        %v466 = vpop.f32.mrf.mxu0
        %467 = vmatprep.mubr.bf16.mxu0 0
        %468 = vmatmul.mubr.bf16.gmra.mxu0 %v384
        %v469 = vpop.f32.mrf.mxu0
        %v470 = vadd.f32 %v308, %v469
        %v471 = vpop.f32.mrf.mxu0
        %v472 = vpop.f32.mrf.mxu0
        %v473 = vadd.f32 %v308, %v472
        %v474 = vpop.f32.mrf.mxu0
        %475 = vmatprep.mubr.bf16.mxu0 0
        %476 = vmatmul.mubr.bf16.gmra.mxu0 %v387
        %v477 = vpop.f32.mrf.mxu0
        %v478 = vadd.f32 %v308, %v477
        %v479 = vpop.f32.mrf.mxu0
        %v480 = vpop.f32.mrf.mxu0
        %v481 = vadd.f32 %v308, %v480
        %v482 = vpop.f32.mrf.mxu0
        %483 = vmatprep.mubr.bf16.mxu0 0
        %484 = vmatmul.mubr.bf16.gmra.mxu0 %v390
        %v485 = vpop.f32.mrf.mxu0
        %v486 = vadd.f32 %v308, %v485
        %v487 = vpop.f32.mrf.mxu0
        %v488 = vpop.f32.mrf.mxu0
        %v489 = vadd.f32 %v308, %v488
        %v490 = vpop.f32.mrf.mxu0
        %491 = vmatprep.mubr.bf16.mxu0 0
        %492 = vmatmul.mubr.bf16.gmra.mxu0 %v393
        %v493 = vpop.f32.mrf.mxu0
        %v494 = vadd.f32 %v308, %v493
        %v495 = vpop.f32.mrf.mxu0
        %v496 = vpop.f32.mrf.mxu0
        %v497 = vadd.f32 %v308, %v496
        %v498 = vpop.f32.mrf.mxu0
        %499 = vdwg.mxu0
        %v500 = vmax.f32 %v430, 0.0
        %v501 = vmax.f32 %v433, 0.0
        %v502 = vmax.f32 %v438, 0.0
        %v503 = vmax.f32 %v441, 0.0
        %v504 = vmax.f32 %v446, 0.0
        %v505 = vmax.f32 %v449, 0.0
        %v506 = vmax.f32 %v454, 0.0
        %v507 = vmax.f32 %v457, 0.0
        %v508 = vmax.f32 %v462, 0.0
        %v509 = vmax.f32 %v465, 0.0
        %v510 = vmax.f32 %v470, 0.0
        %v511 = vmax.f32 %v473, 0.0
        %v512 = vmax.f32 %v478, 0.0
        %v513 = vmax.f32 %v481, 0.0
        %v514 = vmax.f32 %v486, 0.0
        %v515 = vmax.f32 %v489, 0.0
        %v516 = vmax.f32 %v494, 0.0
        %v517 = vmax.f32 %v497, 0.0
        %518 = vst.msk [vmem:[#allocation2] sm:$0xff] %vm367, %v500
        %519 = vst.msk [vmem:[#allocation2 + $0x8] sm:$0xff] %vm367, %v501
        %520 = vst.msk [vmem:[#allocation2 + $0x10] sm:$0xff] %vm367, %v502
        %521 = vst.msk [vmem:[#allocation2 + $0x18] sm:$0xff] %vm367, %v503
        %522 = vst.msk [vmem:[#allocation2 + $0x20] sm:$0xff] %vm367, %v504
        %523 = vst.msk [vmem:[#allocation2 + $0x28] sm:$0xff] %vm367, %v505
        %524 = vst.msk [vmem:[#allocation2 + $0x30] sm:$0xff] %vm367, %v506
        %525 = vst.msk [vmem:[#allocation2 + $0x38] sm:$0xff] %vm367, %v507
        %526 = vst.msk [vmem:[#allocation2 + $0x40] sm:$0xff] %vm367, %v508
        %527 = vst.msk [vmem:[#allocation2 + $0x48] sm:$0xff] %vm367, %v509
        %528 = vst.msk [vmem:[#allocation2 + $0x50] sm:$0xff] %vm367, %v510
        %529 = vst.msk [vmem:[#allocation2 + $0x58] sm:$0xff] %vm367, %v511
        %530 = vst.msk [vmem:[#allocation2 + $0x60] sm:$0xff] %vm367, %v512
        %531 = vst.msk [vmem:[#allocation2 + $0x68] sm:$0xff] %vm367, %v513
        %532 = vst.msk [vmem:[#allocation2 + $0x70] sm:$0xff] %vm367, %v514
        %533 = vst.msk [vmem:[#allocation2 + $0x78] sm:$0xff] %vm367, %v515
        %534 = vst.msk [vmem:[#allocation2 + $0x80] sm:$0xff] %vm367, %v516
        %535 = vst.msk [vmem:[#allocation2 + $0x88] sm:$0xff] %vm367, %v517
        %v536 = vld [vmem:[%s274 + $0x48] sm:$0xf]
        %v537 = vld [vmem:[%s274 + $0x4c] sm:$0xf]
        %v538 = vld [vmem:[%s274 + $0x50] sm:$0xf]
        %v539 = vld [vmem:[%s274 + $0x54] sm:$0xf]
        %v540 = vld [vmem:[%s274 + $0x58] sm:$0xf]
        %v541 = vld [vmem:[%s274 + $0x5c] sm:$0xf]
        %v542 = vld [vmem:[%s274 + $0x60] sm:$0xf]
        %v543 = vld [vmem:[%s274 + $0x64] sm:$0xf]
        %v544 = vld [vmem:[%s274 + $0x68] sm:$0xf]
        %v545 = vld [vmem:[%s274 + $0x6c] sm:$0xf]
        %v546 = vld [vmem:[%s274 + $0x70] sm:$0xf]
        %v547 = vld [vmem:[%s274 + $0x74] sm:$0xf]
        %v548 = vld [vmem:[%s274 + $0x78] sm:$0xf]
        %v549 = vld [vmem:[%s274 + $0x7c] sm:$0xf]
        %v550 = vld [vmem:[%s274 + $0x80] sm:$0xf]
        %v551 = vld [vmem:[%s274 + $0x84] sm:$0xf]
        %v552 = vld [vmem:[%s274 + $0x88] sm:$0xf]
        %v553 = vld [vmem:[%s274 + $0x8c] sm:$0xf]
        %v554 = vld [vmem:[#allocation3] sm:$0xf]
        %v555 = vld [vmem:[#allocation3 + $0x4] sm:$0xf]
        %v556 = vld [vmem:[#allocation3 + $0x8] sm:$0xf]
        %v557 = vld [vmem:[#allocation3 + $0xc] sm:$0xf]
        %v558 = vld [vmem:[#allocation5] sm:$0x1]
        %v560 = vlaneseq
        %v561 = vshrl.u32 %v560, 7
        %v562 = vsub.s32 0, %v561
        %v563 = vrot.slane %v558, %v562
        %v583 = vunpack.c.l.b16 %v536
        %v584 = vunpack.c.l.b16 %v537
        %v585 = vunpack.c.l.b16 %v538
        %v586 = vunpack.c.l.b16 %v539
        %v587 = vunpack.c.l.b16 %v540
        %v588 = vunpack.c.l.b16 %v541
        %v589 = vunpack.c.l.b16 %v542
        %v590 = vunpack.c.l.b16 %v543
        %v591 = vunpack.c.l.b16 %v544
        %v592 = vunpack.c.l.b16 %v545
        %v593 = vunpack.c.l.b16 %v546
        %v594 = vunpack.c.l.b16 %v547
        %v595 = vunpack.c.l.b16 %v548
        %v596 = vunpack.c.l.b16 %v549
        %v597 = vunpack.c.l.b16 %v550
        %v598 = vunpack.c.l.b16 %v551
        %v599 = vunpack.c.l.b16 %v552
        %v600 = vunpack.c.l.b16 %v553
        %v601 = vpack.c.b16 %v584, %v583
        %v602 = vpack.c.b16 %v586, %v585
        %v603 = vpack.c.b16 %v588, %v587
        %v604 = vpack.c.b16 %v590, %v589
        %v605 = vpack.c.b16 %v592, %v591
        %v606 = vpack.c.b16 %v594, %v593
        %v607 = vpack.c.b16 %v596, %v595
        %v608 = vpack.c.b16 %v598, %v597
        %v609 = vpack.c.b16 %v600, %v599
        %v614 = vunpack.c.l.b16 %v554
        %v615 = vunpack.c.l.b16 %v555
        %v616 = vunpack.c.l.b16 %v556
        %v617 = vunpack.c.l.b16 %v557
        %v618 = vpack.c.b16 %v615, %v614
        %v619 = vpack.c.b16 %v617, %v616
        %v623 = vsel %vm367, %v601, 0
        %v626 = vsel %vm367, %v602, 0
        %v629 = vsel %vm367, %v603, 0
        %v632 = vsel %vm367, %v604, 0
        %v635 = vsel %vm367, %v605, 0
        %v638 = vsel %vm367, %v606, 0
        %v641 = vsel %vm367, %v607, 0
        %v644 = vsel %vm367, %v608, 0
        %v647 = vsel %vm367, %v609, 0
        %649 = vmatprep.subr.bf16.mxu0 0
        %650 = vmatpush1.bf16.msra.mxu0 0
        %651 = vmatprep.subr.bf16.mxu0 0
        %652 = vmatpush1.bf16.msra.mxu0 0
        %653 = vmatprep.subr.bf16.mxu0 0
        %654 = vmatpush1.bf16.msra.mxu0 0
        %655 = vmatprep.subr.bf16.mxu0 0
        %656 = vmatpush1.bf16.msra.mxu0 0
        %657 = vmatprep.subr.bf16.mxu0 0
        %658 = vmatpush1.bf16.msra.mxu0 0
        %659 = vmatprep.subr.bf16.mxu0 0
        %660 = vmatpush1.bf16.msra.mxu0 0
        %661 = vmatprep.subr.bf16.mxu0 0
        %662 = vmatpush1.bf16.msra.mxu0 %v619
        %663 = vmatprep.subr.bf16.mxu0 0
        %664 = vmatpush1.bf16.msra.mxu0 %v618
        %665 = vmatprep.subr.bf16.mxu0 0
        %666 = vmatpush2.bf16.msra.mxu0 0
        %667 = vmatprep.subr.bf16.mxu0 0
        %668 = vmatpush2.bf16.msra.mxu0 0
        %669 = vmatprep.subr.bf16.mxu0 0
        %670 = vmatpush2.bf16.msra.mxu0 0
        %671 = vmatprep.subr.bf16.mxu0 0
        %672 = vmatpush2.bf16.msra.mxu0 0
        %673 = vmatprep.subr.bf16.mxu0 0
        %674 = vmatpush2.bf16.msra.mxu0 0
        %675 = vmatprep.subr.bf16.mxu0 0
        %676 = vmatpush2.bf16.msra.mxu0 0
        %677 = vmatprep.subr.bf16.mxu0 0
        %678 = vmatpush2.bf16.msra.mxu0 0
        %679 = vmatprep.subr.bf16.mxu0 0
        %680 = vmatpush2.bf16.msra.mxu0 0
        %681 = vmatprep.mubr.bf16.mxu0 0
        %682 = vmatmul.mubr.bf16.gmra.mxu0 %v623
        %v683 = vpop.f32.mrf.mxu0
        %v684 = vadd.f32 %v563, %v683
        %v685 = vpop.f32.mrf.mxu0
        %v686 = vpop.f32.mrf.mxu0
        %v687 = vadd.f32 %v563, %v686
        %v688 = vpop.f32.mrf.mxu0
        %689 = vmatprep.mubr.bf16.mxu0 0
        %690 = vmatmul.mubr.bf16.gmra.mxu0 %v626
        %v691 = vpop.f32.mrf.mxu0
        %v692 = vadd.f32 %v563, %v691
        %v693 = vpop.f32.mrf.mxu0
        %v694 = vpop.f32.mrf.mxu0
        %v695 = vadd.f32 %v563, %v694
        %v696 = vpop.f32.mrf.mxu0
        %697 = vmatprep.mubr.bf16.mxu0 0
        %698 = vmatmul.mubr.bf16.gmra.mxu0 %v629
        %v699 = vpop.f32.mrf.mxu0
        %v700 = vadd.f32 %v563, %v699
        %v701 = vpop.f32.mrf.mxu0
        %v702 = vpop.f32.mrf.mxu0
        %v703 = vadd.f32 %v563, %v702
        %v704 = vpop.f32.mrf.mxu0
        %705 = vmatprep.mubr.bf16.mxu0 0
        %706 = vmatmul.mubr.bf16.gmra.mxu0 %v632
        %v707 = vpop.f32.mrf.mxu0
        %v708 = vadd.f32 %v563, %v707
        %v709 = vpop.f32.mrf.mxu0
        %v710 = vpop.f32.mrf.mxu0
        %v711 = vadd.f32 %v563, %v710
        %v712 = vpop.f32.mrf.mxu0
        %713 = vmatprep.mubr.bf16.mxu0 0
        %714 = vmatmul.mubr.bf16.gmra.mxu0 %v635
        %v715 = vpop.f32.mrf.mxu0
        %v716 = vadd.f32 %v563, %v715
        %v717 = vpop.f32.mrf.mxu0
        %v718 = vpop.f32.mrf.mxu0
        %v719 = vadd.f32 %v563, %v718
        %v720 = vpop.f32.mrf.mxu0
        %721 = vmatprep.mubr.bf16.mxu0 0
        %722 = vmatmul.mubr.bf16.gmra.mxu0 %v638
        %v723 = vpop.f32.mrf.mxu0
        %v724 = vadd.f32 %v563, %v723
        %v725 = vpop.f32.mrf.mxu0
        %v726 = vpop.f32.mrf.mxu0
        %v727 = vadd.f32 %v563, %v726
        %v728 = vpop.f32.mrf.mxu0
        %729 = vmatprep.mubr.bf16.mxu0 0
        %730 = vmatmul.mubr.bf16.gmra.mxu0 %v641
        %v731 = vpop.f32.mrf.mxu0
        %v732 = vadd.f32 %v563, %v731
        %v733 = vpop.f32.mrf.mxu0
        %v734 = vpop.f32.mrf.mxu0
        %v735 = vadd.f32 %v563, %v734
        %v736 = vpop.f32.mrf.mxu0
        %737 = vmatprep.mubr.bf16.mxu0 0
        %738 = vmatmul.mubr.bf16.gmra.mxu0 %v644
        %v739 = vpop.f32.mrf.mxu0
        %v740 = vadd.f32 %v563, %v739
        %v741 = vpop.f32.mrf.mxu0
        %v742 = vpop.f32.mrf.mxu0
        %v743 = vadd.f32 %v563, %v742
        %v744 = vpop.f32.mrf.mxu0
        %745 = vmatprep.mubr.bf16.mxu0 0
        %746 = vmatmul.mubr.bf16.gmra.mxu0 %v647
        %v747 = vpop.f32.mrf.mxu0
        %v748 = vadd.f32 %v563, %v747
        %v749 = vpop.f32.mrf.mxu0
        %v750 = vpop.f32.mrf.mxu0
        %v751 = vadd.f32 %v563, %v750
        %v752 = vpop.f32.mrf.mxu0
        %753 = vdwg.mxu0
        %v754 = vmax.f32 %v684, 0.0
        %v755 = vmax.f32 %v687, 0.0
        %v756 = vmax.f32 %v692, 0.0
        %v757 = vmax.f32 %v695, 0.0
        %v758 = vmax.f32 %v700, 0.0
        %v759 = vmax.f32 %v703, 0.0
        %v760 = vmax.f32 %v708, 0.0
        %v761 = vmax.f32 %v711, 0.0
        %v762 = vmax.f32 %v716, 0.0
        %v763 = vmax.f32 %v719, 0.0
        %v764 = vmax.f32 %v724, 0.0
        %v765 = vmax.f32 %v727, 0.0
        %v766 = vmax.f32 %v732, 0.0
        %v767 = vmax.f32 %v735, 0.0
        %v768 = vmax.f32 %v740, 0.0
        %v769 = vmax.f32 %v743, 0.0
        %v770 = vmax.f32 %v748, 0.0
        %v771 = vmax.f32 %v751, 0.0
        %772 = vst.msk [vmem:[#allocation2 + $0x90] sm:$0xff] %vm367, %v754
        %773 = vst.msk [vmem:[#allocation2 + $0x98] sm:$0xff] %vm367, %v755
        %774 = vst.msk [vmem:[#allocation2 + $0xa0] sm:$0xff] %vm367, %v756
        %775 = vst.msk [vmem:[#allocation2 + $0xa8] sm:$0xff] %vm367, %v757
        %776 = vst.msk [vmem:[#allocation2 + $0xb0] sm:$0xff] %vm367, %v758
        %777 = vst.msk [vmem:[#allocation2 + $0xb8] sm:$0xff] %vm367, %v759
        %778 = vst.msk [vmem:[#allocation2 + $0xc0] sm:$0xff] %vm367, %v760
        %779 = vst.msk [vmem:[#allocation2 + $0xc8] sm:$0xff] %vm367, %v761
        %780 = vst.msk [vmem:[#allocation2 + $0xd0] sm:$0xff] %vm367, %v762
        %781 = vst.msk [vmem:[#allocation2 + $0xd8] sm:$0xff] %vm367, %v763
        %782 = vst.msk [vmem:[#allocation2 + $0xe0] sm:$0xff] %vm367, %v764
        %783 = vst.msk [vmem:[#allocation2 + $0xe8] sm:$0xff] %vm367, %v765
        %784 = vst.msk [vmem:[#allocation2 + $0xf0] sm:$0xff] %vm367, %v766
        %785 = vst.msk [vmem:[#allocation2 + $0xf8] sm:$0xff] %vm367, %v767
        %786 = vst.msk [vmem:[#allocation2 + $0x100] sm:$0xff] %vm367, %v768
        %787 = vst.msk [vmem:[#allocation2 + $0x108] sm:$0xff] %vm367, %v769
        %788 = vst.msk [vmem:[#allocation2 + $0x110] sm:$0xff] %vm367, %v770
        %789 = vst.msk [vmem:[#allocation2 + $0x118] sm:$0xff] %vm367, %v771
        %v790 = vld [vmem:[%s274 + $0x90] sm:$0xf]
        %v791 = vld [vmem:[%s274 + $0x94] sm:$0xf]
        %v792 = vld [vmem:[%s274 + $0x98] sm:$0xf]
        %v793 = vld [vmem:[%s274 + $0x9c] sm:$0xf]
        %v794 = vld [vmem:[%s274 + $0xa0] sm:$0xf]
        %v795 = vld [vmem:[%s274 + $0xa4] sm:$0xf]
        %v796 = vld [vmem:[%s274 + $0xa8] sm:$0xf]
        %v797 = vld [vmem:[%s274 + $0xac] sm:$0xf]
        %v798 = vld [vmem:[%s274 + $0xb0] sm:$0xf]
        %v799 = vld [vmem:[%s274 + $0xb4] sm:$0xf]
        %v800 = vld [vmem:[%s274 + $0xb8] sm:$0xf]
        %v801 = vld [vmem:[%s274 + $0xbc] sm:$0xf]
        %v802 = vld [vmem:[%s274 + $0xc0] sm:$0xf]
        %v803 = vld [vmem:[%s274 + $0xc4] sm:$0xf]
        %v804 = vld [vmem:[%s274 + $0xc8] sm:$0xf]
        %v805 = vld [vmem:[%s274 + $0xcc] sm:$0xf]
        %v806 = vld [vmem:[%s274 + $0xd0] sm:$0xf]
        %v807 = vld [vmem:[%s274 + $0xd4] sm:$0xf]
        %v808 = vld [vmem:[#allocation3] sm:$0xf]
        %v809 = vld [vmem:[#allocation3 + $0x4] sm:$0xf]
        %v810 = vld [vmem:[#allocation3 + $0x8] sm:$0xf]
        %v811 = vld [vmem:[#allocation3 + $0xc] sm:$0xf]
        %v812 = vld [vmem:[#allocation5] sm:$0x1]
        %v814 = vlaneseq
        %v815 = vshrl.u32 %v814, 7
        %v816 = vsub.s32 0, %v815
        %v817 = vrot.slane %v812, %v816
        %v837 = vunpack.c.l.b16 %v790
        %v838 = vunpack.c.l.b16 %v791
        %v839 = vunpack.c.l.b16 %v792
        %v840 = vunpack.c.l.b16 %v793
        %v841 = vunpack.c.l.b16 %v794
        %v842 = vunpack.c.l.b16 %v795
        %v843 = vunpack.c.l.b16 %v796
        %v844 = vunpack.c.l.b16 %v797
        %v845 = vunpack.c.l.b16 %v798
        %v846 = vunpack.c.l.b16 %v799
        %v847 = vunpack.c.l.b16 %v800
        %v848 = vunpack.c.l.b16 %v801
        %v849 = vunpack.c.l.b16 %v802
        %v850 = vunpack.c.l.b16 %v803
        %v851 = vunpack.c.l.b16 %v804
        %v852 = vunpack.c.l.b16 %v805
        %v853 = vunpack.c.l.b16 %v806
        %v854 = vunpack.c.l.b16 %v807
        %v855 = vpack.c.b16 %v838, %v837
        %v856 = vpack.c.b16 %v840, %v839
        %v857 = vpack.c.b16 %v842, %v841
        %v858 = vpack.c.b16 %v844, %v843
        %v859 = vpack.c.b16 %v846, %v845
        %v860 = vpack.c.b16 %v848, %v847
        %v861 = vpack.c.b16 %v850, %v849
        %v862 = vpack.c.b16 %v852, %v851
        %v863 = vpack.c.b16 %v854, %v853
        %v868 = vunpack.c.l.b16 %v808
        %v869 = vunpack.c.l.b16 %v809
        %v870 = vunpack.c.l.b16 %v810
        %v871 = vunpack.c.l.b16 %v811
        %v872 = vpack.c.b16 %v869, %v868
        %v873 = vpack.c.b16 %v871, %v870
        %v877 = vsel %vm367, %v855, 0
        %v880 = vsel %vm367, %v856, 0
        %v883 = vsel %vm367, %v857, 0
        %v886 = vsel %vm367, %v858, 0
        %v889 = vsel %vm367, %v859, 0
        %v892 = vsel %vm367, %v860, 0
        %v895 = vsel %vm367, %v861, 0
        %v898 = vsel %vm367, %v862, 0
        %v901 = vsel %vm367, %v863, 0
        %903 = vmatprep.subr.bf16.mxu0 0
        %904 = vmatpush1.bf16.msra.mxu0 0
        %905 = vmatprep.subr.bf16.mxu0 0
        %906 = vmatpush1.bf16.msra.mxu0 0
        %907 = vmatprep.subr.bf16.mxu0 0
        %908 = vmatpush1.bf16.msra.mxu0 0
        %909 = vmatprep.subr.bf16.mxu0 0
        %910 = vmatpush1.bf16.msra.mxu0 0
        %911 = vmatprep.subr.bf16.mxu0 0
        %912 = vmatpush1.bf16.msra.mxu0 0
        %913 = vmatprep.subr.bf16.mxu0 0
        %914 = vmatpush1.bf16.msra.mxu0 0
        %915 = vmatprep.subr.bf16.mxu0 0
        %916 = vmatpush1.bf16.msra.mxu0 %v873
        %917 = vmatprep.subr.bf16.mxu0 0
        %918 = vmatpush1.bf16.msra.mxu0 %v872
        %919 = vmatprep.subr.bf16.mxu0 0
        %920 = vmatpush2.bf16.msra.mxu0 0
        %921 = vmatprep.subr.bf16.mxu0 0
        %922 = vmatpush2.bf16.msra.mxu0 0
        %923 = vmatprep.subr.bf16.mxu0 0
        %924 = vmatpush2.bf16.msra.mxu0 0
        %925 = vmatprep.subr.bf16.mxu0 0
        %926 = vmatpush2.bf16.msra.mxu0 0
        %927 = vmatprep.subr.bf16.mxu0 0
        %928 = vmatpush2.bf16.msra.mxu0 0
        %929 = vmatprep.subr.bf16.mxu0 0
        %930 = vmatpush2.bf16.msra.mxu0 0
        %931 = vmatprep.subr.bf16.mxu0 0
        %932 = vmatpush2.bf16.msra.mxu0 0
        %933 = vmatprep.subr.bf16.mxu0 0
        %934 = vmatpush2.bf16.msra.mxu0 0
        %935 = vmatprep.mubr.bf16.mxu0 0
        %936 = vmatmul.mubr.bf16.gmra.mxu0 %v877
        %v937 = vpop.f32.mrf.mxu0
        %v938 = vadd.f32 %v817, %v937
        %v939 = vpop.f32.mrf.mxu0
        %v940 = vpop.f32.mrf.mxu0
        %v941 = vadd.f32 %v817, %v940
        %v942 = vpop.f32.mrf.mxu0
        %943 = vmatprep.mubr.bf16.mxu0 0
        %944 = vmatmul.mubr.bf16.gmra.mxu0 %v880
        %v945 = vpop.f32.mrf.mxu0
        %v946 = vadd.f32 %v817, %v945
        %v947 = vpop.f32.mrf.mxu0
        %v948 = vpop.f32.mrf.mxu0
        %v949 = vadd.f32 %v817, %v948
        %v950 = vpop.f32.mrf.mxu0
        %951 = vmatprep.mubr.bf16.mxu0 0
        %952 = vmatmul.mubr.bf16.gmra.mxu0 %v883
        %v953 = vpop.f32.mrf.mxu0
        %v954 = vadd.f32 %v817, %v953
        %v955 = vpop.f32.mrf.mxu0
        %v956 = vpop.f32.mrf.mxu0
        %v957 = vadd.f32 %v817, %v956
        %v958 = vpop.f32.mrf.mxu0
        %959 = vmatprep.mubr.bf16.mxu0 0
        %960 = vmatmul.mubr.bf16.gmra.mxu0 %v886
        %v961 = vpop.f32.mrf.mxu0
        %v962 = vadd.f32 %v817, %v961
        %v963 = vpop.f32.mrf.mxu0
        %v964 = vpop.f32.mrf.mxu0
        %v965 = vadd.f32 %v817, %v964
        %v966 = vpop.f32.mrf.mxu0
        %967 = vmatprep.mubr.bf16.mxu0 0
        %968 = vmatmul.mubr.bf16.gmra.mxu0 %v889
        %v969 = vpop.f32.mrf.mxu0
        %v970 = vadd.f32 %v817, %v969
        %v971 = vpop.f32.mrf.mxu0
        %v972 = vpop.f32.mrf.mxu0
        %v973 = vadd.f32 %v817, %v972
        %v974 = vpop.f32.mrf.mxu0
        %975 = vmatprep.mubr.bf16.mxu0 0
        %976 = vmatmul.mubr.bf16.gmra.mxu0 %v892
        %v977 = vpop.f32.mrf.mxu0
        %v978 = vadd.f32 %v817, %v977
        %v979 = vpop.f32.mrf.mxu0
        %v980 = vpop.f32.mrf.mxu0
        %v981 = vadd.f32 %v817, %v980
        %v982 = vpop.f32.mrf.mxu0
        %983 = vmatprep.mubr.bf16.mxu0 0
        %984 = vmatmul.mubr.bf16.gmra.mxu0 %v895
        %v985 = vpop.f32.mrf.mxu0
        %v986 = vadd.f32 %v817, %v985
        %v987 = vpop.f32.mrf.mxu0
        %v988 = vpop.f32.mrf.mxu0
        %v989 = vadd.f32 %v817, %v988
        %v990 = vpop.f32.mrf.mxu0
        %991 = vmatprep.mubr.bf16.mxu0 0
        %992 = vmatmul.mubr.bf16.gmra.mxu0 %v898
        %v993 = vpop.f32.mrf.mxu0
        %v994 = vadd.f32 %v817, %v993
        %v995 = vpop.f32.mrf.mxu0
        %v996 = vpop.f32.mrf.mxu0
        %v997 = vadd.f32 %v817, %v996
        %v998 = vpop.f32.mrf.mxu0
        %999 = vmatprep.mubr.bf16.mxu0 0
        %1000 = vmatmul.mubr.bf16.gmra.mxu0 %v901
        %v1001 = vpop.f32.mrf.mxu0
        %v1002 = vadd.f32 %v817, %v1001
        %v1003 = vpop.f32.mrf.mxu0
        %v1004 = vpop.f32.mrf.mxu0
        %v1005 = vadd.f32 %v817, %v1004
        %v1006 = vpop.f32.mrf.mxu0
        %1007 = vdwg.mxu0
        %v1008 = vmax.f32 %v938, 0.0
        %v1009 = vmax.f32 %v941, 0.0
        %v1010 = vmax.f32 %v946, 0.0
        %v1011 = vmax.f32 %v949, 0.0
        %v1012 = vmax.f32 %v954, 0.0
        %v1013 = vmax.f32 %v957, 0.0
        %v1014 = vmax.f32 %v962, 0.0
        %v1015 = vmax.f32 %v965, 0.0
        %v1016 = vmax.f32 %v970, 0.0
        %v1017 = vmax.f32 %v973, 0.0
        %v1018 = vmax.f32 %v978, 0.0
        %v1019 = vmax.f32 %v981, 0.0
        %v1020 = vmax.f32 %v986, 0.0
        %v1021 = vmax.f32 %v989, 0.0
        %v1022 = vmax.f32 %v994, 0.0
        %v1023 = vmax.f32 %v997, 0.0
        %v1024 = vmax.f32 %v1002, 0.0
        %v1025 = vmax.f32 %v1005, 0.0
        %1026 = vst.msk [vmem:[#allocation2 + $0x120] sm:$0xff] %vm367, %v1008
        %1027 = vst.msk [vmem:[#allocation2 + $0x128] sm:$0xff] %vm367, %v1009
        %1028 = vst.msk [vmem:[#allocation2 + $0x130] sm:$0xff] %vm367, %v1010
        %1029 = vst.msk [vmem:[#allocation2 + $0x138] sm:$0xff] %vm367, %v1011
        %1030 = vst.msk [vmem:[#allocation2 + $0x140] sm:$0xff] %vm367, %v1012
        %1031 = vst.msk [vmem:[#allocation2 + $0x148] sm:$0xff] %vm367, %v1013
        %1032 = vst.msk [vmem:[#allocation2 + $0x150] sm:$0xff] %vm367, %v1014
        %1033 = vst.msk [vmem:[#allocation2 + $0x158] sm:$0xff] %vm367, %v1015
        %1034 = vst.msk [vmem:[#allocation2 + $0x160] sm:$0xff] %vm367, %v1016
        %1035 = vst.msk [vmem:[#allocation2 + $0x168] sm:$0xff] %vm367, %v1017
        %1036 = vst.msk [vmem:[#allocation2 + $0x170] sm:$0xff] %vm367, %v1018
        %1037 = vst.msk [vmem:[#allocation2 + $0x178] sm:$0xff] %vm367, %v1019
        %1038 = vst.msk [vmem:[#allocation2 + $0x180] sm:$0xff] %vm367, %v1020
        %1039 = vst.msk [vmem:[#allocation2 + $0x188] sm:$0xff] %vm367, %v1021
        %1040 = vst.msk [vmem:[#allocation2 + $0x190] sm:$0xff] %vm367, %v1022
        %1041 = vst.msk [vmem:[#allocation2 + $0x198] sm:$0xff] %vm367, %v1023
        %1042 = vst.msk [vmem:[#allocation2 + $0x1a0] sm:$0xff] %vm367, %v1024
        %1043 = vst.msk [vmem:[#allocation2 + $0x1a8] sm:$0xff] %vm367, %v1025
        %v1044 = vld [vmem:[%s274 + $0xd8] sm:$0xf]
        %v1045 = vld [vmem:[%s274 + $0xdc] sm:$0xf]
        %v1046 = vld [vmem:[%s274 + $0xe0] sm:$0xf]
        %v1047 = vld [vmem:[%s274 + $0xe4] sm:$0xf]
        %v1048 = vld [vmem:[%s274 + $0xe8] sm:$0xf]
        %v1049 = vld [vmem:[%s274 + $0xec] sm:$0xf]
        %v1050 = vld [vmem:[%s274 + $0xf0] sm:$0xf]
        %v1051 = vld [vmem:[%s274 + $0xf4] sm:$0xf]
        %v1052 = vld [vmem:[%s274 + $0xf8] sm:$0xf]
        %v1053 = vld [vmem:[%s274 + $0xfc] sm:$0xf]
        %v1054 = vld [vmem:[%s274 + $0x100] sm:$0xf]
        %v1055 = vld [vmem:[%s274 + $0x104] sm:$0xf]
        %v1056 = vld [vmem:[%s274 + $0x108] sm:$0xf]
        %v1057 = vld [vmem:[%s274 + $0x10c] sm:$0xf]
        %v1058 = vld [vmem:[%s274 + $0x110] sm:$0xf]
        %v1059 = vld [vmem:[%s274 + $0x114] sm:$0xf]
        %v1060 = vld [vmem:[%s274 + $0x118] sm:$0xf]
        %v1061 = vld [vmem:[%s274 + $0x11c] sm:$0xf]
        %v1062 = vld [vmem:[#allocation3] sm:$0xf]
        %v1063 = vld [vmem:[#allocation3 + $0x4] sm:$0xf]
        %v1064 = vld [vmem:[#allocation3 + $0x8] sm:$0xf]
        %v1065 = vld [vmem:[#allocation3 + $0xc] sm:$0xf]
        %v1066 = vld [vmem:[#allocation5] sm:$0x1]
        %v1068 = vlaneseq
        %v1069 = vshrl.u32 %v1068, 7
        %v1070 = vsub.s32 0, %v1069
        %v1071 = vrot.slane %v1066, %v1070
        %v1091 = vunpack.c.l.b16 %v1044
        %v1092 = vunpack.c.l.b16 %v1045
        %v1093 = vunpack.c.l.b16 %v1046
        %v1094 = vunpack.c.l.b16 %v1047
        %v1095 = vunpack.c.l.b16 %v1048
        %v1096 = vunpack.c.l.b16 %v1049
        %v1097 = vunpack.c.l.b16 %v1050
        %v1098 = vunpack.c.l.b16 %v1051
        %v1099 = vunpack.c.l.b16 %v1052
        %v1100 = vunpack.c.l.b16 %v1053
        %v1101 = vunpack.c.l.b16 %v1054
        %v1102 = vunpack.c.l.b16 %v1055
        %v1103 = vunpack.c.l.b16 %v1056
        %v1104 = vunpack.c.l.b16 %v1057
        %v1105 = vunpack.c.l.b16 %v1058
        %v1106 = vunpack.c.l.b16 %v1059
        %v1107 = vunpack.c.l.b16 %v1060
        %v1108 = vunpack.c.l.b16 %v1061
        %v1109 = vpack.c.b16 %v1092, %v1091
        %v1110 = vpack.c.b16 %v1094, %v1093
        %v1111 = vpack.c.b16 %v1096, %v1095
        %v1112 = vpack.c.b16 %v1098, %v1097
        %v1113 = vpack.c.b16 %v1100, %v1099
        %v1114 = vpack.c.b16 %v1102, %v1101
        %v1115 = vpack.c.b16 %v1104, %v1103
        %v1116 = vpack.c.b16 %v1106, %v1105
        %v1117 = vpack.c.b16 %v1108, %v1107
        %v1122 = vunpack.c.l.b16 %v1062
        %v1123 = vunpack.c.l.b16 %v1063
        %v1124 = vunpack.c.l.b16 %v1064
        %v1125 = vunpack.c.l.b16 %v1065
        %v1126 = vpack.c.b16 %v1123, %v1122
        %v1127 = vpack.c.b16 %v1125, %v1124
        %v1131 = vsel %vm367, %v1109, 0
        %v1134 = vsel %vm367, %v1110, 0
        %v1137 = vsel %vm367, %v1111, 0
        %v1140 = vsel %vm367, %v1112, 0
        %v1143 = vsel %vm367, %v1113, 0
        %v1146 = vsel %vm367, %v1114, 0
        %v1149 = vsel %vm367, %v1115, 0
        %v1152 = vsel %vm367, %v1116, 0
        %v1155 = vsel %vm367, %v1117, 0
        %1157 = vmatprep.subr.bf16.mxu0 0
        %1158 = vmatpush1.bf16.msra.mxu0 0
        %1159 = vmatprep.subr.bf16.mxu0 0
        %1160 = vmatpush1.bf16.msra.mxu0 0
        %1161 = vmatprep.subr.bf16.mxu0 0
        %1162 = vmatpush1.bf16.msra.mxu0 0
        %1163 = vmatprep.subr.bf16.mxu0 0
        %1164 = vmatpush1.bf16.msra.mxu0 0
        %1165 = vmatprep.subr.bf16.mxu0 0
        %1166 = vmatpush1.bf16.msra.mxu0 0
        %1167 = vmatprep.subr.bf16.mxu0 0
        %1168 = vmatpush1.bf16.msra.mxu0 0
        %1169 = vmatprep.subr.bf16.mxu0 0
        %1170 = vmatpush1.bf16.msra.mxu0 %v1127
        %1171 = vmatprep.subr.bf16.mxu0 0
        %1172 = vmatpush1.bf16.msra.mxu0 %v1126
        %1173 = vmatprep.subr.bf16.mxu0 0
        %1174 = vmatpush2.bf16.msra.mxu0 0
        %1175 = vmatprep.subr.bf16.mxu0 0
        %1176 = vmatpush2.bf16.msra.mxu0 0
        %1177 = vmatprep.subr.bf16.mxu0 0
        %1178 = vmatpush2.bf16.msra.mxu0 0
        %1179 = vmatprep.subr.bf16.mxu0 0
        %1180 = vmatpush2.bf16.msra.mxu0 0
        %1181 = vmatprep.subr.bf16.mxu0 0
        %1182 = vmatpush2.bf16.msra.mxu0 0
        %1183 = vmatprep.subr.bf16.mxu0 0
        %1184 = vmatpush2.bf16.msra.mxu0 0
        %1185 = vmatprep.subr.bf16.mxu0 0
        %1186 = vmatpush2.bf16.msra.mxu0 0
        %1187 = vmatprep.subr.bf16.mxu0 0
        %1188 = vmatpush2.bf16.msra.mxu0 0
        %1189 = vmatprep.mubr.bf16.mxu0 0
        %1190 = vmatmul.mubr.bf16.gmra.mxu0 %v1131
        %v1191 = vpop.f32.mrf.mxu0
        %v1192 = vadd.f32 %v1071, %v1191
        %v1193 = vpop.f32.mrf.mxu0
        %v1194 = vpop.f32.mrf.mxu0
        %v1195 = vadd.f32 %v1071, %v1194
        %v1196 = vpop.f32.mrf.mxu0
        %1197 = vmatprep.mubr.bf16.mxu0 0
        %1198 = vmatmul.mubr.bf16.gmra.mxu0 %v1134
        %v1199 = vpop.f32.mrf.mxu0
        %v1200 = vadd.f32 %v1071, %v1199
        %v1201 = vpop.f32.mrf.mxu0
        %v1202 = vpop.f32.mrf.mxu0
        %v1203 = vadd.f32 %v1071, %v1202
        %v1204 = vpop.f32.mrf.mxu0
        %1205 = vmatprep.mubr.bf16.mxu0 0
        %1206 = vmatmul.mubr.bf16.gmra.mxu0 %v1137
        %v1207 = vpop.f32.mrf.mxu0
        %v1208 = vadd.f32 %v1071, %v1207
        %v1209 = vpop.f32.mrf.mxu0
        %v1210 = vpop.f32.mrf.mxu0
        %v1211 = vadd.f32 %v1071, %v1210
        %v1212 = vpop.f32.mrf.mxu0
        %1213 = vmatprep.mubr.bf16.mxu0 0
        %1214 = vmatmul.mubr.bf16.gmra.mxu0 %v1140
        %v1215 = vpop.f32.mrf.mxu0
        %v1216 = vadd.f32 %v1071, %v1215
        %v1217 = vpop.f32.mrf.mxu0
        %v1218 = vpop.f32.mrf.mxu0
        %v1219 = vadd.f32 %v1071, %v1218
        %v1220 = vpop.f32.mrf.mxu0
        %1221 = vmatprep.mubr.bf16.mxu0 0
        %1222 = vmatmul.mubr.bf16.gmra.mxu0 %v1143
        %v1223 = vpop.f32.mrf.mxu0
        %v1224 = vadd.f32 %v1071, %v1223
        %v1225 = vpop.f32.mrf.mxu0
        %v1226 = vpop.f32.mrf.mxu0
        %v1227 = vadd.f32 %v1071, %v1226
        %v1228 = vpop.f32.mrf.mxu0
        %1229 = vmatprep.mubr.bf16.mxu0 0
        %1230 = vmatmul.mubr.bf16.gmra.mxu0 %v1146
        %v1231 = vpop.f32.mrf.mxu0
        %v1232 = vadd.f32 %v1071, %v1231
        %v1233 = vpop.f32.mrf.mxu0
        %v1234 = vpop.f32.mrf.mxu0
        %v1235 = vadd.f32 %v1071, %v1234
        %v1236 = vpop.f32.mrf.mxu0
        %1237 = vmatprep.mubr.bf16.mxu0 0
        %1238 = vmatmul.mubr.bf16.gmra.mxu0 %v1149
        %v1239 = vpop.f32.mrf.mxu0
        %v1240 = vadd.f32 %v1071, %v1239
        %v1241 = vpop.f32.mrf.mxu0
        %v1242 = vpop.f32.mrf.mxu0
        %v1243 = vadd.f32 %v1071, %v1242
        %v1244 = vpop.f32.mrf.mxu0
        %1245 = vmatprep.mubr.bf16.mxu0 0
        %1246 = vmatmul.mubr.bf16.gmra.mxu0 %v1152
        %v1247 = vpop.f32.mrf.mxu0
        %v1248 = vadd.f32 %v1071, %v1247
        %v1249 = vpop.f32.mrf.mxu0
        %v1250 = vpop.f32.mrf.mxu0
        %v1251 = vadd.f32 %v1071, %v1250
        %v1252 = vpop.f32.mrf.mxu0
        %1253 = vmatprep.mubr.bf16.mxu0 0
        %1254 = vmatmul.mubr.bf16.gmra.mxu0 %v1155
        %v1255 = vpop.f32.mrf.mxu0
        %v1256 = vadd.f32 %v1071, %v1255
        %v1257 = vpop.f32.mrf.mxu0
        %v1258 = vpop.f32.mrf.mxu0
        %v1259 = vadd.f32 %v1071, %v1258
        %v1260 = vpop.f32.mrf.mxu0
        %1261 = vdwg.mxu0
        %v1262 = vmax.f32 %v1192, 0.0
        %v1263 = vmax.f32 %v1195, 0.0
        %v1264 = vmax.f32 %v1200, 0.0
        %v1265 = vmax.f32 %v1203, 0.0
        %v1266 = vmax.f32 %v1208, 0.0
        %v1267 = vmax.f32 %v1211, 0.0
        %v1268 = vmax.f32 %v1216, 0.0
        %v1269 = vmax.f32 %v1219, 0.0
        %v1270 = vmax.f32 %v1224, 0.0
        %v1271 = vmax.f32 %v1227, 0.0
        %v1272 = vmax.f32 %v1232, 0.0
        %v1273 = vmax.f32 %v1235, 0.0
        %v1274 = vmax.f32 %v1240, 0.0
        %v1275 = vmax.f32 %v1243, 0.0
        %v1276 = vmax.f32 %v1248, 0.0
        %v1277 = vmax.f32 %v1251, 0.0
        %v1278 = vmax.f32 %v1256, 0.0
        %v1279 = vmax.f32 %v1259, 0.0
        %1280 = vst.msk [vmem:[#allocation2 + $0x1b0] sm:$0xff] %vm367, %v1262
        %1281 = vst.msk [vmem:[#allocation2 + $0x1b8] sm:$0xff] %vm367, %v1263
        %1282 = vst.msk [vmem:[#allocation2 + $0x1c0] sm:$0xff] %vm367, %v1264
        %1283 = vst.msk [vmem:[#allocation2 + $0x1c8] sm:$0xff] %vm367, %v1265
        %1284 = vst.msk [vmem:[#allocation2 + $0x1d0] sm:$0xff] %vm367, %v1266
        %1285 = vst.msk [vmem:[#allocation2 + $0x1d8] sm:$0xff] %vm367, %v1267
        %1286 = vst.msk [vmem:[#allocation2 + $0x1e0] sm:$0xff] %vm367, %v1268
        %1287 = vst.msk [vmem:[#allocation2 + $0x1e8] sm:$0xff] %vm367, %v1269
        %1288 = vst.msk [vmem:[#allocation2 + $0x1f0] sm:$0xff] %vm367, %v1270
        %1289 = vst.msk [vmem:[#allocation2 + $0x1f8] sm:$0xff] %vm367, %v1271
        %1290 = vst.msk [vmem:[#allocation2 + $0x200] sm:$0xff] %vm367, %v1272
        %1291 = vst.msk [vmem:[#allocation2 + $0x208] sm:$0xff] %vm367, %v1273
        %1292 = vst.msk [vmem:[#allocation2 + $0x210] sm:$0xff] %vm367, %v1274
        %1293 = vst.msk [vmem:[#allocation2 + $0x218] sm:$0xff] %vm367, %v1275
        %1294 = vst.msk [vmem:[#allocation2 + $0x220] sm:$0xff] %vm367, %v1276
        %1295 = vst.msk [vmem:[#allocation2 + $0x228] sm:$0xff] %vm367, %v1277
        %1296 = vst.msk [vmem:[#allocation2 + $0x230] sm:$0xff] %vm367, %v1278
        %1297 = vst.msk [vmem:[#allocation2 + $0x238] sm:$0xff] %vm367, %v1279
        %v1298 = vld [vmem:[#allocation2] sm:$0xff]
        %v1299 = vld [vmem:[#allocation2 + $0x8] sm:$0xff]
        %v1300 = vld [vmem:[#allocation2 + $0x10] sm:$0xff]
        %v1301 = vld [vmem:[#allocation2 + $0x18] sm:$0xff]
        %v1302 = vld [vmem:[#allocation2 + $0x20] sm:$0xff]
        %v1303 = vld [vmem:[#allocation2 + $0x28] sm:$0xff]
        %v1304 = vld [vmem:[#allocation2 + $0x30] sm:$0xff]
        %v1305 = vld [vmem:[#allocation2 + $0x38] sm:$0xff]
        %v1306 = vld [vmem:[#allocation2 + $0x40] sm:$0xff]
        %v1307 = vld [vmem:[#allocation2 + $0x48] sm:$0xff]
        %v1308 = vld [vmem:[#allocation2 + $0x50] sm:$0xff]
        %v1309 = vld [vmem:[#allocation2 + $0x58] sm:$0xff]
        %v1310 = vld [vmem:[#allocation2 + $0x60] sm:$0xff]
        %v1311 = vld [vmem:[#allocation2 + $0x68] sm:$0xff]
        %v1312 = vld [vmem:[#allocation2 + $0x70] sm:$0xff]
        %v1313 = vld [vmem:[#allocation2 + $0x78] sm:$0xff]
        %v1314 = vld [vmem:[#allocation2 + $0x80] sm:$0xff]
        %v1315 = vld [vmem:[#allocation2 + $0x88] sm:$0xff]
        %v1316 = vld [vmem:[#allocation7] sm:$0xff]
        %v1317 = vld [vmem:[#allocation7 + $0x8] sm:$0xff]
        %v1318 = vld [vmem:[#allocation7 + $0x10] sm:$0xff]
        %v1319 = vld [vmem:[#allocation7 + $0x18] sm:$0xff]
        %v1320 = vld [vmem:[#allocation2 + $0x90] sm:$0xff]
        %v1321 = vld [vmem:[#allocation2 + $0x98] sm:$0xff]
        %v1322 = vld [vmem:[#allocation2 + $0xa0] sm:$0xff]
        %v1323 = vld [vmem:[#allocation2 + $0xa8] sm:$0xff]
        %v1324 = vld [vmem:[#allocation2 + $0xb0] sm:$0xff]
        %v1325 = vld [vmem:[#allocation2 + $0xb8] sm:$0xff]
        %v1326 = vld [vmem:[#allocation2 + $0xc0] sm:$0xff]
        %v1327 = vld [vmem:[#allocation2 + $0xc8] sm:$0xff]
        %v1328 = vld [vmem:[#allocation2 + $0xd0] sm:$0xff]
        %v1329 = vld [vmem:[#allocation2 + $0xd8] sm:$0xff]
        %v1330 = vld [vmem:[#allocation2 + $0xe0] sm:$0xff]
        %v1331 = vld [vmem:[#allocation2 + $0xe8] sm:$0xff]
        %v1332 = vld [vmem:[#allocation2 + $0xf0] sm:$0xff]
        %v1333 = vld [vmem:[#allocation2 + $0xf8] sm:$0xff]
        %v1334 = vld [vmem:[#allocation2 + $0x100] sm:$0xff]
        %v1335 = vld [vmem:[#allocation2 + $0x108] sm:$0xff]
        %v1336 = vld [vmem:[#allocation2 + $0x110] sm:$0xff]
        %v1337 = vld [vmem:[#allocation2 + $0x118] sm:$0xff]
        %s1338 = scalar_lea.vmem [#allocation7], 32
        %v1339 = vld [vmem:[%s1338] sm:$0xff]
        %v1340 = vld [vmem:[%s1338 + $0x8] sm:$0xff]
        %v1341 = vld [vmem:[%s1338 + $0x10] sm:$0xff]
        %v1342 = vld [vmem:[%s1338 + $0x18] sm:$0xff]
        %v1344 = vsel %vm367, %v1320, 0
        %v1347 = vsel %vm367, %v1321, 0
        %v1350 = vsel %vm367, %v1322, 0
        %v1353 = vsel %vm367, %v1323, 0
        %v1356 = vsel %vm367, %v1324, 0
        %v1359 = vsel %vm367, %v1325, 0
        %v1362 = vsel %vm367, %v1326, 0
        %v1365 = vsel %vm367, %v1327, 0
        %v1368 = vsel %vm367, %v1328, 0
        %v1371 = vsel %vm367, %v1329, 0
        %v1374 = vsel %vm367, %v1330, 0
        %v1377 = vsel %vm367, %v1331, 0
        %v1380 = vsel %vm367, %v1332, 0
        %v1383 = vsel %vm367, %v1333, 0
        %v1386 = vsel %vm367, %v1334, 0
        %v1389 = vsel %vm367, %v1335, 0
        %v1392 = vsel %vm367, %v1336, 0
        %v1395 = vsel %vm367, %v1337, 0
        %1397 = vmatprep.subr.mxu0 0.0
        %1398 = vmatpush1.msra.mxu0 0.0
        %1399 = vmatprep.subr.mxu0 0.0
        %1400 = vmatpush1.msra.mxu0 0.0
        %1401 = vmatprep.subr.mxu0 0.0
        %1402 = vmatpush1.msra.mxu0 0.0
        %1403 = vmatprep.subr.mxu0 0.0
        %1404 = vmatpush1.msra.mxu0 0.0
        %1405 = vmatprep.subr.mxu0 0.0
        %1406 = vmatpush1.msra.mxu0 0.0
        %1407 = vmatprep.subr.mxu0 0.0
        %1408 = vmatpush1.msra.mxu0 0.0
        %1409 = vmatprep.subr.mxu0 0.0
        %1410 = vmatpush1.msra.mxu0 0.0
        %1411 = vmatprep.subr.mxu0 0.0
        %1412 = vmatpush1.msra.mxu0 0.0
        %1413 = vmatprep.subr.mxu0 0.0
        %1414 = vmatpush1.msra.mxu0 0.0
        %1415 = vmatprep.subr.mxu0 0.0
        %1416 = vmatpush1.msra.mxu0 0.0
        %1417 = vmatprep.subr.mxu0 0.0
        %1418 = vmatpush1.msra.mxu0 0.0
        %1419 = vmatprep.subr.mxu0 0.0
        %1420 = vmatpush1.msra.mxu0 0.0
        %1421 = vmatprep.subr.mxu0 0.0
        %1422 = vmatpush1.msra.mxu0 %v1342
        %1423 = vmatprep.subr.mxu0 0.0
        %1424 = vmatpush1.msra.mxu0 %v1341
        %1425 = vmatprep.subr.mxu0 0.0
        %1426 = vmatpush1.msra.mxu0 %v1340
        %1427 = vmatprep.subr.mxu0 0.0
        %1428 = vmatpush1.msra.mxu0 %v1339
        %1429 = vmatprep.subr.mxu0 0.0
        %1430 = vmatpush2.msra.mxu0 0.0
        %1431 = vmatprep.subr.mxu0 0.0
        %1432 = vmatpush2.msra.mxu0 0.0
        %1433 = vmatprep.subr.mxu0 0.0
        %1434 = vmatpush2.msra.mxu0 0.0
        %1435 = vmatprep.subr.mxu0 0.0
        %1436 = vmatpush2.msra.mxu0 0.0
        %1437 = vmatprep.subr.mxu0 0.0
        %1438 = vmatpush2.msra.mxu0 0.0
        %1439 = vmatprep.subr.mxu0 0.0
        %1440 = vmatpush2.msra.mxu0 0.0
        %1441 = vmatprep.subr.mxu0 0.0
        %1442 = vmatpush2.msra.mxu0 0.0
        %1443 = vmatprep.subr.mxu0 0.0
        %1444 = vmatpush2.msra.mxu0 0.0
        %1445 = vmatprep.subr.mxu0 0.0
        %1446 = vmatpush2.msra.mxu0 0.0
        %1447 = vmatprep.subr.mxu0 0.0
        %1448 = vmatpush2.msra.mxu0 0.0
        %1449 = vmatprep.subr.mxu0 0.0
        %1450 = vmatpush2.msra.mxu0 0.0
        %1451 = vmatprep.subr.mxu0 0.0
        %1452 = vmatpush2.msra.mxu0 0.0
        %1453 = vmatprep.subr.mxu0 0.0
        %1454 = vmatpush2.msra.mxu0 0.0
        %1455 = vmatprep.subr.mxu0 0.0
        %1456 = vmatpush2.msra.mxu0 0.0
        %1457 = vmatprep.subr.mxu0 0.0
        %1458 = vmatpush2.msra.mxu0 0.0
        %1459 = vmatprep.subr.mxu0 0.0
        %1460 = vmatpush2.msra.mxu0 0.0
        %1461 = vmatprep.mubr.f32.mxu0 0.0
        %1462 = vmatmul.mubr.f32.gmra.mxu0 %v1344
        %v1463 = vpop.f32.mrf.mxu0
        %v1464 = vadd.f32 0.0, %v1463
        %v1465 = vpop.f32.mrf.mxu0
        %1466 = vmatprep.mubr.f32.mxu0 0.0
        %1467 = vmatmul.mubr.f32.gmra.mxu0 %v1347
        %v1468 = vpop.f32.mrf.mxu0
        %v1469 = vadd.f32 0.0, %v1468
        %v1470 = vpop.f32.mrf.mxu0
        %1471 = vmatprep.mubr.f32.mxu0 0.0
        %1472 = vmatmul.mubr.f32.gmra.mxu0 %v1350
        %v1473 = vpop.f32.mrf.mxu0
        %v1474 = vadd.f32 0.0, %v1473
        %v1475 = vpop.f32.mrf.mxu0
        %1476 = vmatprep.mubr.f32.mxu0 0.0
        %1477 = vmatmul.mubr.f32.gmra.mxu0 %v1353
        %v1478 = vpop.f32.mrf.mxu0
        %v1479 = vadd.f32 0.0, %v1478
        %v1480 = vpop.f32.mrf.mxu0
        %1481 = vmatprep.mubr.f32.mxu0 0.0
        %1482 = vmatmul.mubr.f32.gmra.mxu0 %v1356
        %v1483 = vpop.f32.mrf.mxu0
        %v1484 = vadd.f32 0.0, %v1483
        %v1485 = vpop.f32.mrf.mxu0
        %1486 = vmatprep.mubr.f32.mxu0 0.0
        %1487 = vmatmul.mubr.f32.gmra.mxu0 %v1359
        %v1488 = vpop.f32.mrf.mxu0
        %v1489 = vadd.f32 0.0, %v1488
        %v1490 = vpop.f32.mrf.mxu0
        %1491 = vmatprep.mubr.f32.mxu0 0.0
        %1492 = vmatmul.mubr.f32.gmra.mxu0 %v1362
        %v1493 = vpop.f32.mrf.mxu0
        %v1494 = vadd.f32 0.0, %v1493
        %v1495 = vpop.f32.mrf.mxu0
        %1496 = vmatprep.mubr.f32.mxu0 0.0
        %1497 = vmatmul.mubr.f32.gmra.mxu0 %v1365
        %v1498 = vpop.f32.mrf.mxu0
        %v1499 = vadd.f32 0.0, %v1498
        %v1500 = vpop.f32.mrf.mxu0
        %1501 = vmatprep.mubr.f32.mxu0 0.0
        %1502 = vmatmul.mubr.f32.gmra.mxu0 %v1368
        %v1503 = vpop.f32.mrf.mxu0
        %v1504 = vadd.f32 0.0, %v1503
        %v1505 = vpop.f32.mrf.mxu0
        %1506 = vmatprep.mubr.f32.mxu0 0.0
        %1507 = vmatmul.mubr.f32.gmra.mxu0 %v1371
        %v1508 = vpop.f32.mrf.mxu0
        %v1509 = vadd.f32 0.0, %v1508
        %v1510 = vpop.f32.mrf.mxu0
        %1511 = vmatprep.mubr.f32.mxu0 0.0
        %1512 = vmatmul.mubr.f32.gmra.mxu0 %v1374
        %v1513 = vpop.f32.mrf.mxu0
        %v1514 = vadd.f32 0.0, %v1513
        %v1515 = vpop.f32.mrf.mxu0
        %1516 = vmatprep.mubr.f32.mxu0 0.0
        %1517 = vmatmul.mubr.f32.gmra.mxu0 %v1377
        %v1518 = vpop.f32.mrf.mxu0
        %v1519 = vadd.f32 0.0, %v1518
        %v1520 = vpop.f32.mrf.mxu0
        %1521 = vmatprep.mubr.f32.mxu0 0.0
        %1522 = vmatmul.mubr.f32.gmra.mxu0 %v1380
        %v1523 = vpop.f32.mrf.mxu0
        %v1524 = vadd.f32 0.0, %v1523
        %v1525 = vpop.f32.mrf.mxu0
        %1526 = vmatprep.mubr.f32.mxu0 0.0
        %1527 = vmatmul.mubr.f32.gmra.mxu0 %v1383
        %v1528 = vpop.f32.mrf.mxu0
        %v1529 = vadd.f32 0.0, %v1528
        %v1530 = vpop.f32.mrf.mxu0
        %1531 = vmatprep.mubr.f32.mxu0 0.0
        %1532 = vmatmul.mubr.f32.gmra.mxu0 %v1386
        %v1533 = vpop.f32.mrf.mxu0
        %v1534 = vadd.f32 0.0, %v1533
        %v1535 = vpop.f32.mrf.mxu0
        %1536 = vmatprep.mubr.f32.mxu0 0.0
        %1537 = vmatmul.mubr.f32.gmra.mxu0 %v1389
        %v1538 = vpop.f32.mrf.mxu0
        %v1539 = vadd.f32 0.0, %v1538
        %v1540 = vpop.f32.mrf.mxu0
        %1541 = vmatprep.mubr.f32.mxu0 0.0
        %1542 = vmatmul.mubr.f32.gmra.mxu0 %v1392
        %v1543 = vpop.f32.mrf.mxu0
        %v1544 = vadd.f32 0.0, %v1543
        %v1545 = vpop.f32.mrf.mxu0
        %1546 = vmatprep.mubr.f32.mxu0 0.0
        %1547 = vmatmul.mubr.f32.gmra.mxu0 %v1395
        %v1548 = vpop.f32.mrf.mxu0
        %v1549 = vadd.f32 0.0, %v1548
        %v1550 = vpop.f32.mrf.mxu0
        %1551 = vdwg.mxu0
        %v1553 = vsel %vm367, %v1298, 0
        %v1556 = vsel %vm367, %v1299, 0
        %v1559 = vsel %vm367, %v1300, 0
        %v1562 = vsel %vm367, %v1301, 0
        %v1565 = vsel %vm367, %v1302, 0
        %v1568 = vsel %vm367, %v1303, 0
        %v1571 = vsel %vm367, %v1304, 0
        %v1574 = vsel %vm367, %v1305, 0
        %v1577 = vsel %vm367, %v1306, 0
        %v1580 = vsel %vm367, %v1307, 0
        %v1583 = vsel %vm367, %v1308, 0
        %v1586 = vsel %vm367, %v1309, 0
        %v1589 = vsel %vm367, %v1310, 0
        %v1592 = vsel %vm367, %v1311, 0
        %v1595 = vsel %vm367, %v1312, 0
        %v1598 = vsel %vm367, %v1313, 0
        %v1601 = vsel %vm367, %v1314, 0
        %v1604 = vsel %vm367, %v1315, 0
        %1606 = vmatprep.subr.mxu0 0.0
        %1607 = vmatpush1.msra.mxu0 0.0
        %1608 = vmatprep.subr.mxu0 0.0
        %1609 = vmatpush1.msra.mxu0 0.0
        %1610 = vmatprep.subr.mxu0 0.0
        %1611 = vmatpush1.msra.mxu0 0.0
        %1612 = vmatprep.subr.mxu0 0.0
        %1613 = vmatpush1.msra.mxu0 0.0
        %1614 = vmatprep.subr.mxu0 0.0
        %1615 = vmatpush1.msra.mxu0 0.0
        %1616 = vmatprep.subr.mxu0 0.0
        %1617 = vmatpush1.msra.mxu0 0.0
        %1618 = vmatprep.subr.mxu0 0.0
        %1619 = vmatpush1.msra.mxu0 0.0
        %1620 = vmatprep.subr.mxu0 0.0
        %1621 = vmatpush1.msra.mxu0 0.0
        %1622 = vmatprep.subr.mxu0 0.0
        %1623 = vmatpush1.msra.mxu0 0.0
        %1624 = vmatprep.subr.mxu0 0.0
        %1625 = vmatpush1.msra.mxu0 0.0
        %1626 = vmatprep.subr.mxu0 0.0
        %1627 = vmatpush1.msra.mxu0 0.0
        %1628 = vmatprep.subr.mxu0 0.0
        %1629 = vmatpush1.msra.mxu0 0.0
        %1630 = vmatprep.subr.mxu0 0.0
        %1631 = vmatpush1.msra.mxu0 %v1319
        %1632 = vmatprep.subr.mxu0 0.0
        %1633 = vmatpush1.msra.mxu0 %v1318
        %1634 = vmatprep.subr.mxu0 0.0
        %1635 = vmatpush1.msra.mxu0 %v1317
        %1636 = vmatprep.subr.mxu0 0.0
        %1637 = vmatpush1.msra.mxu0 %v1316
        %1638 = vmatprep.subr.mxu0 0.0
        %1639 = vmatpush2.msra.mxu0 0.0
        %1640 = vmatprep.subr.mxu0 0.0
        %1641 = vmatpush2.msra.mxu0 0.0
        %1642 = vmatprep.subr.mxu0 0.0
        %1643 = vmatpush2.msra.mxu0 0.0
        %1644 = vmatprep.subr.mxu0 0.0
        %1645 = vmatpush2.msra.mxu0 0.0
        %1646 = vmatprep.subr.mxu0 0.0
        %1647 = vmatpush2.msra.mxu0 0.0
        %1648 = vmatprep.subr.mxu0 0.0
        %1649 = vmatpush2.msra.mxu0 0.0
        %1650 = vmatprep.subr.mxu0 0.0
        %1651 = vmatpush2.msra.mxu0 0.0
        %1652 = vmatprep.subr.mxu0 0.0
        %1653 = vmatpush2.msra.mxu0 0.0
        %1654 = vmatprep.subr.mxu0 0.0
        %1655 = vmatpush2.msra.mxu0 0.0
        %1656 = vmatprep.subr.mxu0 0.0
        %1657 = vmatpush2.msra.mxu0 0.0
        %1658 = vmatprep.subr.mxu0 0.0
        %1659 = vmatpush2.msra.mxu0 0.0
        %1660 = vmatprep.subr.mxu0 0.0
        %1661 = vmatpush2.msra.mxu0 0.0
        %1662 = vmatprep.subr.mxu0 0.0
        %1663 = vmatpush2.msra.mxu0 0.0
        %1664 = vmatprep.subr.mxu0 0.0
        %1665 = vmatpush2.msra.mxu0 0.0
        %1666 = vmatprep.subr.mxu0 0.0
        %1667 = vmatpush2.msra.mxu0 0.0
        %1668 = vmatprep.subr.mxu0 0.0
        %1669 = vmatpush2.msra.mxu0 0.0
        %1670 = vmatprep.mubr.f32.mxu0 0.0
        %1671 = vmatmul.mubr.f32.gmra.mxu0 %v1553
        %v1672 = vpop.f32.mrf.mxu0
        %v1673 = vadd.f32 %v1464, %v1672
        %v1674 = vpop.f32.mrf.mxu0
        %1675 = vmatprep.mubr.f32.mxu0 0.0
        %1676 = vmatmul.mubr.f32.gmra.mxu0 %v1556
        %v1677 = vpop.f32.mrf.mxu0
        %v1678 = vadd.f32 %v1469, %v1677
        %v1679 = vpop.f32.mrf.mxu0
        %1680 = vmatprep.mubr.f32.mxu0 0.0
        %1681 = vmatmul.mubr.f32.gmra.mxu0 %v1559
        %v1682 = vpop.f32.mrf.mxu0
        %v1683 = vadd.f32 %v1474, %v1682
        %v1684 = vpop.f32.mrf.mxu0
        %1685 = vmatprep.mubr.f32.mxu0 0.0
        %1686 = vmatmul.mubr.f32.gmra.mxu0 %v1562
        %v1687 = vpop.f32.mrf.mxu0
        %v1688 = vadd.f32 %v1479, %v1687
        %v1689 = vpop.f32.mrf.mxu0
        %1690 = vmatprep.mubr.f32.mxu0 0.0
        %1691 = vmatmul.mubr.f32.gmra.mxu0 %v1565
        %v1692 = vpop.f32.mrf.mxu0
        %v1693 = vadd.f32 %v1484, %v1692
        %v1694 = vpop.f32.mrf.mxu0
        %1695 = vmatprep.mubr.f32.mxu0 0.0
        %1696 = vmatmul.mubr.f32.gmra.mxu0 %v1568
        %v1697 = vpop.f32.mrf.mxu0
        %v1698 = vadd.f32 %v1489, %v1697
        %v1699 = vpop.f32.mrf.mxu0
        %1700 = vmatprep.mubr.f32.mxu0 0.0
        %1701 = vmatmul.mubr.f32.gmra.mxu0 %v1571
        %v1702 = vpop.f32.mrf.mxu0
        %v1703 = vadd.f32 %v1494, %v1702
        %v1704 = vpop.f32.mrf.mxu0
        %1705 = vmatprep.mubr.f32.mxu0 0.0
        %1706 = vmatmul.mubr.f32.gmra.mxu0 %v1574
        %v1707 = vpop.f32.mrf.mxu0
        %v1708 = vadd.f32 %v1499, %v1707
        %v1709 = vpop.f32.mrf.mxu0
        %1710 = vmatprep.mubr.f32.mxu0 0.0
        %1711 = vmatmul.mubr.f32.gmra.mxu0 %v1577
        %v1712 = vpop.f32.mrf.mxu0
        %v1713 = vadd.f32 %v1504, %v1712
        %v1714 = vpop.f32.mrf.mxu0
        %1715 = vmatprep.mubr.f32.mxu0 0.0
        %1716 = vmatmul.mubr.f32.gmra.mxu0 %v1580
        %v1717 = vpop.f32.mrf.mxu0
        %v1718 = vadd.f32 %v1509, %v1717
        %v1719 = vpop.f32.mrf.mxu0
        %1720 = vmatprep.mubr.f32.mxu0 0.0
        %1721 = vmatmul.mubr.f32.gmra.mxu0 %v1583
        %v1722 = vpop.f32.mrf.mxu0
        %v1723 = vadd.f32 %v1514, %v1722
        %v1724 = vpop.f32.mrf.mxu0
        %1725 = vmatprep.mubr.f32.mxu0 0.0
        %1726 = vmatmul.mubr.f32.gmra.mxu0 %v1586
        %v1727 = vpop.f32.mrf.mxu0
        %v1728 = vadd.f32 %v1519, %v1727
        %v1729 = vpop.f32.mrf.mxu0
        %1730 = vmatprep.mubr.f32.mxu0 0.0
        %1731 = vmatmul.mubr.f32.gmra.mxu0 %v1589
        %v1732 = vpop.f32.mrf.mxu0
        %v1733 = vadd.f32 %v1524, %v1732
        %v1734 = vpop.f32.mrf.mxu0
        %1735 = vmatprep.mubr.f32.mxu0 0.0
        %1736 = vmatmul.mubr.f32.gmra.mxu0 %v1592
        %v1737 = vpop.f32.mrf.mxu0
        %v1738 = vadd.f32 %v1529, %v1737
        %v1739 = vpop.f32.mrf.mxu0
        %1740 = vmatprep.mubr.f32.mxu0 0.0
        %1741 = vmatmul.mubr.f32.gmra.mxu0 %v1595
        %v1742 = vpop.f32.mrf.mxu0
        %v1743 = vadd.f32 %v1534, %v1742
        %v1744 = vpop.f32.mrf.mxu0
        %1745 = vmatprep.mubr.f32.mxu0 0.0
        %1746 = vmatmul.mubr.f32.gmra.mxu0 %v1598
        %v1747 = vpop.f32.mrf.mxu0
        %v1748 = vadd.f32 %v1539, %v1747
        %v1749 = vpop.f32.mrf.mxu0
        %1750 = vmatprep.mubr.f32.mxu0 0.0
        %1751 = vmatmul.mubr.f32.gmra.mxu0 %v1601
        %v1752 = vpop.f32.mrf.mxu0
        %v1753 = vadd.f32 %v1544, %v1752
        %v1754 = vpop.f32.mrf.mxu0
        %1755 = vmatprep.mubr.f32.mxu0 0.0
        %1756 = vmatmul.mubr.f32.gmra.mxu0 %v1604
        %v1757 = vpop.f32.mrf.mxu0
        %v1758 = vadd.f32 %v1549, %v1757
        %v1759 = vpop.f32.mrf.mxu0
        %1760 = vdwg.mxu0
        %v1761 = vld [vmem:[#allocation2 + $0x1] sm:$0xff]
        %v1762 = vld [vmem:[#allocation2 + $0x9] sm:$0xff]
        %v1763 = vld [vmem:[#allocation2 + $0x11] sm:$0xff]
        %v1764 = vld [vmem:[#allocation2 + $0x19] sm:$0xff]
        %v1765 = vld [vmem:[#allocation2 + $0x21] sm:$0xff]
        %v1766 = vld [vmem:[#allocation2 + $0x29] sm:$0xff]
        %v1767 = vld [vmem:[#allocation2 + $0x31] sm:$0xff]
        %v1768 = vld [vmem:[#allocation2 + $0x39] sm:$0xff]
        %v1769 = vld [vmem:[#allocation2 + $0x41] sm:$0xff]
        %v1770 = vld [vmem:[#allocation2 + $0x49] sm:$0xff]
        %v1771 = vld [vmem:[#allocation2 + $0x51] sm:$0xff]
        %v1772 = vld [vmem:[#allocation2 + $0x59] sm:$0xff]
        %v1773 = vld [vmem:[#allocation2 + $0x61] sm:$0xff]
        %v1774 = vld [vmem:[#allocation2 + $0x69] sm:$0xff]
        %v1775 = vld [vmem:[#allocation2 + $0x71] sm:$0xff]
        %v1776 = vld [vmem:[#allocation2 + $0x79] sm:$0xff]
        %v1777 = vld [vmem:[#allocation2 + $0x81] sm:$0xff]
        %v1778 = vld [vmem:[#allocation2 + $0x89] sm:$0xff]
        %s1779 = scalar_lea.vmem [#allocation7], 64
        %v1780 = vld [vmem:[%s1779] sm:$0xff]
        %v1781 = vld [vmem:[%s1779 + $0x8] sm:$0xff]
        %v1782 = vld [vmem:[%s1779 + $0x10] sm:$0xff]
        %v1783 = vld [vmem:[%s1779 + $0x18] sm:$0xff]
        %v1785 = vsel %vm367, %v1761, 0
        %v1788 = vsel %vm367, %v1762, 0
        %v1791 = vsel %vm367, %v1763, 0
        %v1794 = vsel %vm367, %v1764, 0
        %v1797 = vsel %vm367, %v1765, 0
        %v1800 = vsel %vm367, %v1766, 0
        %v1803 = vsel %vm367, %v1767, 0
        %v1806 = vsel %vm367, %v1768, 0
        %v1809 = vsel %vm367, %v1769, 0
        %v1812 = vsel %vm367, %v1770, 0
        %v1815 = vsel %vm367, %v1771, 0
        %v1818 = vsel %vm367, %v1772, 0
        %v1821 = vsel %vm367, %v1773, 0
        %v1824 = vsel %vm367, %v1774, 0
        %v1827 = vsel %vm367, %v1775, 0
        %v1830 = vsel %vm367, %v1776, 0
        %v1833 = vsel %vm367, %v1777, 0
        %v1836 = vsel %vm367, %v1778, 0
        %1838 = vmatprep.subr.mxu0 0.0
        %1839 = vmatpush1.msra.mxu0 0.0
        %1840 = vmatprep.subr.mxu0 0.0
        %1841 = vmatpush1.msra.mxu0 0.0
        %1842 = vmatprep.subr.mxu0 0.0
        %1843 = vmatpush1.msra.mxu0 0.0
        %1844 = vmatprep.subr.mxu0 0.0
        %1845 = vmatpush1.msra.mxu0 0.0
        %1846 = vmatprep.subr.mxu0 0.0
        %1847 = vmatpush1.msra.mxu0 0.0
        %1848 = vmatprep.subr.mxu0 0.0
        %1849 = vmatpush1.msra.mxu0 0.0
        %1850 = vmatprep.subr.mxu0 0.0
        %1851 = vmatpush1.msra.mxu0 0.0
        %1852 = vmatprep.subr.mxu0 0.0
        %1853 = vmatpush1.msra.mxu0 0.0
        %1854 = vmatprep.subr.mxu0 0.0
        %1855 = vmatpush1.msra.mxu0 0.0
        %1856 = vmatprep.subr.mxu0 0.0
        %1857 = vmatpush1.msra.mxu0 0.0
        %1858 = vmatprep.subr.mxu0 0.0
        %1859 = vmatpush1.msra.mxu0 0.0
        %1860 = vmatprep.subr.mxu0 0.0
        %1861 = vmatpush1.msra.mxu0 0.0
        %1862 = vmatprep.subr.mxu0 0.0
        %1863 = vmatpush1.msra.mxu0 %v1783
        %1864 = vmatprep.subr.mxu0 0.0
        %1865 = vmatpush1.msra.mxu0 %v1782
        %1866 = vmatprep.subr.mxu0 0.0
        %1867 = vmatpush1.msra.mxu0 %v1781
        %1868 = vmatprep.subr.mxu0 0.0
        %1869 = vmatpush1.msra.mxu0 %v1780
        %1870 = vmatprep.subr.mxu0 0.0
        %1871 = vmatpush2.msra.mxu0 0.0
        %1872 = vmatprep.subr.mxu0 0.0
        %1873 = vmatpush2.msra.mxu0 0.0
        %1874 = vmatprep.subr.mxu0 0.0
        %1875 = vmatpush2.msra.mxu0 0.0
        %1876 = vmatprep.subr.mxu0 0.0
        %1877 = vmatpush2.msra.mxu0 0.0
        %1878 = vmatprep.subr.mxu0 0.0
        %1879 = vmatpush2.msra.mxu0 0.0
        %1880 = vmatprep.subr.mxu0 0.0
        %1881 = vmatpush2.msra.mxu0 0.0
        %1882 = vmatprep.subr.mxu0 0.0
        %1883 = vmatpush2.msra.mxu0 0.0
        %1884 = vmatprep.subr.mxu0 0.0
        %1885 = vmatpush2.msra.mxu0 0.0
        %1886 = vmatprep.subr.mxu0 0.0
        %1887 = vmatpush2.msra.mxu0 0.0
        %1888 = vmatprep.subr.mxu0 0.0
        %1889 = vmatpush2.msra.mxu0 0.0
        %1890 = vmatprep.subr.mxu0 0.0
        %1891 = vmatpush2.msra.mxu0 0.0
        %1892 = vmatprep.subr.mxu0 0.0
        %1893 = vmatpush2.msra.mxu0 0.0
        %1894 = vmatprep.subr.mxu0 0.0
        %1895 = vmatpush2.msra.mxu0 0.0
        %1896 = vmatprep.subr.mxu0 0.0
        %1897 = vmatpush2.msra.mxu0 0.0
        %1898 = vmatprep.subr.mxu0 0.0
        %1899 = vmatpush2.msra.mxu0 0.0
        %1900 = vmatprep.subr.mxu0 0.0
        %1901 = vmatpush2.msra.mxu0 0.0
        %1902 = vmatprep.mubr.f32.mxu0 0.0
        %1903 = vmatmul.mubr.f32.gmra.mxu0 %v1785
        %v1904 = vpop.f32.mrf.mxu0
        %v1905 = vadd.f32 0.0, %v1904
        %v1906 = vpop.f32.mrf.mxu0
        %1907 = vmatprep.mubr.f32.mxu0 0.0
        %1908 = vmatmul.mubr.f32.gmra.mxu0 %v1788
        %v1909 = vpop.f32.mrf.mxu0
        %v1910 = vadd.f32 0.0, %v1909
        %v1911 = vpop.f32.mrf.mxu0
        %1912 = vmatprep.mubr.f32.mxu0 0.0
        %1913 = vmatmul.mubr.f32.gmra.mxu0 %v1791
        %v1914 = vpop.f32.mrf.mxu0
        %v1915 = vadd.f32 0.0, %v1914
        %v1916 = vpop.f32.mrf.mxu0
        %1917 = vmatprep.mubr.f32.mxu0 0.0
        %1918 = vmatmul.mubr.f32.gmra.mxu0 %v1794
        %v1919 = vpop.f32.mrf.mxu0
        %v1920 = vadd.f32 0.0, %v1919
        %v1921 = vpop.f32.mrf.mxu0
        %1922 = vmatprep.mubr.f32.mxu0 0.0
        %1923 = vmatmul.mubr.f32.gmra.mxu0 %v1797
        %v1924 = vpop.f32.mrf.mxu0
        %v1925 = vadd.f32 0.0, %v1924
        %v1926 = vpop.f32.mrf.mxu0
        %1927 = vmatprep.mubr.f32.mxu0 0.0
        %1928 = vmatmul.mubr.f32.gmra.mxu0 %v1800
        %v1929 = vpop.f32.mrf.mxu0
        %v1930 = vadd.f32 0.0, %v1929
        %v1931 = vpop.f32.mrf.mxu0
        %1932 = vmatprep.mubr.f32.mxu0 0.0
        %1933 = vmatmul.mubr.f32.gmra.mxu0 %v1803
        %v1934 = vpop.f32.mrf.mxu0
        %v1935 = vadd.f32 0.0, %v1934
        %v1936 = vpop.f32.mrf.mxu0
        %1937 = vmatprep.mubr.f32.mxu0 0.0
        %1938 = vmatmul.mubr.f32.gmra.mxu0 %v1806
        %v1939 = vpop.f32.mrf.mxu0
        %v1940 = vadd.f32 0.0, %v1939
        %v1941 = vpop.f32.mrf.mxu0
        %1942 = vmatprep.mubr.f32.mxu0 0.0
        %1943 = vmatmul.mubr.f32.gmra.mxu0 %v1809
        %v1944 = vpop.f32.mrf.mxu0
        %v1945 = vadd.f32 0.0, %v1944
        %v1946 = vpop.f32.mrf.mxu0
        %1947 = vmatprep.mubr.f32.mxu0 0.0
        %1948 = vmatmul.mubr.f32.gmra.mxu0 %v1812
        %v1949 = vpop.f32.mrf.mxu0
        %v1950 = vadd.f32 0.0, %v1949
        %v1951 = vpop.f32.mrf.mxu0
        %1952 = vmatprep.mubr.f32.mxu0 0.0
        %1953 = vmatmul.mubr.f32.gmra.mxu0 %v1815
        %v1954 = vpop.f32.mrf.mxu0
        %v1955 = vadd.f32 0.0, %v1954
        %v1956 = vpop.f32.mrf.mxu0
        %1957 = vmatprep.mubr.f32.mxu0 0.0
        %1958 = vmatmul.mubr.f32.gmra.mxu0 %v1818
        %v1959 = vpop.f32.mrf.mxu0
        %v1960 = vadd.f32 0.0, %v1959
        %v1961 = vpop.f32.mrf.mxu0
        %1962 = vmatprep.mubr.f32.mxu0 0.0
        %1963 = vmatmul.mubr.f32.gmra.mxu0 %v1821
        %v1964 = vpop.f32.mrf.mxu0
        %v1965 = vadd.f32 0.0, %v1964
        %v1966 = vpop.f32.mrf.mxu0
        %1967 = vmatprep.mubr.f32.mxu0 0.0
        %1968 = vmatmul.mubr.f32.gmra.mxu0 %v1824
        %v1969 = vpop.f32.mrf.mxu0
        %v1970 = vadd.f32 0.0, %v1969
        %v1971 = vpop.f32.mrf.mxu0
        %1972 = vmatprep.mubr.f32.mxu0 0.0
        %1973 = vmatmul.mubr.f32.gmra.mxu0 %v1827
        %v1974 = vpop.f32.mrf.mxu0
        %v1975 = vadd.f32 0.0, %v1974
        %v1976 = vpop.f32.mrf.mxu0
        %1977 = vmatprep.mubr.f32.mxu0 0.0
        %1978 = vmatmul.mubr.f32.gmra.mxu0 %v1830
        %v1979 = vpop.f32.mrf.mxu0
        %v1980 = vadd.f32 0.0, %v1979
        %v1981 = vpop.f32.mrf.mxu0
        %1982 = vmatprep.mubr.f32.mxu0 0.0
        %1983 = vmatmul.mubr.f32.gmra.mxu0 %v1833
        %v1984 = vpop.f32.mrf.mxu0
        %v1985 = vadd.f32 0.0, %v1984
        %v1986 = vpop.f32.mrf.mxu0
        %1987 = vmatprep.mubr.f32.mxu0 0.0
        %1988 = vmatmul.mubr.f32.gmra.mxu0 %v1836
        %v1989 = vpop.f32.mrf.mxu0
        %v1990 = vadd.f32 0.0, %v1989
        %v1991 = vpop.f32.mrf.mxu0
        %1992 = vdwg.mxu0
        %v1993 = vadd.f32 %v1673, %v1905
        %v1994 = vadd.f32 %v1678, %v1910
        %v1995 = vadd.f32 %v1683, %v1915
        %v1996 = vadd.f32 %v1688, %v1920
        %v1997 = vadd.f32 %v1693, %v1925
        %v1998 = vadd.f32 %v1698, %v1930
        %v1999 = vadd.f32 %v1703, %v1935
        %v2000 = vadd.f32 %v1708, %v1940
        %v2001 = vadd.f32 %v1713, %v1945
        %v2002 = vadd.f32 %v1718, %v1950
        %v2003 = vadd.f32 %v1723, %v1955
        %v2004 = vadd.f32 %v1728, %v1960
        %v2005 = vadd.f32 %v1733, %v1965
        %v2006 = vadd.f32 %v1738, %v1970
        %v2007 = vadd.f32 %v1743, %v1975
        %v2008 = vadd.f32 %v1748, %v1980
        %v2009 = vadd.f32 %v1753, %v1985
        %v2010 = vadd.f32 %v1758, %v1990
        %v2011 = vld [vmem:[#allocation2 + $0x120] sm:$0xff]
        %v2012 = vld [vmem:[#allocation2 + $0x128] sm:$0xff]
        %v2013 = vld [vmem:[#allocation2 + $0x130] sm:$0xff]
        %v2014 = vld [vmem:[#allocation2 + $0x138] sm:$0xff]
        %v2015 = vld [vmem:[#allocation2 + $0x140] sm:$0xff]
        %v2016 = vld [vmem:[#allocation2 + $0x148] sm:$0xff]
        %v2017 = vld [vmem:[#allocation2 + $0x150] sm:$0xff]
        %v2018 = vld [vmem:[#allocation2 + $0x158] sm:$0xff]
        %v2019 = vld [vmem:[#allocation2 + $0x160] sm:$0xff]
        %v2020 = vld [vmem:[#allocation2 + $0x168] sm:$0xff]
        %v2021 = vld [vmem:[#allocation2 + $0x170] sm:$0xff]
        %v2022 = vld [vmem:[#allocation2 + $0x178] sm:$0xff]
        %v2023 = vld [vmem:[#allocation2 + $0x180] sm:$0xff]
        %v2024 = vld [vmem:[#allocation2 + $0x188] sm:$0xff]
        %v2025 = vld [vmem:[#allocation2 + $0x190] sm:$0xff]
        %v2026 = vld [vmem:[#allocation2 + $0x198] sm:$0xff]
        %v2027 = vld [vmem:[#allocation2 + $0x1a0] sm:$0xff]
        %v2028 = vld [vmem:[#allocation2 + $0x1a8] sm:$0xff]
        %s2029 = scalar_lea.vmem [#allocation7], 96
        %v2030 = vld [vmem:[%s2029] sm:$0xff]
        %v2031 = vld [vmem:[%s2029 + $0x8] sm:$0xff]
        %v2032 = vld [vmem:[%s2029 + $0x10] sm:$0xff]
        %v2033 = vld [vmem:[%s2029 + $0x18] sm:$0xff]
        %v2035 = vsel %vm367, %v2011, 0
        %v2038 = vsel %vm367, %v2012, 0
        %v2041 = vsel %vm367, %v2013, 0
        %v2044 = vsel %vm367, %v2014, 0
        %v2047 = vsel %vm367, %v2015, 0
        %v2050 = vsel %vm367, %v2016, 0
        %v2053 = vsel %vm367, %v2017, 0
        %v2056 = vsel %vm367, %v2018, 0
        %v2059 = vsel %vm367, %v2019, 0
        %v2062 = vsel %vm367, %v2020, 0
        %v2065 = vsel %vm367, %v2021, 0
        %v2068 = vsel %vm367, %v2022, 0
        %v2071 = vsel %vm367, %v2023, 0
        %v2074 = vsel %vm367, %v2024, 0
        %v2077 = vsel %vm367, %v2025, 0
        %v2080 = vsel %vm367, %v2026, 0
        %v2083 = vsel %vm367, %v2027, 0
        %v2086 = vsel %vm367, %v2028, 0
        %2088 = vmatprep.subr.mxu0 0.0
        %2089 = vmatpush1.msra.mxu0 0.0
        %2090 = vmatprep.subr.mxu0 0.0
        %2091 = vmatpush1.msra.mxu0 0.0
        %2092 = vmatprep.subr.mxu0 0.0
        %2093 = vmatpush1.msra.mxu0 0.0
        %2094 = vmatprep.subr.mxu0 0.0
        %2095 = vmatpush1.msra.mxu0 0.0
        %2096 = vmatprep.subr.mxu0 0.0
        %2097 = vmatpush1.msra.mxu0 0.0
        %2098 = vmatprep.subr.mxu0 0.0
        %2099 = vmatpush1.msra.mxu0 0.0
        %2100 = vmatprep.subr.mxu0 0.0
        %2101 = vmatpush1.msra.mxu0 0.0
        %2102 = vmatprep.subr.mxu0 0.0
        %2103 = vmatpush1.msra.mxu0 0.0
        %2104 = vmatprep.subr.mxu0 0.0
        %2105 = vmatpush1.msra.mxu0 0.0
        %2106 = vmatprep.subr.mxu0 0.0
        %2107 = vmatpush1.msra.mxu0 0.0
        %2108 = vmatprep.subr.mxu0 0.0
        %2109 = vmatpush1.msra.mxu0 0.0
        %2110 = vmatprep.subr.mxu0 0.0
        %2111 = vmatpush1.msra.mxu0 0.0
        %2112 = vmatprep.subr.mxu0 0.0
        %2113 = vmatpush1.msra.mxu0 %v2033
        %2114 = vmatprep.subr.mxu0 0.0
        %2115 = vmatpush1.msra.mxu0 %v2032
        %2116 = vmatprep.subr.mxu0 0.0
        %2117 = vmatpush1.msra.mxu0 %v2031
        %2118 = vmatprep.subr.mxu0 0.0
        %2119 = vmatpush1.msra.mxu0 %v2030
        %2120 = vmatprep.subr.mxu0 0.0
        %2121 = vmatpush2.msra.mxu0 0.0
        %2122 = vmatprep.subr.mxu0 0.0
        %2123 = vmatpush2.msra.mxu0 0.0
        %2124 = vmatprep.subr.mxu0 0.0
        %2125 = vmatpush2.msra.mxu0 0.0
        %2126 = vmatprep.subr.mxu0 0.0
        %2127 = vmatpush2.msra.mxu0 0.0
        %2128 = vmatprep.subr.mxu0 0.0
        %2129 = vmatpush2.msra.mxu0 0.0
        %2130 = vmatprep.subr.mxu0 0.0
        %2131 = vmatpush2.msra.mxu0 0.0
        %2132 = vmatprep.subr.mxu0 0.0
        %2133 = vmatpush2.msra.mxu0 0.0
        %2134 = vmatprep.subr.mxu0 0.0
        %2135 = vmatpush2.msra.mxu0 0.0
        %2136 = vmatprep.subr.mxu0 0.0
        %2137 = vmatpush2.msra.mxu0 0.0
        %2138 = vmatprep.subr.mxu0 0.0
        %2139 = vmatpush2.msra.mxu0 0.0
        %2140 = vmatprep.subr.mxu0 0.0
        %2141 = vmatpush2.msra.mxu0 0.0
        %2142 = vmatprep.subr.mxu0 0.0
        %2143 = vmatpush2.msra.mxu0 0.0
        %2144 = vmatprep.subr.mxu0 0.0
        %2145 = vmatpush2.msra.mxu0 0.0
        %2146 = vmatprep.subr.mxu0 0.0
        %2147 = vmatpush2.msra.mxu0 0.0
        %2148 = vmatprep.subr.mxu0 0.0
        %2149 = vmatpush2.msra.mxu0 0.0
        %2150 = vmatprep.subr.mxu0 0.0
        %2151 = vmatpush2.msra.mxu0 0.0
        %2152 = vmatprep.mubr.f32.mxu0 0.0
        %2153 = vmatmul.mubr.f32.gmra.mxu0 %v2035
        %v2154 = vpop.f32.mrf.mxu0
        %v2155 = vadd.f32 0.0, %v2154
        %v2156 = vpop.f32.mrf.mxu0
        %2157 = vmatprep.mubr.f32.mxu0 0.0
        %2158 = vmatmul.mubr.f32.gmra.mxu0 %v2038
        %v2159 = vpop.f32.mrf.mxu0
        %v2160 = vadd.f32 0.0, %v2159
        %v2161 = vpop.f32.mrf.mxu0
        %2162 = vmatprep.mubr.f32.mxu0 0.0
        %2163 = vmatmul.mubr.f32.gmra.mxu0 %v2041
        %v2164 = vpop.f32.mrf.mxu0
        %v2165 = vadd.f32 0.0, %v2164
        %v2166 = vpop.f32.mrf.mxu0
        %2167 = vmatprep.mubr.f32.mxu0 0.0
        %2168 = vmatmul.mubr.f32.gmra.mxu0 %v2044
        %v2169 = vpop.f32.mrf.mxu0
        %v2170 = vadd.f32 0.0, %v2169
        %v2171 = vpop.f32.mrf.mxu0
        %2172 = vmatprep.mubr.f32.mxu0 0.0
        %2173 = vmatmul.mubr.f32.gmra.mxu0 %v2047
        %v2174 = vpop.f32.mrf.mxu0
        %v2175 = vadd.f32 0.0, %v2174
        %v2176 = vpop.f32.mrf.mxu0
        %2177 = vmatprep.mubr.f32.mxu0 0.0
        %2178 = vmatmul.mubr.f32.gmra.mxu0 %v2050
        %v2179 = vpop.f32.mrf.mxu0
        %v2180 = vadd.f32 0.0, %v2179
        %v2181 = vpop.f32.mrf.mxu0
        %2182 = vmatprep.mubr.f32.mxu0 0.0
        %2183 = vmatmul.mubr.f32.gmra.mxu0 %v2053
        %v2184 = vpop.f32.mrf.mxu0
        %v2185 = vadd.f32 0.0, %v2184
        %v2186 = vpop.f32.mrf.mxu0
        %2187 = vmatprep.mubr.f32.mxu0 0.0
        %2188 = vmatmul.mubr.f32.gmra.mxu0 %v2056
        %v2189 = vpop.f32.mrf.mxu0
        %v2190 = vadd.f32 0.0, %v2189
        %v2191 = vpop.f32.mrf.mxu0
        %2192 = vmatprep.mubr.f32.mxu0 0.0
        %2193 = vmatmul.mubr.f32.gmra.mxu0 %v2059
        %v2194 = vpop.f32.mrf.mxu0
        %v2195 = vadd.f32 0.0, %v2194
        %v2196 = vpop.f32.mrf.mxu0
        %2197 = vmatprep.mubr.f32.mxu0 0.0
        %2198 = vmatmul.mubr.f32.gmra.mxu0 %v2062
        %v2199 = vpop.f32.mrf.mxu0
        %v2200 = vadd.f32 0.0, %v2199
        %v2201 = vpop.f32.mrf.mxu0
        %2202 = vmatprep.mubr.f32.mxu0 0.0
        %2203 = vmatmul.mubr.f32.gmra.mxu0 %v2065
        %v2204 = vpop.f32.mrf.mxu0
        %v2205 = vadd.f32 0.0, %v2204
        %v2206 = vpop.f32.mrf.mxu0
        %2207 = vmatprep.mubr.f32.mxu0 0.0
        %2208 = vmatmul.mubr.f32.gmra.mxu0 %v2068
        %v2209 = vpop.f32.mrf.mxu0
        %v2210 = vadd.f32 0.0, %v2209
        %v2211 = vpop.f32.mrf.mxu0
        %2212 = vmatprep.mubr.f32.mxu0 0.0
        %2213 = vmatmul.mubr.f32.gmra.mxu0 %v2071
        %v2214 = vpop.f32.mrf.mxu0
        %v2215 = vadd.f32 0.0, %v2214
        %v2216 = vpop.f32.mrf.mxu0
        %2217 = vmatprep.mubr.f32.mxu0 0.0
        %2218 = vmatmul.mubr.f32.gmra.mxu0 %v2074
        %v2219 = vpop.f32.mrf.mxu0
        %v2220 = vadd.f32 0.0, %v2219
        %v2221 = vpop.f32.mrf.mxu0
        %2222 = vmatprep.mubr.f32.mxu0 0.0
        %2223 = vmatmul.mubr.f32.gmra.mxu0 %v2077
        %v2224 = vpop.f32.mrf.mxu0
        %v2225 = vadd.f32 0.0, %v2224
        %v2226 = vpop.f32.mrf.mxu0
        %2227 = vmatprep.mubr.f32.mxu0 0.0
        %2228 = vmatmul.mubr.f32.gmra.mxu0 %v2080
        %v2229 = vpop.f32.mrf.mxu0
        %v2230 = vadd.f32 0.0, %v2229
        %v2231 = vpop.f32.mrf.mxu0
        %2232 = vmatprep.mubr.f32.mxu0 0.0
        %2233 = vmatmul.mubr.f32.gmra.mxu0 %v2083
        %v2234 = vpop.f32.mrf.mxu0
        %v2235 = vadd.f32 0.0, %v2234
        %v2236 = vpop.f32.mrf.mxu0
        %2237 = vmatprep.mubr.f32.mxu0 0.0
        %2238 = vmatmul.mubr.f32.gmra.mxu0 %v2086
        %v2239 = vpop.f32.mrf.mxu0
        %v2240 = vadd.f32 0.0, %v2239
        %v2241 = vpop.f32.mrf.mxu0
        %2242 = vdwg.mxu0
        %v2243 = vadd.f32 %v1993, %v2155
        %v2244 = vadd.f32 %v1994, %v2160
        %v2245 = vadd.f32 %v1995, %v2165
        %v2246 = vadd.f32 %v1996, %v2170
        %v2247 = vadd.f32 %v1997, %v2175
        %v2248 = vadd.f32 %v1998, %v2180
        %v2249 = vadd.f32 %v1999, %v2185
        %v2250 = vadd.f32 %v2000, %v2190
        %v2251 = vadd.f32 %v2001, %v2195
        %v2252 = vadd.f32 %v2002, %v2200
        %v2253 = vadd.f32 %v2003, %v2205
        %v2254 = vadd.f32 %v2004, %v2210
        %v2255 = vadd.f32 %v2005, %v2215
        %v2256 = vadd.f32 %v2006, %v2220
        %v2257 = vadd.f32 %v2007, %v2225
        %v2258 = vadd.f32 %v2008, %v2230
        %v2259 = vadd.f32 %v2009, %v2235
        %v2260 = vadd.f32 %v2010, %v2240
        %v2261 = vld [vmem:[#allocation2 + $0x1b0] sm:$0xff]
        %v2262 = vld [vmem:[#allocation2 + $0x1b8] sm:$0xff]
        %v2263 = vld [vmem:[#allocation2 + $0x1c0] sm:$0xff]
        %v2264 = vld [vmem:[#allocation2 + $0x1c8] sm:$0xff]
        %v2265 = vld [vmem:[#allocation2 + $0x1d0] sm:$0xff]
        %v2266 = vld [vmem:[#allocation2 + $0x1d8] sm:$0xff]
        %v2267 = vld [vmem:[#allocation2 + $0x1e0] sm:$0xff]
        %v2268 = vld [vmem:[#allocation2 + $0x1e8] sm:$0xff]
        %v2269 = vld [vmem:[#allocation2 + $0x1f0] sm:$0xff]
        %v2270 = vld [vmem:[#allocation2 + $0x1f8] sm:$0xff]
        %v2271 = vld [vmem:[#allocation2 + $0x200] sm:$0xff]
        %v2272 = vld [vmem:[#allocation2 + $0x208] sm:$0xff]
        %v2273 = vld [vmem:[#allocation2 + $0x210] sm:$0xff]
        %v2274 = vld [vmem:[#allocation2 + $0x218] sm:$0xff]
        %v2275 = vld [vmem:[#allocation2 + $0x220] sm:$0xff]
        %v2276 = vld [vmem:[#allocation2 + $0x228] sm:$0xff]
        %v2277 = vld [vmem:[#allocation2 + $0x230] sm:$0xff]
        %v2278 = vld [vmem:[#allocation2 + $0x238] sm:$0xff]
        %s2279 = scalar_lea.vmem [#allocation7], 128
        %v2280 = vld [vmem:[%s2279] sm:$0xff]
        %v2281 = vld [vmem:[%s2279 + $0x8] sm:$0xff]
        %v2282 = vld [vmem:[%s2279 + $0x10] sm:$0xff]
        %v2283 = vld [vmem:[%s2279 + $0x18] sm:$0xff]
        %v2285 = vsel %vm367, %v2261, 0
        %v2288 = vsel %vm367, %v2262, 0
        %v2291 = vsel %vm367, %v2263, 0
        %v2294 = vsel %vm367, %v2264, 0
        %v2297 = vsel %vm367, %v2265, 0
        %v2300 = vsel %vm367, %v2266, 0
        %v2303 = vsel %vm367, %v2267, 0
        %v2306 = vsel %vm367, %v2268, 0
        %v2309 = vsel %vm367, %v2269, 0
        %v2312 = vsel %vm367, %v2270, 0
        %v2315 = vsel %vm367, %v2271, 0
        %v2318 = vsel %vm367, %v2272, 0
        %v2321 = vsel %vm367, %v2273, 0
        %v2324 = vsel %vm367, %v2274, 0
        %v2327 = vsel %vm367, %v2275, 0
        %v2330 = vsel %vm367, %v2276, 0
        %v2333 = vsel %vm367, %v2277, 0
        %v2336 = vsel %vm367, %v2278, 0
        %2338 = vmatprep.subr.mxu0 0.0
        %2339 = vmatpush1.msra.mxu0 0.0
        %2340 = vmatprep.subr.mxu0 0.0
        %2341 = vmatpush1.msra.mxu0 0.0
        %2342 = vmatprep.subr.mxu0 0.0
        %2343 = vmatpush1.msra.mxu0 0.0
        %2344 = vmatprep.subr.mxu0 0.0
        %2345 = vmatpush1.msra.mxu0 0.0
        %2346 = vmatprep.subr.mxu0 0.0
        %2347 = vmatpush1.msra.mxu0 0.0
        %2348 = vmatprep.subr.mxu0 0.0
        %2349 = vmatpush1.msra.mxu0 0.0
        %2350 = vmatprep.subr.mxu0 0.0
        %2351 = vmatpush1.msra.mxu0 0.0
        %2352 = vmatprep.subr.mxu0 0.0
        %2353 = vmatpush1.msra.mxu0 0.0
        %2354 = vmatprep.subr.mxu0 0.0
        %2355 = vmatpush1.msra.mxu0 0.0
        %2356 = vmatprep.subr.mxu0 0.0
        %2357 = vmatpush1.msra.mxu0 0.0
        %2358 = vmatprep.subr.mxu0 0.0
        %2359 = vmatpush1.msra.mxu0 0.0
        %2360 = vmatprep.subr.mxu0 0.0
        %2361 = vmatpush1.msra.mxu0 0.0
        %2362 = vmatprep.subr.mxu0 0.0
        %2363 = vmatpush1.msra.mxu0 %v2283
        %2364 = vmatprep.subr.mxu0 0.0
        %2365 = vmatpush1.msra.mxu0 %v2282
        %2366 = vmatprep.subr.mxu0 0.0
        %2367 = vmatpush1.msra.mxu0 %v2281
        %2368 = vmatprep.subr.mxu0 0.0
        %2369 = vmatpush1.msra.mxu0 %v2280
        %2370 = vmatprep.subr.mxu0 0.0
        %2371 = vmatpush2.msra.mxu0 0.0
        %2372 = vmatprep.subr.mxu0 0.0
        %2373 = vmatpush2.msra.mxu0 0.0
        %2374 = vmatprep.subr.mxu0 0.0
        %2375 = vmatpush2.msra.mxu0 0.0
        %2376 = vmatprep.subr.mxu0 0.0
        %2377 = vmatpush2.msra.mxu0 0.0
        %2378 = vmatprep.subr.mxu0 0.0
        %2379 = vmatpush2.msra.mxu0 0.0
        %2380 = vmatprep.subr.mxu0 0.0
        %2381 = vmatpush2.msra.mxu0 0.0
        %2382 = vmatprep.subr.mxu0 0.0
        %2383 = vmatpush2.msra.mxu0 0.0
        %2384 = vmatprep.subr.mxu0 0.0
        %2385 = vmatpush2.msra.mxu0 0.0
        %2386 = vmatprep.subr.mxu0 0.0
        %2387 = vmatpush2.msra.mxu0 0.0
        %2388 = vmatprep.subr.mxu0 0.0
        %2389 = vmatpush2.msra.mxu0 0.0
        %2390 = vmatprep.subr.mxu0 0.0
        %2391 = vmatpush2.msra.mxu0 0.0
        %2392 = vmatprep.subr.mxu0 0.0
        %2393 = vmatpush2.msra.mxu0 0.0
        %2394 = vmatprep.subr.mxu0 0.0
        %2395 = vmatpush2.msra.mxu0 0.0
        %2396 = vmatprep.subr.mxu0 0.0
        %2397 = vmatpush2.msra.mxu0 0.0
        %2398 = vmatprep.subr.mxu0 0.0
        %2399 = vmatpush2.msra.mxu0 0.0
        %2400 = vmatprep.subr.mxu0 0.0
        %2401 = vmatpush2.msra.mxu0 0.0
        %2402 = vmatprep.mubr.f32.mxu0 0.0
        %2403 = vmatmul.mubr.f32.gmra.mxu0 %v2285
        %v2404 = vpop.f32.mrf.mxu0
        %v2405 = vadd.f32 0.0, %v2404
        %v2406 = vpop.f32.mrf.mxu0
        %2407 = vmatprep.mubr.f32.mxu0 0.0
        %2408 = vmatmul.mubr.f32.gmra.mxu0 %v2288
        %v2409 = vpop.f32.mrf.mxu0
        %v2410 = vadd.f32 0.0, %v2409
        %v2411 = vpop.f32.mrf.mxu0
        %2412 = vmatprep.mubr.f32.mxu0 0.0
        %2413 = vmatmul.mubr.f32.gmra.mxu0 %v2291
        %v2414 = vpop.f32.mrf.mxu0
        %v2415 = vadd.f32 0.0, %v2414
        %v2416 = vpop.f32.mrf.mxu0
        %2417 = vmatprep.mubr.f32.mxu0 0.0
        %2418 = vmatmul.mubr.f32.gmra.mxu0 %v2294
        %v2419 = vpop.f32.mrf.mxu0
        %v2420 = vadd.f32 0.0, %v2419
        %v2421 = vpop.f32.mrf.mxu0
        %2422 = vmatprep.mubr.f32.mxu0 0.0
        %2423 = vmatmul.mubr.f32.gmra.mxu0 %v2297
        %v2424 = vpop.f32.mrf.mxu0
        %v2425 = vadd.f32 0.0, %v2424
        %v2426 = vpop.f32.mrf.mxu0
        %2427 = vmatprep.mubr.f32.mxu0 0.0
        %2428 = vmatmul.mubr.f32.gmra.mxu0 %v2300
        %v2429 = vpop.f32.mrf.mxu0
        %v2430 = vadd.f32 0.0, %v2429
        %v2431 = vpop.f32.mrf.mxu0
        %2432 = vmatprep.mubr.f32.mxu0 0.0
        %2433 = vmatmul.mubr.f32.gmra.mxu0 %v2303
        %v2434 = vpop.f32.mrf.mxu0
        %v2435 = vadd.f32 0.0, %v2434
        %v2436 = vpop.f32.mrf.mxu0
        %2437 = vmatprep.mubr.f32.mxu0 0.0
        %2438 = vmatmul.mubr.f32.gmra.mxu0 %v2306
        %v2439 = vpop.f32.mrf.mxu0
        %v2440 = vadd.f32 0.0, %v2439
        %v2441 = vpop.f32.mrf.mxu0
        %2442 = vmatprep.mubr.f32.mxu0 0.0
        %2443 = vmatmul.mubr.f32.gmra.mxu0 %v2309
        %v2444 = vpop.f32.mrf.mxu0
        %v2445 = vadd.f32 0.0, %v2444
        %v2446 = vpop.f32.mrf.mxu0
        %2447 = vmatprep.mubr.f32.mxu0 0.0
        %2448 = vmatmul.mubr.f32.gmra.mxu0 %v2312
        %v2449 = vpop.f32.mrf.mxu0
        %v2450 = vadd.f32 0.0, %v2449
        %v2451 = vpop.f32.mrf.mxu0
        %2452 = vmatprep.mubr.f32.mxu0 0.0
        %2453 = vmatmul.mubr.f32.gmra.mxu0 %v2315
        %v2454 = vpop.f32.mrf.mxu0
        %v2455 = vadd.f32 0.0, %v2454
        %v2456 = vpop.f32.mrf.mxu0
        %2457 = vmatprep.mubr.f32.mxu0 0.0
        %2458 = vmatmul.mubr.f32.gmra.mxu0 %v2318
        %v2459 = vpop.f32.mrf.mxu0
        %v2460 = vadd.f32 0.0, %v2459
        %v2461 = vpop.f32.mrf.mxu0
        %2462 = vmatprep.mubr.f32.mxu0 0.0
        %2463 = vmatmul.mubr.f32.gmra.mxu0 %v2321
        %v2464 = vpop.f32.mrf.mxu0
        %v2465 = vadd.f32 0.0, %v2464
        %v2466 = vpop.f32.mrf.mxu0
        %2467 = vmatprep.mubr.f32.mxu0 0.0
        %2468 = vmatmul.mubr.f32.gmra.mxu0 %v2324
        %v2469 = vpop.f32.mrf.mxu0
        %v2470 = vadd.f32 0.0, %v2469
        %v2471 = vpop.f32.mrf.mxu0
        %2472 = vmatprep.mubr.f32.mxu0 0.0
        %2473 = vmatmul.mubr.f32.gmra.mxu0 %v2327
        %v2474 = vpop.f32.mrf.mxu0
        %v2475 = vadd.f32 0.0, %v2474
        %v2476 = vpop.f32.mrf.mxu0
        %2477 = vmatprep.mubr.f32.mxu0 0.0
        %2478 = vmatmul.mubr.f32.gmra.mxu0 %v2330
        %v2479 = vpop.f32.mrf.mxu0
        %v2480 = vadd.f32 0.0, %v2479
        %v2481 = vpop.f32.mrf.mxu0
        %2482 = vmatprep.mubr.f32.mxu0 0.0
        %2483 = vmatmul.mubr.f32.gmra.mxu0 %v2333
        %v2484 = vpop.f32.mrf.mxu0
        %v2485 = vadd.f32 0.0, %v2484
        %v2486 = vpop.f32.mrf.mxu0
        %2487 = vmatprep.mubr.f32.mxu0 0.0
        %2488 = vmatmul.mubr.f32.gmra.mxu0 %v2336
        %v2489 = vpop.f32.mrf.mxu0
        %v2490 = vadd.f32 0.0, %v2489
        %v2491 = vpop.f32.mrf.mxu0
        %2492 = vdwg.mxu0
        %v2493 = vadd.f32 %v2243, %v2405
        %v2494 = vadd.f32 %v2244, %v2410
        %v2495 = vadd.f32 %v2245, %v2415
        %v2496 = vadd.f32 %v2246, %v2420
        %v2497 = vadd.f32 %v2247, %v2425
        %v2498 = vadd.f32 %v2248, %v2430
        %v2499 = vadd.f32 %v2249, %v2435
        %v2500 = vadd.f32 %v2250, %v2440
        %v2501 = vadd.f32 %v2251, %v2445
        %v2502 = vadd.f32 %v2252, %v2450
        %v2503 = vadd.f32 %v2253, %v2455
        %v2504 = vadd.f32 %v2254, %v2460
        %v2505 = vadd.f32 %v2255, %v2465
        %v2506 = vadd.f32 %v2256, %v2470
        %v2507 = vadd.f32 %v2257, %v2475
        %v2508 = vadd.f32 %v2258, %v2480
        %v2509 = vadd.f32 %v2259, %v2485
        %v2510 = vadd.f32 %v2260, %v2490
        %v2511 = vld [vmem:[#allocation2 + $0x121] sm:$0xff]
        %v2512 = vld [vmem:[#allocation2 + $0x129] sm:$0xff]
        %v2513 = vld [vmem:[#allocation2 + $0x131] sm:$0xff]
        %v2514 = vld [vmem:[#allocation2 + $0x139] sm:$0xff]
        %v2515 = vld [vmem:[#allocation2 + $0x141] sm:$0xff]
        %v2516 = vld [vmem:[#allocation2 + $0x149] sm:$0xff]
        %v2517 = vld [vmem:[#allocation2 + $0x151] sm:$0xff]
        %v2518 = vld [vmem:[#allocation2 + $0x159] sm:$0xff]
        %v2519 = vld [vmem:[#allocation2 + $0x161] sm:$0xff]
        %v2520 = vld [vmem:[#allocation2 + $0x169] sm:$0xff]
        %v2521 = vld [vmem:[#allocation2 + $0x171] sm:$0xff]
        %v2522 = vld [vmem:[#allocation2 + $0x179] sm:$0xff]
        %v2523 = vld [vmem:[#allocation2 + $0x181] sm:$0xff]
        %v2524 = vld [vmem:[#allocation2 + $0x189] sm:$0xff]
        %v2525 = vld [vmem:[#allocation2 + $0x191] sm:$0xff]
        %v2526 = vld [vmem:[#allocation2 + $0x199] sm:$0xff]
        %v2527 = vld [vmem:[#allocation2 + $0x1a1] sm:$0xff]
        %v2528 = vld [vmem:[#allocation2 + $0x1a9] sm:$0xff]
        %s2529 = scalar_lea.vmem [#allocation7], 160
        %v2530 = vld [vmem:[%s2529] sm:$0xff]
        %v2531 = vld [vmem:[%s2529 + $0x8] sm:$0xff]
        %v2532 = vld [vmem:[%s2529 + $0x10] sm:$0xff]
        %v2533 = vld [vmem:[%s2529 + $0x18] sm:$0xff]
        %v2535 = vsel %vm367, %v2511, 0
        %v2538 = vsel %vm367, %v2512, 0
        %v2541 = vsel %vm367, %v2513, 0
        %v2544 = vsel %vm367, %v2514, 0
        %v2547 = vsel %vm367, %v2515, 0
        %v2550 = vsel %vm367, %v2516, 0
        %v2553 = vsel %vm367, %v2517, 0
        %v2556 = vsel %vm367, %v2518, 0
        %v2559 = vsel %vm367, %v2519, 0
        %v2562 = vsel %vm367, %v2520, 0
        %v2565 = vsel %vm367, %v2521, 0
        %v2568 = vsel %vm367, %v2522, 0
        %v2571 = vsel %vm367, %v2523, 0
        %v2574 = vsel %vm367, %v2524, 0
        %v2577 = vsel %vm367, %v2525, 0
        %v2580 = vsel %vm367, %v2526, 0
        %v2583 = vsel %vm367, %v2527, 0
        %v2586 = vsel %vm367, %v2528, 0
        %2588 = vmatprep.subr.mxu0 0.0
        %2589 = vmatpush1.msra.mxu0 0.0
        %2590 = vmatprep.subr.mxu0 0.0
        %2591 = vmatpush1.msra.mxu0 0.0
        %2592 = vmatprep.subr.mxu0 0.0
        %2593 = vmatpush1.msra.mxu0 0.0
        %2594 = vmatprep.subr.mxu0 0.0
        %2595 = vmatpush1.msra.mxu0 0.0
        %2596 = vmatprep.subr.mxu0 0.0
        %2597 = vmatpush1.msra.mxu0 0.0
        %2598 = vmatprep.subr.mxu0 0.0
        %2599 = vmatpush1.msra.mxu0 0.0
        %2600 = vmatprep.subr.mxu0 0.0
        %2601 = vmatpush1.msra.mxu0 0.0
        %2602 = vmatprep.subr.mxu0 0.0
        %2603 = vmatpush1.msra.mxu0 0.0
        %2604 = vmatprep.subr.mxu0 0.0
        %2605 = vmatpush1.msra.mxu0 0.0
        %2606 = vmatprep.subr.mxu0 0.0
        %2607 = vmatpush1.msra.mxu0 0.0
        %2608 = vmatprep.subr.mxu0 0.0
        %2609 = vmatpush1.msra.mxu0 0.0
        %2610 = vmatprep.subr.mxu0 0.0
        %2611 = vmatpush1.msra.mxu0 0.0
        %2612 = vmatprep.subr.mxu0 0.0
        %2613 = vmatpush1.msra.mxu0 %v2533
        %2614 = vmatprep.subr.mxu0 0.0
        %2615 = vmatpush1.msra.mxu0 %v2532
        %2616 = vmatprep.subr.mxu0 0.0
        %2617 = vmatpush1.msra.mxu0 %v2531
        %2618 = vmatprep.subr.mxu0 0.0
        %2619 = vmatpush1.msra.mxu0 %v2530
        %2620 = vmatprep.subr.mxu0 0.0
        %2621 = vmatpush2.msra.mxu0 0.0
        %2622 = vmatprep.subr.mxu0 0.0
        %2623 = vmatpush2.msra.mxu0 0.0
        %2624 = vmatprep.subr.mxu0 0.0
        %2625 = vmatpush2.msra.mxu0 0.0
        %2626 = vmatprep.subr.mxu0 0.0
        %2627 = vmatpush2.msra.mxu0 0.0
        %2628 = vmatprep.subr.mxu0 0.0
        %2629 = vmatpush2.msra.mxu0 0.0
        %2630 = vmatprep.subr.mxu0 0.0
        %2631 = vmatpush2.msra.mxu0 0.0
        %2632 = vmatprep.subr.mxu0 0.0
        %2633 = vmatpush2.msra.mxu0 0.0
        %2634 = vmatprep.subr.mxu0 0.0
        %2635 = vmatpush2.msra.mxu0 0.0
        %2636 = vmatprep.subr.mxu0 0.0
        %2637 = vmatpush2.msra.mxu0 0.0
        %2638 = vmatprep.subr.mxu0 0.0
        %2639 = vmatpush2.msra.mxu0 0.0
        %2640 = vmatprep.subr.mxu0 0.0
        %2641 = vmatpush2.msra.mxu0 0.0
        %2642 = vmatprep.subr.mxu0 0.0
        %2643 = vmatpush2.msra.mxu0 0.0
        %2644 = vmatprep.subr.mxu0 0.0
        %2645 = vmatpush2.msra.mxu0 0.0
        %2646 = vmatprep.subr.mxu0 0.0
        %2647 = vmatpush2.msra.mxu0 0.0
        %2648 = vmatprep.subr.mxu0 0.0
        %2649 = vmatpush2.msra.mxu0 0.0
        %2650 = vmatprep.subr.mxu0 0.0
        %2651 = vmatpush2.msra.mxu0 0.0
        %2652 = vmatprep.mubr.f32.mxu0 0.0
        %2653 = vmatmul.mubr.f32.gmra.mxu0 %v2535
        %v2654 = vpop.f32.mrf.mxu0
        %v2655 = vadd.f32 0.0, %v2654
        %v2656 = vpop.f32.mrf.mxu0
        %2657 = vmatprep.mubr.f32.mxu0 0.0
        %2658 = vmatmul.mubr.f32.gmra.mxu0 %v2538
        %v2659 = vpop.f32.mrf.mxu0
        %v2660 = vadd.f32 0.0, %v2659
        %v2661 = vpop.f32.mrf.mxu0
        %2662 = vmatprep.mubr.f32.mxu0 0.0
        %2663 = vmatmul.mubr.f32.gmra.mxu0 %v2541
        %v2664 = vpop.f32.mrf.mxu0
        %v2665 = vadd.f32 0.0, %v2664
        %v2666 = vpop.f32.mrf.mxu0
        %2667 = vmatprep.mubr.f32.mxu0 0.0
        %2668 = vmatmul.mubr.f32.gmra.mxu0 %v2544
        %v2669 = vpop.f32.mrf.mxu0
        %v2670 = vadd.f32 0.0, %v2669
        %v2671 = vpop.f32.mrf.mxu0
        %2672 = vmatprep.mubr.f32.mxu0 0.0
        %2673 = vmatmul.mubr.f32.gmra.mxu0 %v2547
        %v2674 = vpop.f32.mrf.mxu0
        %v2675 = vadd.f32 0.0, %v2674
        %v2676 = vpop.f32.mrf.mxu0
        %2677 = vmatprep.mubr.f32.mxu0 0.0
        %2678 = vmatmul.mubr.f32.gmra.mxu0 %v2550
        %v2679 = vpop.f32.mrf.mxu0
        %v2680 = vadd.f32 0.0, %v2679
        %v2681 = vpop.f32.mrf.mxu0
        %2682 = vmatprep.mubr.f32.mxu0 0.0
        %2683 = vmatmul.mubr.f32.gmra.mxu0 %v2553
        %v2684 = vpop.f32.mrf.mxu0
        %v2685 = vadd.f32 0.0, %v2684
        %v2686 = vpop.f32.mrf.mxu0
        %2687 = vmatprep.mubr.f32.mxu0 0.0
        %2688 = vmatmul.mubr.f32.gmra.mxu0 %v2556
        %v2689 = vpop.f32.mrf.mxu0
        %v2690 = vadd.f32 0.0, %v2689
        %v2691 = vpop.f32.mrf.mxu0
        %2692 = vmatprep.mubr.f32.mxu0 0.0
        %2693 = vmatmul.mubr.f32.gmra.mxu0 %v2559
        %v2694 = vpop.f32.mrf.mxu0
        %v2695 = vadd.f32 0.0, %v2694
        %v2696 = vpop.f32.mrf.mxu0
        %2697 = vmatprep.mubr.f32.mxu0 0.0
        %2698 = vmatmul.mubr.f32.gmra.mxu0 %v2562
        %v2699 = vpop.f32.mrf.mxu0
        %v2700 = vadd.f32 0.0, %v2699
        %v2701 = vpop.f32.mrf.mxu0
        %2702 = vmatprep.mubr.f32.mxu0 0.0
        %2703 = vmatmul.mubr.f32.gmra.mxu0 %v2565
        %v2704 = vpop.f32.mrf.mxu0
        %v2705 = vadd.f32 0.0, %v2704
        %v2706 = vpop.f32.mrf.mxu0
        %2707 = vmatprep.mubr.f32.mxu0 0.0
        %2708 = vmatmul.mubr.f32.gmra.mxu0 %v2568
        %v2709 = vpop.f32.mrf.mxu0
        %v2710 = vadd.f32 0.0, %v2709
        %v2711 = vpop.f32.mrf.mxu0
        %2712 = vmatprep.mubr.f32.mxu0 0.0
        %2713 = vmatmul.mubr.f32.gmra.mxu0 %v2571
        %v2714 = vpop.f32.mrf.mxu0
        %v2715 = vadd.f32 0.0, %v2714
        %v2716 = vpop.f32.mrf.mxu0
        %2717 = vmatprep.mubr.f32.mxu0 0.0
        %2718 = vmatmul.mubr.f32.gmra.mxu0 %v2574
        %v2719 = vpop.f32.mrf.mxu0
        %v2720 = vadd.f32 0.0, %v2719
        %v2721 = vpop.f32.mrf.mxu0
        %2722 = vmatprep.mubr.f32.mxu0 0.0
        %2723 = vmatmul.mubr.f32.gmra.mxu0 %v2577
        %v2724 = vpop.f32.mrf.mxu0
        %v2725 = vadd.f32 0.0, %v2724
        %v2726 = vpop.f32.mrf.mxu0
        %2727 = vmatprep.mubr.f32.mxu0 0.0
        %2728 = vmatmul.mubr.f32.gmra.mxu0 %v2580
        %v2729 = vpop.f32.mrf.mxu0
        %v2730 = vadd.f32 0.0, %v2729
        %v2731 = vpop.f32.mrf.mxu0
        %2732 = vmatprep.mubr.f32.mxu0 0.0
        %2733 = vmatmul.mubr.f32.gmra.mxu0 %v2583
        %v2734 = vpop.f32.mrf.mxu0
        %v2735 = vadd.f32 0.0, %v2734
        %v2736 = vpop.f32.mrf.mxu0
        %2737 = vmatprep.mubr.f32.mxu0 0.0
        %2738 = vmatmul.mubr.f32.gmra.mxu0 %v2586
        %v2739 = vpop.f32.mrf.mxu0
        %v2740 = vadd.f32 0.0, %v2739
        %v2741 = vpop.f32.mrf.mxu0
        %2742 = vdwg.mxu0
        %v2743 = vadd.f32 %v2493, %v2655
        %v2744 = vadd.f32 %v2494, %v2660
        %v2745 = vadd.f32 %v2495, %v2665
        %v2746 = vadd.f32 %v2496, %v2670
        %v2747 = vadd.f32 %v2497, %v2675
        %v2748 = vadd.f32 %v2498, %v2680
        %v2749 = vadd.f32 %v2499, %v2685
        %v2750 = vadd.f32 %v2500, %v2690
        %v2751 = vadd.f32 %v2501, %v2695
        %v2752 = vadd.f32 %v2502, %v2700
        %v2753 = vadd.f32 %v2503, %v2705
        %v2754 = vadd.f32 %v2504, %v2710
        %v2755 = vadd.f32 %v2505, %v2715
        %v2756 = vadd.f32 %v2506, %v2720
        %v2757 = vadd.f32 %v2507, %v2725
        %v2758 = vadd.f32 %v2508, %v2730
        %v2759 = vadd.f32 %v2509, %v2735
        %v2760 = vadd.f32 %v2510, %v2740
        %v2761 = vld [vmem:[#allocation2 + $0xc] sm:$0xff]
        %v2762 = vld [vmem:[#allocation2 + $0x14] sm:$0xff]
        %v2763 = vld [vmem:[#allocation2 + $0x1c] sm:$0xff]
        %v2764 = vld [vmem:[#allocation2 + $0x24] sm:$0xff]
        %v2765 = vld [vmem:[#allocation2 + $0x2c] sm:$0xff]
        %v2766 = vld [vmem:[#allocation2 + $0x34] sm:$0xff]
        %v2767 = vld [vmem:[#allocation2 + $0x3c] sm:$0xff]
        %v2768 = vld [vmem:[#allocation2 + $0x44] sm:$0xff]
        %v2769 = vld [vmem:[#allocation2 + $0x4c] sm:$0xff]
        %v2770 = vld [vmem:[#allocation2 + $0x54] sm:$0xff]
        %v2771 = vld [vmem:[#allocation2 + $0x5c] sm:$0xff]
        %v2772 = vld [vmem:[#allocation2 + $0x64] sm:$0xff]
        %v2773 = vld [vmem:[#allocation2 + $0x6c] sm:$0xff]
        %v2774 = vld [vmem:[#allocation2 + $0x74] sm:$0xff]
        %v2775 = vld [vmem:[#allocation2 + $0x7c] sm:$0xff]
        %v2776 = vld [vmem:[#allocation2 + $0x84] sm:$0xff]
        %v2777 = vld [vmem:[#allocation2 + $0x8c] sm:$0xff]
        %v2778 = vld [vmem:[#allocation2 + $0x94] sm:$0xff]
        %s2779 = scalar_lea.vmem [#allocation7], 192
        %v2780 = vld [vmem:[%s2779] sm:$0xff]
        %v2781 = vld [vmem:[%s2779 + $0x8] sm:$0xff]
        %v2782 = vld [vmem:[%s2779 + $0x10] sm:$0xff]
        %v2783 = vld [vmem:[%s2779 + $0x18] sm:$0xff]
        %v2785 = vsel %vm367, %v2761, 0
        %v2788 = vsel %vm367, %v2762, 0
        %v2791 = vsel %vm367, %v2763, 0
        %v2794 = vsel %vm367, %v2764, 0
        %v2797 = vsel %vm367, %v2765, 0
        %v2800 = vsel %vm367, %v2766, 0
        %v2803 = vsel %vm367, %v2767, 0
        %v2806 = vsel %vm367, %v2768, 0
        %v2809 = vsel %vm367, %v2769, 0
        %v2812 = vsel %vm367, %v2770, 0
        %v2815 = vsel %vm367, %v2771, 0
        %v2818 = vsel %vm367, %v2772, 0
        %v2821 = vsel %vm367, %v2773, 0
        %v2824 = vsel %vm367, %v2774, 0
        %v2827 = vsel %vm367, %v2775, 0
        %v2830 = vsel %vm367, %v2776, 0
        %v2833 = vsel %vm367, %v2777, 0
        %v2836 = vsel %vm367, %v2778, 0
        %2838 = vmatprep.subr.mxu0 0.0
        %2839 = vmatpush1.msra.mxu0 0.0
        %2840 = vmatprep.subr.mxu0 0.0
        %2841 = vmatpush1.msra.mxu0 0.0
        %2842 = vmatprep.subr.mxu0 0.0
        %2843 = vmatpush1.msra.mxu0 0.0
        %2844 = vmatprep.subr.mxu0 0.0
        %2845 = vmatpush1.msra.mxu0 0.0
        %2846 = vmatprep.subr.mxu0 0.0
        %2847 = vmatpush1.msra.mxu0 0.0
        %2848 = vmatprep.subr.mxu0 0.0
        %2849 = vmatpush1.msra.mxu0 0.0
        %2850 = vmatprep.subr.mxu0 0.0
        %2851 = vmatpush1.msra.mxu0 0.0
        %2852 = vmatprep.subr.mxu0 0.0
        %2853 = vmatpush1.msra.mxu0 0.0
        %2854 = vmatprep.subr.mxu0 0.0
        %2855 = vmatpush1.msra.mxu0 0.0
        %2856 = vmatprep.subr.mxu0 0.0
        %2857 = vmatpush1.msra.mxu0 0.0
        %2858 = vmatprep.subr.mxu0 0.0
        %2859 = vmatpush1.msra.mxu0 0.0
        %2860 = vmatprep.subr.mxu0 0.0
        %2861 = vmatpush1.msra.mxu0 0.0
        %2862 = vmatprep.subr.mxu0 0.0
        %2863 = vmatpush1.msra.mxu0 %v2783
        %2864 = vmatprep.subr.mxu0 0.0
        %2865 = vmatpush1.msra.mxu0 %v2782
        %2866 = vmatprep.subr.mxu0 0.0
        %2867 = vmatpush1.msra.mxu0 %v2781
        %2868 = vmatprep.subr.mxu0 0.0
        %2869 = vmatpush1.msra.mxu0 %v2780
        %2870 = vmatprep.subr.mxu0 0.0
        %2871 = vmatpush2.msra.mxu0 0.0
        %2872 = vmatprep.subr.mxu0 0.0
        %2873 = vmatpush2.msra.mxu0 0.0
        %2874 = vmatprep.subr.mxu0 0.0
        %2875 = vmatpush2.msra.mxu0 0.0
        %2876 = vmatprep.subr.mxu0 0.0
        %2877 = vmatpush2.msra.mxu0 0.0
        %2878 = vmatprep.subr.mxu0 0.0
        %2879 = vmatpush2.msra.mxu0 0.0
        %2880 = vmatprep.subr.mxu0 0.0
        %2881 = vmatpush2.msra.mxu0 0.0
        %2882 = vmatprep.subr.mxu0 0.0
        %2883 = vmatpush2.msra.mxu0 0.0
        %2884 = vmatprep.subr.mxu0 0.0
        %2885 = vmatpush2.msra.mxu0 0.0
        %2886 = vmatprep.subr.mxu0 0.0
        %2887 = vmatpush2.msra.mxu0 0.0
        %2888 = vmatprep.subr.mxu0 0.0
        %2889 = vmatpush2.msra.mxu0 0.0
        %2890 = vmatprep.subr.mxu0 0.0
        %2891 = vmatpush2.msra.mxu0 0.0
        %2892 = vmatprep.subr.mxu0 0.0
        %2893 = vmatpush2.msra.mxu0 0.0
        %2894 = vmatprep.subr.mxu0 0.0
        %2895 = vmatpush2.msra.mxu0 0.0
        %2896 = vmatprep.subr.mxu0 0.0
        %2897 = vmatpush2.msra.mxu0 0.0
        %2898 = vmatprep.subr.mxu0 0.0
        %2899 = vmatpush2.msra.mxu0 0.0
        %2900 = vmatprep.subr.mxu0 0.0
        %2901 = vmatpush2.msra.mxu0 0.0
        %2902 = vmatprep.mubr.f32.mxu0 0.0
        %2903 = vmatmul.mubr.f32.gmra.mxu0 %v2785
        %v2904 = vpop.f32.mrf.mxu0
        %v2905 = vadd.f32 0.0, %v2904
        %v2906 = vpop.f32.mrf.mxu0
        %2907 = vmatprep.mubr.f32.mxu0 0.0
        %2908 = vmatmul.mubr.f32.gmra.mxu0 %v2788
        %v2909 = vpop.f32.mrf.mxu0
        %v2910 = vadd.f32 0.0, %v2909
        %v2911 = vpop.f32.mrf.mxu0
        %2912 = vmatprep.mubr.f32.mxu0 0.0
        %2913 = vmatmul.mubr.f32.gmra.mxu0 %v2791
        %v2914 = vpop.f32.mrf.mxu0
        %v2915 = vadd.f32 0.0, %v2914
        %v2916 = vpop.f32.mrf.mxu0
        %2917 = vmatprep.mubr.f32.mxu0 0.0
        %2918 = vmatmul.mubr.f32.gmra.mxu0 %v2794
        %v2919 = vpop.f32.mrf.mxu0
        %v2920 = vadd.f32 0.0, %v2919
        %v2921 = vpop.f32.mrf.mxu0
        %2922 = vmatprep.mubr.f32.mxu0 0.0
        %2923 = vmatmul.mubr.f32.gmra.mxu0 %v2797
        %v2924 = vpop.f32.mrf.mxu0
        %v2925 = vadd.f32 0.0, %v2924
        %v2926 = vpop.f32.mrf.mxu0
        %2927 = vmatprep.mubr.f32.mxu0 0.0
        %2928 = vmatmul.mubr.f32.gmra.mxu0 %v2800
        %v2929 = vpop.f32.mrf.mxu0
        %v2930 = vadd.f32 0.0, %v2929
        %v2931 = vpop.f32.mrf.mxu0
        %2932 = vmatprep.mubr.f32.mxu0 0.0
        %2933 = vmatmul.mubr.f32.gmra.mxu0 %v2803
        %v2934 = vpop.f32.mrf.mxu0
        %v2935 = vadd.f32 0.0, %v2934
        %v2936 = vpop.f32.mrf.mxu0
        %2937 = vmatprep.mubr.f32.mxu0 0.0
        %2938 = vmatmul.mubr.f32.gmra.mxu0 %v2806
        %v2939 = vpop.f32.mrf.mxu0
        %v2940 = vadd.f32 0.0, %v2939
        %v2941 = vpop.f32.mrf.mxu0
        %2942 = vmatprep.mubr.f32.mxu0 0.0
        %2943 = vmatmul.mubr.f32.gmra.mxu0 %v2809
        %v2944 = vpop.f32.mrf.mxu0
        %v2945 = vadd.f32 0.0, %v2944
        %v2946 = vpop.f32.mrf.mxu0
        %2947 = vmatprep.mubr.f32.mxu0 0.0
        %2948 = vmatmul.mubr.f32.gmra.mxu0 %v2812
        %v2949 = vpop.f32.mrf.mxu0
        %v2950 = vadd.f32 0.0, %v2949
        %v2951 = vpop.f32.mrf.mxu0
        %2952 = vmatprep.mubr.f32.mxu0 0.0
        %2953 = vmatmul.mubr.f32.gmra.mxu0 %v2815
        %v2954 = vpop.f32.mrf.mxu0
        %v2955 = vadd.f32 0.0, %v2954
        %v2956 = vpop.f32.mrf.mxu0
        %2957 = vmatprep.mubr.f32.mxu0 0.0
        %2958 = vmatmul.mubr.f32.gmra.mxu0 %v2818
        %v2959 = vpop.f32.mrf.mxu0
        %v2960 = vadd.f32 0.0, %v2959
        %v2961 = vpop.f32.mrf.mxu0
        %2962 = vmatprep.mubr.f32.mxu0 0.0
        %2963 = vmatmul.mubr.f32.gmra.mxu0 %v2821
        %v2964 = vpop.f32.mrf.mxu0
        %v2965 = vadd.f32 0.0, %v2964
        %v2966 = vpop.f32.mrf.mxu0
        %2967 = vmatprep.mubr.f32.mxu0 0.0
        %2968 = vmatmul.mubr.f32.gmra.mxu0 %v2824
        %v2969 = vpop.f32.mrf.mxu0
        %v2970 = vadd.f32 0.0, %v2969
        %v2971 = vpop.f32.mrf.mxu0
        %2972 = vmatprep.mubr.f32.mxu0 0.0
        %2973 = vmatmul.mubr.f32.gmra.mxu0 %v2827
        %v2974 = vpop.f32.mrf.mxu0
        %v2975 = vadd.f32 0.0, %v2974
        %v2976 = vpop.f32.mrf.mxu0
        %2977 = vmatprep.mubr.f32.mxu0 0.0
        %2978 = vmatmul.mubr.f32.gmra.mxu0 %v2830
        %v2979 = vpop.f32.mrf.mxu0
        %v2980 = vadd.f32 0.0, %v2979
        %v2981 = vpop.f32.mrf.mxu0
        %2982 = vmatprep.mubr.f32.mxu0 0.0
        %2983 = vmatmul.mubr.f32.gmra.mxu0 %v2833
        %v2984 = vpop.f32.mrf.mxu0
        %v2985 = vadd.f32 0.0, %v2984
        %v2986 = vpop.f32.mrf.mxu0
        %2987 = vmatprep.mubr.f32.mxu0 0.0
        %2988 = vmatmul.mubr.f32.gmra.mxu0 %v2836
        %v2989 = vpop.f32.mrf.mxu0
        %v2990 = vadd.f32 0.0, %v2989
        %v2991 = vpop.f32.mrf.mxu0
        %2992 = vdwg.mxu0
        %v2993 = vadd.f32 %v2743, %v2905
        %v2994 = vadd.f32 %v2744, %v2910
        %v2995 = vadd.f32 %v2745, %v2915
        %v2996 = vadd.f32 %v2746, %v2920
        %v2997 = vadd.f32 %v2747, %v2925
        %v2998 = vadd.f32 %v2748, %v2930
        %v2999 = vadd.f32 %v2749, %v2935
        %v3000 = vadd.f32 %v2750, %v2940
        %v3001 = vadd.f32 %v2751, %v2945
        %v3002 = vadd.f32 %v2752, %v2950
        %v3003 = vadd.f32 %v2753, %v2955
        %v3004 = vadd.f32 %v2754, %v2960
        %v3005 = vadd.f32 %v2755, %v2965
        %v3006 = vadd.f32 %v2756, %v2970
        %v3007 = vadd.f32 %v2757, %v2975
        %v3008 = vadd.f32 %v2758, %v2980
        %v3009 = vadd.f32 %v2759, %v2985
        %v3010 = vadd.f32 %v2760, %v2990
        %v3011 = vld [vmem:[#allocation2 + $0x9c] sm:$0xff]
        %v3012 = vld [vmem:[#allocation2 + $0xa4] sm:$0xff]
        %v3013 = vld [vmem:[#allocation2 + $0xac] sm:$0xff]
        %v3014 = vld [vmem:[#allocation2 + $0xb4] sm:$0xff]
        %v3015 = vld [vmem:[#allocation2 + $0xbc] sm:$0xff]
        %v3016 = vld [vmem:[#allocation2 + $0xc4] sm:$0xff]
        %v3017 = vld [vmem:[#allocation2 + $0xcc] sm:$0xff]
        %v3018 = vld [vmem:[#allocation2 + $0xd4] sm:$0xff]
        %v3019 = vld [vmem:[#allocation2 + $0xdc] sm:$0xff]
        %v3020 = vld [vmem:[#allocation2 + $0xe4] sm:$0xff]
        %v3021 = vld [vmem:[#allocation2 + $0xec] sm:$0xff]
        %v3022 = vld [vmem:[#allocation2 + $0xf4] sm:$0xff]
        %v3023 = vld [vmem:[#allocation2 + $0xfc] sm:$0xff]
        %v3024 = vld [vmem:[#allocation2 + $0x104] sm:$0xff]
        %v3025 = vld [vmem:[#allocation2 + $0x10c] sm:$0xff]
        %v3026 = vld [vmem:[#allocation2 + $0x114] sm:$0xff]
        %v3027 = vld [vmem:[#allocation2 + $0x11c] sm:$0xff]
        %v3028 = vld [vmem:[#allocation2 + $0x124] sm:$0xff]
        %s3029 = scalar_lea.vmem [#allocation7], 224
        %v3030 = vld [vmem:[%s3029] sm:$0xff]
        %v3031 = vld [vmem:[%s3029 + $0x8] sm:$0xff]
        %v3032 = vld [vmem:[%s3029 + $0x10] sm:$0xff]
        %v3033 = vld [vmem:[%s3029 + $0x18] sm:$0xff]
        %v3035 = vsel %vm367, %v3011, 0
        %v3038 = vsel %vm367, %v3012, 0
        %v3041 = vsel %vm367, %v3013, 0
        %v3044 = vsel %vm367, %v3014, 0
        %v3047 = vsel %vm367, %v3015, 0
        %v3050 = vsel %vm367, %v3016, 0
        %v3053 = vsel %vm367, %v3017, 0
        %v3056 = vsel %vm367, %v3018, 0
        %v3059 = vsel %vm367, %v3019, 0
        %v3062 = vsel %vm367, %v3020, 0
        %v3065 = vsel %vm367, %v3021, 0
        %v3068 = vsel %vm367, %v3022, 0
        %v3071 = vsel %vm367, %v3023, 0
        %v3074 = vsel %vm367, %v3024, 0
        %v3077 = vsel %vm367, %v3025, 0
        %v3080 = vsel %vm367, %v3026, 0
        %v3083 = vsel %vm367, %v3027, 0
        %v3086 = vsel %vm367, %v3028, 0
        %3088 = vmatprep.subr.mxu0 0.0
        %3089 = vmatpush1.msra.mxu0 0.0
        %3090 = vmatprep.subr.mxu0 0.0
        %3091 = vmatpush1.msra.mxu0 0.0
        %3092 = vmatprep.subr.mxu0 0.0
        %3093 = vmatpush1.msra.mxu0 0.0
        %3094 = vmatprep.subr.mxu0 0.0
        %3095 = vmatpush1.msra.mxu0 0.0
        %3096 = vmatprep.subr.mxu0 0.0
        %3097 = vmatpush1.msra.mxu0 0.0
        %3098 = vmatprep.subr.mxu0 0.0
        %3099 = vmatpush1.msra.mxu0 0.0
        %3100 = vmatprep.subr.mxu0 0.0
        %3101 = vmatpush1.msra.mxu0 0.0
        %3102 = vmatprep.subr.mxu0 0.0
        %3103 = vmatpush1.msra.mxu0 0.0
        %3104 = vmatprep.subr.mxu0 0.0
        %3105 = vmatpush1.msra.mxu0 0.0
        %3106 = vmatprep.subr.mxu0 0.0
        %3107 = vmatpush1.msra.mxu0 0.0
        %3108 = vmatprep.subr.mxu0 0.0
        %3109 = vmatpush1.msra.mxu0 0.0
        %3110 = vmatprep.subr.mxu0 0.0
        %3111 = vmatpush1.msra.mxu0 0.0
        %3112 = vmatprep.subr.mxu0 0.0
        %3113 = vmatpush1.msra.mxu0 %v3033
        %3114 = vmatprep.subr.mxu0 0.0
        %3115 = vmatpush1.msra.mxu0 %v3032
        %3116 = vmatprep.subr.mxu0 0.0
        %3117 = vmatpush1.msra.mxu0 %v3031
        %3118 = vmatprep.subr.mxu0 0.0
        %3119 = vmatpush1.msra.mxu0 %v3030
        %3120 = vmatprep.subr.mxu0 0.0
        %3121 = vmatpush2.msra.mxu0 0.0
        %3122 = vmatprep.subr.mxu0 0.0
        %3123 = vmatpush2.msra.mxu0 0.0
        %3124 = vmatprep.subr.mxu0 0.0
        %3125 = vmatpush2.msra.mxu0 0.0
        %3126 = vmatprep.subr.mxu0 0.0
        %3127 = vmatpush2.msra.mxu0 0.0
        %3128 = vmatprep.subr.mxu0 0.0
        %3129 = vmatpush2.msra.mxu0 0.0
        %3130 = vmatprep.subr.mxu0 0.0
        %3131 = vmatpush2.msra.mxu0 0.0
        %3132 = vmatprep.subr.mxu0 0.0
        %3133 = vmatpush2.msra.mxu0 0.0
        %3134 = vmatprep.subr.mxu0 0.0
        %3135 = vmatpush2.msra.mxu0 0.0
        %3136 = vmatprep.subr.mxu0 0.0
        %3137 = vmatpush2.msra.mxu0 0.0
        %3138 = vmatprep.subr.mxu0 0.0
        %3139 = vmatpush2.msra.mxu0 0.0
        %3140 = vmatprep.subr.mxu0 0.0
        %3141 = vmatpush2.msra.mxu0 0.0
        %3142 = vmatprep.subr.mxu0 0.0
        %3143 = vmatpush2.msra.mxu0 0.0
        %3144 = vmatprep.subr.mxu0 0.0
        %3145 = vmatpush2.msra.mxu0 0.0
        %3146 = vmatprep.subr.mxu0 0.0
        %3147 = vmatpush2.msra.mxu0 0.0
        %3148 = vmatprep.subr.mxu0 0.0
        %3149 = vmatpush2.msra.mxu0 0.0
        %3150 = vmatprep.subr.mxu0 0.0
        %3151 = vmatpush2.msra.mxu0 0.0
        %3152 = vmatprep.mubr.f32.mxu0 0.0
        %3153 = vmatmul.mubr.f32.gmra.mxu0 %v3035
        %v3154 = vpop.f32.mrf.mxu0
        %v3155 = vadd.f32 0.0, %v3154
        %v3156 = vpop.f32.mrf.mxu0
        %3157 = vmatprep.mubr.f32.mxu0 0.0
        %3158 = vmatmul.mubr.f32.gmra.mxu0 %v3038
        %v3159 = vpop.f32.mrf.mxu0
        %v3160 = vadd.f32 0.0, %v3159
        %v3161 = vpop.f32.mrf.mxu0
        %3162 = vmatprep.mubr.f32.mxu0 0.0
        %3163 = vmatmul.mubr.f32.gmra.mxu0 %v3041
        %v3164 = vpop.f32.mrf.mxu0
        %v3165 = vadd.f32 0.0, %v3164
        %v3166 = vpop.f32.mrf.mxu0
        %3167 = vmatprep.mubr.f32.mxu0 0.0
        %3168 = vmatmul.mubr.f32.gmra.mxu0 %v3044
        %v3169 = vpop.f32.mrf.mxu0
        %v3170 = vadd.f32 0.0, %v3169
        %v3171 = vpop.f32.mrf.mxu0
        %3172 = vmatprep.mubr.f32.mxu0 0.0
        %3173 = vmatmul.mubr.f32.gmra.mxu0 %v3047
        %v3174 = vpop.f32.mrf.mxu0
        %v3175 = vadd.f32 0.0, %v3174
        %v3176 = vpop.f32.mrf.mxu0
        %3177 = vmatprep.mubr.f32.mxu0 0.0
        %3178 = vmatmul.mubr.f32.gmra.mxu0 %v3050
        %v3179 = vpop.f32.mrf.mxu0
        %v3180 = vadd.f32 0.0, %v3179
        %v3181 = vpop.f32.mrf.mxu0
        %3182 = vmatprep.mubr.f32.mxu0 0.0
        %3183 = vmatmul.mubr.f32.gmra.mxu0 %v3053
        %v3184 = vpop.f32.mrf.mxu0
        %v3185 = vadd.f32 0.0, %v3184
        %v3186 = vpop.f32.mrf.mxu0
        %3187 = vmatprep.mubr.f32.mxu0 0.0
        %3188 = vmatmul.mubr.f32.gmra.mxu0 %v3056
        %v3189 = vpop.f32.mrf.mxu0
        %v3190 = vadd.f32 0.0, %v3189
        %v3191 = vpop.f32.mrf.mxu0
        %3192 = vmatprep.mubr.f32.mxu0 0.0
        %3193 = vmatmul.mubr.f32.gmra.mxu0 %v3059
        %v3194 = vpop.f32.mrf.mxu0
        %v3195 = vadd.f32 0.0, %v3194
        %v3196 = vpop.f32.mrf.mxu0
        %3197 = vmatprep.mubr.f32.mxu0 0.0
        %3198 = vmatmul.mubr.f32.gmra.mxu0 %v3062
        %v3199 = vpop.f32.mrf.mxu0
        %v3200 = vadd.f32 0.0, %v3199
        %v3201 = vpop.f32.mrf.mxu0
        %3202 = vmatprep.mubr.f32.mxu0 0.0
        %3203 = vmatmul.mubr.f32.gmra.mxu0 %v3065
        %v3204 = vpop.f32.mrf.mxu0
        %v3205 = vadd.f32 0.0, %v3204
        %v3206 = vpop.f32.mrf.mxu0
        %3207 = vmatprep.mubr.f32.mxu0 0.0
        %3208 = vmatmul.mubr.f32.gmra.mxu0 %v3068
        %v3209 = vpop.f32.mrf.mxu0
        %v3210 = vadd.f32 0.0, %v3209
        %v3211 = vpop.f32.mrf.mxu0
        %3212 = vmatprep.mubr.f32.mxu0 0.0
        %3213 = vmatmul.mubr.f32.gmra.mxu0 %v3071
        %v3214 = vpop.f32.mrf.mxu0
        %v3215 = vadd.f32 0.0, %v3214
        %v3216 = vpop.f32.mrf.mxu0
        %3217 = vmatprep.mubr.f32.mxu0 0.0
        %3218 = vmatmul.mubr.f32.gmra.mxu0 %v3074
        %v3219 = vpop.f32.mrf.mxu0
        %v3220 = vadd.f32 0.0, %v3219
        %v3221 = vpop.f32.mrf.mxu0
        %3222 = vmatprep.mubr.f32.mxu0 0.0
        %3223 = vmatmul.mubr.f32.gmra.mxu0 %v3077
        %v3224 = vpop.f32.mrf.mxu0
        %v3225 = vadd.f32 0.0, %v3224
        %v3226 = vpop.f32.mrf.mxu0
        %3227 = vmatprep.mubr.f32.mxu0 0.0
        %3228 = vmatmul.mubr.f32.gmra.mxu0 %v3080
        %v3229 = vpop.f32.mrf.mxu0
        %v3230 = vadd.f32 0.0, %v3229
        %v3231 = vpop.f32.mrf.mxu0
        %3232 = vmatprep.mubr.f32.mxu0 0.0
        %3233 = vmatmul.mubr.f32.gmra.mxu0 %v3083
        %v3234 = vpop.f32.mrf.mxu0
        %v3235 = vadd.f32 0.0, %v3234
        %v3236 = vpop.f32.mrf.mxu0
        %3237 = vmatprep.mubr.f32.mxu0 0.0
        %3238 = vmatmul.mubr.f32.gmra.mxu0 %v3086
        %v3239 = vpop.f32.mrf.mxu0
        %v3240 = vadd.f32 0.0, %v3239
        %v3241 = vpop.f32.mrf.mxu0
        %3242 = vdwg.mxu0
        %v3243 = vadd.f32 %v2993, %v3155
        %v3244 = vadd.f32 %v2994, %v3160
        %v3245 = vadd.f32 %v2995, %v3165
        %v3246 = vadd.f32 %v2996, %v3170
        %v3247 = vadd.f32 %v2997, %v3175
        %v3248 = vadd.f32 %v2998, %v3180
        %v3249 = vadd.f32 %v2999, %v3185
        %v3250 = vadd.f32 %v3000, %v3190
        %v3251 = vadd.f32 %v3001, %v3195
        %v3252 = vadd.f32 %v3002, %v3200
        %v3253 = vadd.f32 %v3003, %v3205
        %v3254 = vadd.f32 %v3004, %v3210
        %v3255 = vadd.f32 %v3005, %v3215
        %v3256 = vadd.f32 %v3006, %v3220
        %v3257 = vadd.f32 %v3007, %v3225
        %v3258 = vadd.f32 %v3008, %v3230
        %v3259 = vadd.f32 %v3009, %v3235
        %v3260 = vadd.f32 %v3010, %v3240
        %v3261 = vld [vmem:[#allocation2 + $0xd] sm:$0xff]
        %v3262 = vld [vmem:[#allocation2 + $0x15] sm:$0xff]
        %v3263 = vld [vmem:[#allocation2 + $0x1d] sm:$0xff]
        %v3264 = vld [vmem:[#allocation2 + $0x25] sm:$0xff]
        %v3265 = vld [vmem:[#allocation2 + $0x2d] sm:$0xff]
        %v3266 = vld [vmem:[#allocation2 + $0x35] sm:$0xff]
        %v3267 = vld [vmem:[#allocation2 + $0x3d] sm:$0xff]
        %v3268 = vld [vmem:[#allocation2 + $0x45] sm:$0xff]
        %v3269 = vld [vmem:[#allocation2 + $0x4d] sm:$0xff]
        %v3270 = vld [vmem:[#allocation2 + $0x55] sm:$0xff]
        %v3271 = vld [vmem:[#allocation2 + $0x5d] sm:$0xff]
        %v3272 = vld [vmem:[#allocation2 + $0x65] sm:$0xff]
        %v3273 = vld [vmem:[#allocation2 + $0x6d] sm:$0xff]
        %v3274 = vld [vmem:[#allocation2 + $0x75] sm:$0xff]
        %v3275 = vld [vmem:[#allocation2 + $0x7d] sm:$0xff]
        %v3276 = vld [vmem:[#allocation2 + $0x85] sm:$0xff]
        %v3277 = vld [vmem:[#allocation2 + $0x8d] sm:$0xff]
        %v3278 = vld [vmem:[#allocation2 + $0x95] sm:$0xff]
        %s3279 = scalar_lea.vmem [#allocation7], 256
        %v3280 = vld [vmem:[%s3279] sm:$0xff]
        %v3281 = vld [vmem:[%s3279 + $0x8] sm:$0xff]
        %v3282 = vld [vmem:[%s3279 + $0x10] sm:$0xff]
        %v3283 = vld [vmem:[%s3279 + $0x18] sm:$0xff]
        %v3285 = vsel %vm367, %v3261, 0
        %v3288 = vsel %vm367, %v3262, 0
        %v3291 = vsel %vm367, %v3263, 0
        %v3294 = vsel %vm367, %v3264, 0
        %v3297 = vsel %vm367, %v3265, 0
        %v3300 = vsel %vm367, %v3266, 0
        %v3303 = vsel %vm367, %v3267, 0
        %v3306 = vsel %vm367, %v3268, 0
        %v3309 = vsel %vm367, %v3269, 0
        %v3312 = vsel %vm367, %v3270, 0
        %v3315 = vsel %vm367, %v3271, 0
        %v3318 = vsel %vm367, %v3272, 0
        %v3321 = vsel %vm367, %v3273, 0
        %v3324 = vsel %vm367, %v3274, 0
        %v3327 = vsel %vm367, %v3275, 0
        %v3330 = vsel %vm367, %v3276, 0
        %v3333 = vsel %vm367, %v3277, 0
        %v3336 = vsel %vm367, %v3278, 0
        %3338 = vmatprep.subr.mxu0 0.0
        %3339 = vmatpush1.msra.mxu0 0.0
        %3340 = vmatprep.subr.mxu0 0.0
        %3341 = vmatpush1.msra.mxu0 0.0
        %3342 = vmatprep.subr.mxu0 0.0
        %3343 = vmatpush1.msra.mxu0 0.0
        %3344 = vmatprep.subr.mxu0 0.0
        %3345 = vmatpush1.msra.mxu0 0.0
        %3346 = vmatprep.subr.mxu0 0.0
        %3347 = vmatpush1.msra.mxu0 0.0
        %3348 = vmatprep.subr.mxu0 0.0
        %3349 = vmatpush1.msra.mxu0 0.0
        %3350 = vmatprep.subr.mxu0 0.0
        %3351 = vmatpush1.msra.mxu0 0.0
        %3352 = vmatprep.subr.mxu0 0.0
        %3353 = vmatpush1.msra.mxu0 0.0
        %3354 = vmatprep.subr.mxu0 0.0
        %3355 = vmatpush1.msra.mxu0 0.0
        %3356 = vmatprep.subr.mxu0 0.0
        %3357 = vmatpush1.msra.mxu0 0.0
        %3358 = vmatprep.subr.mxu0 0.0
        %3359 = vmatpush1.msra.mxu0 0.0
        %3360 = vmatprep.subr.mxu0 0.0
        %3361 = vmatpush1.msra.mxu0 0.0
        %3362 = vmatprep.subr.mxu0 0.0
        %3363 = vmatpush1.msra.mxu0 %v3283
        %3364 = vmatprep.subr.mxu0 0.0
        %3365 = vmatpush1.msra.mxu0 %v3282
        %3366 = vmatprep.subr.mxu0 0.0
        %3367 = vmatpush1.msra.mxu0 %v3281
        %3368 = vmatprep.subr.mxu0 0.0
        %3369 = vmatpush1.msra.mxu0 %v3280
        %3370 = vmatprep.subr.mxu0 0.0
        %3371 = vmatpush2.msra.mxu0 0.0
        %3372 = vmatprep.subr.mxu0 0.0
        %3373 = vmatpush2.msra.mxu0 0.0
        %3374 = vmatprep.subr.mxu0 0.0
        %3375 = vmatpush2.msra.mxu0 0.0
        %3376 = vmatprep.subr.mxu0 0.0
        %3377 = vmatpush2.msra.mxu0 0.0
        %3378 = vmatprep.subr.mxu0 0.0
        %3379 = vmatpush2.msra.mxu0 0.0
        %3380 = vmatprep.subr.mxu0 0.0
        %3381 = vmatpush2.msra.mxu0 0.0
        %3382 = vmatprep.subr.mxu0 0.0
        %3383 = vmatpush2.msra.mxu0 0.0
        %3384 = vmatprep.subr.mxu0 0.0
        %3385 = vmatpush2.msra.mxu0 0.0
        %3386 = vmatprep.subr.mxu0 0.0
        %3387 = vmatpush2.msra.mxu0 0.0
        %3388 = vmatprep.subr.mxu0 0.0
        %3389 = vmatpush2.msra.mxu0 0.0
        %3390 = vmatprep.subr.mxu0 0.0
        %3391 = vmatpush2.msra.mxu0 0.0
        %3392 = vmatprep.subr.mxu0 0.0
        %3393 = vmatpush2.msra.mxu0 0.0
        %3394 = vmatprep.subr.mxu0 0.0
        %3395 = vmatpush2.msra.mxu0 0.0
        %3396 = vmatprep.subr.mxu0 0.0
        %3397 = vmatpush2.msra.mxu0 0.0
        %3398 = vmatprep.subr.mxu0 0.0
        %3399 = vmatpush2.msra.mxu0 0.0
        %3400 = vmatprep.subr.mxu0 0.0
        %3401 = vmatpush2.msra.mxu0 0.0
        %3402 = vmatprep.mubr.f32.mxu0 0.0
        %3403 = vmatmul.mubr.f32.gmra.mxu0 %v3285
        %v3404 = vpop.f32.mrf.mxu0
        %v3405 = vadd.f32 0.0, %v3404
        %v3406 = vpop.f32.mrf.mxu0
        %3407 = vmatprep.mubr.f32.mxu0 0.0
        %3408 = vmatmul.mubr.f32.gmra.mxu0 %v3288
        %v3409 = vpop.f32.mrf.mxu0
        %v3410 = vadd.f32 0.0, %v3409
        %v3411 = vpop.f32.mrf.mxu0
        %3412 = vmatprep.mubr.f32.mxu0 0.0
        %3413 = vmatmul.mubr.f32.gmra.mxu0 %v3291
        %v3414 = vpop.f32.mrf.mxu0
        %v3415 = vadd.f32 0.0, %v3414
        %v3416 = vpop.f32.mrf.mxu0
        %3417 = vmatprep.mubr.f32.mxu0 0.0
        %3418 = vmatmul.mubr.f32.gmra.mxu0 %v3294
        %v3419 = vpop.f32.mrf.mxu0
        %v3420 = vadd.f32 0.0, %v3419
        %v3421 = vpop.f32.mrf.mxu0
        %3422 = vmatprep.mubr.f32.mxu0 0.0
        %3423 = vmatmul.mubr.f32.gmra.mxu0 %v3297
        %v3424 = vpop.f32.mrf.mxu0
        %v3425 = vadd.f32 0.0, %v3424
        %v3426 = vpop.f32.mrf.mxu0
        %3427 = vmatprep.mubr.f32.mxu0 0.0
        %3428 = vmatmul.mubr.f32.gmra.mxu0 %v3300
        %v3429 = vpop.f32.mrf.mxu0
        %v3430 = vadd.f32 0.0, %v3429
        %v3431 = vpop.f32.mrf.mxu0
        %3432 = vmatprep.mubr.f32.mxu0 0.0
        %3433 = vmatmul.mubr.f32.gmra.mxu0 %v3303
        %v3434 = vpop.f32.mrf.mxu0
        %v3435 = vadd.f32 0.0, %v3434
        %v3436 = vpop.f32.mrf.mxu0
        %3437 = vmatprep.mubr.f32.mxu0 0.0
        %3438 = vmatmul.mubr.f32.gmra.mxu0 %v3306
        %v3439 = vpop.f32.mrf.mxu0
        %v3440 = vadd.f32 0.0, %v3439
        %v3441 = vpop.f32.mrf.mxu0
        %3442 = vmatprep.mubr.f32.mxu0 0.0
        %3443 = vmatmul.mubr.f32.gmra.mxu0 %v3309
        %v3444 = vpop.f32.mrf.mxu0
        %v3445 = vadd.f32 0.0, %v3444
        %v3446 = vpop.f32.mrf.mxu0
        %3447 = vmatprep.mubr.f32.mxu0 0.0
        %3448 = vmatmul.mubr.f32.gmra.mxu0 %v3312
        %v3449 = vpop.f32.mrf.mxu0
        %v3450 = vadd.f32 0.0, %v3449
        %v3451 = vpop.f32.mrf.mxu0
        %3452 = vmatprep.mubr.f32.mxu0 0.0
        %3453 = vmatmul.mubr.f32.gmra.mxu0 %v3315
        %v3454 = vpop.f32.mrf.mxu0
        %v3455 = vadd.f32 0.0, %v3454
        %v3456 = vpop.f32.mrf.mxu0
        %3457 = vmatprep.mubr.f32.mxu0 0.0
        %3458 = vmatmul.mubr.f32.gmra.mxu0 %v3318
        %v3459 = vpop.f32.mrf.mxu0
        %v3460 = vadd.f32 0.0, %v3459
        %v3461 = vpop.f32.mrf.mxu0
        %3462 = vmatprep.mubr.f32.mxu0 0.0
        %3463 = vmatmul.mubr.f32.gmra.mxu0 %v3321
        %v3464 = vpop.f32.mrf.mxu0
        %v3465 = vadd.f32 0.0, %v3464
        %v3466 = vpop.f32.mrf.mxu0
        %3467 = vmatprep.mubr.f32.mxu0 0.0
        %3468 = vmatmul.mubr.f32.gmra.mxu0 %v3324
        %v3469 = vpop.f32.mrf.mxu0
        %v3470 = vadd.f32 0.0, %v3469
        %v3471 = vpop.f32.mrf.mxu0
        %3472 = vmatprep.mubr.f32.mxu0 0.0
        %3473 = vmatmul.mubr.f32.gmra.mxu0 %v3327
        %v3474 = vpop.f32.mrf.mxu0
        %v3475 = vadd.f32 0.0, %v3474
        %v3476 = vpop.f32.mrf.mxu0
        %3477 = vmatprep.mubr.f32.mxu0 0.0
        %3478 = vmatmul.mubr.f32.gmra.mxu0 %v3330
        %v3479 = vpop.f32.mrf.mxu0
        %v3480 = vadd.f32 0.0, %v3479
        %v3481 = vpop.f32.mrf.mxu0
        %3482 = vmatprep.mubr.f32.mxu0 0.0
        %3483 = vmatmul.mubr.f32.gmra.mxu0 %v3333
        %v3484 = vpop.f32.mrf.mxu0
        %v3485 = vadd.f32 0.0, %v3484
        %v3486 = vpop.f32.mrf.mxu0
        %3487 = vmatprep.mubr.f32.mxu0 0.0
        %3488 = vmatmul.mubr.f32.gmra.mxu0 %v3336
        %v3489 = vpop.f32.mrf.mxu0
        %v3490 = vadd.f32 0.0, %v3489
        %v3491 = vpop.f32.mrf.mxu0
        %3492 = vdwg.mxu0
        %v3493 = vadd.f32 %v3243, %v3405
        %v3494 = vadd.f32 %v3244, %v3410
        %v3495 = vadd.f32 %v3245, %v3415
        %v3496 = vadd.f32 %v3246, %v3420
        %v3497 = vadd.f32 %v3247, %v3425
        %v3498 = vadd.f32 %v3248, %v3430
        %v3499 = vadd.f32 %v3249, %v3435
        %v3500 = vadd.f32 %v3250, %v3440
        %v3501 = vadd.f32 %v3251, %v3445
        %v3502 = vadd.f32 %v3252, %v3450
        %v3503 = vadd.f32 %v3253, %v3455
        %v3504 = vadd.f32 %v3254, %v3460
        %v3505 = vadd.f32 %v3255, %v3465
        %v3506 = vadd.f32 %v3256, %v3470
        %v3507 = vadd.f32 %v3257, %v3475
        %v3508 = vadd.f32 %v3258, %v3480
        %v3509 = vadd.f32 %v3259, %v3485
        %v3510 = vadd.f32 %v3260, %v3490
        %v3511 = vld [vmem:[#allocation8] sm:$0x1]
        %v3513 = vlaneseq
        %v3514 = vshrl.u32 %v3513, 7
        %v3515 = vsub.s32 0, %v3514
        %v3516 = vrot.slane %v3511, %v3515
        %v3518 = vadd.f32 %v3493, %v3516
        %v3519 = vadd.f32 %v3494, %v3516
        %v3520 = vadd.f32 %v3495, %v3516
        %v3521 = vadd.f32 %v3496, %v3516
        %v3522 = vadd.f32 %v3497, %v3516
        %v3523 = vadd.f32 %v3498, %v3516
        %v3524 = vadd.f32 %v3499, %v3516
        %v3525 = vadd.f32 %v3500, %v3516
        %v3526 = vadd.f32 %v3501, %v3516
        %v3527 = vadd.f32 %v3502, %v3516
        %v3528 = vadd.f32 %v3503, %v3516
        %v3529 = vadd.f32 %v3504, %v3516
        %v3530 = vadd.f32 %v3505, %v3516
        %v3531 = vadd.f32 %v3506, %v3516
        %v3532 = vadd.f32 %v3507, %v3516
        %v3533 = vadd.f32 %v3508, %v3516
        %v3534 = vadd.f32 %v3509, %v3516
        %v3535 = vadd.f32 %v3510, %v3516
        %v3536 = vmax.f32 %v3518, 0.0
        %v3537 = vmax.f32 %v3519, 0.0
        %v3538 = vmax.f32 %v3520, 0.0
        %v3539 = vmax.f32 %v3521, 0.0
        %v3540 = vmax.f32 %v3522, 0.0
        %v3541 = vmax.f32 %v3523, 0.0
        %v3542 = vmax.f32 %v3524, 0.0
        %v3543 = vmax.f32 %v3525, 0.0
        %v3544 = vmax.f32 %v3526, 0.0
        %v3545 = vmax.f32 %v3527, 0.0
        %v3546 = vmax.f32 %v3528, 0.0
        %v3547 = vmax.f32 %v3529, 0.0
        %v3548 = vmax.f32 %v3530, 0.0
        %v3549 = vmax.f32 %v3531, 0.0
        %v3550 = vmax.f32 %v3532, 0.0
        %v3551 = vmax.f32 %v3533, 0.0
        %v3552 = vmax.f32 %v3534, 0.0
        %v3553 = vmax.f32 %v3535, 0.0
        %v3554 = vpack.c.bf16 %v3537, %v3536
        %v3555 = vpack.c.bf16 %v3539, %v3538
        %v3556 = vpack.c.bf16 %v3541, %v3540
        %v3557 = vpack.c.bf16 %v3543, %v3542
        %v3558 = vpack.c.bf16 %v3545, %v3544
        %v3559 = vpack.c.bf16 %v3547, %v3546
        %v3560 = vpack.c.bf16 %v3549, %v3548
        %v3561 = vpack.c.bf16 %v3551, %v3550
        %v3562 = vpack.c.bf16 %v3553, %v3552
        %v3572 = vunpack.c.l.b16 %v3554
        %v3573 = vunpack.c.h.b16 %v3554
        %v3574 = vunpack.c.l.b16 %v3555
        %v3575 = vunpack.c.h.b16 %v3555
        %v3576 = vunpack.c.l.b16 %v3556
        %v3577 = vunpack.c.h.b16 %v3556
        %v3578 = vunpack.c.l.b16 %v3557
        %v3579 = vunpack.c.h.b16 %v3557
        %v3580 = vunpack.c.l.b16 %v3558
        %v3581 = vunpack.c.h.b16 %v3558
        %v3582 = vunpack.c.l.b16 %v3559
        %v3583 = vunpack.c.h.b16 %v3559
        %v3584 = vunpack.c.l.b16 %v3560
        %v3585 = vunpack.c.h.b16 %v3560
        %v3586 = vunpack.c.l.b16 %v3561
        %v3587 = vunpack.c.h.b16 %v3561
        %v3588 = vunpack.c.l.b16 %v3562
        %v3589 = vunpack.c.h.b16 %v3562
        %v3590 = vpack.c.b16 %v3572, %v3572
        %v3591 = vpack.c.b16 %v3573, %v3573
        %v3592 = vpack.c.b16 %v3574, %v3574
        %v3593 = vpack.c.b16 %v3575, %v3575
        %v3594 = vpack.c.b16 %v3576, %v3576
        %v3595 = vpack.c.b16 %v3577, %v3577
        %v3596 = vpack.c.b16 %v3578, %v3578
        %v3597 = vpack.c.b16 %v3579, %v3579
        %v3598 = vpack.c.b16 %v3580, %v3580
        %v3599 = vpack.c.b16 %v3581, %v3581
        %v3600 = vpack.c.b16 %v3582, %v3582
        %v3601 = vpack.c.b16 %v3583, %v3583
        %v3602 = vpack.c.b16 %v3584, %v3584
        %v3603 = vpack.c.b16 %v3585, %v3585
        %v3604 = vpack.c.b16 %v3586, %v3586
        %v3605 = vpack.c.b16 %v3587, %v3587
        %v3606 = vpack.c.b16 %v3588, %v3588
        %v3607 = vpack.c.b16 %v3589, %v3589
        %vm3626 = vcmask 519168
        %3627 = vst.msk [vmem:[%s279] sm:$0xf] %vm3626, %v3590
        %3628 = vst.msk [vmem:[%s279 + $0x4] sm:$0xf] %vm3626, %v3591
        %3629 = vst.msk [vmem:[%s279 + $0x8] sm:$0xf] %vm3626, %v3592
        %3630 = vst.msk [vmem:[%s279 + $0xc] sm:$0xf] %vm3626, %v3593
        %3631 = vst.msk [vmem:[%s279 + $0x10] sm:$0xf] %vm3626, %v3594
        %3632 = vst.msk [vmem:[%s279 + $0x14] sm:$0xf] %vm3626, %v3595
        %3633 = vst.msk [vmem:[%s279 + $0x18] sm:$0xf] %vm3626, %v3596
        %3634 = vst.msk [vmem:[%s279 + $0x1c] sm:$0xf] %vm3626, %v3597
        %3635 = vst.msk [vmem:[%s279 + $0x20] sm:$0xf] %vm3626, %v3598
        %3636 = vst.msk [vmem:[%s279 + $0x24] sm:$0xf] %vm3626, %v3599
        %3637 = vst.msk [vmem:[%s279 + $0x28] sm:$0xf] %vm3626, %v3600
        %3638 = vst.msk [vmem:[%s279 + $0x2c] sm:$0xf] %vm3626, %v3601
        %3639 = vst.msk [vmem:[%s279 + $0x30] sm:$0xf] %vm3626, %v3602
        %3640 = vst.msk [vmem:[%s279 + $0x34] sm:$0xf] %vm3626, %v3603
        %3641 = vst.msk [vmem:[%s279 + $0x38] sm:$0xf] %vm3626, %v3604
        %3642 = vst.msk [vmem:[%s279 + $0x3c] sm:$0xf] %vm3626, %v3605
        %3643 = vst.msk [vmem:[%s279 + $0x40] sm:$0xf] %vm3626, %v3606
        %3644 = vst.msk [vmem:[%s279 + $0x44] sm:$0xf] %vm3626, %v3607
        %p3645 = scmp.lt.s32.totalorder %s19, 1
        %s3646 = scalar_select %p3645, %s19, 1
        %s3647 = smul.addr %s3646, 18
        %s3648 = smul.addr %s3647, 4
        %s3649 = scalar_lea.vmem %s5, %s3648
        // Predicated region
        $region57: #{cnn_forward.2} parent=39 // pred_check
          %p3650 = pneg %p147
        $region58: #{cnn_forward.2} parent=39 // pred_check_branch
          %3652 = sbr.rel (%p3650) target = $region60
        $region59: #{cnn_forward.2} parent=39 // pred_region
          _
        $region60: #{cnn_forward.2} parent=39 // pred_fallthru
          _
      $region40: #{cnn_forward.2} parent=5 // pred_fallthru
        _
      %p3653 = scmp.le.s32.totalorder 2, %s14
      // Predicated region
      $region61: #{cnn_forward.2} parent=5 // pred_check
        %p3654 = pneg %p3653
      $region62: #{cnn_forward.2} parent=5 // pred_check_branch
        %3656 = sbr.rel (%p3654) target = $region64
      $region63: #{cnn_forward.2} parent=5 // pred_region
        %s3657 = ssub.s32 %s14, 2
        // Predicated region
        $region65: #{cnn_forward.2} parent=63 // pred_check
          %p3658 = pneg %p153
        $region66: #{cnn_forward.2} parent=63 // pred_check_branch
          %3660 = sbr.rel (%p3658) target = $region68
        $region67: #{cnn_forward.2} parent=63 // pred_region
          %p3661 = scmp.lt.s32.totalorder %s20, 1
          %s3662 = scalar_select %p3661, %s20, 1
          %s3663 = smul.addr %s3662, 18
          %s3664 = smul.addr %s3663, 4
          %s3665 = scalar_lea.vmem %s5, %s3664
        $region68: #{cnn_forward.2} parent=63 // pred_fallthru
          _
      $region64: #{cnn_forward.2} parent=5 // pred_fallthru
        _
    $region6: #{cnn_forward.2} parent=1 // loop_footer
      %s18 = sadd.s32 1, %s14
    $region7: #{cnn_forward.2} parent=1 // loop_footer_branch
      %13 = sbr.rel target = $region3
    $region8: #{cnn_forward.2} parent=1 // loop_exit
      _
    %3666 = vsyncpa [#allocation4], 1
    %s3667 = scalar_lea.sflag [#allocation4], 1
    %3668 = vsyncpa %s3667, 1
    %3669 = vsyncpa [#allocation6], 1
    %3670 = vsyncpa [#allocation9], 1

// kernel: cnn_forward.3
$region0: #{cnn_forward.3}
  #allocation0 [shape = 'u32[]', space=smem, size = 0x4, offset = 0x4, fixed_abs, tag = 'smem constant byte address 0x4 - core index']
  #allocation1 [shape = 'u32[144,128]{1,0:T(1,128)}', space=vmem, size = 0x12000, scoped, tag = 'internal scratch']
  %s0 = inlined_call_operand.vmem [shape: bf16[8,9216], index: 0, kind: input, shape index: {}]
  %s1 = inlined_call_operand.vmem [shape: bf16[9216,256], index: 1, kind: input, shape index: {}]
  %s2 = inlined_call_operand.vmem [shape: f32[1,256], index: 2, kind: input, shape index: {}]
  %s3 = inlined_call_operand.vmem [shape: bf16[256,4], index: 3, kind: input, shape index: {}]
  %s4 = inlined_call_operand.vmem [shape: f32[1,4], index: 4, kind: input, shape index: {}]
  %s5 = inlined_call_operand.vmem [shape: f32[8,4], index: 5, kind: output, shape index: {}]
  %s6 = sld [smem:[#allocation0]]
  $region30: #{cnn_forward.3} parent=0
    _
  %s8 = ssub.s32 1, %s6
  %s9 = scalar_select 0, %s8, %s6
  // Predicated region
  $region2: #{cnn_forward.3} parent=0 // pred_check
    _
  $region3: #{cnn_forward.3} parent=0 // pred_check_branch
    %11 = sbr.rel (0) target = $region5
  $region4: #{cnn_forward.3} parent=0 // pred_region
    _
  $region5: #{cnn_forward.3} parent=0 // pred_fallthru
    _
  // Predicated region
  $region6: #{cnn_forward.3} parent=0 // pred_check
    _
  $region7: #{cnn_forward.3} parent=0 // pred_check_branch
    %13 = sbr.rel (0) target = $region9
  $region8: #{cnn_forward.3} parent=0 // pred_region
    _
  $region9: #{cnn_forward.3} parent=0 // pred_fallthru
    _
  // Predicated region
  $region10: #{cnn_forward.3} parent=0 // pred_check
    _
  $region11: #{cnn_forward.3} parent=0 // pred_check_branch
    %15 = sbr.rel (0) target = $region13
  $region12: #{cnn_forward.3} parent=0 // pred_region
    _
  $region13: #{cnn_forward.3} parent=0 // pred_fallthru
    _
  // Predicated region
  $region14: #{cnn_forward.3} parent=0 // pred_check
    _
  $region15: #{cnn_forward.3} parent=0 // pred_check_branch
    %17 = sbr.rel (0) target = $region17
  $region16: #{cnn_forward.3} parent=0 // pred_region
    _
  $region17: #{cnn_forward.3} parent=0 // pred_fallthru
    _
  // Predicated region
  $region18: #{cnn_forward.3} parent=0 // pred_check
    _
  $region19: #{cnn_forward.3} parent=0 // pred_check_branch
    %19 = sbr.rel (0) target = $region21
  $region20: #{cnn_forward.3} parent=0 // pred_region
    _
  $region21: #{cnn_forward.3} parent=0 // pred_fallthru
    _
  %v21 = vld [vmem:[%s0] sm:$0xff]
  %v22 = vld [vmem:[%s0 + $0x8] sm:$0xff]
  %v23 = vld [vmem:[%s0 + $0x10] sm:$0xff]
  %v24 = vld [vmem:[%s0 + $0x18] sm:$0xff]
  %v25 = vld [vmem:[%s0 + $0x20] sm:$0xff]
  %v26 = vld [vmem:[%s0 + $0x28] sm:$0xff]
  %v27 = vld [vmem:[%s0 + $0x30] sm:$0xff]
  %v28 = vld [vmem:[%s0 + $0x38] sm:$0xff]
  %v29 = vld [vmem:[%s0 + $0x40] sm:$0xff]
  %v30 = vld [vmem:[%s0 + $0x48] sm:$0xff]
  %v31 = vld [vmem:[%s0 + $0x50] sm:$0xff]
  %v32 = vld [vmem:[%s0 + $0x58] sm:$0xff]
  %v33 = vld [vmem:[%s0 + $0x60] sm:$0xff]
  %v34 = vld [vmem:[%s0 + $0x68] sm:$0xff]
  %v35 = vld [vmem:[%s0 + $0x70] sm:$0xff]
  %v36 = vld [vmem:[%s0 + $0x78] sm:$0xff]
  %v37 = vld [vmem:[%s0 + $0x80] sm:$0xff]
  %v38 = vld [vmem:[%s0 + $0x88] sm:$0xff]
  %v39 = vld [vmem:[%s0 + $0x90] sm:$0xff]
  %v40 = vld [vmem:[%s0 + $0x98] sm:$0xff]
  %v41 = vld [vmem:[%s0 + $0xa0] sm:$0xff]
  %v42 = vld [vmem:[%s0 + $0xa8] sm:$0xff]
  %v43 = vld [vmem:[%s0 + $0xb0] sm:$0xff]
  %v44 = vld [vmem:[%s0 + $0xb8] sm:$0xff]
  %v45 = vld [vmem:[%s0 + $0xc0] sm:$0xff]
  %v46 = vld [vmem:[%s0 + $0xc8] sm:$0xff]
  %v47 = vld [vmem:[%s0 + $0xd0] sm:$0xff]
  %v48 = vld [vmem:[%s0 + $0xd8] sm:$0xff]
  %v49 = vld [vmem:[%s0 + $0xe0] sm:$0xff]
  %v50 = vld [vmem:[%s0 + $0xe8] sm:$0xff]
  %v51 = vld [vmem:[%s0 + $0xf0] sm:$0xff]
  %v52 = vld [vmem:[%s0 + $0xf8] sm:$0xff]
  %v53 = vld [vmem:[%s0 + $0x100] sm:$0xff]
  %v54 = vld [vmem:[%s0 + $0x108] sm:$0xff]
  %v55 = vld [vmem:[%s0 + $0x110] sm:$0xff]
  %v56 = vld [vmem:[%s0 + $0x118] sm:$0xff]
  %v57 = vld [vmem:[%s1] sm:$0xff]
  %v58 = vld [vmem:[%s1 + $0x8] sm:$0xff]
  %v59 = vld [vmem:[%s1 + $0x10] sm:$0xff]
  %v60 = vld [vmem:[%s1 + $0x18] sm:$0xff]
  %v61 = vld [vmem:[%s1 + $0x20] sm:$0xff]
  %v62 = vld [vmem:[%s1 + $0x28] sm:$0xff]
  %v63 = vld [vmem:[%s1 + $0x30] sm:$0xff]
  %v64 = vld [vmem:[%s1 + $0x38] sm:$0xff]
  %v65 = vld [vmem:[%s1 + $0x40] sm:$0xff]
  %v66 = vld [vmem:[%s1 + $0x48] sm:$0xff]
  %v67 = vld [vmem:[%s1 + $0x50] sm:$0xff]
  %v68 = vld [vmem:[%s1 + $0x58] sm:$0xff]
  %v69 = vld [vmem:[%s1 + $0x60] sm:$0xff]
  %v70 = vld [vmem:[%s1 + $0x68] sm:$0xff]
  %v71 = vld [vmem:[%s1 + $0x70] sm:$0xff]
  %v72 = vld [vmem:[%s1 + $0x78] sm:$0xff]
  %v73 = vld [vmem:[%s1 + $0x80] sm:$0xff]
  %v74 = vld [vmem:[%s1 + $0x88] sm:$0xff]
  %v75 = vld [vmem:[%s1 + $0x90] sm:$0xff]
  %v76 = vld [vmem:[%s1 + $0x98] sm:$0xff]
  %v77 = vld [vmem:[%s1 + $0xa0] sm:$0xff]
  %v78 = vld [vmem:[%s1 + $0xa8] sm:$0xff]
  %v79 = vld [vmem:[%s1 + $0xb0] sm:$0xff]
  %v80 = vld [vmem:[%s1 + $0xb8] sm:$0xff]
  %v81 = vld [vmem:[%s1 + $0xc0] sm:$0xff]
  %v82 = vld [vmem:[%s1 + $0xc8] sm:$0xff]
  %v83 = vld [vmem:[%s1 + $0xd0] sm:$0xff]
  %v84 = vld [vmem:[%s1 + $0xd8] sm:$0xff]
  %v85 = vld [vmem:[%s1 + $0xe0] sm:$0xff]
  %v86 = vld [vmem:[%s1 + $0xe8] sm:$0xff]
  %v87 = vld [vmem:[%s1 + $0xf0] sm:$0xff]
  %v88 = vld [vmem:[%s1 + $0xf8] sm:$0xff]
  %v89 = vld [vmem:[%s1 + $0x100] sm:$0xff]
  %v90 = vld [vmem:[%s1 + $0x108] sm:$0xff]
  %v91 = vld [vmem:[%s1 + $0x110] sm:$0xff]
  %v92 = vld [vmem:[%s1 + $0x118] sm:$0xff]
  %v93 = vld [vmem:[%s1 + $0x120] sm:$0xff]
  %v94 = vld [vmem:[%s1 + $0x128] sm:$0xff]
  %v95 = vld [vmem:[%s1 + $0x130] sm:$0xff]
  %v96 = vld [vmem:[%s1 + $0x138] sm:$0xff]
  %v97 = vld [vmem:[%s1 + $0x140] sm:$0xff]
  %v98 = vld [vmem:[%s1 + $0x148] sm:$0xff]
  %v99 = vld [vmem:[%s1 + $0x150] sm:$0xff]
  %v100 = vld [vmem:[%s1 + $0x158] sm:$0xff]
  %v101 = vld [vmem:[%s1 + $0x160] sm:$0xff]
  %v102 = vld [vmem:[%s1 + $0x168] sm:$0xff]
  %v103 = vld [vmem:[%s1 + $0x170] sm:$0xff]
  %v104 = vld [vmem:[%s1 + $0x178] sm:$0xff]
  %v105 = vld [vmem:[%s1 + $0x180] sm:$0xff]
  %v106 = vld [vmem:[%s1 + $0x188] sm:$0xff]
  %v107 = vld [vmem:[%s1 + $0x190] sm:$0xff]
  %v108 = vld [vmem:[%s1 + $0x198] sm:$0xff]
  %v109 = vld [vmem:[%s1 + $0x1a0] sm:$0xff]
  %v110 = vld [vmem:[%s1 + $0x1a8] sm:$0xff]
  %v111 = vld [vmem:[%s1 + $0x1b0] sm:$0xff]
  %v112 = vld [vmem:[%s1 + $0x1b8] sm:$0xff]
  %v113 = vld [vmem:[%s1 + $0x1c0] sm:$0xff]
  %v114 = vld [vmem:[%s1 + $0x1c8] sm:$0xff]
  %v115 = vld [vmem:[%s1 + $0x1d0] sm:$0xff]
  %v116 = vld [vmem:[%s1 + $0x1d8] sm:$0xff]
  %v117 = vld [vmem:[%s1 + $0x1e0] sm:$0xff]
  %v118 = vld [vmem:[%s1 + $0x1e8] sm:$0xff]
  %v119 = vld [vmem:[%s1 + $0x1f0] sm:$0xff]
  %v120 = vld [vmem:[%s1 + $0x1f8] sm:$0xff]
  %v121 = vld [vmem:[%s1 + $0x200] sm:$0xff]
  %v122 = vld [vmem:[%s1 + $0x208] sm:$0xff]
  %v123 = vld [vmem:[%s1 + $0x210] sm:$0xff]
  %v124 = vld [vmem:[%s1 + $0x218] sm:$0xff]
  %v125 = vld [vmem:[%s1 + $0x220] sm:$0xff]
  %v126 = vld [vmem:[%s1 + $0x228] sm:$0xff]
  %v127 = vld [vmem:[%s1 + $0x230] sm:$0xff]
  %v128 = vld [vmem:[%s1 + $0x238] sm:$0xff]
  %v129 = vld [vmem:[%s1 + $0x240] sm:$0xff]
  %v130 = vld [vmem:[%s1 + $0x248] sm:$0xff]
  %v131 = vld [vmem:[%s1 + $0x250] sm:$0xff]
  %v132 = vld [vmem:[%s1 + $0x258] sm:$0xff]
  %v133 = vld [vmem:[%s1 + $0x260] sm:$0xff]
  %v134 = vld [vmem:[%s1 + $0x268] sm:$0xff]
  %v135 = vld [vmem:[%s1 + $0x270] sm:$0xff]
  %v136 = vld [vmem:[%s1 + $0x278] sm:$0xff]
  %v137 = vld [vmem:[%s1 + $0x280] sm:$0xff]
  %v138 = vld [vmem:[%s1 + $0x288] sm:$0xff]
  %v139 = vld [vmem:[%s1 + $0x290] sm:$0xff]
  %v140 = vld [vmem:[%s1 + $0x298] sm:$0xff]
  %v141 = vld [vmem:[%s1 + $0x2a0] sm:$0xff]
  %v142 = vld [vmem:[%s1 + $0x2a8] sm:$0xff]
  %v143 = vld [vmem:[%s1 + $0x2b0] sm:$0xff]
  %v144 = vld [vmem:[%s1 + $0x2b8] sm:$0xff]
  %v145 = vld [vmem:[%s1 + $0x2c0] sm:$0xff]
  %v146 = vld [vmem:[%s1 + $0x2c8] sm:$0xff]
  %v147 = vld [vmem:[%s1 + $0x2d0] sm:$0xff]
  %v148 = vld [vmem:[%s1 + $0x2d8] sm:$0xff]
  %v149 = vld [vmem:[%s1 + $0x2e0] sm:$0xff]
  %v150 = vld [vmem:[%s1 + $0x2e8] sm:$0xff]
  %v151 = vld [vmem:[%s1 + $0x2f0] sm:$0xff]
  %v152 = vld [vmem:[%s1 + $0x2f8] sm:$0xff]
  %v153 = vld [vmem:[%s1 + $0x300] sm:$0xff]
  %v154 = vld [vmem:[%s1 + $0x308] sm:$0xff]
  %v155 = vld [vmem:[%s1 + $0x310] sm:$0xff]
  %v156 = vld [vmem:[%s1 + $0x318] sm:$0xff]
  %v157 = vld [vmem:[%s1 + $0x320] sm:$0xff]
  %v158 = vld [vmem:[%s1 + $0x328] sm:$0xff]
  %v159 = vld [vmem:[%s1 + $0x330] sm:$0xff]
  %v160 = vld [vmem:[%s1 + $0x338] sm:$0xff]
  %v161 = vld [vmem:[%s1 + $0x340] sm:$0xff]
  %v162 = vld [vmem:[%s1 + $0x348] sm:$0xff]
  %v163 = vld [vmem:[%s1 + $0x350] sm:$0xff]
  %v164 = vld [vmem:[%s1 + $0x358] sm:$0xff]
  %v165 = vld [vmem:[%s1 + $0x360] sm:$0xff]
  %v166 = vld [vmem:[%s1 + $0x368] sm:$0xff]
  %v167 = vld [vmem:[%s1 + $0x370] sm:$0xff]
  %v168 = vld [vmem:[%s1 + $0x378] sm:$0xff]
  %v169 = vld [vmem:[%s1 + $0x380] sm:$0xff]
  %v170 = vld [vmem:[%s1 + $0x388] sm:$0xff]
  %v171 = vld [vmem:[%s1 + $0x390] sm:$0xff]
  %v172 = vld [vmem:[%s1 + $0x398] sm:$0xff]
  %v173 = vld [vmem:[%s1 + $0x3a0] sm:$0xff]
  %v174 = vld [vmem:[%s1 + $0x3a8] sm:$0xff]
  %v175 = vld [vmem:[%s1 + $0x3b0] sm:$0xff]
  %v176 = vld [vmem:[%s1 + $0x3b8] sm:$0xff]
  %v177 = vld [vmem:[%s1 + $0x3c0] sm:$0xff]
  %v178 = vld [vmem:[%s1 + $0x3c8] sm:$0xff]
  %v179 = vld [vmem:[%s1 + $0x3d0] sm:$0xff]
  %v180 = vld [vmem:[%s1 + $0x3d8] sm:$0xff]
  %v181 = vld [vmem:[%s1 + $0x3e0] sm:$0xff]
  %v182 = vld [vmem:[%s1 + $0x3e8] sm:$0xff]
  %v183 = vld [vmem:[%s1 + $0x3f0] sm:$0xff]
  %v184 = vld [vmem:[%s1 + $0x3f8] sm:$0xff]
  %v185 = vld [vmem:[%s1 + $0x400] sm:$0xff]
  %v186 = vld [vmem:[%s1 + $0x408] sm:$0xff]
  %v187 = vld [vmem:[%s1 + $0x410] sm:$0xff]
  %v188 = vld [vmem:[%s1 + $0x418] sm:$0xff]
  %v189 = vld [vmem:[%s1 + $0x420] sm:$0xff]
  %v190 = vld [vmem:[%s1 + $0x428] sm:$0xff]
  %v191 = vld [vmem:[%s1 + $0x430] sm:$0xff]
  %v192 = vld [vmem:[%s1 + $0x438] sm:$0xff]
  %v193 = vld [vmem:[%s1 + $0x440] sm:$0xff]
  %v194 = vld [vmem:[%s1 + $0x448] sm:$0xff]
  %v195 = vld [vmem:[%s1 + $0x450] sm:$0xff]
  %v196 = vld [vmem:[%s1 + $0x458] sm:$0xff]
  %v197 = vld [vmem:[%s1 + $0x460] sm:$0xff]
  %v198 = vld [vmem:[%s1 + $0x468] sm:$0xff]
  %v199 = vld [vmem:[%s1 + $0x470] sm:$0xff]
  %v200 = vld [vmem:[%s1 + $0x478] sm:$0xff]
  %v201 = vld [vmem:[%s1 + $0x480] sm:$0xff]
  %v202 = vld [vmem:[%s1 + $0x488] sm:$0xff]
  %v203 = vld [vmem:[%s1 + $0x490] sm:$0xff]
  %v204 = vld [vmem:[%s1 + $0x498] sm:$0xff]
  %v205 = vld [vmem:[%s1 + $0x4a0] sm:$0xff]
  %v206 = vld [vmem:[%s1 + $0x4a8] sm:$0xff]
  %v207 = vld [vmem:[%s1 + $0x4b0] sm:$0xff]
  %v208 = vld [vmem:[%s1 + $0x4b8] sm:$0xff]
  %v209 = vld [vmem:[%s1 + $0x4c0] sm:$0xff]
  %v210 = vld [vmem:[%s1 + $0x4c8] sm:$0xff]
  %v211 = vld [vmem:[%s1 + $0x4d0] sm:$0xff]
  %v212 = vld [vmem:[%s1 + $0x4d8] sm:$0xff]
  %v213 = vld [vmem:[%s1 + $0x4e0] sm:$0xff]
  %v214 = vld [vmem:[%s1 + $0x4e8] sm:$0xff]
  %v215 = vld [vmem:[%s1 + $0x4f0] sm:$0xff]
  %v216 = vld [vmem:[%s1 + $0x4f8] sm:$0xff]
  %v217 = vld [vmem:[%s1 + $0x500] sm:$0xff]
  %v218 = vld [vmem:[%s1 + $0x508] sm:$0xff]
  %v219 = vld [vmem:[%s1 + $0x510] sm:$0xff]
  %v220 = vld [vmem:[%s1 + $0x518] sm:$0xff]
  %v221 = vld [vmem:[%s1 + $0x520] sm:$0xff]
  %v222 = vld [vmem:[%s1 + $0x528] sm:$0xff]
  %v223 = vld [vmem:[%s1 + $0x530] sm:$0xff]
  %v224 = vld [vmem:[%s1 + $0x538] sm:$0xff]
  %v225 = vld [vmem:[%s1 + $0x540] sm:$0xff]
  %v226 = vld [vmem:[%s1 + $0x548] sm:$0xff]
  %v227 = vld [vmem:[%s1 + $0x550] sm:$0xff]
  %v228 = vld [vmem:[%s1 + $0x558] sm:$0xff]
  %v229 = vld [vmem:[%s1 + $0x560] sm:$0xff]
  %v230 = vld [vmem:[%s1 + $0x568] sm:$0xff]
  %v231 = vld [vmem:[%s1 + $0x570] sm:$0xff]
  %v232 = vld [vmem:[%s1 + $0x578] sm:$0xff]
  %v233 = vld [vmem:[%s1 + $0x580] sm:$0xff]
  %v234 = vld [vmem:[%s1 + $0x588] sm:$0xff]
  %v235 = vld [vmem:[%s1 + $0x590] sm:$0xff]
  %v236 = vld [vmem:[%s1 + $0x598] sm:$0xff]
  %v237 = vld [vmem:[%s1 + $0x5a0] sm:$0xff]
  %v238 = vld [vmem:[%s1 + $0x5a8] sm:$0xff]
  %v239 = vld [vmem:[%s1 + $0x5b0] sm:$0xff]
  %v240 = vld [vmem:[%s1 + $0x5b8] sm:$0xff]
  %v241 = vld [vmem:[%s1 + $0x5c0] sm:$0xff]
  %v242 = vld [vmem:[%s1 + $0x5c8] sm:$0xff]
  %v243 = vld [vmem:[%s1 + $0x5d0] sm:$0xff]
  %v244 = vld [vmem:[%s1 + $0x5d8] sm:$0xff]
  %v245 = vld [vmem:[%s1 + $0x5e0] sm:$0xff]
  %v246 = vld [vmem:[%s1 + $0x5e8] sm:$0xff]
  %v247 = vld [vmem:[%s1 + $0x5f0] sm:$0xff]
  %v248 = vld [vmem:[%s1 + $0x5f8] sm:$0xff]
  %v249 = vld [vmem:[%s1 + $0x600] sm:$0xff]
  %v250 = vld [vmem:[%s1 + $0x608] sm:$0xff]
  %v251 = vld [vmem:[%s1 + $0x610] sm:$0xff]
  %v252 = vld [vmem:[%s1 + $0x618] sm:$0xff]
  %v253 = vld [vmem:[%s1 + $0x620] sm:$0xff]
  %v254 = vld [vmem:[%s1 + $0x628] sm:$0xff]
  %v255 = vld [vmem:[%s1 + $0x630] sm:$0xff]
  %v256 = vld [vmem:[%s1 + $0x638] sm:$0xff]
  %v257 = vld [vmem:[%s1 + $0x640] sm:$0xff]
  %v258 = vld [vmem:[%s1 + $0x648] sm:$0xff]
  %v259 = vld [vmem:[%s1 + $0x650] sm:$0xff]
  %v260 = vld [vmem:[%s1 + $0x658] sm:$0xff]
  %v261 = vld [vmem:[%s1 + $0x660] sm:$0xff]
  %v262 = vld [vmem:[%s1 + $0x668] sm:$0xff]
  %v263 = vld [vmem:[%s1 + $0x670] sm:$0xff]
  %v264 = vld [vmem:[%s1 + $0x678] sm:$0xff]
  %v265 = vld [vmem:[%s1 + $0x680] sm:$0xff]
  %v266 = vld [vmem:[%s1 + $0x688] sm:$0xff]
  %v267 = vld [vmem:[%s1 + $0x690] sm:$0xff]
  %v268 = vld [vmem:[%s1 + $0x698] sm:$0xff]
  %v269 = vld [vmem:[%s1 + $0x6a0] sm:$0xff]
  %v270 = vld [vmem:[%s1 + $0x6a8] sm:$0xff]
  %v271 = vld [vmem:[%s1 + $0x6b0] sm:$0xff]
  %v272 = vld [vmem:[%s1 + $0x6b8] sm:$0xff]
  %v273 = vld [vmem:[%s1 + $0x6c0] sm:$0xff]
  %v274 = vld [vmem:[%s1 + $0x6c8] sm:$0xff]
  %v275 = vld [vmem:[%s1 + $0x6d0] sm:$0xff]
  %v276 = vld [vmem:[%s1 + $0x6d8] sm:$0xff]
  %v277 = vld [vmem:[%s1 + $0x6e0] sm:$0xff]
  %v278 = vld [vmem:[%s1 + $0x6e8] sm:$0xff]
  %v279 = vld [vmem:[%s1 + $0x6f0] sm:$0xff]
  %v280 = vld [vmem:[%s1 + $0x6f8] sm:$0xff]
  %v281 = vld [vmem:[%s1 + $0x700] sm:$0xff]
  %v282 = vld [vmem:[%s1 + $0x708] sm:$0xff]
  %v283 = vld [vmem:[%s1 + $0x710] sm:$0xff]
  %v284 = vld [vmem:[%s1 + $0x718] sm:$0xff]
  %v285 = vld [vmem:[%s1 + $0x720] sm:$0xff]
  %v286 = vld [vmem:[%s1 + $0x728] sm:$0xff]
  %v287 = vld [vmem:[%s1 + $0x730] sm:$0xff]
  %v288 = vld [vmem:[%s1 + $0x738] sm:$0xff]
  %v289 = vld [vmem:[%s1 + $0x740] sm:$0xff]
  %v290 = vld [vmem:[%s1 + $0x748] sm:$0xff]
  %v291 = vld [vmem:[%s1 + $0x750] sm:$0xff]
  %v292 = vld [vmem:[%s1 + $0x758] sm:$0xff]
  %v293 = vld [vmem:[%s1 + $0x760] sm:$0xff]
  %v294 = vld [vmem:[%s1 + $0x768] sm:$0xff]
  %v295 = vld [vmem:[%s1 + $0x770] sm:$0xff]
  %v296 = vld [vmem:[%s1 + $0x778] sm:$0xff]
  %v297 = vld [vmem:[%s1 + $0x780] sm:$0xff]
  %v298 = vld [vmem:[%s1 + $0x788] sm:$0xff]
  %v299 = vld [vmem:[%s1 + $0x790] sm:$0xff]
  %v300 = vld [vmem:[%s1 + $0x798] sm:$0xff]
  %v301 = vld [vmem:[%s1 + $0x7a0] sm:$0xff]
  %v302 = vld [vmem:[%s1 + $0x7a8] sm:$0xff]
  %v303 = vld [vmem:[%s1 + $0x7b0] sm:$0xff]
  %v304 = vld [vmem:[%s1 + $0x7b8] sm:$0xff]
  %v305 = vld [vmem:[%s1 + $0x7c0] sm:$0xff]
  %v306 = vld [vmem:[%s1 + $0x7c8] sm:$0xff]
  %v307 = vld [vmem:[%s1 + $0x7d0] sm:$0xff]
  %v308 = vld [vmem:[%s1 + $0x7d8] sm:$0xff]
  %v309 = vld [vmem:[%s1 + $0x7e0] sm:$0xff]
  %v310 = vld [vmem:[%s1 + $0x7e8] sm:$0xff]
  %v311 = vld [vmem:[%s1 + $0x7f0] sm:$0xff]
  %v312 = vld [vmem:[%s1 + $0x7f8] sm:$0xff]
  %v313 = vld [vmem:[%s1 + $0x800] sm:$0xff]
  %v314 = vld [vmem:[%s1 + $0x808] sm:$0xff]
  %v315 = vld [vmem:[%s1 + $0x810] sm:$0xff]
  %v316 = vld [vmem:[%s1 + $0x818] sm:$0xff]
  %v317 = vld [vmem:[%s1 + $0x820] sm:$0xff]
  %v318 = vld [vmem:[%s1 + $0x828] sm:$0xff]
  %v319 = vld [vmem:[%s1 + $0x830] sm:$0xff]
  %v320 = vld [vmem:[%s1 + $0x838] sm:$0xff]
  %v321 = vld [vmem:[%s1 + $0x840] sm:$0xff]
  %v322 = vld [vmem:[%s1 + $0x848] sm:$0xff]
  %v323 = vld [vmem:[%s1 + $0x850] sm:$0xff]
  %v324 = vld [vmem:[%s1 + $0x858] sm:$0xff]
  %v325 = vld [vmem:[%s1 + $0x860] sm:$0xff]
  %v326 = vld [vmem:[%s1 + $0x868] sm:$0xff]
  %v327 = vld [vmem:[%s1 + $0x870] sm:$0xff]
  %v328 = vld [vmem:[%s1 + $0x878] sm:$0xff]
  %v329 = vld [vmem:[%s1 + $0x880] sm:$0xff]
  %v330 = vld [vmem:[%s1 + $0x888] sm:$0xff]
  %v331 = vld [vmem:[%s1 + $0x890] sm:$0xff]
  %v332 = vld [vmem:[%s1 + $0x898] sm:$0xff]
  %v333 = vld [vmem:[%s1 + $0x8a0] sm:$0xff]
  %v334 = vld [vmem:[%s1 + $0x8a8] sm:$0xff]
  %v335 = vld [vmem:[%s1 + $0x8b0] sm:$0xff]
  %v336 = vld [vmem:[%s1 + $0x8b8] sm:$0xff]
  %v337 = vld [vmem:[%s1 + $0x8c0] sm:$0xff]
  %v338 = vld [vmem:[%s1 + $0x8c8] sm:$0xff]
  %v339 = vld [vmem:[%s1 + $0x8d0] sm:$0xff]
  %v340 = vld [vmem:[%s1 + $0x8d8] sm:$0xff]
  %v341 = vld [vmem:[%s1 + $0x8e0] sm:$0xff]
  %v342 = vld [vmem:[%s1 + $0x8e8] sm:$0xff]
  %v343 = vld [vmem:[%s1 + $0x8f0] sm:$0xff]
  %v344 = vld [vmem:[%s1 + $0x8f8] sm:$0xff]
  %v345 = vld [vmem:[%s1 + $0x900] sm:$0xff]
  %v346 = vld [vmem:[%s1 + $0x908] sm:$0xff]
  %v347 = vld [vmem:[%s1 + $0x910] sm:$0xff]
  %v348 = vld [vmem:[%s1 + $0x918] sm:$0xff]
  %v349 = vld [vmem:[%s1 + $0x920] sm:$0xff]
  %v350 = vld [vmem:[%s1 + $0x928] sm:$0xff]
  %v351 = vld [vmem:[%s1 + $0x930] sm:$0xff]
  %v352 = vld [vmem:[%s1 + $0x938] sm:$0xff]
  %v353 = vld [vmem:[%s1 + $0x940] sm:$0xff]
  %v354 = vld [vmem:[%s1 + $0x948] sm:$0xff]
  %v355 = vld [vmem:[%s1 + $0x950] sm:$0xff]
  %v356 = vld [vmem:[%s1 + $0x958] sm:$0xff]
  %v357 = vld [vmem:[%s1 + $0x960] sm:$0xff]
  %v358 = vld [vmem:[%s1 + $0x968] sm:$0xff]
  %v359 = vld [vmem:[%s1 + $0x970] sm:$0xff]
  %v360 = vld [vmem:[%s1 + $0x978] sm:$0xff]
  %v361 = vld [vmem:[%s1 + $0x980] sm:$0xff]
  %v362 = vld [vmem:[%s1 + $0x988] sm:$0xff]
  %v363 = vld [vmem:[%s1 + $0x990] sm:$0xff]
  %v364 = vld [vmem:[%s1 + $0x998] sm:$0xff]
  %v365 = vld [vmem:[%s1 + $0x9a0] sm:$0xff]
  %v366 = vld [vmem:[%s1 + $0x9a8] sm:$0xff]
  %v367 = vld [vmem:[%s1 + $0x9b0] sm:$0xff]
  %v368 = vld [vmem:[%s1 + $0x9b8] sm:$0xff]
  %v369 = vld [vmem:[%s1 + $0x9c0] sm:$0xff]
  %v370 = vld [vmem:[%s1 + $0x9c8] sm:$0xff]
  %v371 = vld [vmem:[%s1 + $0x9d0] sm:$0xff]
  %v372 = vld [vmem:[%s1 + $0x9d8] sm:$0xff]
  %v373 = vld [vmem:[%s1 + $0x9e0] sm:$0xff]
  %v374 = vld [vmem:[%s1 + $0x9e8] sm:$0xff]
  %v375 = vld [vmem:[%s1 + $0x9f0] sm:$0xff]
  %v376 = vld [vmem:[%s1 + $0x9f8] sm:$0xff]
  %v377 = vld [vmem:[%s1 + $0xa00] sm:$0xff]
  %v378 = vld [vmem:[%s1 + $0xa08] sm:$0xff]
  %v379 = vld [vmem:[%s1 + $0xa10] sm:$0xff]
  %v380 = vld [vmem:[%s1 + $0xa18] sm:$0xff]
  %v381 = vld [vmem:[%s1 + $0xa20] sm:$0xff]
  %v382 = vld [vmem:[%s1 + $0xa28] sm:$0xff]
  %v383 = vld [vmem:[%s1 + $0xa30] sm:$0xff]
  %v384 = vld [vmem:[%s1 + $0xa38] sm:$0xff]
  %v385 = vld [vmem:[%s1 + $0xa40] sm:$0xff]
  %v386 = vld [vmem:[%s1 + $0xa48] sm:$0xff]
  %v387 = vld [vmem:[%s1 + $0xa50] sm:$0xff]
  %v388 = vld [vmem:[%s1 + $0xa58] sm:$0xff]
  %v389 = vld [vmem:[%s1 + $0xa60] sm:$0xff]
  %v390 = vld [vmem:[%s1 + $0xa68] sm:$0xff]
  %v391 = vld [vmem:[%s1 + $0xa70] sm:$0xff]
  %v392 = vld [vmem:[%s1 + $0xa78] sm:$0xff]
  %v393 = vld [vmem:[%s1 + $0xa80] sm:$0xff]
  %v394 = vld [vmem:[%s1 + $0xa88] sm:$0xff]
  %v395 = vld [vmem:[%s1 + $0xa90] sm:$0xff]
  %v396 = vld [vmem:[%s1 + $0xa98] sm:$0xff]
  %v397 = vld [vmem:[%s1 + $0xaa0] sm:$0xff]
  %v398 = vld [vmem:[%s1 + $0xaa8] sm:$0xff]
  %v399 = vld [vmem:[%s1 + $0xab0] sm:$0xff]
  %v400 = vld [vmem:[%s1 + $0xab8] sm:$0xff]
  %v401 = vld [vmem:[%s1 + $0xac0] sm:$0xff]
  %v402 = vld [vmem:[%s1 + $0xac8] sm:$0xff]
  %v403 = vld [vmem:[%s1 + $0xad0] sm:$0xff]
  %v404 = vld [vmem:[%s1 + $0xad8] sm:$0xff]
  %v405 = vld [vmem:[%s1 + $0xae0] sm:$0xff]
  %v406 = vld [vmem:[%s1 + $0xae8] sm:$0xff]
  %v407 = vld [vmem:[%s1 + $0xaf0] sm:$0xff]
  %v408 = vld [vmem:[%s1 + $0xaf8] sm:$0xff]
  %v409 = vld [vmem:[%s1 + $0xb00] sm:$0xff]
  %v410 = vld [vmem:[%s1 + $0xb08] sm:$0xff]
  %v411 = vld [vmem:[%s1 + $0xb10] sm:$0xff]
  %v412 = vld [vmem:[%s1 + $0xb18] sm:$0xff]
  %v413 = vld [vmem:[%s1 + $0xb20] sm:$0xff]
  %v414 = vld [vmem:[%s1 + $0xb28] sm:$0xff]
  %v415 = vld [vmem:[%s1 + $0xb30] sm:$0xff]
  %v416 = vld [vmem:[%s1 + $0xb38] sm:$0xff]
  %v417 = vld [vmem:[%s1 + $0xb40] sm:$0xff]
  %v418 = vld [vmem:[%s1 + $0xb48] sm:$0xff]
  %v419 = vld [vmem:[%s1 + $0xb50] sm:$0xff]
  %v420 = vld [vmem:[%s1 + $0xb58] sm:$0xff]
  %v421 = vld [vmem:[%s1 + $0xb60] sm:$0xff]
  %v422 = vld [vmem:[%s1 + $0xb68] sm:$0xff]
  %v423 = vld [vmem:[%s1 + $0xb70] sm:$0xff]
  %v424 = vld [vmem:[%s1 + $0xb78] sm:$0xff]
  %v425 = vld [vmem:[%s1 + $0xb80] sm:$0xff]
  %v426 = vld [vmem:[%s1 + $0xb88] sm:$0xff]
  %v427 = vld [vmem:[%s1 + $0xb90] sm:$0xff]
  %v428 = vld [vmem:[%s1 + $0xb98] sm:$0xff]
  %v429 = vld [vmem:[%s1 + $0xba0] sm:$0xff]
  %v430 = vld [vmem:[%s1 + $0xba8] sm:$0xff]
  %v431 = vld [vmem:[%s1 + $0xbb0] sm:$0xff]
  %v432 = vld [vmem:[%s1 + $0xbb8] sm:$0xff]
  %v433 = vld [vmem:[%s1 + $0xbc0] sm:$0xff]
  %v434 = vld [vmem:[%s1 + $0xbc8] sm:$0xff]
  %v435 = vld [vmem:[%s1 + $0xbd0] sm:$0xff]
  %v436 = vld [vmem:[%s1 + $0xbd8] sm:$0xff]
  %v437 = vld [vmem:[%s1 + $0xbe0] sm:$0xff]
  %v438 = vld [vmem:[%s1 + $0xbe8] sm:$0xff]
  %v439 = vld [vmem:[%s1 + $0xbf0] sm:$0xff]
  %v440 = vld [vmem:[%s1 + $0xbf8] sm:$0xff]
  %v441 = vld [vmem:[%s1 + $0xc00] sm:$0xff]
  %v442 = vld [vmem:[%s1 + $0xc08] sm:$0xff]
  %v443 = vld [vmem:[%s1 + $0xc10] sm:$0xff]
  %v444 = vld [vmem:[%s1 + $0xc18] sm:$0xff]
  %v445 = vld [vmem:[%s1 + $0xc20] sm:$0xff]
  %v446 = vld [vmem:[%s1 + $0xc28] sm:$0xff]
  %v447 = vld [vmem:[%s1 + $0xc30] sm:$0xff]
  %v448 = vld [vmem:[%s1 + $0xc38] sm:$0xff]
  %v449 = vld [vmem:[%s1 + $0xc40] sm:$0xff]
  %v450 = vld [vmem:[%s1 + $0xc48] sm:$0xff]
  %v451 = vld [vmem:[%s1 + $0xc50] sm:$0xff]
  %v452 = vld [vmem:[%s1 + $0xc58] sm:$0xff]
  %v453 = vld [vmem:[%s1 + $0xc60] sm:$0xff]
  %v454 = vld [vmem:[%s1 + $0xc68] sm:$0xff]
  %v455 = vld [vmem:[%s1 + $0xc70] sm:$0xff]
  %v456 = vld [vmem:[%s1 + $0xc78] sm:$0xff]
  %v457 = vld [vmem:[%s1 + $0xc80] sm:$0xff]
  %v458 = vld [vmem:[%s1 + $0xc88] sm:$0xff]
  %v459 = vld [vmem:[%s1 + $0xc90] sm:$0xff]
  %v460 = vld [vmem:[%s1 + $0xc98] sm:$0xff]
  %v461 = vld [vmem:[%s1 + $0xca0] sm:$0xff]
  %v462 = vld [vmem:[%s1 + $0xca8] sm:$0xff]
  %v463 = vld [vmem:[%s1 + $0xcb0] sm:$0xff]
  %v464 = vld [vmem:[%s1 + $0xcb8] sm:$0xff]
  %v465 = vld [vmem:[%s1 + $0xcc0] sm:$0xff]
  %v466 = vld [vmem:[%s1 + $0xcc8] sm:$0xff]
  %v467 = vld [vmem:[%s1 + $0xcd0] sm:$0xff]
  %v468 = vld [vmem:[%s1 + $0xcd8] sm:$0xff]
  %v469 = vld [vmem:[%s1 + $0xce0] sm:$0xff]
  %v470 = vld [vmem:[%s1 + $0xce8] sm:$0xff]
  %v471 = vld [vmem:[%s1 + $0xcf0] sm:$0xff]
  %v472 = vld [vmem:[%s1 + $0xcf8] sm:$0xff]
  %v473 = vld [vmem:[%s1 + $0xd00] sm:$0xff]
  %v474 = vld [vmem:[%s1 + $0xd08] sm:$0xff]
  %v475 = vld [vmem:[%s1 + $0xd10] sm:$0xff]
  %v476 = vld [vmem:[%s1 + $0xd18] sm:$0xff]
  %v477 = vld [vmem:[%s1 + $0xd20] sm:$0xff]
  %v478 = vld [vmem:[%s1 + $0xd28] sm:$0xff]
  %v479 = vld [vmem:[%s1 + $0xd30] sm:$0xff]
  %v480 = vld [vmem:[%s1 + $0xd38] sm:$0xff]
  %v481 = vld [vmem:[%s1 + $0xd40] sm:$0xff]
  %v482 = vld [vmem:[%s1 + $0xd48] sm:$0xff]
  %v483 = vld [vmem:[%s1 + $0xd50] sm:$0xff]
  %v484 = vld [vmem:[%s1 + $0xd58] sm:$0xff]
  %v485 = vld [vmem:[%s1 + $0xd60] sm:$0xff]
  %v486 = vld [vmem:[%s1 + $0xd68] sm:$0xff]
  %v487 = vld [vmem:[%s1 + $0xd70] sm:$0xff]
  %v488 = vld [vmem:[%s1 + $0xd78] sm:$0xff]
  %v489 = vld [vmem:[%s1 + $0xd80] sm:$0xff]
  %v490 = vld [vmem:[%s1 + $0xd88] sm:$0xff]
  %v491 = vld [vmem:[%s1 + $0xd90] sm:$0xff]
  %v492 = vld [vmem:[%s1 + $0xd98] sm:$0xff]
  %v493 = vld [vmem:[%s1 + $0xda0] sm:$0xff]
  %v494 = vld [vmem:[%s1 + $0xda8] sm:$0xff]
  %v495 = vld [vmem:[%s1 + $0xdb0] sm:$0xff]
  %v496 = vld [vmem:[%s1 + $0xdb8] sm:$0xff]
  %v497 = vld [vmem:[%s1 + $0xdc0] sm:$0xff]
  %v498 = vld [vmem:[%s1 + $0xdc8] sm:$0xff]
  %v499 = vld [vmem:[%s1 + $0xdd0] sm:$0xff]
  %v500 = vld [vmem:[%s1 + $0xdd8] sm:$0xff]
  %v501 = vld [vmem:[%s1 + $0xde0] sm:$0xff]
  %v502 = vld [vmem:[%s1 + $0xde8] sm:$0xff]
  %v503 = vld [vmem:[%s1 + $0xdf0] sm:$0xff]
  %v504 = vld [vmem:[%s1 + $0xdf8] sm:$0xff]
  %v505 = vld [vmem:[%s1 + $0xe00] sm:$0xff]
  %v506 = vld [vmem:[%s1 + $0xe08] sm:$0xff]
  %v507 = vld [vmem:[%s1 + $0xe10] sm:$0xff]
  %v508 = vld [vmem:[%s1 + $0xe18] sm:$0xff]
  %v509 = vld [vmem:[%s1 + $0xe20] sm:$0xff]
  %v510 = vld [vmem:[%s1 + $0xe28] sm:$0xff]
  %v511 = vld [vmem:[%s1 + $0xe30] sm:$0xff]
  %v512 = vld [vmem:[%s1 + $0xe38] sm:$0xff]
  %v513 = vld [vmem:[%s1 + $0xe40] sm:$0xff]
  %v514 = vld [vmem:[%s1 + $0xe48] sm:$0xff]
  %v515 = vld [vmem:[%s1 + $0xe50] sm:$0xff]
  %v516 = vld [vmem:[%s1 + $0xe58] sm:$0xff]
  %v517 = vld [vmem:[%s1 + $0xe60] sm:$0xff]
  %v518 = vld [vmem:[%s1 + $0xe68] sm:$0xff]
  %v519 = vld [vmem:[%s1 + $0xe70] sm:$0xff]
  %v520 = vld [vmem:[%s1 + $0xe78] sm:$0xff]
  %v521 = vld [vmem:[%s1 + $0xe80] sm:$0xff]
  %v522 = vld [vmem:[%s1 + $0xe88] sm:$0xff]
  %v523 = vld [vmem:[%s1 + $0xe90] sm:$0xff]
  %v524 = vld [vmem:[%s1 + $0xe98] sm:$0xff]
  %v525 = vld [vmem:[%s1 + $0xea0] sm:$0xff]
  %v526 = vld [vmem:[%s1 + $0xea8] sm:$0xff]
  %v527 = vld [vmem:[%s1 + $0xeb0] sm:$0xff]
  %v528 = vld [vmem:[%s1 + $0xeb8] sm:$0xff]
  %v529 = vld [vmem:[%s1 + $0xec0] sm:$0xff]
  %v530 = vld [vmem:[%s1 + $0xec8] sm:$0xff]
  %v531 = vld [vmem:[%s1 + $0xed0] sm:$0xff]
  %v532 = vld [vmem:[%s1 + $0xed8] sm:$0xff]
  %v533 = vld [vmem:[%s1 + $0xee0] sm:$0xff]
  %v534 = vld [vmem:[%s1 + $0xee8] sm:$0xff]
  %v535 = vld [vmem:[%s1 + $0xef0] sm:$0xff]
  %v536 = vld [vmem:[%s1 + $0xef8] sm:$0xff]
  %v537 = vld [vmem:[%s1 + $0xf00] sm:$0xff]
  %v538 = vld [vmem:[%s1 + $0xf08] sm:$0xff]
  %v539 = vld [vmem:[%s1 + $0xf10] sm:$0xff]
  %v540 = vld [vmem:[%s1 + $0xf18] sm:$0xff]
  %v541 = vld [vmem:[%s1 + $0xf20] sm:$0xff]
  %v542 = vld [vmem:[%s1 + $0xf28] sm:$0xff]
  %v543 = vld [vmem:[%s1 + $0xf30] sm:$0xff]
  %v544 = vld [vmem:[%s1 + $0xf38] sm:$0xff]
  %v545 = vld [vmem:[%s1 + $0xf40] sm:$0xff]
  %v546 = vld [vmem:[%s1 + $0xf48] sm:$0xff]
  %v547 = vld [vmem:[%s1 + $0xf50] sm:$0xff]
  %v548 = vld [vmem:[%s1 + $0xf58] sm:$0xff]
  %v549 = vld [vmem:[%s1 + $0xf60] sm:$0xff]
  %v550 = vld [vmem:[%s1 + $0xf68] sm:$0xff]
  %v551 = vld [vmem:[%s1 + $0xf70] sm:$0xff]
  %v552 = vld [vmem:[%s1 + $0xf78] sm:$0xff]
  %v553 = vld [vmem:[%s1 + $0xf80] sm:$0xff]
  %v554 = vld [vmem:[%s1 + $0xf88] sm:$0xff]
  %v555 = vld [vmem:[%s1 + $0xf90] sm:$0xff]
  %v556 = vld [vmem:[%s1 + $0xf98] sm:$0xff]
  %v557 = vld [vmem:[%s1 + $0xfa0] sm:$0xff]
  %v558 = vld [vmem:[%s1 + $0xfa8] sm:$0xff]
  %v559 = vld [vmem:[%s1 + $0xfb0] sm:$0xff]
  %v560 = vld [vmem:[%s1 + $0xfb8] sm:$0xff]
  %v561 = vld [vmem:[%s1 + $0xfc0] sm:$0xff]
  %v562 = vld [vmem:[%s1 + $0xfc8] sm:$0xff]
  %v563 = vld [vmem:[%s1 + $0xfd0] sm:$0xff]
  %v564 = vld [vmem:[%s1 + $0xfd8] sm:$0xff]
  %v565 = vld [vmem:[%s1 + $0xfe0] sm:$0xff]
  %v566 = vld [vmem:[%s1 + $0xfe8] sm:$0xff]
  %v567 = vld [vmem:[%s1 + $0xff0] sm:$0xff]
  %v568 = vld [vmem:[%s1 + $0xff8] sm:$0xff]
  %v569 = vld [vmem:[%s1 + $0x1000] sm:$0xff]
  %v570 = vld [vmem:[%s1 + $0x1008] sm:$0xff]
  %v571 = vld [vmem:[%s1 + $0x1010] sm:$0xff]
  %v572 = vld [vmem:[%s1 + $0x1018] sm:$0xff]
  %v573 = vld [vmem:[%s1 + $0x1020] sm:$0xff]
  %v574 = vld [vmem:[%s1 + $0x1028] sm:$0xff]
  %v575 = vld [vmem:[%s1 + $0x1030] sm:$0xff]
  %v576 = vld [vmem:[%s1 + $0x1038] sm:$0xff]
  %v577 = vld [vmem:[%s1 + $0x1040] sm:$0xff]
  %v578 = vld [vmem:[%s1 + $0x1048] sm:$0xff]
  %v579 = vld [vmem:[%s1 + $0x1050] sm:$0xff]
  %v580 = vld [vmem:[%s1 + $0x1058] sm:$0xff]
  %v581 = vld [vmem:[%s1 + $0x1060] sm:$0xff]
  %v582 = vld [vmem:[%s1 + $0x1068] sm:$0xff]
  %v583 = vld [vmem:[%s1 + $0x1070] sm:$0xff]
  %v584 = vld [vmem:[%s1 + $0x1078] sm:$0xff]
  %v585 = vld [vmem:[%s1 + $0x1080] sm:$0xff]
  %v586 = vld [vmem:[%s1 + $0x1088] sm:$0xff]
  %v587 = vld [vmem:[%s1 + $0x1090] sm:$0xff]
  %v588 = vld [vmem:[%s1 + $0x1098] sm:$0xff]
  %v589 = vld [vmem:[%s1 + $0x10a0] sm:$0xff]
  %v590 = vld [vmem:[%s1 + $0x10a8] sm:$0xff]
  %v591 = vld [vmem:[%s1 + $0x10b0] sm:$0xff]
  %v592 = vld [vmem:[%s1 + $0x10b8] sm:$0xff]
  %v593 = vld [vmem:[%s1 + $0x10c0] sm:$0xff]
  %v594 = vld [vmem:[%s1 + $0x10c8] sm:$0xff]
  %v595 = vld [vmem:[%s1 + $0x10d0] sm:$0xff]
  %v596 = vld [vmem:[%s1 + $0x10d8] sm:$0xff]
  %v597 = vld [vmem:[%s1 + $0x10e0] sm:$0xff]
  %v598 = vld [vmem:[%s1 + $0x10e8] sm:$0xff]
  %v599 = vld [vmem:[%s1 + $0x10f0] sm:$0xff]
  %v600 = vld [vmem:[%s1 + $0x10f8] sm:$0xff]
  %v601 = vld [vmem:[%s1 + $0x1100] sm:$0xff]
  %v602 = vld [vmem:[%s1 + $0x1108] sm:$0xff]
  %v603 = vld [vmem:[%s1 + $0x1110] sm:$0xff]
  %v604 = vld [vmem:[%s1 + $0x1118] sm:$0xff]
  %v605 = vld [vmem:[%s1 + $0x1120] sm:$0xff]
  %v606 = vld [vmem:[%s1 + $0x1128] sm:$0xff]
  %v607 = vld [vmem:[%s1 + $0x1130] sm:$0xff]
  %v608 = vld [vmem:[%s1 + $0x1138] sm:$0xff]
  %v609 = vld [vmem:[%s1 + $0x1140] sm:$0xff]
  %v610 = vld [vmem:[%s1 + $0x1148] sm:$0xff]
  %v611 = vld [vmem:[%s1 + $0x1150] sm:$0xff]
  %v612 = vld [vmem:[%s1 + $0x1158] sm:$0xff]
  %v613 = vld [vmem:[%s1 + $0x1160] sm:$0xff]
  %v614 = vld [vmem:[%s1 + $0x1168] sm:$0xff]
  %v615 = vld [vmem:[%s1 + $0x1170] sm:$0xff]
  %v616 = vld [vmem:[%s1 + $0x1178] sm:$0xff]
  %v617 = vld [vmem:[%s1 + $0x1180] sm:$0xff]
  %v618 = vld [vmem:[%s1 + $0x1188] sm:$0xff]
  %v619 = vld [vmem:[%s1 + $0x1190] sm:$0xff]
  %v620 = vld [vmem:[%s1 + $0x1198] sm:$0xff]
  %v621 = vld [vmem:[%s1 + $0x11a0] sm:$0xff]
  %v622 = vld [vmem:[%s1 + $0x11a8] sm:$0xff]
  %v623 = vld [vmem:[%s1 + $0x11b0] sm:$0xff]
  %v624 = vld [vmem:[%s1 + $0x11b8] sm:$0xff]
  %v625 = vld [vmem:[%s1 + $0x11c0] sm:$0xff]
  %v626 = vld [vmem:[%s1 + $0x11c8] sm:$0xff]
  %v627 = vld [vmem:[%s1 + $0x11d0] sm:$0xff]
  %v628 = vld [vmem:[%s1 + $0x11d8] sm:$0xff]
  %v629 = vld [vmem:[%s1 + $0x11e0] sm:$0xff]
  %v630 = vld [vmem:[%s1 + $0x11e8] sm:$0xff]
  %v631 = vld [vmem:[%s1 + $0x11f0] sm:$0xff]
  %v632 = vld [vmem:[%s1 + $0x11f8] sm:$0xff]
  %v633 = vld [vmem:[%s1 + $0x1200] sm:$0xff]
  %v634 = vld [vmem:[%s1 + $0x1208] sm:$0xff]
  %v635 = vld [vmem:[%s1 + $0x1210] sm:$0xff]
  %v636 = vld [vmem:[%s1 + $0x1218] sm:$0xff]
  %v637 = vld [vmem:[%s1 + $0x1220] sm:$0xff]
  %v638 = vld [vmem:[%s1 + $0x1228] sm:$0xff]
  %v639 = vld [vmem:[%s1 + $0x1230] sm:$0xff]
  %v640 = vld [vmem:[%s1 + $0x1238] sm:$0xff]
  %v641 = vld [vmem:[%s1 + $0x1240] sm:$0xff]
  %v642 = vld [vmem:[%s1 + $0x1248] sm:$0xff]
  %v643 = vld [vmem:[%s1 + $0x1250] sm:$0xff]
  %v644 = vld [vmem:[%s1 + $0x1258] sm:$0xff]
  %v645 = vld [vmem:[%s1 + $0x1260] sm:$0xff]
  %v646 = vld [vmem:[%s1 + $0x1268] sm:$0xff]
  %v647 = vld [vmem:[%s1 + $0x1270] sm:$0xff]
  %v648 = vld [vmem:[%s1 + $0x1278] sm:$0xff]
  %v649 = vld [vmem:[%s1 + $0x1280] sm:$0xff]
  %v650 = vld [vmem:[%s1 + $0x1288] sm:$0xff]
  %v651 = vld [vmem:[%s1 + $0x1290] sm:$0xff]
  %v652 = vld [vmem:[%s1 + $0x1298] sm:$0xff]
  %v653 = vld [vmem:[%s1 + $0x12a0] sm:$0xff]
  %v654 = vld [vmem:[%s1 + $0x12a8] sm:$0xff]
  %v655 = vld [vmem:[%s1 + $0x12b0] sm:$0xff]
  %v656 = vld [vmem:[%s1 + $0x12b8] sm:$0xff]
  %v657 = vld [vmem:[%s1 + $0x12c0] sm:$0xff]
  %v658 = vld [vmem:[%s1 + $0x12c8] sm:$0xff]
  %v659 = vld [vmem:[%s1 + $0x12d0] sm:$0xff]
  %v660 = vld [vmem:[%s1 + $0x12d8] sm:$0xff]
  %v661 = vld [vmem:[%s1 + $0x12e0] sm:$0xff]
  %v662 = vld [vmem:[%s1 + $0x12e8] sm:$0xff]
  %v663 = vld [vmem:[%s1 + $0x12f0] sm:$0xff]
  %v664 = vld [vmem:[%s1 + $0x12f8] sm:$0xff]
  %v665 = vld [vmem:[%s1 + $0x1300] sm:$0xff]
  %v666 = vld [vmem:[%s1 + $0x1308] sm:$0xff]
  %v667 = vld [vmem:[%s1 + $0x1310] sm:$0xff]
  %v668 = vld [vmem:[%s1 + $0x1318] sm:$0xff]
  %v669 = vld [vmem:[%s1 + $0x1320] sm:$0xff]
  %v670 = vld [vmem:[%s1 + $0x1328] sm:$0xff]
  %v671 = vld [vmem:[%s1 + $0x1330] sm:$0xff]
  %v672 = vld [vmem:[%s1 + $0x1338] sm:$0xff]
  %v673 = vld [vmem:[%s1 + $0x1340] sm:$0xff]
  %v674 = vld [vmem:[%s1 + $0x1348] sm:$0xff]
  %v675 = vld [vmem:[%s1 + $0x1350] sm:$0xff]
  %v676 = vld [vmem:[%s1 + $0x1358] sm:$0xff]
  %v677 = vld [vmem:[%s1 + $0x1360] sm:$0xff]
  %v678 = vld [vmem:[%s1 + $0x1368] sm:$0xff]
  %v679 = vld [vmem:[%s1 + $0x1370] sm:$0xff]
  %v680 = vld [vmem:[%s1 + $0x1378] sm:$0xff]
  %v681 = vld [vmem:[%s1 + $0x1380] sm:$0xff]
  %v682 = vld [vmem:[%s1 + $0x1388] sm:$0xff]
  %v683 = vld [vmem:[%s1 + $0x1390] sm:$0xff]
  %v684 = vld [vmem:[%s1 + $0x1398] sm:$0xff]
  %v685 = vld [vmem:[%s1 + $0x13a0] sm:$0xff]
  %v686 = vld [vmem:[%s1 + $0x13a8] sm:$0xff]
  %v687 = vld [vmem:[%s1 + $0x13b0] sm:$0xff]
  %v688 = vld [vmem:[%s1 + $0x13b8] sm:$0xff]
  %v689 = vld [vmem:[%s1 + $0x13c0] sm:$0xff]
  %v690 = vld [vmem:[%s1 + $0x13c8] sm:$0xff]
  %v691 = vld [vmem:[%s1 + $0x13d0] sm:$0xff]
  %v692 = vld [vmem:[%s1 + $0x13d8] sm:$0xff]
  %v693 = vld [vmem:[%s1 + $0x13e0] sm:$0xff]
  %v694 = vld [vmem:[%s1 + $0x13e8] sm:$0xff]
  %v695 = vld [vmem:[%s1 + $0x13f0] sm:$0xff]
  %v696 = vld [vmem:[%s1 + $0x13f8] sm:$0xff]
  %v697 = vld [vmem:[%s1 + $0x1400] sm:$0xff]
  %v698 = vld [vmem:[%s1 + $0x1408] sm:$0xff]
  %v699 = vld [vmem:[%s1 + $0x1410] sm:$0xff]
  %v700 = vld [vmem:[%s1 + $0x1418] sm:$0xff]
  %v701 = vld [vmem:[%s1 + $0x1420] sm:$0xff]
  %v702 = vld [vmem:[%s1 + $0x1428] sm:$0xff]
  %v703 = vld [vmem:[%s1 + $0x1430] sm:$0xff]
  %v704 = vld [vmem:[%s1 + $0x1438] sm:$0xff]
  %v705 = vld [vmem:[%s1 + $0x1440] sm:$0xff]
  %v706 = vld [vmem:[%s1 + $0x1448] sm:$0xff]
  %v707 = vld [vmem:[%s1 + $0x1450] sm:$0xff]
  %v708 = vld [vmem:[%s1 + $0x1458] sm:$0xff]
  %v709 = vld [vmem:[%s1 + $0x1460] sm:$0xff]
  %v710 = vld [vmem:[%s1 + $0x1468] sm:$0xff]
  %v711 = vld [vmem:[%s1 + $0x1470] sm:$0xff]
  %v712 = vld [vmem:[%s1 + $0x1478] sm:$0xff]
  %v713 = vld [vmem:[%s1 + $0x1480] sm:$0xff]
  %v714 = vld [vmem:[%s1 + $0x1488] sm:$0xff]
  %v715 = vld [vmem:[%s1 + $0x1490] sm:$0xff]
  %v716 = vld [vmem:[%s1 + $0x1498] sm:$0xff]
  %v717 = vld [vmem:[%s1 + $0x14a0] sm:$0xff]
  %v718 = vld [vmem:[%s1 + $0x14a8] sm:$0xff]
  %v719 = vld [vmem:[%s1 + $0x14b0] sm:$0xff]
  %v720 = vld [vmem:[%s1 + $0x14b8] sm:$0xff]
  %v721 = vld [vmem:[%s1 + $0x14c0] sm:$0xff]
  %v722 = vld [vmem:[%s1 + $0x14c8] sm:$0xff]
  %v723 = vld [vmem:[%s1 + $0x14d0] sm:$0xff]
  %v724 = vld [vmem:[%s1 + $0x14d8] sm:$0xff]
  %v725 = vld [vmem:[%s1 + $0x14e0] sm:$0xff]
  %v726 = vld [vmem:[%s1 + $0x14e8] sm:$0xff]
  %v727 = vld [vmem:[%s1 + $0x14f0] sm:$0xff]
  %v728 = vld [vmem:[%s1 + $0x14f8] sm:$0xff]
  %v729 = vld [vmem:[%s1 + $0x1500] sm:$0xff]
  %v730 = vld [vmem:[%s1 + $0x1508] sm:$0xff]
  %v731 = vld [vmem:[%s1 + $0x1510] sm:$0xff]
  %v732 = vld [vmem:[%s1 + $0x1518] sm:$0xff]
  %v733 = vld [vmem:[%s1 + $0x1520] sm:$0xff]
  %v734 = vld [vmem:[%s1 + $0x1528] sm:$0xff]
  %v735 = vld [vmem:[%s1 + $0x1530] sm:$0xff]
  %v736 = vld [vmem:[%s1 + $0x1538] sm:$0xff]
  %v737 = vld [vmem:[%s1 + $0x1540] sm:$0xff]
  %v738 = vld [vmem:[%s1 + $0x1548] sm:$0xff]
  %v739 = vld [vmem:[%s1 + $0x1550] sm:$0xff]
  %v740 = vld [vmem:[%s1 + $0x1558] sm:$0xff]
  %v741 = vld [vmem:[%s1 + $0x1560] sm:$0xff]
  %v742 = vld [vmem:[%s1 + $0x1568] sm:$0xff]
  %v743 = vld [vmem:[%s1 + $0x1570] sm:$0xff]
  %v744 = vld [vmem:[%s1 + $0x1578] sm:$0xff]
  %v745 = vld [vmem:[%s1 + $0x1580] sm:$0xff]
  %v746 = vld [vmem:[%s1 + $0x1588] sm:$0xff]
  %v747 = vld [vmem:[%s1 + $0x1590] sm:$0xff]
  %v748 = vld [vmem:[%s1 + $0x1598] sm:$0xff]
  %v749 = vld [vmem:[%s1 + $0x15a0] sm:$0xff]
  %v750 = vld [vmem:[%s1 + $0x15a8] sm:$0xff]
  %v751 = vld [vmem:[%s1 + $0x15b0] sm:$0xff]
  %v752 = vld [vmem:[%s1 + $0x15b8] sm:$0xff]
  %v753 = vld [vmem:[%s1 + $0x15c0] sm:$0xff]
  %v754 = vld [vmem:[%s1 + $0x15c8] sm:$0xff]
  %v755 = vld [vmem:[%s1 + $0x15d0] sm:$0xff]
  %v756 = vld [vmem:[%s1 + $0x15d8] sm:$0xff]
  %v757 = vld [vmem:[%s1 + $0x15e0] sm:$0xff]
  %v758 = vld [vmem:[%s1 + $0x15e8] sm:$0xff]
  %v759 = vld [vmem:[%s1 + $0x15f0] sm:$0xff]
  %v760 = vld [vmem:[%s1 + $0x15f8] sm:$0xff]
  %v761 = vld [vmem:[%s1 + $0x1600] sm:$0xff]
  %v762 = vld [vmem:[%s1 + $0x1608] sm:$0xff]
  %v763 = vld [vmem:[%s1 + $0x1610] sm:$0xff]
  %v764 = vld [vmem:[%s1 + $0x1618] sm:$0xff]
  %v765 = vld [vmem:[%s1 + $0x1620] sm:$0xff]
  %v766 = vld [vmem:[%s1 + $0x1628] sm:$0xff]
  %v767 = vld [vmem:[%s1 + $0x1630] sm:$0xff]
  %v768 = vld [vmem:[%s1 + $0x1638] sm:$0xff]
  %v769 = vld [vmem:[%s1 + $0x1640] sm:$0xff]
  %v770 = vld [vmem:[%s1 + $0x1648] sm:$0xff]
  %v771 = vld [vmem:[%s1 + $0x1650] sm:$0xff]
  %v772 = vld [vmem:[%s1 + $0x1658] sm:$0xff]
  %v773 = vld [vmem:[%s1 + $0x1660] sm:$0xff]
  %v774 = vld [vmem:[%s1 + $0x1668] sm:$0xff]
  %v775 = vld [vmem:[%s1 + $0x1670] sm:$0xff]
  %v776 = vld [vmem:[%s1 + $0x1678] sm:$0xff]
  %v777 = vld [vmem:[%s1 + $0x1680] sm:$0xff]
  %v778 = vld [vmem:[%s1 + $0x1688] sm:$0xff]
  %v779 = vld [vmem:[%s1 + $0x1690] sm:$0xff]
  %v780 = vld [vmem:[%s1 + $0x1698] sm:$0xff]
  %v781 = vld [vmem:[%s1 + $0x16a0] sm:$0xff]
  %v782 = vld [vmem:[%s1 + $0x16a8] sm:$0xff]
  %v783 = vld [vmem:[%s1 + $0x16b0] sm:$0xff]
  %v784 = vld [vmem:[%s1 + $0x16b8] sm:$0xff]
  %v785 = vld [vmem:[%s1 + $0x16c0] sm:$0xff]
  %v786 = vld [vmem:[%s1 + $0x16c8] sm:$0xff]
  %v787 = vld [vmem:[%s1 + $0x16d0] sm:$0xff]
  %v788 = vld [vmem:[%s1 + $0x16d8] sm:$0xff]
  %v789 = vld [vmem:[%s1 + $0x16e0] sm:$0xff]
  %v790 = vld [vmem:[%s1 + $0x16e8] sm:$0xff]
  %v791 = vld [vmem:[%s1 + $0x16f0] sm:$0xff]
  %v792 = vld [vmem:[%s1 + $0x16f8] sm:$0xff]
  %v793 = vld [vmem:[%s1 + $0x1700] sm:$0xff]
  %v794 = vld [vmem:[%s1 + $0x1708] sm:$0xff]
  %v795 = vld [vmem:[%s1 + $0x1710] sm:$0xff]
  %v796 = vld [vmem:[%s1 + $0x1718] sm:$0xff]
  %v797 = vld [vmem:[%s1 + $0x1720] sm:$0xff]
  %v798 = vld [vmem:[%s1 + $0x1728] sm:$0xff]
  %v799 = vld [vmem:[%s1 + $0x1730] sm:$0xff]
  %v800 = vld [vmem:[%s1 + $0x1738] sm:$0xff]
  %v801 = vld [vmem:[%s1 + $0x1740] sm:$0xff]
  %v802 = vld [vmem:[%s1 + $0x1748] sm:$0xff]
  %v803 = vld [vmem:[%s1 + $0x1750] sm:$0xff]
  %v804 = vld [vmem:[%s1 + $0x1758] sm:$0xff]
  %v805 = vld [vmem:[%s1 + $0x1760] sm:$0xff]
  %v806 = vld [vmem:[%s1 + $0x1768] sm:$0xff]
  %v807 = vld [vmem:[%s1 + $0x1770] sm:$0xff]
  %v808 = vld [vmem:[%s1 + $0x1778] sm:$0xff]
  %v809 = vld [vmem:[%s1 + $0x1780] sm:$0xff]
  %v810 = vld [vmem:[%s1 + $0x1788] sm:$0xff]
  %v811 = vld [vmem:[%s1 + $0x1790] sm:$0xff]
  %v812 = vld [vmem:[%s1 + $0x1798] sm:$0xff]
  %v813 = vld [vmem:[%s1 + $0x17a0] sm:$0xff]
  %v814 = vld [vmem:[%s1 + $0x17a8] sm:$0xff]
  %v815 = vld [vmem:[%s1 + $0x17b0] sm:$0xff]
  %v816 = vld [vmem:[%s1 + $0x17b8] sm:$0xff]
  %v817 = vld [vmem:[%s1 + $0x17c0] sm:$0xff]
  %v818 = vld [vmem:[%s1 + $0x17c8] sm:$0xff]
  %v819 = vld [vmem:[%s1 + $0x17d0] sm:$0xff]
  %v820 = vld [vmem:[%s1 + $0x17d8] sm:$0xff]
  %v821 = vld [vmem:[%s1 + $0x17e0] sm:$0xff]
  %v822 = vld [vmem:[%s1 + $0x17e8] sm:$0xff]
  %v823 = vld [vmem:[%s1 + $0x17f0] sm:$0xff]
  %v824 = vld [vmem:[%s1 + $0x17f8] sm:$0xff]
  %v825 = vld [vmem:[%s1 + $0x1800] sm:$0xff]
  %v826 = vld [vmem:[%s1 + $0x1808] sm:$0xff]
  %v827 = vld [vmem:[%s1 + $0x1810] sm:$0xff]
  %v828 = vld [vmem:[%s1 + $0x1818] sm:$0xff]
  %v829 = vld [vmem:[%s1 + $0x1820] sm:$0xff]
  %v830 = vld [vmem:[%s1 + $0x1828] sm:$0xff]
  %v831 = vld [vmem:[%s1 + $0x1830] sm:$0xff]
  %v832 = vld [vmem:[%s1 + $0x1838] sm:$0xff]
  %v833 = vld [vmem:[%s1 + $0x1840] sm:$0xff]
  %v834 = vld [vmem:[%s1 + $0x1848] sm:$0xff]
  %v835 = vld [vmem:[%s1 + $0x1850] sm:$0xff]
  %v836 = vld [vmem:[%s1 + $0x1858] sm:$0xff]
  %v837 = vld [vmem:[%s1 + $0x1860] sm:$0xff]
  %v838 = vld [vmem:[%s1 + $0x1868] sm:$0xff]
  %v839 = vld [vmem:[%s1 + $0x1870] sm:$0xff]
  %v840 = vld [vmem:[%s1 + $0x1878] sm:$0xff]
  %v841 = vld [vmem:[%s1 + $0x1880] sm:$0xff]
  %v842 = vld [vmem:[%s1 + $0x1888] sm:$0xff]
  %v843 = vld [vmem:[%s1 + $0x1890] sm:$0xff]
  %v844 = vld [vmem:[%s1 + $0x1898] sm:$0xff]
  %v845 = vld [vmem:[%s1 + $0x18a0] sm:$0xff]
  %v846 = vld [vmem:[%s1 + $0x18a8] sm:$0xff]
  %v847 = vld [vmem:[%s1 + $0x18b0] sm:$0xff]
  %v848 = vld [vmem:[%s1 + $0x18b8] sm:$0xff]
  %v849 = vld [vmem:[%s1 + $0x18c0] sm:$0xff]
  %v850 = vld [vmem:[%s1 + $0x18c8] sm:$0xff]
  %v851 = vld [vmem:[%s1 + $0x18d0] sm:$0xff]
  %v852 = vld [vmem:[%s1 + $0x18d8] sm:$0xff]
  %v853 = vld [vmem:[%s1 + $0x18e0] sm:$0xff]
  %v854 = vld [vmem:[%s1 + $0x18e8] sm:$0xff]
  %v855 = vld [vmem:[%s1 + $0x18f0] sm:$0xff]
  %v856 = vld [vmem:[%s1 + $0x18f8] sm:$0xff]
  %v857 = vld [vmem:[%s1 + $0x1900] sm:$0xff]
  %v858 = vld [vmem:[%s1 + $0x1908] sm:$0xff]
  %v859 = vld [vmem:[%s1 + $0x1910] sm:$0xff]
  %v860 = vld [vmem:[%s1 + $0x1918] sm:$0xff]
  %v861 = vld [vmem:[%s1 + $0x1920] sm:$0xff]
  %v862 = vld [vmem:[%s1 + $0x1928] sm:$0xff]
  %v863 = vld [vmem:[%s1 + $0x1930] sm:$0xff]
  %v864 = vld [vmem:[%s1 + $0x1938] sm:$0xff]
  %v865 = vld [vmem:[%s1 + $0x1940] sm:$0xff]
  %v866 = vld [vmem:[%s1 + $0x1948] sm:$0xff]
  %v867 = vld [vmem:[%s1 + $0x1950] sm:$0xff]
  %v868 = vld [vmem:[%s1 + $0x1958] sm:$0xff]
  %v869 = vld [vmem:[%s1 + $0x1960] sm:$0xff]
  %v870 = vld [vmem:[%s1 + $0x1968] sm:$0xff]
  %v871 = vld [vmem:[%s1 + $0x1970] sm:$0xff]
  %v872 = vld [vmem:[%s1 + $0x1978] sm:$0xff]
  %v873 = vld [vmem:[%s1 + $0x1980] sm:$0xff]
  %v874 = vld [vmem:[%s1 + $0x1988] sm:$0xff]
  %v875 = vld [vmem:[%s1 + $0x1990] sm:$0xff]
  %v876 = vld [vmem:[%s1 + $0x1998] sm:$0xff]
  %v877 = vld [vmem:[%s1 + $0x19a0] sm:$0xff]
  %v878 = vld [vmem:[%s1 + $0x19a8] sm:$0xff]
  %v879 = vld [vmem:[%s1 + $0x19b0] sm:$0xff]
  %v880 = vld [vmem:[%s1 + $0x19b8] sm:$0xff]
  %v881 = vld [vmem:[%s1 + $0x19c0] sm:$0xff]
  %v882 = vld [vmem:[%s1 + $0x19c8] sm:$0xff]
  %v883 = vld [vmem:[%s1 + $0x19d0] sm:$0xff]
  %v884 = vld [vmem:[%s1 + $0x19d8] sm:$0xff]
  %v885 = vld [vmem:[%s1 + $0x19e0] sm:$0xff]
  %v886 = vld [vmem:[%s1 + $0x19e8] sm:$0xff]
  %v887 = vld [vmem:[%s1 + $0x19f0] sm:$0xff]
  %v888 = vld [vmem:[%s1 + $0x19f8] sm:$0xff]
  %v889 = vld [vmem:[%s1 + $0x1a00] sm:$0xff]
  %v890 = vld [vmem:[%s1 + $0x1a08] sm:$0xff]
  %v891 = vld [vmem:[%s1 + $0x1a10] sm:$0xff]
  %v892 = vld [vmem:[%s1 + $0x1a18] sm:$0xff]
  %v893 = vld [vmem:[%s1 + $0x1a20] sm:$0xff]
  %v894 = vld [vmem:[%s1 + $0x1a28] sm:$0xff]
  %v895 = vld [vmem:[%s1 + $0x1a30] sm:$0xff]
  %v896 = vld [vmem:[%s1 + $0x1a38] sm:$0xff]
  %v897 = vld [vmem:[%s1 + $0x1a40] sm:$0xff]
  %v898 = vld [vmem:[%s1 + $0x1a48] sm:$0xff]
  %v899 = vld [vmem:[%s1 + $0x1a50] sm:$0xff]
  %v900 = vld [vmem:[%s1 + $0x1a58] sm:$0xff]
  %v901 = vld [vmem:[%s1 + $0x1a60] sm:$0xff]
  %v902 = vld [vmem:[%s1 + $0x1a68] sm:$0xff]
  %v903 = vld [vmem:[%s1 + $0x1a70] sm:$0xff]
  %v904 = vld [vmem:[%s1 + $0x1a78] sm:$0xff]
  %v905 = vld [vmem:[%s1 + $0x1a80] sm:$0xff]
  %v906 = vld [vmem:[%s1 + $0x1a88] sm:$0xff]
  %v907 = vld [vmem:[%s1 + $0x1a90] sm:$0xff]
  %v908 = vld [vmem:[%s1 + $0x1a98] sm:$0xff]
  %v909 = vld [vmem:[%s1 + $0x1aa0] sm:$0xff]
  %v910 = vld [vmem:[%s1 + $0x1aa8] sm:$0xff]
  %v911 = vld [vmem:[%s1 + $0x1ab0] sm:$0xff]
  %v912 = vld [vmem:[%s1 + $0x1ab8] sm:$0xff]
  %v913 = vld [vmem:[%s1 + $0x1ac0] sm:$0xff]
  %v914 = vld [vmem:[%s1 + $0x1ac8] sm:$0xff]
  %v915 = vld [vmem:[%s1 + $0x1ad0] sm:$0xff]
  %v916 = vld [vmem:[%s1 + $0x1ad8] sm:$0xff]
  %v917 = vld [vmem:[%s1 + $0x1ae0] sm:$0xff]
  %v918 = vld [vmem:[%s1 + $0x1ae8] sm:$0xff]
  %v919 = vld [vmem:[%s1 + $0x1af0] sm:$0xff]
  %v920 = vld [vmem:[%s1 + $0x1af8] sm:$0xff]
  %v921 = vld [vmem:[%s1 + $0x1b00] sm:$0xff]
  %v922 = vld [vmem:[%s1 + $0x1b08] sm:$0xff]
  %v923 = vld [vmem:[%s1 + $0x1b10] sm:$0xff]
  %v924 = vld [vmem:[%s1 + $0x1b18] sm:$0xff]
  %v925 = vld [vmem:[%s1 + $0x1b20] sm:$0xff]
  %v926 = vld [vmem:[%s1 + $0x1b28] sm:$0xff]
  %v927 = vld [vmem:[%s1 + $0x1b30] sm:$0xff]
  %v928 = vld [vmem:[%s1 + $0x1b38] sm:$0xff]
  %v929 = vld [vmem:[%s1 + $0x1b40] sm:$0xff]
  %v930 = vld [vmem:[%s1 + $0x1b48] sm:$0xff]
  %v931 = vld [vmem:[%s1 + $0x1b50] sm:$0xff]
  %v932 = vld [vmem:[%s1 + $0x1b58] sm:$0xff]
  %v933 = vld [vmem:[%s1 + $0x1b60] sm:$0xff]
  %v934 = vld [vmem:[%s1 + $0x1b68] sm:$0xff]
  %v935 = vld [vmem:[%s1 + $0x1b70] sm:$0xff]
  %v936 = vld [vmem:[%s1 + $0x1b78] sm:$0xff]
  %v937 = vld [vmem:[%s1 + $0x1b80] sm:$0xff]
  %v938 = vld [vmem:[%s1 + $0x1b88] sm:$0xff]
  %v939 = vld [vmem:[%s1 + $0x1b90] sm:$0xff]
  %v940 = vld [vmem:[%s1 + $0x1b98] sm:$0xff]
  %v941 = vld [vmem:[%s1 + $0x1ba0] sm:$0xff]
  %v942 = vld [vmem:[%s1 + $0x1ba8] sm:$0xff]
  %v943 = vld [vmem:[%s1 + $0x1bb0] sm:$0xff]
  %v944 = vld [vmem:[%s1 + $0x1bb8] sm:$0xff]
  %v945 = vld [vmem:[%s1 + $0x1bc0] sm:$0xff]
  %v946 = vld [vmem:[%s1 + $0x1bc8] sm:$0xff]
  %v947 = vld [vmem:[%s1 + $0x1bd0] sm:$0xff]
  %v948 = vld [vmem:[%s1 + $0x1bd8] sm:$0xff]
  %v949 = vld [vmem:[%s1 + $0x1be0] sm:$0xff]
  %v950 = vld [vmem:[%s1 + $0x1be8] sm:$0xff]
  %v951 = vld [vmem:[%s1 + $0x1bf0] sm:$0xff]
  %v952 = vld [vmem:[%s1 + $0x1bf8] sm:$0xff]
  %v953 = vld [vmem:[%s1 + $0x1c00] sm:$0xff]
  %v954 = vld [vmem:[%s1 + $0x1c08] sm:$0xff]
  %v955 = vld [vmem:[%s1 + $0x1c10] sm:$0xff]
  %v956 = vld [vmem:[%s1 + $0x1c18] sm:$0xff]
  %v957 = vld [vmem:[%s1 + $0x1c20] sm:$0xff]
  %v958 = vld [vmem:[%s1 + $0x1c28] sm:$0xff]
  %v959 = vld [vmem:[%s1 + $0x1c30] sm:$0xff]
  %v960 = vld [vmem:[%s1 + $0x1c38] sm:$0xff]
  %v961 = vld [vmem:[%s1 + $0x1c40] sm:$0xff]
  %v962 = vld [vmem:[%s1 + $0x1c48] sm:$0xff]
  %v963 = vld [vmem:[%s1 + $0x1c50] sm:$0xff]
  %v964 = vld [vmem:[%s1 + $0x1c58] sm:$0xff]
  %v965 = vld [vmem:[%s1 + $0x1c60] sm:$0xff]
  %v966 = vld [vmem:[%s1 + $0x1c68] sm:$0xff]
  %v967 = vld [vmem:[%s1 + $0x1c70] sm:$0xff]
  %v968 = vld [vmem:[%s1 + $0x1c78] sm:$0xff]
  %v969 = vld [vmem:[%s1 + $0x1c80] sm:$0xff]
  %v970 = vld [vmem:[%s1 + $0x1c88] sm:$0xff]
  %v971 = vld [vmem:[%s1 + $0x1c90] sm:$0xff]
  %v972 = vld [vmem:[%s1 + $0x1c98] sm:$0xff]
  %v973 = vld [vmem:[%s1 + $0x1ca0] sm:$0xff]
  %v974 = vld [vmem:[%s1 + $0x1ca8] sm:$0xff]
  %v975 = vld [vmem:[%s1 + $0x1cb0] sm:$0xff]
  %v976 = vld [vmem:[%s1 + $0x1cb8] sm:$0xff]
  %v977 = vld [vmem:[%s1 + $0x1cc0] sm:$0xff]
  %v978 = vld [vmem:[%s1 + $0x1cc8] sm:$0xff]
  %v979 = vld [vmem:[%s1 + $0x1cd0] sm:$0xff]
  %v980 = vld [vmem:[%s1 + $0x1cd8] sm:$0xff]
  %v981 = vld [vmem:[%s1 + $0x1ce0] sm:$0xff]
  %v982 = vld [vmem:[%s1 + $0x1ce8] sm:$0xff]
  %v983 = vld [vmem:[%s1 + $0x1cf0] sm:$0xff]
  %v984 = vld [vmem:[%s1 + $0x1cf8] sm:$0xff]
  %v985 = vld [vmem:[%s1 + $0x1d00] sm:$0xff]
  %v986 = vld [vmem:[%s1 + $0x1d08] sm:$0xff]
  %v987 = vld [vmem:[%s1 + $0x1d10] sm:$0xff]
  %v988 = vld [vmem:[%s1 + $0x1d18] sm:$0xff]
  %v989 = vld [vmem:[%s1 + $0x1d20] sm:$0xff]
  %v990 = vld [vmem:[%s1 + $0x1d28] sm:$0xff]
  %v991 = vld [vmem:[%s1 + $0x1d30] sm:$0xff]
  %v992 = vld [vmem:[%s1 + $0x1d38] sm:$0xff]
  %v993 = vld [vmem:[%s1 + $0x1d40] sm:$0xff]
  %v994 = vld [vmem:[%s1 + $0x1d48] sm:$0xff]
  %v995 = vld [vmem:[%s1 + $0x1d50] sm:$0xff]
  %v996 = vld [vmem:[%s1 + $0x1d58] sm:$0xff]
  %v997 = vld [vmem:[%s1 + $0x1d60] sm:$0xff]
  %v998 = vld [vmem:[%s1 + $0x1d68] sm:$0xff]
  %v999 = vld [vmem:[%s1 + $0x1d70] sm:$0xff]
  %v1000 = vld [vmem:[%s1 + $0x1d78] sm:$0xff]
  %v1001 = vld [vmem:[%s1 + $0x1d80] sm:$0xff]
  %v1002 = vld [vmem:[%s1 + $0x1d88] sm:$0xff]
  %v1003 = vld [vmem:[%s1 + $0x1d90] sm:$0xff]
  %v1004 = vld [vmem:[%s1 + $0x1d98] sm:$0xff]
  %v1005 = vld [vmem:[%s1 + $0x1da0] sm:$0xff]
  %v1006 = vld [vmem:[%s1 + $0x1da8] sm:$0xff]
  %v1007 = vld [vmem:[%s1 + $0x1db0] sm:$0xff]
  %v1008 = vld [vmem:[%s1 + $0x1db8] sm:$0xff]
  %v1009 = vld [vmem:[%s1 + $0x1dc0] sm:$0xff]
  %v1010 = vld [vmem:[%s1 + $0x1dc8] sm:$0xff]
  %v1011 = vld [vmem:[%s1 + $0x1dd0] sm:$0xff]
  %v1012 = vld [vmem:[%s1 + $0x1dd8] sm:$0xff]
  %v1013 = vld [vmem:[%s1 + $0x1de0] sm:$0xff]
  %v1014 = vld [vmem:[%s1 + $0x1de8] sm:$0xff]
  %v1015 = vld [vmem:[%s1 + $0x1df0] sm:$0xff]
  %v1016 = vld [vmem:[%s1 + $0x1df8] sm:$0xff]
  %v1017 = vld [vmem:[%s1 + $0x1e00] sm:$0xff]
  %v1018 = vld [vmem:[%s1 + $0x1e08] sm:$0xff]
  %v1019 = vld [vmem:[%s1 + $0x1e10] sm:$0xff]
  %v1020 = vld [vmem:[%s1 + $0x1e18] sm:$0xff]
  %v1021 = vld [vmem:[%s1 + $0x1e20] sm:$0xff]
  %v1022 = vld [vmem:[%s1 + $0x1e28] sm:$0xff]
  %v1023 = vld [vmem:[%s1 + $0x1e30] sm:$0xff]
  %v1024 = vld [vmem:[%s1 + $0x1e38] sm:$0xff]
  %v1025 = vld [vmem:[%s1 + $0x1e40] sm:$0xff]
  %v1026 = vld [vmem:[%s1 + $0x1e48] sm:$0xff]
  %v1027 = vld [vmem:[%s1 + $0x1e50] sm:$0xff]
  %v1028 = vld [vmem:[%s1 + $0x1e58] sm:$0xff]
  %v1029 = vld [vmem:[%s1 + $0x1e60] sm:$0xff]
  %v1030 = vld [vmem:[%s1 + $0x1e68] sm:$0xff]
  %v1031 = vld [vmem:[%s1 + $0x1e70] sm:$0xff]
  %v1032 = vld [vmem:[%s1 + $0x1e78] sm:$0xff]
  %v1033 = vld [vmem:[%s1 + $0x1e80] sm:$0xff]
  %v1034 = vld [vmem:[%s1 + $0x1e88] sm:$0xff]
  %v1035 = vld [vmem:[%s1 + $0x1e90] sm:$0xff]
  %v1036 = vld [vmem:[%s1 + $0x1e98] sm:$0xff]
  %v1037 = vld [vmem:[%s1 + $0x1ea0] sm:$0xff]
  %v1038 = vld [vmem:[%s1 + $0x1ea8] sm:$0xff]
  %v1039 = vld [vmem:[%s1 + $0x1eb0] sm:$0xff]
  %v1040 = vld [vmem:[%s1 + $0x1eb8] sm:$0xff]
  %v1041 = vld [vmem:[%s1 + $0x1ec0] sm:$0xff]
  %v1042 = vld [vmem:[%s1 + $0x1ec8] sm:$0xff]
  %v1043 = vld [vmem:[%s1 + $0x1ed0] sm:$0xff]
  %v1044 = vld [vmem:[%s1 + $0x1ed8] sm:$0xff]
  %v1045 = vld [vmem:[%s1 + $0x1ee0] sm:$0xff]
  %v1046 = vld [vmem:[%s1 + $0x1ee8] sm:$0xff]
  %v1047 = vld [vmem:[%s1 + $0x1ef0] sm:$0xff]
  %v1048 = vld [vmem:[%s1 + $0x1ef8] sm:$0xff]
  %v1049 = vld [vmem:[%s1 + $0x1f00] sm:$0xff]
  %v1050 = vld [vmem:[%s1 + $0x1f08] sm:$0xff]
  %v1051 = vld [vmem:[%s1 + $0x1f10] sm:$0xff]
  %v1052 = vld [vmem:[%s1 + $0x1f18] sm:$0xff]
  %v1053 = vld [vmem:[%s1 + $0x1f20] sm:$0xff]
  %v1054 = vld [vmem:[%s1 + $0x1f28] sm:$0xff]
  %v1055 = vld [vmem:[%s1 + $0x1f30] sm:$0xff]
  %v1056 = vld [vmem:[%s1 + $0x1f38] sm:$0xff]
  %v1057 = vld [vmem:[%s1 + $0x1f40] sm:$0xff]
  %v1058 = vld [vmem:[%s1 + $0x1f48] sm:$0xff]
  %v1059 = vld [vmem:[%s1 + $0x1f50] sm:$0xff]
  %v1060 = vld [vmem:[%s1 + $0x1f58] sm:$0xff]
  %v1061 = vld [vmem:[%s1 + $0x1f60] sm:$0xff]
  %v1062 = vld [vmem:[%s1 + $0x1f68] sm:$0xff]
  %v1063 = vld [vmem:[%s1 + $0x1f70] sm:$0xff]
  %v1064 = vld [vmem:[%s1 + $0x1f78] sm:$0xff]
  %v1065 = vld [vmem:[%s1 + $0x1f80] sm:$0xff]
  %v1066 = vld [vmem:[%s1 + $0x1f88] sm:$0xff]
  %v1067 = vld [vmem:[%s1 + $0x1f90] sm:$0xff]
  %v1068 = vld [vmem:[%s1 + $0x1f98] sm:$0xff]
  %v1069 = vld [vmem:[%s1 + $0x1fa0] sm:$0xff]
  %v1070 = vld [vmem:[%s1 + $0x1fa8] sm:$0xff]
  %v1071 = vld [vmem:[%s1 + $0x1fb0] sm:$0xff]
  %v1072 = vld [vmem:[%s1 + $0x1fb8] sm:$0xff]
  %v1073 = vld [vmem:[%s1 + $0x1fc0] sm:$0xff]
  %v1074 = vld [vmem:[%s1 + $0x1fc8] sm:$0xff]
  %v1075 = vld [vmem:[%s1 + $0x1fd0] sm:$0xff]
  %v1076 = vld [vmem:[%s1 + $0x1fd8] sm:$0xff]
  %v1077 = vld [vmem:[%s1 + $0x1fe0] sm:$0xff]
  %v1078 = vld [vmem:[%s1 + $0x1fe8] sm:$0xff]
  %v1079 = vld [vmem:[%s1 + $0x1ff0] sm:$0xff]
  %v1080 = vld [vmem:[%s1 + $0x1ff8] sm:$0xff]
  %v1081 = vld [vmem:[%s1 + $0x2000] sm:$0xff]
  %v1082 = vld [vmem:[%s1 + $0x2008] sm:$0xff]
  %v1083 = vld [vmem:[%s1 + $0x2010] sm:$0xff]
  %v1084 = vld [vmem:[%s1 + $0x2018] sm:$0xff]
  %v1085 = vld [vmem:[%s1 + $0x2020] sm:$0xff]
  %v1086 = vld [vmem:[%s1 + $0x2028] sm:$0xff]
  %v1087 = vld [vmem:[%s1 + $0x2030] sm:$0xff]
  %v1088 = vld [vmem:[%s1 + $0x2038] sm:$0xff]
  %v1089 = vld [vmem:[%s1 + $0x2040] sm:$0xff]
  %v1090 = vld [vmem:[%s1 + $0x2048] sm:$0xff]
  %v1091 = vld [vmem:[%s1 + $0x2050] sm:$0xff]
  %v1092 = vld [vmem:[%s1 + $0x2058] sm:$0xff]
  %v1093 = vld [vmem:[%s1 + $0x2060] sm:$0xff]
  %v1094 = vld [vmem:[%s1 + $0x2068] sm:$0xff]
  %v1095 = vld [vmem:[%s1 + $0x2070] sm:$0xff]
  %v1096 = vld [vmem:[%s1 + $0x2078] sm:$0xff]
  %v1097 = vld [vmem:[%s1 + $0x2080] sm:$0xff]
  %v1098 = vld [vmem:[%s1 + $0x2088] sm:$0xff]
  %v1099 = vld [vmem:[%s1 + $0x2090] sm:$0xff]
  %v1100 = vld [vmem:[%s1 + $0x2098] sm:$0xff]
  %v1101 = vld [vmem:[%s1 + $0x20a0] sm:$0xff]
  %v1102 = vld [vmem:[%s1 + $0x20a8] sm:$0xff]
  %v1103 = vld [vmem:[%s1 + $0x20b0] sm:$0xff]
  %v1104 = vld [vmem:[%s1 + $0x20b8] sm:$0xff]
  %v1105 = vld [vmem:[%s1 + $0x20c0] sm:$0xff]
  %v1106 = vld [vmem:[%s1 + $0x20c8] sm:$0xff]
  %v1107 = vld [vmem:[%s1 + $0x20d0] sm:$0xff]
  %v1108 = vld [vmem:[%s1 + $0x20d8] sm:$0xff]
  %v1109 = vld [vmem:[%s1 + $0x20e0] sm:$0xff]
  %v1110 = vld [vmem:[%s1 + $0x20e8] sm:$0xff]
  %v1111 = vld [vmem:[%s1 + $0x20f0] sm:$0xff]
  %v1112 = vld [vmem:[%s1 + $0x20f8] sm:$0xff]
  %v1113 = vld [vmem:[%s1 + $0x2100] sm:$0xff]
  %v1114 = vld [vmem:[%s1 + $0x2108] sm:$0xff]
  %v1115 = vld [vmem:[%s1 + $0x2110] sm:$0xff]
  %v1116 = vld [vmem:[%s1 + $0x2118] sm:$0xff]
  %v1117 = vld [vmem:[%s1 + $0x2120] sm:$0xff]
  %v1118 = vld [vmem:[%s1 + $0x2128] sm:$0xff]
  %v1119 = vld [vmem:[%s1 + $0x2130] sm:$0xff]
  %v1120 = vld [vmem:[%s1 + $0x2138] sm:$0xff]
  %v1121 = vld [vmem:[%s1 + $0x2140] sm:$0xff]
  %v1122 = vld [vmem:[%s1 + $0x2148] sm:$0xff]
  %v1123 = vld [vmem:[%s1 + $0x2150] sm:$0xff]
  %v1124 = vld [vmem:[%s1 + $0x2158] sm:$0xff]
  %v1125 = vld [vmem:[%s1 + $0x2160] sm:$0xff]
  %v1126 = vld [vmem:[%s1 + $0x2168] sm:$0xff]
  %v1127 = vld [vmem:[%s1 + $0x2170] sm:$0xff]
  %v1128 = vld [vmem:[%s1 + $0x2178] sm:$0xff]
  %v1129 = vld [vmem:[%s1 + $0x2180] sm:$0xff]
  %v1130 = vld [vmem:[%s1 + $0x2188] sm:$0xff]
  %v1131 = vld [vmem:[%s1 + $0x2190] sm:$0xff]
  %v1132 = vld [vmem:[%s1 + $0x2198] sm:$0xff]
  %v1133 = vld [vmem:[%s1 + $0x21a0] sm:$0xff]
  %v1134 = vld [vmem:[%s1 + $0x21a8] sm:$0xff]
  %v1135 = vld [vmem:[%s1 + $0x21b0] sm:$0xff]
  %v1136 = vld [vmem:[%s1 + $0x21b8] sm:$0xff]
  %v1137 = vld [vmem:[%s1 + $0x21c0] sm:$0xff]
  %v1138 = vld [vmem:[%s1 + $0x21c8] sm:$0xff]
  %v1139 = vld [vmem:[%s1 + $0x21d0] sm:$0xff]
  %v1140 = vld [vmem:[%s1 + $0x21d8] sm:$0xff]
  %v1141 = vld [vmem:[%s1 + $0x21e0] sm:$0xff]
  %v1142 = vld [vmem:[%s1 + $0x21e8] sm:$0xff]
  %v1143 = vld [vmem:[%s1 + $0x21f0] sm:$0xff]
  %v1144 = vld [vmem:[%s1 + $0x21f8] sm:$0xff]
  %v1145 = vld [vmem:[%s1 + $0x2200] sm:$0xff]
  %v1146 = vld [vmem:[%s1 + $0x2208] sm:$0xff]
  %v1147 = vld [vmem:[%s1 + $0x2210] sm:$0xff]
  %v1148 = vld [vmem:[%s1 + $0x2218] sm:$0xff]
  %v1149 = vld [vmem:[%s1 + $0x2220] sm:$0xff]
  %v1150 = vld [vmem:[%s1 + $0x2228] sm:$0xff]
  %v1151 = vld [vmem:[%s1 + $0x2230] sm:$0xff]
  %v1152 = vld [vmem:[%s1 + $0x2238] sm:$0xff]
  %v1153 = vld [vmem:[%s1 + $0x2240] sm:$0xff]
  %v1154 = vld [vmem:[%s1 + $0x2248] sm:$0xff]
  %v1155 = vld [vmem:[%s1 + $0x2250] sm:$0xff]
  %v1156 = vld [vmem:[%s1 + $0x2258] sm:$0xff]
  %v1157 = vld [vmem:[%s1 + $0x2260] sm:$0xff]
  %v1158 = vld [vmem:[%s1 + $0x2268] sm:$0xff]
  %v1159 = vld [vmem:[%s1 + $0x2270] sm:$0xff]
  %v1160 = vld [vmem:[%s1 + $0x2278] sm:$0xff]
  %v1161 = vld [vmem:[%s1 + $0x2280] sm:$0xff]
  %v1162 = vld [vmem:[%s1 + $0x2288] sm:$0xff]
  %v1163 = vld [vmem:[%s1 + $0x2290] sm:$0xff]
  %v1164 = vld [vmem:[%s1 + $0x2298] sm:$0xff]
  %v1165 = vld [vmem:[%s1 + $0x22a0] sm:$0xff]
  %v1166 = vld [vmem:[%s1 + $0x22a8] sm:$0xff]
  %v1167 = vld [vmem:[%s1 + $0x22b0] sm:$0xff]
  %v1168 = vld [vmem:[%s1 + $0x22b8] sm:$0xff]
  %v1169 = vld [vmem:[%s1 + $0x22c0] sm:$0xff]
  %v1170 = vld [vmem:[%s1 + $0x22c8] sm:$0xff]
  %v1171 = vld [vmem:[%s1 + $0x22d0] sm:$0xff]
  %v1172 = vld [vmem:[%s1 + $0x22d8] sm:$0xff]
  %v1173 = vld [vmem:[%s1 + $0x22e0] sm:$0xff]
  %v1174 = vld [vmem:[%s1 + $0x22e8] sm:$0xff]
  %v1175 = vld [vmem:[%s1 + $0x22f0] sm:$0xff]
  %v1176 = vld [vmem:[%s1 + $0x22f8] sm:$0xff]
  %v1177 = vld [vmem:[%s1 + $0x2300] sm:$0xff]
  %v1178 = vld [vmem:[%s1 + $0x2308] sm:$0xff]
  %v1179 = vld [vmem:[%s1 + $0x2310] sm:$0xff]
  %v1180 = vld [vmem:[%s1 + $0x2318] sm:$0xff]
  %v1181 = vld [vmem:[%s1 + $0x2320] sm:$0xff]
  %v1182 = vld [vmem:[%s1 + $0x2328] sm:$0xff]
  %v1183 = vld [vmem:[%s1 + $0x2330] sm:$0xff]
  %v1184 = vld [vmem:[%s1 + $0x2338] sm:$0xff]
  %v1185 = vld [vmem:[%s1 + $0x2340] sm:$0xff]
  %v1186 = vld [vmem:[%s1 + $0x2348] sm:$0xff]
  %v1187 = vld [vmem:[%s1 + $0x2350] sm:$0xff]
  %v1188 = vld [vmem:[%s1 + $0x2358] sm:$0xff]
  %v1189 = vld [vmem:[%s1 + $0x2360] sm:$0xff]
  %v1190 = vld [vmem:[%s1 + $0x2368] sm:$0xff]
  %v1191 = vld [vmem:[%s1 + $0x2370] sm:$0xff]
  %v1192 = vld [vmem:[%s1 + $0x2378] sm:$0xff]
  %v1193 = vld [vmem:[%s1 + $0x2380] sm:$0xff]
  %v1194 = vld [vmem:[%s1 + $0x2388] sm:$0xff]
  %v1195 = vld [vmem:[%s1 + $0x2390] sm:$0xff]
  %v1196 = vld [vmem:[%s1 + $0x2398] sm:$0xff]
  %v1197 = vld [vmem:[%s1 + $0x23a0] sm:$0xff]
  %v1198 = vld [vmem:[%s1 + $0x23a8] sm:$0xff]
  %v1199 = vld [vmem:[%s1 + $0x23b0] sm:$0xff]
  %v1200 = vld [vmem:[%s1 + $0x23b8] sm:$0xff]
  %v1201 = vld [vmem:[%s1 + $0x23c0] sm:$0xff]
  %v1202 = vld [vmem:[%s1 + $0x23c8] sm:$0xff]
  %v1203 = vld [vmem:[%s1 + $0x23d0] sm:$0xff]
  %v1204 = vld [vmem:[%s1 + $0x23d8] sm:$0xff]
  %v1205 = vld [vmem:[%s1 + $0x23e0] sm:$0xff]
  %v1206 = vld [vmem:[%s1 + $0x23e8] sm:$0xff]
  %v1207 = vld [vmem:[%s1 + $0x23f0] sm:$0xff]
  %v1208 = vld [vmem:[%s1 + $0x23f8] sm:$0xff]
  %v1209 = vld [vmem:[%s2] sm:$0x3]
  %v1211 = vlaneseq
  %v1212 = vshrl.u32 %v1211, 7
  %v1213 = vsub.s32 0, %v1212
  %v1214 = vrot.slane %v1209, %v1213
  %v1215 = vlaneseq
  %v1216 = vshrl.u32 %v1215, 7
  %v1217 = vsub.s32 1, %v1216
  %v1218 = vrot.slane %v1209, %v1217
  %v1257 = vunpack.c.l.b16 %v21
  %v1258 = vunpack.c.h.b16 %v21
  %v1259 = vunpack.c.l.b16 %v22
  %v1260 = vunpack.c.h.b16 %v22
  %v1261 = vunpack.c.l.b16 %v23
  %v1262 = vunpack.c.h.b16 %v23
  %v1263 = vunpack.c.l.b16 %v24
  %v1264 = vunpack.c.h.b16 %v24
  %v1265 = vunpack.c.l.b16 %v25
  %v1266 = vunpack.c.h.b16 %v25
  %v1267 = vunpack.c.l.b16 %v26
  %v1268 = vunpack.c.h.b16 %v26
  %v1269 = vunpack.c.l.b16 %v27
  %v1270 = vunpack.c.h.b16 %v27
  %v1271 = vunpack.c.l.b16 %v28
  %v1272 = vunpack.c.h.b16 %v28
  %v1273 = vunpack.c.l.b16 %v29
  %v1274 = vunpack.c.h.b16 %v29
  %v1275 = vunpack.c.l.b16 %v30
  %v1276 = vunpack.c.h.b16 %v30
  %v1277 = vunpack.c.l.b16 %v31
  %v1278 = vunpack.c.h.b16 %v31
  %v1279 = vunpack.c.l.b16 %v32
  %v1280 = vunpack.c.h.b16 %v32
  %v1281 = vunpack.c.l.b16 %v33
  %v1282 = vunpack.c.h.b16 %v33
  %v1283 = vunpack.c.l.b16 %v34
  %v1284 = vunpack.c.h.b16 %v34
  %v1285 = vunpack.c.l.b16 %v35
  %v1286 = vunpack.c.h.b16 %v35
  %v1287 = vunpack.c.l.b16 %v36
  %v1288 = vunpack.c.h.b16 %v36
  %v1289 = vunpack.c.l.b16 %v37
  %v1290 = vunpack.c.h.b16 %v37
  %v1291 = vunpack.c.l.b16 %v38
  %v1292 = vunpack.c.h.b16 %v38
  %v1293 = vunpack.c.l.b16 %v39
  %v1294 = vunpack.c.h.b16 %v39
  %v1295 = vunpack.c.l.b16 %v40
  %v1296 = vunpack.c.h.b16 %v40
  %v1297 = vunpack.c.l.b16 %v41
  %v1298 = vunpack.c.h.b16 %v41
  %v1299 = vunpack.c.l.b16 %v42
  %v1300 = vunpack.c.h.b16 %v42
  %v1301 = vunpack.c.l.b16 %v43
  %v1302 = vunpack.c.h.b16 %v43
  %v1303 = vunpack.c.l.b16 %v44
  %v1304 = vunpack.c.h.b16 %v44
  %v1305 = vunpack.c.l.b16 %v45
  %v1306 = vunpack.c.h.b16 %v45
  %v1307 = vunpack.c.l.b16 %v46
  %v1308 = vunpack.c.h.b16 %v46
  %v1309 = vunpack.c.l.b16 %v47
  %v1310 = vunpack.c.h.b16 %v47
  %v1311 = vunpack.c.l.b16 %v48
  %v1312 = vunpack.c.h.b16 %v48
  %v1313 = vunpack.c.l.b16 %v49
  %v1314 = vunpack.c.h.b16 %v49
  %v1315 = vunpack.c.l.b16 %v50
  %v1316 = vunpack.c.h.b16 %v50
  %v1317 = vunpack.c.l.b16 %v51
  %v1318 = vunpack.c.h.b16 %v51
  %v1319 = vunpack.c.l.b16 %v52
  %v1320 = vunpack.c.h.b16 %v52
  %v1321 = vunpack.c.l.b16 %v53
  %v1322 = vunpack.c.h.b16 %v53
  %v1323 = vunpack.c.l.b16 %v54
  %v1324 = vunpack.c.h.b16 %v54
  %v1325 = vunpack.c.l.b16 %v55
  %v1326 = vunpack.c.h.b16 %v55
  %v1327 = vunpack.c.l.b16 %v56
  %v1328 = vunpack.c.h.b16 %v56
  %v1329 = vpack.c.b16 %v1257, %v1257
  %v1330 = vpack.c.b16 %v1258, %v1258
  %v1331 = vpack.c.b16 %v1259, %v1259
  %v1332 = vpack.c.b16 %v1260, %v1260
  %v1333 = vpack.c.b16 %v1261, %v1261
  %v1334 = vpack.c.b16 %v1262, %v1262
  %v1335 = vpack.c.b16 %v1263, %v1263
  %v1336 = vpack.c.b16 %v1264, %v1264
  %v1337 = vpack.c.b16 %v1265, %v1265
  %v1338 = vpack.c.b16 %v1266, %v1266
  %v1339 = vpack.c.b16 %v1267, %v1267
  %v1340 = vpack.c.b16 %v1268, %v1268
  %v1341 = vpack.c.b16 %v1269, %v1269
  %v1342 = vpack.c.b16 %v1270, %v1270
  %v1343 = vpack.c.b16 %v1271, %v1271
  %v1344 = vpack.c.b16 %v1272, %v1272
  %v1345 = vpack.c.b16 %v1273, %v1273
  %v1346 = vpack.c.b16 %v1274, %v1274
  %v1347 = vpack.c.b16 %v1275, %v1275
  %v1348 = vpack.c.b16 %v1276, %v1276
  %v1349 = vpack.c.b16 %v1277, %v1277
  %v1350 = vpack.c.b16 %v1278, %v1278
  %v1351 = vpack.c.b16 %v1279, %v1279
  %v1352 = vpack.c.b16 %v1280, %v1280
  %v1353 = vpack.c.b16 %v1281, %v1281
  %v1354 = vpack.c.b16 %v1282, %v1282
  %v1355 = vpack.c.b16 %v1283, %v1283
  %v1356 = vpack.c.b16 %v1284, %v1284
  %v1357 = vpack.c.b16 %v1285, %v1285
  %v1358 = vpack.c.b16 %v1286, %v1286
  %v1359 = vpack.c.b16 %v1287, %v1287
  %v1360 = vpack.c.b16 %v1288, %v1288
  %v1361 = vpack.c.b16 %v1289, %v1289
  %v1362 = vpack.c.b16 %v1290, %v1290
  %v1363 = vpack.c.b16 %v1291, %v1291
  %v1364 = vpack.c.b16 %v1292, %v1292
  %v1365 = vpack.c.b16 %v1293, %v1293
  %v1366 = vpack.c.b16 %v1294, %v1294
  %v1367 = vpack.c.b16 %v1295, %v1295
  %v1368 = vpack.c.b16 %v1296, %v1296
  %v1369 = vpack.c.b16 %v1297, %v1297
  %v1370 = vpack.c.b16 %v1298, %v1298
  %v1371 = vpack.c.b16 %v1299, %v1299
  %v1372 = vpack.c.b16 %v1300, %v1300
  %v1373 = vpack.c.b16 %v1301, %v1301
  %v1374 = vpack.c.b16 %v1302, %v1302
  %v1375 = vpack.c.b16 %v1303, %v1303
  %v1376 = vpack.c.b16 %v1304, %v1304
  %v1377 = vpack.c.b16 %v1305, %v1305
  %v1378 = vpack.c.b16 %v1306, %v1306
  %v1379 = vpack.c.b16 %v1307, %v1307
  %v1380 = vpack.c.b16 %v1308, %v1308
  %v1381 = vpack.c.b16 %v1309, %v1309
  %v1382 = vpack.c.b16 %v1310, %v1310
  %v1383 = vpack.c.b16 %v1311, %v1311
  %v1384 = vpack.c.b16 %v1312, %v1312
  %v1385 = vpack.c.b16 %v1313, %v1313
  %v1386 = vpack.c.b16 %v1314, %v1314
  %v1387 = vpack.c.b16 %v1315, %v1315
  %v1388 = vpack.c.b16 %v1316, %v1316
  %v1389 = vpack.c.b16 %v1317, %v1317
  %v1390 = vpack.c.b16 %v1318, %v1318
  %v1391 = vpack.c.b16 %v1319, %v1319
  %v1392 = vpack.c.b16 %v1320, %v1320
  %v1393 = vpack.c.b16 %v1321, %v1321
  %v1394 = vpack.c.b16 %v1322, %v1322
  %v1395 = vpack.c.b16 %v1323, %v1323
  %v1396 = vpack.c.b16 %v1324, %v1324
  %v1397 = vpack.c.b16 %v1325, %v1325
  %v1398 = vpack.c.b16 %v1326, %v1326
  %v1399 = vpack.c.b16 %v1327, %v1327
  %v1400 = vpack.c.b16 %v1328, %v1328
  %v2625 = vunpack.c.l.b16 %v57
  %v2626 = vunpack.c.h.b16 %v57
  %v2627 = vunpack.c.l.b16 %v58
  %v2628 = vunpack.c.h.b16 %v58
  %v2629 = vunpack.c.l.b16 %v59
  %v2630 = vunpack.c.h.b16 %v59
  %v2631 = vunpack.c.l.b16 %v60
  %v2632 = vunpack.c.h.b16 %v60
  %v2633 = vunpack.c.l.b16 %v61
  %v2634 = vunpack.c.h.b16 %v61
  %v2635 = vunpack.c.l.b16 %v62
  %v2636 = vunpack.c.h.b16 %v62
  %v2637 = vunpack.c.l.b16 %v63
  %v2638 = vunpack.c.h.b16 %v63
  %v2639 = vunpack.c.l.b16 %v64
  %v2640 = vunpack.c.h.b16 %v64
  %v2641 = vunpack.c.l.b16 %v65
  %v2642 = vunpack.c.h.b16 %v65
  %v2643 = vunpack.c.l.b16 %v66
  %v2644 = vunpack.c.h.b16 %v66
  %v2645 = vunpack.c.l.b16 %v67
  %v2646 = vunpack.c.h.b16 %v67
  %v2647 = vunpack.c.l.b16 %v68
  %v2648 = vunpack.c.h.b16 %v68
  %v2649 = vunpack.c.l.b16 %v69
  %v2650 = vunpack.c.h.b16 %v69
  %v2651 = vunpack.c.l.b16 %v70
  %v2652 = vunpack.c.h.b16 %v70
  %v2653 = vunpack.c.l.b16 %v71
  %v2654 = vunpack.c.h.b16 %v71
  %v2655 = vunpack.c.l.b16 %v72
  %v2656 = vunpack.c.h.b16 %v72
  %v2657 = vunpack.c.l.b16 %v73
  %v2658 = vunpack.c.h.b16 %v73
  %v2659 = vunpack.c.l.b16 %v74
  %v2660 = vunpack.c.h.b16 %v74
  %v2661 = vunpack.c.l.b16 %v75
  %v2662 = vunpack.c.h.b16 %v75
  %v2663 = vunpack.c.l.b16 %v76
  %v2664 = vunpack.c.h.b16 %v76
  %v2665 = vunpack.c.l.b16 %v77
  %v2666 = vunpack.c.h.b16 %v77
  %v2667 = vunpack.c.l.b16 %v78
  %v2668 = vunpack.c.h.b16 %v78
  %v2669 = vunpack.c.l.b16 %v79
  %v2670 = vunpack.c.h.b16 %v79
  %v2671 = vunpack.c.l.b16 %v80
  %v2672 = vunpack.c.h.b16 %v80
  %v2673 = vunpack.c.l.b16 %v81
  %v2674 = vunpack.c.h.b16 %v81
  %v2675 = vunpack.c.l.b16 %v82
  %v2676 = vunpack.c.h.b16 %v82
  %v2677 = vunpack.c.l.b16 %v83
  %v2678 = vunpack.c.h.b16 %v83
  %v2679 = vunpack.c.l.b16 %v84
  %v2680 = vunpack.c.h.b16 %v84
  %v2681 = vunpack.c.l.b16 %v85
  %v2682 = vunpack.c.h.b16 %v85
  %v2683 = vunpack.c.l.b16 %v86
  %v2684 = vunpack.c.h.b16 %v86
  %v2685 = vunpack.c.l.b16 %v87
  %v2686 = vunpack.c.h.b16 %v87
  %v2687 = vunpack.c.l.b16 %v88
  %v2688 = vunpack.c.h.b16 %v88
  %v2689 = vunpack.c.l.b16 %v89
  %v2690 = vunpack.c.h.b16 %v89
  %v2691 = vunpack.c.l.b16 %v90
  %v2692 = vunpack.c.h.b16 %v90
  %v2693 = vunpack.c.l.b16 %v91
  %v2694 = vunpack.c.h.b16 %v91
  %v2695 = vunpack.c.l.b16 %v92
  %v2696 = vunpack.c.h.b16 %v92
  %v2697 = vunpack.c.l.b16 %v93
  %v2698 = vunpack.c.h.b16 %v93
  %v2699 = vunpack.c.l.b16 %v94
  %v2700 = vunpack.c.h.b16 %v94
  %v2701 = vunpack.c.l.b16 %v95
  %v2702 = vunpack.c.h.b16 %v95
  %v2703 = vunpack.c.l.b16 %v96
  %v2704 = vunpack.c.h.b16 %v96
  %v2705 = vunpack.c.l.b16 %v97
  %v2706 = vunpack.c.h.b16 %v97
  %v2707 = vunpack.c.l.b16 %v98
  %v2708 = vunpack.c.h.b16 %v98
  %v2709 = vunpack.c.l.b16 %v99
  %v2710 = vunpack.c.h.b16 %v99
  %v2711 = vunpack.c.l.b16 %v100
  %v2712 = vunpack.c.h.b16 %v100
  %v2713 = vunpack.c.l.b16 %v101
  %v2714 = vunpack.c.h.b16 %v101
  %v2715 = vunpack.c.l.b16 %v102
  %v2716 = vunpack.c.h.b16 %v102
  %v2717 = vunpack.c.l.b16 %v103
  %v2718 = vunpack.c.h.b16 %v103
  %v2719 = vunpack.c.l.b16 %v104
  %v2720 = vunpack.c.h.b16 %v104
  %v2721 = vunpack.c.l.b16 %v105
  %v2722 = vunpack.c.h.b16 %v105
  %v2723 = vunpack.c.l.b16 %v106
  %v2724 = vunpack.c.h.b16 %v106
  %v2725 = vunpack.c.l.b16 %v107
  %v2726 = vunpack.c.h.b16 %v107
  %v2727 = vunpack.c.l.b16 %v108
  %v2728 = vunpack.c.h.b16 %v108
  %v2729 = vunpack.c.l.b16 %v109
  %v2730 = vunpack.c.h.b16 %v109
  %v2731 = vunpack.c.l.b16 %v110
  %v2732 = vunpack.c.h.b16 %v110
  %v2733 = vunpack.c.l.b16 %v111
  %v2734 = vunpack.c.h.b16 %v111
  %v2735 = vunpack.c.l.b16 %v112
  %v2736 = vunpack.c.h.b16 %v112
  %v2737 = vunpack.c.l.b16 %v113
  %v2738 = vunpack.c.h.b16 %v113
  %v2739 = vunpack.c.l.b16 %v114
  %v2740 = vunpack.c.h.b16 %v114
  %v2741 = vunpack.c.l.b16 %v115
  %v2742 = vunpack.c.h.b16 %v115
  %v2743 = vunpack.c.l.b16 %v116
  %v2744 = vunpack.c.h.b16 %v116
  %v2745 = vunpack.c.l.b16 %v117
  %v2746 = vunpack.c.h.b16 %v117
  %v2747 = vunpack.c.l.b16 %v118
  %v2748 = vunpack.c.h.b16 %v118
  %v2749 = vunpack.c.l.b16 %v119
  %v2750 = vunpack.c.h.b16 %v119
  %v2751 = vunpack.c.l.b16 %v120
  %v2752 = vunpack.c.h.b16 %v120
  %v2753 = vunpack.c.l.b16 %v121
  %v2754 = vunpack.c.h.b16 %v121
  %v2755 = vunpack.c.l.b16 %v122
  %v2756 = vunpack.c.h.b16 %v122
  %v2757 = vunpack.c.l.b16 %v123
  %v2758 = vunpack.c.h.b16 %v123
  %v2759 = vunpack.c.l.b16 %v124
  %v2760 = vunpack.c.h.b16 %v124
  %v2761 = vunpack.c.l.b16 %v125
  %v2762 = vunpack.c.h.b16 %v125
  %v2763 = vunpack.c.l.b16 %v126
  %v2764 = vunpack.c.h.b16 %v126
  %v2765 = vunpack.c.l.b16 %v127
  %v2766 = vunpack.c.h.b16 %v127
  %v2767 = vunpack.c.l.b16 %v128
  %v2768 = vunpack.c.h.b16 %v128
  %v2769 = vunpack.c.l.b16 %v129
  %v2770 = vunpack.c.h.b16 %v129
  %v2771 = vunpack.c.l.b16 %v130
  %v2772 = vunpack.c.h.b16 %v130
  %v2773 = vunpack.c.l.b16 %v131
  %v2774 = vunpack.c.h.b16 %v131
  %v2775 = vunpack.c.l.b16 %v132
  %v2776 = vunpack.c.h.b16 %v132
  %v2777 = vunpack.c.l.b16 %v133
  %v2778 = vunpack.c.h.b16 %v133
  %v2779 = vunpack.c.l.b16 %v134
  %v2780 = vunpack.c.h.b16 %v134
  %v2781 = vunpack.c.l.b16 %v135
  %v2782 = vunpack.c.h.b16 %v135
  %v2783 = vunpack.c.l.b16 %v136
  %v2784 = vunpack.c.h.b16 %v136
  %v2785 = vunpack.c.l.b16 %v137
  %v2786 = vunpack.c.h.b16 %v137
  %v2787 = vunpack.c.l.b16 %v138
  %v2788 = vunpack.c.h.b16 %v138
  %v2789 = vunpack.c.l.b16 %v139
  %v2790 = vunpack.c.h.b16 %v139
  %v2791 = vunpack.c.l.b16 %v140
  %v2792 = vunpack.c.h.b16 %v140
  %v2793 = vunpack.c.l.b16 %v141
  %v2794 = vunpack.c.h.b16 %v141
  %v2795 = vunpack.c.l.b16 %v142
  %v2796 = vunpack.c.h.b16 %v142
  %v2797 = vunpack.c.l.b16 %v143
  %v2798 = vunpack.c.h.b16 %v143
  %v2799 = vunpack.c.l.b16 %v144
  %v2800 = vunpack.c.h.b16 %v144
  %v2801 = vunpack.c.l.b16 %v145
  %v2802 = vunpack.c.h.b16 %v145
  %v2803 = vunpack.c.l.b16 %v146
  %v2804 = vunpack.c.h.b16 %v146
  %v2805 = vunpack.c.l.b16 %v147
  %v2806 = vunpack.c.h.b16 %v147
  %v2807 = vunpack.c.l.b16 %v148
  %v2808 = vunpack.c.h.b16 %v148
  %v2809 = vunpack.c.l.b16 %v149
  %v2810 = vunpack.c.h.b16 %v149
  %v2811 = vunpack.c.l.b16 %v150
  %v2812 = vunpack.c.h.b16 %v150
  %v2813 = vunpack.c.l.b16 %v151
  %v2814 = vunpack.c.h.b16 %v151
  %v2815 = vunpack.c.l.b16 %v152
  %v2816 = vunpack.c.h.b16 %v152
  %v2817 = vunpack.c.l.b16 %v153
  %v2818 = vunpack.c.h.b16 %v153
  %v2819 = vunpack.c.l.b16 %v154
  %v2820 = vunpack.c.h.b16 %v154
  %v2821 = vunpack.c.l.b16 %v155
  %v2822 = vunpack.c.h.b16 %v155
  %v2823 = vunpack.c.l.b16 %v156
  %v2824 = vunpack.c.h.b16 %v156
  %v2825 = vunpack.c.l.b16 %v157
  %v2826 = vunpack.c.h.b16 %v157
  %v2827 = vunpack.c.l.b16 %v158
  %v2828 = vunpack.c.h.b16 %v158
  %v2829 = vunpack.c.l.b16 %v159
  %v2830 = vunpack.c.h.b16 %v159
  %v2831 = vunpack.c.l.b16 %v160
  %v2832 = vunpack.c.h.b16 %v160
  %v2833 = vunpack.c.l.b16 %v161
  %v2834 = vunpack.c.h.b16 %v161
  %v2835 = vunpack.c.l.b16 %v162
  %v2836 = vunpack.c.h.b16 %v162
  %v2837 = vunpack.c.l.b16 %v163
  %v2838 = vunpack.c.h.b16 %v163
  %v2839 = vunpack.c.l.b16 %v164
  %v2840 = vunpack.c.h.b16 %v164
  %v2841 = vunpack.c.l.b16 %v165
  %v2842 = vunpack.c.h.b16 %v165
  %v2843 = vunpack.c.l.b16 %v166
  %v2844 = vunpack.c.h.b16 %v166
  %v2845 = vunpack.c.l.b16 %v167
  %v2846 = vunpack.c.h.b16 %v167
  %v2847 = vunpack.c.l.b16 %v168
  %v2848 = vunpack.c.h.b16 %v168
  %v2849 = vunpack.c.l.b16 %v169
  %v2850 = vunpack.c.h.b16 %v169
  %v2851 = vunpack.c.l.b16 %v170
  %v2852 = vunpack.c.h.b16 %v170
  %v2853 = vunpack.c.l.b16 %v171
  %v2854 = vunpack.c.h.b16 %v171
  %v2855 = vunpack.c.l.b16 %v172
  %v2856 = vunpack.c.h.b16 %v172
  %v2857 = vunpack.c.l.b16 %v173
  %v2858 = vunpack.c.h.b16 %v173
  %v2859 = vunpack.c.l.b16 %v174
  %v2860 = vunpack.c.h.b16 %v174
  %v2861 = vunpack.c.l.b16 %v175
  %v2862 = vunpack.c.h.b16 %v175
  %v2863 = vunpack.c.l.b16 %v176
  %v2864 = vunpack.c.h.b16 %v176
  %v2865 = vunpack.c.l.b16 %v177
  %v2866 = vunpack.c.h.b16 %v177
  %v2867 = vunpack.c.l.b16 %v178
  %v2868 = vunpack.c.h.b16 %v178
  %v2869 = vunpack.c.l.b16 %v179
  %v2870 = vunpack.c.h.b16 %v179
  %v2871 = vunpack.c.l.b16 %v180
  %v2872 = vunpack.c.h.b16 %v180
  %v2873 = vunpack.c.l.b16 %v181
  %v2874 = vunpack.c.h.b16 %v181
  %v2875 = vunpack.c.l.b16 %v182
  %v2876 = vunpack.c.h.b16 %v182
  %v2877 = vunpack.c.l.b16 %v183
  %v2878 = vunpack.c.h.b16 %v183
  %v2879 = vunpack.c.l.b16 %v184
  %v2880 = vunpack.c.h.b16 %v184
  %v2881 = vunpack.c.l.b16 %v185
  %v2882 = vunpack.c.h.b16 %v185
  %v2883 = vunpack.c.l.b16 %v186
  %v2884 = vunpack.c.h.b16 %v186
  %v2885 = vunpack.c.l.b16 %v187
  %v2886 = vunpack.c.h.b16 %v187
  %v2887 = vunpack.c.l.b16 %v188
  %v2888 = vunpack.c.h.b16 %v188
  %v2889 = vunpack.c.l.b16 %v189
  %v2890 = vunpack.c.h.b16 %v189
  %v2891 = vunpack.c.l.b16 %v190
  %v2892 = vunpack.c.h.b16 %v190
  %v2893 = vunpack.c.l.b16 %v191
  %v2894 = vunpack.c.h.b16 %v191
  %v2895 = vunpack.c.l.b16 %v192
  %v2896 = vunpack.c.h.b16 %v192
  %v2897 = vunpack.c.l.b16 %v193
  %v2898 = vunpack.c.h.b16 %v193
  %v2899 = vunpack.c.l.b16 %v194
  %v2900 = vunpack.c.h.b16 %v194
  %v2901 = vunpack.c.l.b16 %v195
  %v2902 = vunpack.c.h.b16 %v195
  %v2903 = vunpack.c.l.b16 %v196
  %v2904 = vunpack.c.h.b16 %v196
  %v2905 = vunpack.c.l.b16 %v197
  %v2906 = vunpack.c.h.b16 %v197
  %v2907 = vunpack.c.l.b16 %v198
  %v2908 = vunpack.c.h.b16 %v198
  %v2909 = vunpack.c.l.b16 %v199
  %v2910 = vunpack.c.h.b16 %v199
  %v2911 = vunpack.c.l.b16 %v200
  %v2912 = vunpack.c.h.b16 %v200
  %v2913 = vunpack.c.l.b16 %v201
  %v2914 = vunpack.c.h.b16 %v201
  %v2915 = vunpack.c.l.b16 %v202
  %v2916 = vunpack.c.h.b16 %v202
  %v2917 = vunpack.c.l.b16 %v203
  %v2918 = vunpack.c.h.b16 %v203
  %v2919 = vunpack.c.l.b16 %v204
  %v2920 = vunpack.c.h.b16 %v204
  %v2921 = vunpack.c.l.b16 %v205
  %v2922 = vunpack.c.h.b16 %v205
  %v2923 = vunpack.c.l.b16 %v206
  %v2924 = vunpack.c.h.b16 %v206
  %v2925 = vunpack.c.l.b16 %v207
  %v2926 = vunpack.c.h.b16 %v207
  %v2927 = vunpack.c.l.b16 %v208
  %v2928 = vunpack.c.h.b16 %v208
  %v2929 = vunpack.c.l.b16 %v209
  %v2930 = vunpack.c.h.b16 %v209
  %v2931 = vunpack.c.l.b16 %v210
  %v2932 = vunpack.c.h.b16 %v210
  %v2933 = vunpack.c.l.b16 %v211
  %v2934 = vunpack.c.h.b16 %v211
  %v2935 = vunpack.c.l.b16 %v212
  %v2936 = vunpack.c.h.b16 %v212
  %v2937 = vunpack.c.l.b16 %v213
  %v2938 = vunpack.c.h.b16 %v213
  %v2939 = vunpack.c.l.b16 %v214
  %v2940 = vunpack.c.h.b16 %v214
  %v2941 = vunpack.c.l.b16 %v215
  %v2942 = vunpack.c.h.b16 %v215
  %v2943 = vunpack.c.l.b16 %v216
  %v2944 = vunpack.c.h.b16 %v216
  %v2945 = vunpack.c.l.b16 %v217
  %v2946 = vunpack.c.h.b16 %v217
  %v2947 = vunpack.c.l.b16 %v218
  %v2948 = vunpack.c.h.b16 %v218
  %v2949 = vunpack.c.l.b16 %v219
  %v2950 = vunpack.c.h.b16 %v219
  %v2951 = vunpack.c.l.b16 %v220
  %v2952 = vunpack.c.h.b16 %v220
  %v2953 = vunpack.c.l.b16 %v221
  %v2954 = vunpack.c.h.b16 %v221
  %v2955 = vunpack.c.l.b16 %v222
  %v2956 = vunpack.c.h.b16 %v222
  %v2957 = vunpack.c.l.b16 %v223
  %v2958 = vunpack.c.h.b16 %v223
  %v2959 = vunpack.c.l.b16 %v224
  %v2960 = vunpack.c.h.b16 %v224
  %v2961 = vunpack.c.l.b16 %v225
  %v2962 = vunpack.c.h.b16 %v225
  %v2963 = vunpack.c.l.b16 %v226
  %v2964 = vunpack.c.h.b16 %v226
  %v2965 = vunpack.c.l.b16 %v227
  %v2966 = vunpack.c.h.b16 %v227
  %v2967 = vunpack.c.l.b16 %v228
  %v2968 = vunpack.c.h.b16 %v228
  %v2969 = vunpack.c.l.b16 %v229
  %v2970 = vunpack.c.h.b16 %v229
  %v2971 = vunpack.c.l.b16 %v230
  %v2972 = vunpack.c.h.b16 %v230
  %v2973 = vunpack.c.l.b16 %v231
  %v2974 = vunpack.c.h.b16 %v231
  %v2975 = vunpack.c.l.b16 %v232
  %v2976 = vunpack.c.h.b16 %v232
  %v2977 = vunpack.c.l.b16 %v233
  %v2978 = vunpack.c.h.b16 %v233
  %v2979 = vunpack.c.l.b16 %v234
  %v2980 = vunpack.c.h.b16 %v234
  %v2981 = vunpack.c.l.b16 %v235
  %v2982 = vunpack.c.h.b16 %v235
  %v2983 = vunpack.c.l.b16 %v236
  %v2984 = vunpack.c.h.b16 %v236
  %v2985 = vunpack.c.l.b16 %v237
  %v2986 = vunpack.c.h.b16 %v237
  %v2987 = vunpack.c.l.b16 %v238
  %v2988 = vunpack.c.h.b16 %v238
  %v2989 = vunpack.c.l.b16 %v239
  %v2990 = vunpack.c.h.b16 %v239
  %v2991 = vunpack.c.l.b16 %v240
  %v2992 = vunpack.c.h.b16 %v240
  %v2993 = vunpack.c.l.b16 %v241
  %v2994 = vunpack.c.h.b16 %v241
  %v2995 = vunpack.c.l.b16 %v242
  %v2996 = vunpack.c.h.b16 %v242
  %v2997 = vunpack.c.l.b16 %v243
  %v2998 = vunpack.c.h.b16 %v243
  %v2999 = vunpack.c.l.b16 %v244
  %v3000 = vunpack.c.h.b16 %v244
  %v3001 = vunpack.c.l.b16 %v245
  %v3002 = vunpack.c.h.b16 %v245
  %v3003 = vunpack.c.l.b16 %v246
  %v3004 = vunpack.c.h.b16 %v246
  %v3005 = vunpack.c.l.b16 %v247
  %v3006 = vunpack.c.h.b16 %v247
  %v3007 = vunpack.c.l.b16 %v248
  %v3008 = vunpack.c.h.b16 %v248
  %v3009 = vunpack.c.l.b16 %v249
  %v3010 = vunpack.c.h.b16 %v249
  %v3011 = vunpack.c.l.b16 %v250
  %v3012 = vunpack.c.h.b16 %v250
  %v3013 = vunpack.c.l.b16 %v251
  %v3014 = vunpack.c.h.b16 %v251
  %v3015 = vunpack.c.l.b16 %v252
  %v3016 = vunpack.c.h.b16 %v252
  %v3017 = vunpack.c.l.b16 %v253
  %v3018 = vunpack.c.h.b16 %v253
  %v3019 = vunpack.c.l.b16 %v254
  %v3020 = vunpack.c.h.b16 %v254
  %v3021 = vunpack.c.l.b16 %v255
  %v3022 = vunpack.c.h.b16 %v255
  %v3023 = vunpack.c.l.b16 %v256
  %v3024 = vunpack.c.h.b16 %v256
  %v3025 = vunpack.c.l.b16 %v257
  %v3026 = vunpack.c.h.b16 %v257
  %v3027 = vunpack.c.l.b16 %v258
  %v3028 = vunpack.c.h.b16 %v258
  %v3029 = vunpack.c.l.b16 %v259
  %v3030 = vunpack.c.h.b16 %v259
  %v3031 = vunpack.c.l.b16 %v260
  %v3032 = vunpack.c.h.b16 %v260
  %v3033 = vunpack.c.l.b16 %v261
  %v3034 = vunpack.c.h.b16 %v261
  %v3035 = vunpack.c.l.b16 %v262
  %v3036 = vunpack.c.h.b16 %v262
  %v3037 = vunpack.c.l.b16 %v263
  %v3038 = vunpack.c.h.b16 %v263
  %v3039 = vunpack.c.l.b16 %v264
  %v3040 = vunpack.c.h.b16 %v264
  %v3041 = vunpack.c.l.b16 %v265
  %v3042 = vunpack.c.h.b16 %v265
  %v3043 = vunpack.c.l.b16 %v266
  %v3044 = vunpack.c.h.b16 %v266
  %v3045 = vunpack.c.l.b16 %v267
  %v3046 = vunpack.c.h.b16 %v267
  %v3047 = vunpack.c.l.b16 %v268
  %v3048 = vunpack.c.h.b16 %v268
  %v3049 = vunpack.c.l.b16 %v269
  %v3050 = vunpack.c.h.b16 %v269
  %v3051 = vunpack.c.l.b16 %v270
  %v3052 = vunpack.c.h.b16 %v270
  %v3053 = vunpack.c.l.b16 %v271
  %v3054 = vunpack.c.h.b16 %v271
  %v3055 = vunpack.c.l.b16 %v272
  %v3056 = vunpack.c.h.b16 %v272
  %v3057 = vunpack.c.l.b16 %v273
  %v3058 = vunpack.c.h.b16 %v273
  %v3059 = vunpack.c.l.b16 %v274
  %v3060 = vunpack.c.h.b16 %v274
  %v3061 = vunpack.c.l.b16 %v275
  %v3062 = vunpack.c.h.b16 %v275
  %v3063 = vunpack.c.l.b16 %v276
  %v3064 = vunpack.c.h.b16 %v276
  %v3065 = vunpack.c.l.b16 %v277
  %v3066 = vunpack.c.h.b16 %v277
  %v3067 = vunpack.c.l.b16 %v278
  %v3068 = vunpack.c.h.b16 %v278
  %v3069 = vunpack.c.l.b16 %v279
  %v3070 = vunpack.c.h.b16 %v279
  %v3071 = vunpack.c.l.b16 %v280
  %v3072 = vunpack.c.h.b16 %v280
  %v3073 = vunpack.c.l.b16 %v281
  %v3074 = vunpack.c.h.b16 %v281
  %v3075 = vunpack.c.l.b16 %v282
  %v3076 = vunpack.c.h.b16 %v282
  %v3077 = vunpack.c.l.b16 %v283
  %v3078 = vunpack.c.h.b16 %v283
  %v3079 = vunpack.c.l.b16 %v284
  %v3080 = vunpack.c.h.b16 %v284
  %v3081 = vunpack.c.l.b16 %v285
  %v3082 = vunpack.c.h.b16 %v285
  %v3083 = vunpack.c.l.b16 %v286
  %v3084 = vunpack.c.h.b16 %v286
  %v3085 = vunpack.c.l.b16 %v287
  %v3086 = vunpack.c.h.b16 %v287
  %v3087 = vunpack.c.l.b16 %v288
  %v3088 = vunpack.c.h.b16 %v288
  %v3089 = vunpack.c.l.b16 %v289
  %v3090 = vunpack.c.h.b16 %v289
  %v3091 = vunpack.c.l.b16 %v290
  %v3092 = vunpack.c.h.b16 %v290
  %v3093 = vunpack.c.l.b16 %v291
  %v3094 = vunpack.c.h.b16 %v291
  %v3095 = vunpack.c.l.b16 %v292
  %v3096 = vunpack.c.h.b16 %v292
  %v3097 = vunpack.c.l.b16 %v293
  %v3098 = vunpack.c.h.b16 %v293
  %v3099 = vunpack.c.l.b16 %v294
  %v3100 = vunpack.c.h.b16 %v294
  %v3101 = vunpack.c.l.b16 %v295
  %v3102 = vunpack.c.h.b16 %v295
  %v3103 = vunpack.c.l.b16 %v296
  %v3104 = vunpack.c.h.b16 %v296
  %v3105 = vunpack.c.l.b16 %v297
  %v3106 = vunpack.c.h.b16 %v297
  %v3107 = vunpack.c.l.b16 %v298
  %v3108 = vunpack.c.h.b16 %v298
  %v3109 = vunpack.c.l.b16 %v299
  %v3110 = vunpack.c.h.b16 %v299
  %v3111 = vunpack.c.l.b16 %v300
  %v3112 = vunpack.c.h.b16 %v300
  %v3113 = vunpack.c.l.b16 %v301
  %v3114 = vunpack.c.h.b16 %v301
  %v3115 = vunpack.c.l.b16 %v302
  %v3116 = vunpack.c.h.b16 %v302
  %v3117 = vunpack.c.l.b16 %v303
  %v3118 = vunpack.c.h.b16 %v303
  %v3119 = vunpack.c.l.b16 %v304
  %v3120 = vunpack.c.h.b16 %v304
  %v3121 = vunpack.c.l.b16 %v305
  %v3122 = vunpack.c.h.b16 %v305
  %v3123 = vunpack.c.l.b16 %v306
  %v3124 = vunpack.c.h.b16 %v306
  %v3125 = vunpack.c.l.b16 %v307
  %v3126 = vunpack.c.h.b16 %v307
  %v3127 = vunpack.c.l.b16 %v308
  %v3128 = vunpack.c.h.b16 %v308
  %v3129 = vunpack.c.l.b16 %v309
  %v3130 = vunpack.c.h.b16 %v309
  %v3131 = vunpack.c.l.b16 %v310
  %v3132 = vunpack.c.h.b16 %v310
  %v3133 = vunpack.c.l.b16 %v311
  %v3134 = vunpack.c.h.b16 %v311
  %v3135 = vunpack.c.l.b16 %v312
  %v3136 = vunpack.c.h.b16 %v312
  %v3137 = vunpack.c.l.b16 %v313
  %v3138 = vunpack.c.h.b16 %v313
  %v3139 = vunpack.c.l.b16 %v314
  %v3140 = vunpack.c.h.b16 %v314
  %v3141 = vunpack.c.l.b16 %v315
  %v3142 = vunpack.c.h.b16 %v315
  %v3143 = vunpack.c.l.b16 %v316
  %v3144 = vunpack.c.h.b16 %v316
  %v3145 = vunpack.c.l.b16 %v317
  %v3146 = vunpack.c.h.b16 %v317
  %v3147 = vunpack.c.l.b16 %v318
  %v3148 = vunpack.c.h.b16 %v318
  %v3149 = vunpack.c.l.b16 %v319
  %v3150 = vunpack.c.h.b16 %v319
  %v3151 = vunpack.c.l.b16 %v320
  %v3152 = vunpack.c.h.b16 %v320
  %v3153 = vunpack.c.l.b16 %v321
  %v3154 = vunpack.c.h.b16 %v321
  %v3155 = vunpack.c.l.b16 %v322
  %v3156 = vunpack.c.h.b16 %v322
  %v3157 = vunpack.c.l.b16 %v323
  %v3158 = vunpack.c.h.b16 %v323
  %v3159 = vunpack.c.l.b16 %v324
  %v3160 = vunpack.c.h.b16 %v324
  %v3161 = vunpack.c.l.b16 %v325
  %v3162 = vunpack.c.h.b16 %v325
  %v3163 = vunpack.c.l.b16 %v326
  %v3164 = vunpack.c.h.b16 %v326
  %v3165 = vunpack.c.l.b16 %v327
  %v3166 = vunpack.c.h.b16 %v327
  %v3167 = vunpack.c.l.b16 %v328
  %v3168 = vunpack.c.h.b16 %v328
  %v3169 = vunpack.c.l.b16 %v329
  %v3170 = vunpack.c.h.b16 %v329
  %v3171 = vunpack.c.l.b16 %v330
  %v3172 = vunpack.c.h.b16 %v330
  %v3173 = vunpack.c.l.b16 %v331
  %v3174 = vunpack.c.h.b16 %v331
  %v3175 = vunpack.c.l.b16 %v332
  %v3176 = vunpack.c.h.b16 %v332
  %v3177 = vunpack.c.l.b16 %v333
  %v3178 = vunpack.c.h.b16 %v333
  %v3179 = vunpack.c.l.b16 %v334
  %v3180 = vunpack.c.h.b16 %v334
  %v3181 = vunpack.c.l.b16 %v335
  %v3182 = vunpack.c.h.b16 %v335
  %v3183 = vunpack.c.l.b16 %v336
  %v3184 = vunpack.c.h.b16 %v336
  %v3185 = vunpack.c.l.b16 %v337
  %v3186 = vunpack.c.h.b16 %v337
  %v3187 = vunpack.c.l.b16 %v338
  %v3188 = vunpack.c.h.b16 %v338
  %v3189 = vunpack.c.l.b16 %v339
  %v3190 = vunpack.c.h.b16 %v339
  %v3191 = vunpack.c.l.b16 %v340
  %v3192 = vunpack.c.h.b16 %v340
  %v3193 = vunpack.c.l.b16 %v341
  %v3194 = vunpack.c.h.b16 %v341
  %v3195 = vunpack.c.l.b16 %v342
  %v3196 = vunpack.c.h.b16 %v342
  %v3197 = vunpack.c.l.b16 %v343
  %v3198 = vunpack.c.h.b16 %v343
  %v3199 = vunpack.c.l.b16 %v344
  %v3200 = vunpack.c.h.b16 %v344
  %v3201 = vunpack.c.l.b16 %v345
  %v3202 = vunpack.c.h.b16 %v345
  %v3203 = vunpack.c.l.b16 %v346
  %v3204 = vunpack.c.h.b16 %v346
  %v3205 = vunpack.c.l.b16 %v347
  %v3206 = vunpack.c.h.b16 %v347
  %v3207 = vunpack.c.l.b16 %v348
  %v3208 = vunpack.c.h.b16 %v348
  %v3209 = vunpack.c.l.b16 %v349
  %v3210 = vunpack.c.h.b16 %v349
  %v3211 = vunpack.c.l.b16 %v350
  %v3212 = vunpack.c.h.b16 %v350
  %v3213 = vunpack.c.l.b16 %v351
  %v3214 = vunpack.c.h.b16 %v351
  %v3215 = vunpack.c.l.b16 %v352
  %v3216 = vunpack.c.h.b16 %v352
  %v3217 = vunpack.c.l.b16 %v353
  %v3218 = vunpack.c.h.b16 %v353
  %v3219 = vunpack.c.l.b16 %v354
  %v3220 = vunpack.c.h.b16 %v354
  %v3221 = vunpack.c.l.b16 %v355
  %v3222 = vunpack.c.h.b16 %v355
  %v3223 = vunpack.c.l.b16 %v356
  %v3224 = vunpack.c.h.b16 %v356
  %v3225 = vunpack.c.l.b16 %v357
  %v3226 = vunpack.c.h.b16 %v357
  %v3227 = vunpack.c.l.b16 %v358
  %v3228 = vunpack.c.h.b16 %v358
  %v3229 = vunpack.c.l.b16 %v359
  %v3230 = vunpack.c.h.b16 %v359
  %v3231 = vunpack.c.l.b16 %v360
  %v3232 = vunpack.c.h.b16 %v360
  %v3233 = vunpack.c.l.b16 %v361
  %v3234 = vunpack.c.h.b16 %v361
  %v3235 = vunpack.c.l.b16 %v362
  %v3236 = vunpack.c.h.b16 %v362
  %v3237 = vunpack.c.l.b16 %v363
  %v3238 = vunpack.c.h.b16 %v363
  %v3239 = vunpack.c.l.b16 %v364
  %v3240 = vunpack.c.h.b16 %v364
  %v3241 = vunpack.c.l.b16 %v365
  %v3242 = vunpack.c.h.b16 %v365
  %v3243 = vunpack.c.l.b16 %v366
  %v3244 = vunpack.c.h.b16 %v366
  %v3245 = vunpack.c.l.b16 %v367
  %v3246 = vunpack.c.h.b16 %v367
  %v3247 = vunpack.c.l.b16 %v368
  %v3248 = vunpack.c.h.b16 %v368
  %v3249 = vunpack.c.l.b16 %v369
  %v3250 = vunpack.c.h.b16 %v369
  %v3251 = vunpack.c.l.b16 %v370
  %v3252 = vunpack.c.h.b16 %v370
  %v3253 = vunpack.c.l.b16 %v371
  %v3254 = vunpack.c.h.b16 %v371
  %v3255 = vunpack.c.l.b16 %v372
  %v3256 = vunpack.c.h.b16 %v372
  %v3257 = vunpack.c.l.b16 %v373
  %v3258 = vunpack.c.h.b16 %v373
  %v3259 = vunpack.c.l.b16 %v374
  %v3260 = vunpack.c.h.b16 %v374
  %v3261 = vunpack.c.l.b16 %v375
  %v3262 = vunpack.c.h.b16 %v375
  %v3263 = vunpack.c.l.b16 %v376
  %v3264 = vunpack.c.h.b16 %v376
  %v3265 = vunpack.c.l.b16 %v377
  %v3266 = vunpack.c.h.b16 %v377
  %v3267 = vunpack.c.l.b16 %v378
  %v3268 = vunpack.c.h.b16 %v378
  %v3269 = vunpack.c.l.b16 %v379
  %v3270 = vunpack.c.h.b16 %v379
  %v3271 = vunpack.c.l.b16 %v380
  %v3272 = vunpack.c.h.b16 %v380
  %v3273 = vunpack.c.l.b16 %v381
  %v3274 = vunpack.c.h.b16 %v381
  %v3275 = vunpack.c.l.b16 %v382
  %v3276 = vunpack.c.h.b16 %v382
  %v3277 = vunpack.c.l.b16 %v383
  %v3278 = vunpack.c.h.b16 %v383
  %v3279 = vunpack.c.l.b16 %v384
  %v3280 = vunpack.c.h.b16 %v384
  %v3281 = vunpack.c.l.b16 %v385
  %v3282 = vunpack.c.h.b16 %v385
  %v3283 = vunpack.c.l.b16 %v386
  %v3284 = vunpack.c.h.b16 %v386
  %v3285 = vunpack.c.l.b16 %v387
  %v3286 = vunpack.c.h.b16 %v387
  %v3287 = vunpack.c.l.b16 %v388
  %v3288 = vunpack.c.h.b16 %v388
  %v3289 = vunpack.c.l.b16 %v389
  %v3290 = vunpack.c.h.b16 %v389
  %v3291 = vunpack.c.l.b16 %v390
  %v3292 = vunpack.c.h.b16 %v390
  %v3293 = vunpack.c.l.b16 %v391
  %v3294 = vunpack.c.h.b16 %v391
  %v3295 = vunpack.c.l.b16 %v392
  %v3296 = vunpack.c.h.b16 %v392
  %v3297 = vunpack.c.l.b16 %v393
  %v3298 = vunpack.c.h.b16 %v393
  %v3299 = vunpack.c.l.b16 %v394
  %v3300 = vunpack.c.h.b16 %v394
  %v3301 = vunpack.c.l.b16 %v395
  %v3302 = vunpack.c.h.b16 %v395
  %v3303 = vunpack.c.l.b16 %v396
  %v3304 = vunpack.c.h.b16 %v396
  %v3305 = vunpack.c.l.b16 %v397
  %v3306 = vunpack.c.h.b16 %v397
  %v3307 = vunpack.c.l.b16 %v398
  %v3308 = vunpack.c.h.b16 %v398
  %v3309 = vunpack.c.l.b16 %v399
  %v3310 = vunpack.c.h.b16 %v399
  %v3311 = vunpack.c.l.b16 %v400
  %v3312 = vunpack.c.h.b16 %v400
  %v3313 = vunpack.c.l.b16 %v401
  %v3314 = vunpack.c.h.b16 %v401
  %v3315 = vunpack.c.l.b16 %v402
  %v3316 = vunpack.c.h.b16 %v402
  %v3317 = vunpack.c.l.b16 %v403
  %v3318 = vunpack.c.h.b16 %v403
  %v3319 = vunpack.c.l.b16 %v404
  %v3320 = vunpack.c.h.b16 %v404
  %v3321 = vunpack.c.l.b16 %v405
  %v3322 = vunpack.c.h.b16 %v405
  %v3323 = vunpack.c.l.b16 %v406
  %v3324 = vunpack.c.h.b16 %v406
  %v3325 = vunpack.c.l.b16 %v407
  %v3326 = vunpack.c.h.b16 %v407
  %v3327 = vunpack.c.l.b16 %v408
  %v3328 = vunpack.c.h.b16 %v408
  %v3329 = vunpack.c.l.b16 %v409
  %v3330 = vunpack.c.h.b16 %v409
  %v3331 = vunpack.c.l.b16 %v410
  %v3332 = vunpack.c.h.b16 %v410
  %v3333 = vunpack.c.l.b16 %v411
  %v3334 = vunpack.c.h.b16 %v411
  %v3335 = vunpack.c.l.b16 %v412
  %v3336 = vunpack.c.h.b16 %v412
  %v3337 = vunpack.c.l.b16 %v413
  %v3338 = vunpack.c.h.b16 %v413
  %v3339 = vunpack.c.l.b16 %v414
  %v3340 = vunpack.c.h.b16 %v414
  %v3341 = vunpack.c.l.b16 %v415
  %v3342 = vunpack.c.h.b16 %v415
  %v3343 = vunpack.c.l.b16 %v416
  %v3344 = vunpack.c.h.b16 %v416
  %v3345 = vunpack.c.l.b16 %v417
  %v3346 = vunpack.c.h.b16 %v417
  %v3347 = vunpack.c.l.b16 %v418
  %v3348 = vunpack.c.h.b16 %v418
  %v3349 = vunpack.c.l.b16 %v419
  %v3350 = vunpack.c.h.b16 %v419
  %v3351 = vunpack.c.l.b16 %v420
  %v3352 = vunpack.c.h.b16 %v420
  %v3353 = vunpack.c.l.b16 %v421
  %v3354 = vunpack.c.h.b16 %v421
  %v3355 = vunpack.c.l.b16 %v422
  %v3356 = vunpack.c.h.b16 %v422
  %v3357 = vunpack.c.l.b16 %v423
  %v3358 = vunpack.c.h.b16 %v423
  %v3359 = vunpack.c.l.b16 %v424
  %v3360 = vunpack.c.h.b16 %v424
  %v3361 = vunpack.c.l.b16 %v425
  %v3362 = vunpack.c.h.b16 %v425
  %v3363 = vunpack.c.l.b16 %v426
  %v3364 = vunpack.c.h.b16 %v426
  %v3365 = vunpack.c.l.b16 %v427
  %v3366 = vunpack.c.h.b16 %v427
  %v3367 = vunpack.c.l.b16 %v428
  %v3368 = vunpack.c.h.b16 %v428
  %v3369 = vunpack.c.l.b16 %v429
  %v3370 = vunpack.c.h.b16 %v429
  %v3371 = vunpack.c.l.b16 %v430
  %v3372 = vunpack.c.h.b16 %v430
  %v3373 = vunpack.c.l.b16 %v431
  %v3374 = vunpack.c.h.b16 %v431
  %v3375 = vunpack.c.l.b16 %v432
  %v3376 = vunpack.c.h.b16 %v432
  %v3377 = vunpack.c.l.b16 %v433
  %v3378 = vunpack.c.h.b16 %v433
  %v3379 = vunpack.c.l.b16 %v434
  %v3380 = vunpack.c.h.b16 %v434
  %v3381 = vunpack.c.l.b16 %v435
  %v3382 = vunpack.c.h.b16 %v435
  %v3383 = vunpack.c.l.b16 %v436
  %v3384 = vunpack.c.h.b16 %v436
  %v3385 = vunpack.c.l.b16 %v437
  %v3386 = vunpack.c.h.b16 %v437
  %v3387 = vunpack.c.l.b16 %v438
  %v3388 = vunpack.c.h.b16 %v438
  %v3389 = vunpack.c.l.b16 %v439
  %v3390 = vunpack.c.h.b16 %v439
  %v3391 = vunpack.c.l.b16 %v440
  %v3392 = vunpack.c.h.b16 %v440
  %v3393 = vunpack.c.l.b16 %v441
  %v3394 = vunpack.c.h.b16 %v441
  %v3395 = vunpack.c.l.b16 %v442
  %v3396 = vunpack.c.h.b16 %v442
  %v3397 = vunpack.c.l.b16 %v443
  %v3398 = vunpack.c.h.b16 %v443
  %v3399 = vunpack.c.l.b16 %v444
  %v3400 = vunpack.c.h.b16 %v444
  %v3401 = vunpack.c.l.b16 %v445
  %v3402 = vunpack.c.h.b16 %v445
  %v3403 = vunpack.c.l.b16 %v446
  %v3404 = vunpack.c.h.b16 %v446
  %v3405 = vunpack.c.l.b16 %v447
  %v3406 = vunpack.c.h.b16 %v447
  %v3407 = vunpack.c.l.b16 %v448
  %v3408 = vunpack.c.h.b16 %v448
  %v3409 = vunpack.c.l.b16 %v449
  %v3410 = vunpack.c.h.b16 %v449
  %v3411 = vunpack.c.l.b16 %v450
  %v3412 = vunpack.c.h.b16 %v450
  %v3413 = vunpack.c.l.b16 %v451
  %v3414 = vunpack.c.h.b16 %v451
  %v3415 = vunpack.c.l.b16 %v452
  %v3416 = vunpack.c.h.b16 %v452
  %v3417 = vunpack.c.l.b16 %v453
  %v3418 = vunpack.c.h.b16 %v453
  %v3419 = vunpack.c.l.b16 %v454
  %v3420 = vunpack.c.h.b16 %v454
  %v3421 = vunpack.c.l.b16 %v455
  %v3422 = vunpack.c.h.b16 %v455
  %v3423 = vunpack.c.l.b16 %v456
  %v3424 = vunpack.c.h.b16 %v456
  %v3425 = vunpack.c.l.b16 %v457
  %v3426 = vunpack.c.h.b16 %v457
  %v3427 = vunpack.c.l.b16 %v458
  %v3428 = vunpack.c.h.b16 %v458
  %v3429 = vunpack.c.l.b16 %v459
  %v3430 = vunpack.c.h.b16 %v459
  %v3431 = vunpack.c.l.b16 %v460
  %v3432 = vunpack.c.h.b16 %v460
  %v3433 = vunpack.c.l.b16 %v461
  %v3434 = vunpack.c.h.b16 %v461
  %v3435 = vunpack.c.l.b16 %v462
  %v3436 = vunpack.c.h.b16 %v462
  %v3437 = vunpack.c.l.b16 %v463
  %v3438 = vunpack.c.h.b16 %v463
  %v3439 = vunpack.c.l.b16 %v464
  %v3440 = vunpack.c.h.b16 %v464
  %v3441 = vunpack.c.l.b16 %v465
  %v3442 = vunpack.c.h.b16 %v465
  %v3443 = vunpack.c.l.b16 %v466
  %v3444 = vunpack.c.h.b16 %v466
  %v3445 = vunpack.c.l.b16 %v467
  %v3446 = vunpack.c.h.b16 %v467
  %v3447 = vunpack.c.l.b16 %v468
  %v3448 = vunpack.c.h.b16 %v468
  %v3449 = vunpack.c.l.b16 %v469
  %v3450 = vunpack.c.h.b16 %v469
  %v3451 = vunpack.c.l.b16 %v470
  %v3452 = vunpack.c.h.b16 %v470
  %v3453 = vunpack.c.l.b16 %v471
  %v3454 = vunpack.c.h.b16 %v471
  %v3455 = vunpack.c.l.b16 %v472
  %v3456 = vunpack.c.h.b16 %v472
  %v3457 = vunpack.c.l.b16 %v473
  %v3458 = vunpack.c.h.b16 %v473
  %v3459 = vunpack.c.l.b16 %v474
  %v3460 = vunpack.c.h.b16 %v474
  %v3461 = vunpack.c.l.b16 %v475
  %v3462 = vunpack.c.h.b16 %v475
  %v3463 = vunpack.c.l.b16 %v476
  %v3464 = vunpack.c.h.b16 %v476
  %v3465 = vunpack.c.l.b16 %v477
  %v3466 = vunpack.c.h.b16 %v477
  %v3467 = vunpack.c.l.b16 %v478
  %v3468 = vunpack.c.h.b16 %v478
  %v3469 = vunpack.c.l.b16 %v479
  %v3470 = vunpack.c.h.b16 %v479
  %v3471 = vunpack.c.l.b16 %v480
  %v3472 = vunpack.c.h.b16 %v480
  %v3473 = vunpack.c.l.b16 %v481
  %v3474 = vunpack.c.h.b16 %v481
  %v3475 = vunpack.c.l.b16 %v482
  %v3476 = vunpack.c.h.b16 %v482
  %v3477 = vunpack.c.l.b16 %v483
  %v3478 = vunpack.c.h.b16 %v483
  %v3479 = vunpack.c.l.b16 %v484
  %v3480 = vunpack.c.h.b16 %v484
  %v3481 = vunpack.c.l.b16 %v485
  %v3482 = vunpack.c.h.b16 %v485
  %v3483 = vunpack.c.l.b16 %v486
  %v3484 = vunpack.c.h.b16 %v486
  %v3485 = vunpack.c.l.b16 %v487
  %v3486 = vunpack.c.h.b16 %v487
  %v3487 = vunpack.c.l.b16 %v488
  %v3488 = vunpack.c.h.b16 %v488
  %v3489 = vunpack.c.l.b16 %v489
  %v3490 = vunpack.c.h.b16 %v489
  %v3491 = vunpack.c.l.b16 %v490
  %v3492 = vunpack.c.h.b16 %v490
  %v3493 = vunpack.c.l.b16 %v491
  %v3494 = vunpack.c.h.b16 %v491
  %v3495 = vunpack.c.l.b16 %v492
  %v3496 = vunpack.c.h.b16 %v492
  %v3497 = vunpack.c.l.b16 %v493
  %v3498 = vunpack.c.h.b16 %v493
  %v3499 = vunpack.c.l.b16 %v494
  %v3500 = vunpack.c.h.b16 %v494
  %v3501 = vunpack.c.l.b16 %v495
  %v3502 = vunpack.c.h.b16 %v495
  %v3503 = vunpack.c.l.b16 %v496
  %v3504 = vunpack.c.h.b16 %v496
  %v3505 = vunpack.c.l.b16 %v497
  %v3506 = vunpack.c.h.b16 %v497
  %v3507 = vunpack.c.l.b16 %v498
  %v3508 = vunpack.c.h.b16 %v498
  %v3509 = vunpack.c.l.b16 %v499
  %v3510 = vunpack.c.h.b16 %v499
  %v3511 = vunpack.c.l.b16 %v500
  %v3512 = vunpack.c.h.b16 %v500
  %v3513 = vunpack.c.l.b16 %v501
  %v3514 = vunpack.c.h.b16 %v501
  %v3515 = vunpack.c.l.b16 %v502
  %v3516 = vunpack.c.h.b16 %v502
  %v3517 = vunpack.c.l.b16 %v503
  %v3518 = vunpack.c.h.b16 %v503
  %v3519 = vunpack.c.l.b16 %v504
  %v3520 = vunpack.c.h.b16 %v504
  %v3521 = vunpack.c.l.b16 %v505
  %v3522 = vunpack.c.h.b16 %v505
  %v3523 = vunpack.c.l.b16 %v506
  %v3524 = vunpack.c.h.b16 %v506
  %v3525 = vunpack.c.l.b16 %v507
  %v3526 = vunpack.c.h.b16 %v507
  %v3527 = vunpack.c.l.b16 %v508
  %v3528 = vunpack.c.h.b16 %v508
  %v3529 = vunpack.c.l.b16 %v509
  %v3530 = vunpack.c.h.b16 %v509
  %v3531 = vunpack.c.l.b16 %v510
  %v3532 = vunpack.c.h.b16 %v510
  %v3533 = vunpack.c.l.b16 %v511
  %v3534 = vunpack.c.h.b16 %v511
  %v3535 = vunpack.c.l.b16 %v512
  %v3536 = vunpack.c.h.b16 %v512
  %v3537 = vunpack.c.l.b16 %v513
  %v3538 = vunpack.c.h.b16 %v513
  %v3539 = vunpack.c.l.b16 %v514
  %v3540 = vunpack.c.h.b16 %v514
  %v3541 = vunpack.c.l.b16 %v515
  %v3542 = vunpack.c.h.b16 %v515
  %v3543 = vunpack.c.l.b16 %v516
  %v3544 = vunpack.c.h.b16 %v516
  %v3545 = vunpack.c.l.b16 %v517
  %v3546 = vunpack.c.h.b16 %v517
  %v3547 = vunpack.c.l.b16 %v518
  %v3548 = vunpack.c.h.b16 %v518
  %v3549 = vunpack.c.l.b16 %v519
  %v3550 = vunpack.c.h.b16 %v519
  %v3551 = vunpack.c.l.b16 %v520
  %v3552 = vunpack.c.h.b16 %v520
  %v3553 = vunpack.c.l.b16 %v521
  %v3554 = vunpack.c.h.b16 %v521
  %v3555 = vunpack.c.l.b16 %v522
  %v3556 = vunpack.c.h.b16 %v522
  %v3557 = vunpack.c.l.b16 %v523
  %v3558 = vunpack.c.h.b16 %v523
  %v3559 = vunpack.c.l.b16 %v524
  %v3560 = vunpack.c.h.b16 %v524
  %v3561 = vunpack.c.l.b16 %v525
  %v3562 = vunpack.c.h.b16 %v525
  %v3563 = vunpack.c.l.b16 %v526
  %v3564 = vunpack.c.h.b16 %v526
  %v3565 = vunpack.c.l.b16 %v527
  %v3566 = vunpack.c.h.b16 %v527
  %v3567 = vunpack.c.l.b16 %v528
  %v3568 = vunpack.c.h.b16 %v528
  %v3569 = vunpack.c.l.b16 %v529
  %v3570 = vunpack.c.h.b16 %v529
  %v3571 = vunpack.c.l.b16 %v530
  %v3572 = vunpack.c.h.b16 %v530
  %v3573 = vunpack.c.l.b16 %v531
  %v3574 = vunpack.c.h.b16 %v531
  %v3575 = vunpack.c.l.b16 %v532
  %v3576 = vunpack.c.h.b16 %v532
  %v3577 = vunpack.c.l.b16 %v533
  %v3578 = vunpack.c.h.b16 %v533
  %v3579 = vunpack.c.l.b16 %v534
  %v3580 = vunpack.c.h.b16 %v534
  %v3581 = vunpack.c.l.b16 %v535
  %v3582 = vunpack.c.h.b16 %v535
  %v3583 = vunpack.c.l.b16 %v536
  %v3584 = vunpack.c.h.b16 %v536
  %v3585 = vunpack.c.l.b16 %v537
  %v3586 = vunpack.c.h.b16 %v537
  %v3587 = vunpack.c.l.b16 %v538
  %v3588 = vunpack.c.h.b16 %v538
  %v3589 = vunpack.c.l.b16 %v539
  %v3590 = vunpack.c.h.b16 %v539
  %v3591 = vunpack.c.l.b16 %v540
  %v3592 = vunpack.c.h.b16 %v540
  %v3593 = vunpack.c.l.b16 %v541
  %v3594 = vunpack.c.h.b16 %v541
  %v3595 = vunpack.c.l.b16 %v542
  %v3596 = vunpack.c.h.b16 %v542
  %v3597 = vunpack.c.l.b16 %v543
  %v3598 = vunpack.c.h.b16 %v543
  %v3599 = vunpack.c.l.b16 %v544
  %v3600 = vunpack.c.h.b16 %v544
  %v3601 = vunpack.c.l.b16 %v545
  %v3602 = vunpack.c.h.b16 %v545
  %v3603 = vunpack.c.l.b16 %v546
  %v3604 = vunpack.c.h.b16 %v546
  %v3605 = vunpack.c.l.b16 %v547
  %v3606 = vunpack.c.h.b16 %v547
  %v3607 = vunpack.c.l.b16 %v548
  %v3608 = vunpack.c.h.b16 %v548
  %v3609 = vunpack.c.l.b16 %v549
  %v3610 = vunpack.c.h.b16 %v549
  %v3611 = vunpack.c.l.b16 %v550
  %v3612 = vunpack.c.h.b16 %v550
  %v3613 = vunpack.c.l.b16 %v551
  %v3614 = vunpack.c.h.b16 %v551
  %v3615 = vunpack.c.l.b16 %v552
  %v3616 = vunpack.c.h.b16 %v552
  %v3617 = vunpack.c.l.b16 %v553
  %v3618 = vunpack.c.h.b16 %v553
  %v3619 = vunpack.c.l.b16 %v554
  %v3620 = vunpack.c.h.b16 %v554
  %v3621 = vunpack.c.l.b16 %v555
  %v3622 = vunpack.c.h.b16 %v555
  %v3623 = vunpack.c.l.b16 %v556
  %v3624 = vunpack.c.h.b16 %v556
  %v3625 = vunpack.c.l.b16 %v557
  %v3626 = vunpack.c.h.b16 %v557
  %v3627 = vunpack.c.l.b16 %v558
  %v3628 = vunpack.c.h.b16 %v558
  %v3629 = vunpack.c.l.b16 %v559
  %v3630 = vunpack.c.h.b16 %v559
  %v3631 = vunpack.c.l.b16 %v560
  %v3632 = vunpack.c.h.b16 %v560
  %v3633 = vunpack.c.l.b16 %v561
  %v3634 = vunpack.c.h.b16 %v561
  %v3635 = vunpack.c.l.b16 %v562
  %v3636 = vunpack.c.h.b16 %v562
  %v3637 = vunpack.c.l.b16 %v563
  %v3638 = vunpack.c.h.b16 %v563
  %v3639 = vunpack.c.l.b16 %v564
  %v3640 = vunpack.c.h.b16 %v564
  %v3641 = vunpack.c.l.b16 %v565
  %v3642 = vunpack.c.h.b16 %v565
  %v3643 = vunpack.c.l.b16 %v566
  %v3644 = vunpack.c.h.b16 %v566
  %v3645 = vunpack.c.l.b16 %v567
  %v3646 = vunpack.c.h.b16 %v567
  %v3647 = vunpack.c.l.b16 %v568
  %v3648 = vunpack.c.h.b16 %v568
  %v3649 = vunpack.c.l.b16 %v569
  %v3650 = vunpack.c.h.b16 %v569
  %v3651 = vunpack.c.l.b16 %v570
  %v3652 = vunpack.c.h.b16 %v570
  %v3653 = vunpack.c.l.b16 %v571
  %v3654 = vunpack.c.h.b16 %v571
  %v3655 = vunpack.c.l.b16 %v572
  %v3656 = vunpack.c.h.b16 %v572
  %v3657 = vunpack.c.l.b16 %v573
  %v3658 = vunpack.c.h.b16 %v573
  %v3659 = vunpack.c.l.b16 %v574
  %v3660 = vunpack.c.h.b16 %v574
  %v3661 = vunpack.c.l.b16 %v575
  %v3662 = vunpack.c.h.b16 %v575
  %v3663 = vunpack.c.l.b16 %v576
  %v3664 = vunpack.c.h.b16 %v576
  %v3665 = vunpack.c.l.b16 %v577
  %v3666 = vunpack.c.h.b16 %v577
  %v3667 = vunpack.c.l.b16 %v578
  %v3668 = vunpack.c.h.b16 %v578
  %v3669 = vunpack.c.l.b16 %v579
  %v3670 = vunpack.c.h.b16 %v579
  %v3671 = vunpack.c.l.b16 %v580
  %v3672 = vunpack.c.h.b16 %v580
  %v3673 = vunpack.c.l.b16 %v581
  %v3674 = vunpack.c.h.b16 %v581
  %v3675 = vunpack.c.l.b16 %v582
  %v3676 = vunpack.c.h.b16 %v582
  %v3677 = vunpack.c.l.b16 %v583
  %v3678 = vunpack.c.h.b16 %v583
  %v3679 = vunpack.c.l.b16 %v584
  %v3680 = vunpack.c.h.b16 %v584
  %v3681 = vunpack.c.l.b16 %v585
  %v3682 = vunpack.c.h.b16 %v585
  %v3683 = vunpack.c.l.b16 %v586
  %v3684 = vunpack.c.h.b16 %v586
  %v3685 = vunpack.c.l.b16 %v587
  %v3686 = vunpack.c.h.b16 %v587
  %v3687 = vunpack.c.l.b16 %v588
  %v3688 = vunpack.c.h.b16 %v588
  %v3689 = vunpack.c.l.b16 %v589
  %v3690 = vunpack.c.h.b16 %v589
  %v3691 = vunpack.c.l.b16 %v590
  %v3692 = vunpack.c.h.b16 %v590
  %v3693 = vunpack.c.l.b16 %v591
  %v3694 = vunpack.c.h.b16 %v591
  %v3695 = vunpack.c.l.b16 %v592
  %v3696 = vunpack.c.h.b16 %v592
  %v3697 = vunpack.c.l.b16 %v593
  %v3698 = vunpack.c.h.b16 %v593
  %v3699 = vunpack.c.l.b16 %v594
  %v3700 = vunpack.c.h.b16 %v594
  %v3701 = vunpack.c.l.b16 %v595
  %v3702 = vunpack.c.h.b16 %v595
  %v3703 = vunpack.c.l.b16 %v596
  %v3704 = vunpack.c.h.b16 %v596
  %v3705 = vunpack.c.l.b16 %v597
  %v3706 = vunpack.c.h.b16 %v597
  %v3707 = vunpack.c.l.b16 %v598
  %v3708 = vunpack.c.h.b16 %v598
  %v3709 = vunpack.c.l.b16 %v599
  %v3710 = vunpack.c.h.b16 %v599
  %v3711 = vunpack.c.l.b16 %v600
  %v3712 = vunpack.c.h.b16 %v600
  %v3713 = vunpack.c.l.b16 %v601
  %v3714 = vunpack.c.h.b16 %v601
  %v3715 = vunpack.c.l.b16 %v602
  %v3716 = vunpack.c.h.b16 %v602
  %v3717 = vunpack.c.l.b16 %v603
  %v3718 = vunpack.c.h.b16 %v603
  %v3719 = vunpack.c.l.b16 %v604
  %v3720 = vunpack.c.h.b16 %v604
  %v3721 = vunpack.c.l.b16 %v605
  %v3722 = vunpack.c.h.b16 %v605
  %v3723 = vunpack.c.l.b16 %v606
  %v3724 = vunpack.c.h.b16 %v606
  %v3725 = vunpack.c.l.b16 %v607
  %v3726 = vunpack.c.h.b16 %v607
  %v3727 = vunpack.c.l.b16 %v608
  %v3728 = vunpack.c.h.b16 %v608
  %v3729 = vunpack.c.l.b16 %v609
  %v3730 = vunpack.c.h.b16 %v609
  %v3731 = vunpack.c.l.b16 %v610
  %v3732 = vunpack.c.h.b16 %v610
  %v3733 = vunpack.c.l.b16 %v611
  %v3734 = vunpack.c.h.b16 %v611
  %v3735 = vunpack.c.l.b16 %v612
  %v3736 = vunpack.c.h.b16 %v612
  %v3737 = vunpack.c.l.b16 %v613
  %v3738 = vunpack.c.h.b16 %v613
  %v3739 = vunpack.c.l.b16 %v614
  %v3740 = vunpack.c.h.b16 %v614
  %v3741 = vunpack.c.l.b16 %v615
  %v3742 = vunpack.c.h.b16 %v615
  %v3743 = vunpack.c.l.b16 %v616
  %v3744 = vunpack.c.h.b16 %v616
  %v3745 = vunpack.c.l.b16 %v617
  %v3746 = vunpack.c.h.b16 %v617
  %v3747 = vunpack.c.l.b16 %v618
  %v3748 = vunpack.c.h.b16 %v618
  %v3749 = vunpack.c.l.b16 %v619
  %v3750 = vunpack.c.h.b16 %v619
  %v3751 = vunpack.c.l.b16 %v620
  %v3752 = vunpack.c.h.b16 %v620
  %v3753 = vunpack.c.l.b16 %v621
  %v3754 = vunpack.c.h.b16 %v621
  %v3755 = vunpack.c.l.b16 %v622
  %v3756 = vunpack.c.h.b16 %v622
  %v3757 = vunpack.c.l.b16 %v623
  %v3758 = vunpack.c.h.b16 %v623
  %v3759 = vunpack.c.l.b16 %v624
  %v3760 = vunpack.c.h.b16 %v624
  %v3761 = vunpack.c.l.b16 %v625
  %v3762 = vunpack.c.h.b16 %v625
  %v3763 = vunpack.c.l.b16 %v626
  %v3764 = vunpack.c.h.b16 %v626
  %v3765 = vunpack.c.l.b16 %v627
  %v3766 = vunpack.c.h.b16 %v627
  %v3767 = vunpack.c.l.b16 %v628
  %v3768 = vunpack.c.h.b16 %v628
  %v3769 = vunpack.c.l.b16 %v629
  %v3770 = vunpack.c.h.b16 %v629
  %v3771 = vunpack.c.l.b16 %v630
  %v3772 = vunpack.c.h.b16 %v630
  %v3773 = vunpack.c.l.b16 %v631
  %v3774 = vunpack.c.h.b16 %v631
  %v3775 = vunpack.c.l.b16 %v632
  %v3776 = vunpack.c.h.b16 %v632
  %v3777 = vunpack.c.l.b16 %v633
  %v3778 = vunpack.c.h.b16 %v633
  %v3779 = vunpack.c.l.b16 %v634
  %v3780 = vunpack.c.h.b16 %v634
  %v3781 = vunpack.c.l.b16 %v635
  %v3782 = vunpack.c.h.b16 %v635
  %v3783 = vunpack.c.l.b16 %v636
  %v3784 = vunpack.c.h.b16 %v636
  %v3785 = vunpack.c.l.b16 %v637
  %v3786 = vunpack.c.h.b16 %v637
  %v3787 = vunpack.c.l.b16 %v638
  %v3788 = vunpack.c.h.b16 %v638
  %v3789 = vunpack.c.l.b16 %v639
  %v3790 = vunpack.c.h.b16 %v639
  %v3791 = vunpack.c.l.b16 %v640
  %v3792 = vunpack.c.h.b16 %v640
  %v3793 = vunpack.c.l.b16 %v641
  %v3794 = vunpack.c.h.b16 %v641
  %v3795 = vunpack.c.l.b16 %v642
  %v3796 = vunpack.c.h.b16 %v642
  %v3797 = vunpack.c.l.b16 %v643
  %v3798 = vunpack.c.h.b16 %v643
  %v3799 = vunpack.c.l.b16 %v644
  %v3800 = vunpack.c.h.b16 %v644
  %v3801 = vunpack.c.l.b16 %v645
  %v3802 = vunpack.c.h.b16 %v645
  %v3803 = vunpack.c.l.b16 %v646
  %v3804 = vunpack.c.h.b16 %v646
  %v3805 = vunpack.c.l.b16 %v647
  %v3806 = vunpack.c.h.b16 %v647
  %v3807 = vunpack.c.l.b16 %v648
  %v3808 = vunpack.c.h.b16 %v648
  %v3809 = vunpack.c.l.b16 %v649
  %v3810 = vunpack.c.h.b16 %v649
  %v3811 = vunpack.c.l.b16 %v650
  %v3812 = vunpack.c.h.b16 %v650
  %v3813 = vunpack.c.l.b16 %v651
  %v3814 = vunpack.c.h.b16 %v651
  %v3815 = vunpack.c.l.b16 %v652
  %v3816 = vunpack.c.h.b16 %v652
  %v3817 = vunpack.c.l.b16 %v653
  %v3818 = vunpack.c.h.b16 %v653
  %v3819 = vunpack.c.l.b16 %v654
  %v3820 = vunpack.c.h.b16 %v654
  %v3821 = vunpack.c.l.b16 %v655
  %v3822 = vunpack.c.h.b16 %v655
  %v3823 = vunpack.c.l.b16 %v656
  %v3824 = vunpack.c.h.b16 %v656
  %v3825 = vunpack.c.l.b16 %v657
  %v3826 = vunpack.c.h.b16 %v657
  %v3827 = vunpack.c.l.b16 %v658
  %v3828 = vunpack.c.h.b16 %v658
  %v3829 = vunpack.c.l.b16 %v659
  %v3830 = vunpack.c.h.b16 %v659
  %v3831 = vunpack.c.l.b16 %v660
  %v3832 = vunpack.c.h.b16 %v660
  %v3833 = vunpack.c.l.b16 %v661
  %v3834 = vunpack.c.h.b16 %v661
  %v3835 = vunpack.c.l.b16 %v662
  %v3836 = vunpack.c.h.b16 %v662
  %v3837 = vunpack.c.l.b16 %v663
  %v3838 = vunpack.c.h.b16 %v663
  %v3839 = vunpack.c.l.b16 %v664
  %v3840 = vunpack.c.h.b16 %v664
  %v3841 = vunpack.c.l.b16 %v665
  %v3842 = vunpack.c.h.b16 %v665
  %v3843 = vunpack.c.l.b16 %v666
  %v3844 = vunpack.c.h.b16 %v666
  %v3845 = vunpack.c.l.b16 %v667
  %v3846 = vunpack.c.h.b16 %v667
  %v3847 = vunpack.c.l.b16 %v668
  %v3848 = vunpack.c.h.b16 %v668
  %v3849 = vunpack.c.l.b16 %v669
  %v3850 = vunpack.c.h.b16 %v669
  %v3851 = vunpack.c.l.b16 %v670
  %v3852 = vunpack.c.h.b16 %v670
  %v3853 = vunpack.c.l.b16 %v671
  %v3854 = vunpack.c.h.b16 %v671
  %v3855 = vunpack.c.l.b16 %v672
  %v3856 = vunpack.c.h.b16 %v672
  %v3857 = vunpack.c.l.b16 %v673
  %v3858 = vunpack.c.h.b16 %v673
  %v3859 = vunpack.c.l.b16 %v674
  %v3860 = vunpack.c.h.b16 %v674
  %v3861 = vunpack.c.l.b16 %v675
  %v3862 = vunpack.c.h.b16 %v675
  %v3863 = vunpack.c.l.b16 %v676
  %v3864 = vunpack.c.h.b16 %v676
  %v3865 = vunpack.c.l.b16 %v677
  %v3866 = vunpack.c.h.b16 %v677
  %v3867 = vunpack.c.l.b16 %v678
  %v3868 = vunpack.c.h.b16 %v678
  %v3869 = vunpack.c.l.b16 %v679
  %v3870 = vunpack.c.h.b16 %v679
  %v3871 = vunpack.c.l.b16 %v680
  %v3872 = vunpack.c.h.b16 %v680
  %v3873 = vunpack.c.l.b16 %v681
  %v3874 = vunpack.c.h.b16 %v681
  %v3875 = vunpack.c.l.b16 %v682
  %v3876 = vunpack.c.h.b16 %v682
  %v3877 = vunpack.c.l.b16 %v683
  %v3878 = vunpack.c.h.b16 %v683
  %v3879 = vunpack.c.l.b16 %v684
  %v3880 = vunpack.c.h.b16 %v684
  %v3881 = vunpack.c.l.b16 %v685
  %v3882 = vunpack.c.h.b16 %v685
  %v3883 = vunpack.c.l.b16 %v686
  %v3884 = vunpack.c.h.b16 %v686
  %v3885 = vunpack.c.l.b16 %v687
  %v3886 = vunpack.c.h.b16 %v687
  %v3887 = vunpack.c.l.b16 %v688
  %v3888 = vunpack.c.h.b16 %v688
  %v3889 = vunpack.c.l.b16 %v689
  %v3890 = vunpack.c.h.b16 %v689
  %v3891 = vunpack.c.l.b16 %v690
  %v3892 = vunpack.c.h.b16 %v690
  %v3893 = vunpack.c.l.b16 %v691
  %v3894 = vunpack.c.h.b16 %v691
  %v3895 = vunpack.c.l.b16 %v692
  %v3896 = vunpack.c.h.b16 %v692
  %v3897 = vunpack.c.l.b16 %v693
  %v3898 = vunpack.c.h.b16 %v693
  %v3899 = vunpack.c.l.b16 %v694
  %v3900 = vunpack.c.h.b16 %v694
  %v3901 = vunpack.c.l.b16 %v695
  %v3902 = vunpack.c.h.b16 %v695
  %v3903 = vunpack.c.l.b16 %v696
  %v3904 = vunpack.c.h.b16 %v696
  %v3905 = vunpack.c.l.b16 %v697
  %v3906 = vunpack.c.h.b16 %v697
  %v3907 = vunpack.c.l.b16 %v698
  %v3908 = vunpack.c.h.b16 %v698
  %v3909 = vunpack.c.l.b16 %v699
  %v3910 = vunpack.c.h.b16 %v699
  %v3911 = vunpack.c.l.b16 %v700
  %v3912 = vunpack.c.h.b16 %v700
  %v3913 = vunpack.c.l.b16 %v701
  %v3914 = vunpack.c.h.b16 %v701
  %v3915 = vunpack.c.l.b16 %v702
  %v3916 = vunpack.c.h.b16 %v702
  %v3917 = vunpack.c.l.b16 %v703
  %v3918 = vunpack.c.h.b16 %v703
  %v3919 = vunpack.c.l.b16 %v704
  %v3920 = vunpack.c.h.b16 %v704
  %v3921 = vunpack.c.l.b16 %v705
  %v3922 = vunpack.c.h.b16 %v705
  %v3923 = vunpack.c.l.b16 %v706
  %v3924 = vunpack.c.h.b16 %v706
  %v3925 = vunpack.c.l.b16 %v707
  %v3926 = vunpack.c.h.b16 %v707
  %v3927 = vunpack.c.l.b16 %v708
  %v3928 = vunpack.c.h.b16 %v708
  %v3929 = vunpack.c.l.b16 %v709
  %v3930 = vunpack.c.h.b16 %v709
  %v3931 = vunpack.c.l.b16 %v710
  %v3932 = vunpack.c.h.b16 %v710
  %v3933 = vunpack.c.l.b16 %v711
  %v3934 = vunpack.c.h.b16 %v711
  %v3935 = vunpack.c.l.b16 %v712
  %v3936 = vunpack.c.h.b16 %v712
  %v3937 = vunpack.c.l.b16 %v713
  %v3938 = vunpack.c.h.b16 %v713
  %v3939 = vunpack.c.l.b16 %v714
  %v3940 = vunpack.c.h.b16 %v714
  %v3941 = vunpack.c.l.b16 %v715
  %v3942 = vunpack.c.h.b16 %v715
  %v3943 = vunpack.c.l.b16 %v716
  %v3944 = vunpack.c.h.b16 %v716
  %v3945 = vunpack.c.l.b16 %v717
  %v3946 = vunpack.c.h.b16 %v717
  %v3947 = vunpack.c.l.b16 %v718
  %v3948 = vunpack.c.h.b16 %v718
  %v3949 = vunpack.c.l.b16 %v719
  %v3950 = vunpack.c.h.b16 %v719
  %v3951 = vunpack.c.l.b16 %v720
  %v3952 = vunpack.c.h.b16 %v720
  %v3953 = vunpack.c.l.b16 %v721
  %v3954 = vunpack.c.h.b16 %v721
  %v3955 = vunpack.c.l.b16 %v722
  %v3956 = vunpack.c.h.b16 %v722
  %v3957 = vunpack.c.l.b16 %v723
  %v3958 = vunpack.c.h.b16 %v723
  %v3959 = vunpack.c.l.b16 %v724
  %v3960 = vunpack.c.h.b16 %v724
  %v3961 = vunpack.c.l.b16 %v725
  %v3962 = vunpack.c.h.b16 %v725
  %v3963 = vunpack.c.l.b16 %v726
  %v3964 = vunpack.c.h.b16 %v726
  %v3965 = vunpack.c.l.b16 %v727
  %v3966 = vunpack.c.h.b16 %v727
  %v3967 = vunpack.c.l.b16 %v728
  %v3968 = vunpack.c.h.b16 %v728
  %v3969 = vunpack.c.l.b16 %v729
  %v3970 = vunpack.c.h.b16 %v729
  %v3971 = vunpack.c.l.b16 %v730
  %v3972 = vunpack.c.h.b16 %v730
  %v3973 = vunpack.c.l.b16 %v731
  %v3974 = vunpack.c.h.b16 %v731
  %v3975 = vunpack.c.l.b16 %v732
  %v3976 = vunpack.c.h.b16 %v732
  %v3977 = vunpack.c.l.b16 %v733
  %v3978 = vunpack.c.h.b16 %v733
  %v3979 = vunpack.c.l.b16 %v734
  %v3980 = vunpack.c.h.b16 %v734
  %v3981 = vunpack.c.l.b16 %v735
  %v3982 = vunpack.c.h.b16 %v735
  %v3983 = vunpack.c.l.b16 %v736
  %v3984 = vunpack.c.h.b16 %v736
  %v3985 = vunpack.c.l.b16 %v737
  %v3986 = vunpack.c.h.b16 %v737
  %v3987 = vunpack.c.l.b16 %v738
  %v3988 = vunpack.c.h.b16 %v738
  %v3989 = vunpack.c.l.b16 %v739
  %v3990 = vunpack.c.h.b16 %v739
  %v3991 = vunpack.c.l.b16 %v740
  %v3992 = vunpack.c.h.b16 %v740
  %v3993 = vunpack.c.l.b16 %v741
  %v3994 = vunpack.c.h.b16 %v741
  %v3995 = vunpack.c.l.b16 %v742
  %v3996 = vunpack.c.h.b16 %v742
  %v3997 = vunpack.c.l.b16 %v743
  %v3998 = vunpack.c.h.b16 %v743
  %v3999 = vunpack.c.l.b16 %v744
  %v4000 = vunpack.c.h.b16 %v744
  %v4001 = vunpack.c.l.b16 %v745
  %v4002 = vunpack.c.h.b16 %v745
  %v4003 = vunpack.c.l.b16 %v746
  %v4004 = vunpack.c.h.b16 %v746
  %v4005 = vunpack.c.l.b16 %v747
  %v4006 = vunpack.c.h.b16 %v747
  %v4007 = vunpack.c.l.b16 %v748
  %v4008 = vunpack.c.h.b16 %v748
  %v4009 = vunpack.c.l.b16 %v749
  %v4010 = vunpack.c.h.b16 %v749
  %v4011 = vunpack.c.l.b16 %v750
  %v4012 = vunpack.c.h.b16 %v750
  %v4013 = vunpack.c.l.b16 %v751
  %v4014 = vunpack.c.h.b16 %v751
  %v4015 = vunpack.c.l.b16 %v752
  %v4016 = vunpack.c.h.b16 %v752
  %v4017 = vunpack.c.l.b16 %v753
  %v4018 = vunpack.c.h.b16 %v753
  %v4019 = vunpack.c.l.b16 %v754
  %v4020 = vunpack.c.h.b16 %v754
  %v4021 = vunpack.c.l.b16 %v755
  %v4022 = vunpack.c.h.b16 %v755
  %v4023 = vunpack.c.l.b16 %v756
  %v4024 = vunpack.c.h.b16 %v756
  %v4025 = vunpack.c.l.b16 %v757
  %v4026 = vunpack.c.h.b16 %v757
  %v4027 = vunpack.c.l.b16 %v758
  %v4028 = vunpack.c.h.b16 %v758
  %v4029 = vunpack.c.l.b16 %v759
  %v4030 = vunpack.c.h.b16 %v759
  %v4031 = vunpack.c.l.b16 %v760
  %v4032 = vunpack.c.h.b16 %v760
  %v4033 = vunpack.c.l.b16 %v761
  %v4034 = vunpack.c.h.b16 %v761
  %v4035 = vunpack.c.l.b16 %v762
  %v4036 = vunpack.c.h.b16 %v762
  %v4037 = vunpack.c.l.b16 %v763
  %v4038 = vunpack.c.h.b16 %v763
  %v4039 = vunpack.c.l.b16 %v764
  %v4040 = vunpack.c.h.b16 %v764
  %v4041 = vunpack.c.l.b16 %v765
  %v4042 = vunpack.c.h.b16 %v765
  %v4043 = vunpack.c.l.b16 %v766
  %v4044 = vunpack.c.h.b16 %v766
  %v4045 = vunpack.c.l.b16 %v767
  %v4046 = vunpack.c.h.b16 %v767
  %v4047 = vunpack.c.l.b16 %v768
  %v4048 = vunpack.c.h.b16 %v768
  %v4049 = vunpack.c.l.b16 %v769
  %v4050 = vunpack.c.h.b16 %v769
  %v4051 = vunpack.c.l.b16 %v770
  %v4052 = vunpack.c.h.b16 %v770
  %v4053 = vunpack.c.l.b16 %v771
  %v4054 = vunpack.c.h.b16 %v771
  %v4055 = vunpack.c.l.b16 %v772
  %v4056 = vunpack.c.h.b16 %v772
  %v4057 = vunpack.c.l.b16 %v773
  %v4058 = vunpack.c.h.b16 %v773
  %v4059 = vunpack.c.l.b16 %v774
  %v4060 = vunpack.c.h.b16 %v774
  %v4061 = vunpack.c.l.b16 %v775
  %v4062 = vunpack.c.h.b16 %v775
  %v4063 = vunpack.c.l.b16 %v776
  %v4064 = vunpack.c.h.b16 %v776
  %v4065 = vunpack.c.l.b16 %v777
  %v4066 = vunpack.c.h.b16 %v777
  %v4067 = vunpack.c.l.b16 %v778
  %v4068 = vunpack.c.h.b16 %v778
  %v4069 = vunpack.c.l.b16 %v779
  %v4070 = vunpack.c.h.b16 %v779
  %v4071 = vunpack.c.l.b16 %v780
  %v4072 = vunpack.c.h.b16 %v780
  %v4073 = vunpack.c.l.b16 %v781
  %v4074 = vunpack.c.h.b16 %v781
  %v4075 = vunpack.c.l.b16 %v782
  %v4076 = vunpack.c.h.b16 %v782
  %v4077 = vunpack.c.l.b16 %v783
  %v4078 = vunpack.c.h.b16 %v783
  %v4079 = vunpack.c.l.b16 %v784
  %v4080 = vunpack.c.h.b16 %v784
  %v4081 = vunpack.c.l.b16 %v785
  %v4082 = vunpack.c.h.b16 %v785
  %v4083 = vunpack.c.l.b16 %v786
  %v4084 = vunpack.c.h.b16 %v786
  %v4085 = vunpack.c.l.b16 %v787
  %v4086 = vunpack.c.h.b16 %v787
  %v4087 = vunpack.c.l.b16 %v788
  %v4088 = vunpack.c.h.b16 %v788
  %v4089 = vunpack.c.l.b16 %v789
  %v4090 = vunpack.c.h.b16 %v789
  %v4091 = vunpack.c.l.b16 %v790
  %v4092 = vunpack.c.h.b16 %v790
  %v4093 = vunpack.c.l.b16 %v791
  %v4094 = vunpack.c.h.b16 %v791
  %v4095 = vunpack.c.l.b16 %v792
  %v4096 = vunpack.c.h.b16 %v792
  %v4097 = vunpack.c.l.b16 %v793
  %v4098 = vunpack.c.h.b16 %v793
  %v4099 = vunpack.c.l.b16 %v794
  %v4100 = vunpack.c.h.b16 %v794
  %v4101 = vunpack.c.l.b16 %v795
  %v4102 = vunpack.c.h.b16 %v795
  %v4103 = vunpack.c.l.b16 %v796
  %v4104 = vunpack.c.h.b16 %v796
  %v4105 = vunpack.c.l.b16 %v797
  %v4106 = vunpack.c.h.b16 %v797
  %v4107 = vunpack.c.l.b16 %v798
  %v4108 = vunpack.c.h.b16 %v798
  %v4109 = vunpack.c.l.b16 %v799
  %v4110 = vunpack.c.h.b16 %v799
  %v4111 = vunpack.c.l.b16 %v800
  %v4112 = vunpack.c.h.b16 %v800
  %v4113 = vunpack.c.l.b16 %v801
  %v4114 = vunpack.c.h.b16 %v801
  %v4115 = vunpack.c.l.b16 %v802
  %v4116 = vunpack.c.h.b16 %v802
  %v4117 = vunpack.c.l.b16 %v803
  %v4118 = vunpack.c.h.b16 %v803
  %v4119 = vunpack.c.l.b16 %v804
  %v4120 = vunpack.c.h.b16 %v804
  %v4121 = vunpack.c.l.b16 %v805
  %v4122 = vunpack.c.h.b16 %v805
  %v4123 = vunpack.c.l.b16 %v806
  %v4124 = vunpack.c.h.b16 %v806
  %v4125 = vunpack.c.l.b16 %v807
  %v4126 = vunpack.c.h.b16 %v807
  %v4127 = vunpack.c.l.b16 %v808
  %v4128 = vunpack.c.h.b16 %v808
  %v4129 = vunpack.c.l.b16 %v809
  %v4130 = vunpack.c.h.b16 %v809
  %v4131 = vunpack.c.l.b16 %v810
  %v4132 = vunpack.c.h.b16 %v810
  %v4133 = vunpack.c.l.b16 %v811
  %v4134 = vunpack.c.h.b16 %v811
  %v4135 = vunpack.c.l.b16 %v812
  %v4136 = vunpack.c.h.b16 %v812
  %v4137 = vunpack.c.l.b16 %v813
  %v4138 = vunpack.c.h.b16 %v813
  %v4139 = vunpack.c.l.b16 %v814
  %v4140 = vunpack.c.h.b16 %v814
  %v4141 = vunpack.c.l.b16 %v815
  %v4142 = vunpack.c.h.b16 %v815
  %v4143 = vunpack.c.l.b16 %v816
  %v4144 = vunpack.c.h.b16 %v816
  %v4145 = vunpack.c.l.b16 %v817
  %v4146 = vunpack.c.h.b16 %v817
  %v4147 = vunpack.c.l.b16 %v818
  %v4148 = vunpack.c.h.b16 %v818
  %v4149 = vunpack.c.l.b16 %v819
  %v4150 = vunpack.c.h.b16 %v819
  %v4151 = vunpack.c.l.b16 %v820
  %v4152 = vunpack.c.h.b16 %v820
  %v4153 = vunpack.c.l.b16 %v821
  %v4154 = vunpack.c.h.b16 %v821
  %v4155 = vunpack.c.l.b16 %v822
  %v4156 = vunpack.c.h.b16 %v822
  %v4157 = vunpack.c.l.b16 %v823
  %v4158 = vunpack.c.h.b16 %v823
  %v4159 = vunpack.c.l.b16 %v824
  %v4160 = vunpack.c.h.b16 %v824
  %v4161 = vunpack.c.l.b16 %v825
  %v4162 = vunpack.c.h.b16 %v825
  %v4163 = vunpack.c.l.b16 %v826
  %v4164 = vunpack.c.h.b16 %v826
  %v4165 = vunpack.c.l.b16 %v827
  %v4166 = vunpack.c.h.b16 %v827
  %v4167 = vunpack.c.l.b16 %v828
  %v4168 = vunpack.c.h.b16 %v828
  %v4169 = vunpack.c.l.b16 %v829
  %v4170 = vunpack.c.h.b16 %v829
  %v4171 = vunpack.c.l.b16 %v830
  %v4172 = vunpack.c.h.b16 %v830
  %v4173 = vunpack.c.l.b16 %v831
  %v4174 = vunpack.c.h.b16 %v831
  %v4175 = vunpack.c.l.b16 %v832
  %v4176 = vunpack.c.h.b16 %v832
  %v4177 = vunpack.c.l.b16 %v833
  %v4178 = vunpack.c.h.b16 %v833
  %v4179 = vunpack.c.l.b16 %v834
  %v4180 = vunpack.c.h.b16 %v834
  %v4181 = vunpack.c.l.b16 %v835
  %v4182 = vunpack.c.h.b16 %v835
  %v4183 = vunpack.c.l.b16 %v836
  %v4184 = vunpack.c.h.b16 %v836
  %v4185 = vunpack.c.l.b16 %v837
  %v4186 = vunpack.c.h.b16 %v837
  %v4187 = vunpack.c.l.b16 %v838
  %v4188 = vunpack.c.h.b16 %v838
  %v4189 = vunpack.c.l.b16 %v839
  %v4190 = vunpack.c.h.b16 %v839
  %v4191 = vunpack.c.l.b16 %v840
  %v4192 = vunpack.c.h.b16 %v840
  %v4193 = vunpack.c.l.b16 %v841
  %v4194 = vunpack.c.h.b16 %v841
  %v4195 = vunpack.c.l.b16 %v842
  %v4196 = vunpack.c.h.b16 %v842
  %v4197 = vunpack.c.l.b16 %v843
  %v4198 = vunpack.c.h.b16 %v843
  %v4199 = vunpack.c.l.b16 %v844
  %v4200 = vunpack.c.h.b16 %v844
  %v4201 = vunpack.c.l.b16 %v845
  %v4202 = vunpack.c.h.b16 %v845
  %v4203 = vunpack.c.l.b16 %v846
  %v4204 = vunpack.c.h.b16 %v846
  %v4205 = vunpack.c.l.b16 %v847
  %v4206 = vunpack.c.h.b16 %v847
  %v4207 = vunpack.c.l.b16 %v848
  %v4208 = vunpack.c.h.b16 %v848
  %v4209 = vunpack.c.l.b16 %v849
  %v4210 = vunpack.c.h.b16 %v849
  %v4211 = vunpack.c.l.b16 %v850
  %v4212 = vunpack.c.h.b16 %v850
  %v4213 = vunpack.c.l.b16 %v851
  %v4214 = vunpack.c.h.b16 %v851
  %v4215 = vunpack.c.l.b16 %v852
  %v4216 = vunpack.c.h.b16 %v852
  %v4217 = vunpack.c.l.b16 %v853
  %v4218 = vunpack.c.h.b16 %v853
  %v4219 = vunpack.c.l.b16 %v854
  %v4220 = vunpack.c.h.b16 %v854
  %v4221 = vunpack.c.l.b16 %v855
  %v4222 = vunpack.c.h.b16 %v855
  %v4223 = vunpack.c.l.b16 %v856
  %v4224 = vunpack.c.h.b16 %v856
  %v4225 = vunpack.c.l.b16 %v857
  %v4226 = vunpack.c.h.b16 %v857
  %v4227 = vunpack.c.l.b16 %v858
  %v4228 = vunpack.c.h.b16 %v858
  %v4229 = vunpack.c.l.b16 %v859
  %v4230 = vunpack.c.h.b16 %v859
  %v4231 = vunpack.c.l.b16 %v860
  %v4232 = vunpack.c.h.b16 %v860
  %v4233 = vunpack.c.l.b16 %v861
  %v4234 = vunpack.c.h.b16 %v861
  %v4235 = vunpack.c.l.b16 %v862
  %v4236 = vunpack.c.h.b16 %v862
  %v4237 = vunpack.c.l.b16 %v863
  %v4238 = vunpack.c.h.b16 %v863
  %v4239 = vunpack.c.l.b16 %v864
  %v4240 = vunpack.c.h.b16 %v864
  %v4241 = vunpack.c.l.b16 %v865
  %v4242 = vunpack.c.h.b16 %v865
  %v4243 = vunpack.c.l.b16 %v866
  %v4244 = vunpack.c.h.b16 %v866
  %v4245 = vunpack.c.l.b16 %v867
  %v4246 = vunpack.c.h.b16 %v867
  %v4247 = vunpack.c.l.b16 %v868
  %v4248 = vunpack.c.h.b16 %v868
  %v4249 = vunpack.c.l.b16 %v869
  %v4250 = vunpack.c.h.b16 %v869
  %v4251 = vunpack.c.l.b16 %v870
  %v4252 = vunpack.c.h.b16 %v870
  %v4253 = vunpack.c.l.b16 %v871
  %v4254 = vunpack.c.h.b16 %v871
  %v4255 = vunpack.c.l.b16 %v872
  %v4256 = vunpack.c.h.b16 %v872
  %v4257 = vunpack.c.l.b16 %v873
  %v4258 = vunpack.c.h.b16 %v873
  %v4259 = vunpack.c.l.b16 %v874
  %v4260 = vunpack.c.h.b16 %v874
  %v4261 = vunpack.c.l.b16 %v875
  %v4262 = vunpack.c.h.b16 %v875
  %v4263 = vunpack.c.l.b16 %v876
  %v4264 = vunpack.c.h.b16 %v876
  %v4265 = vunpack.c.l.b16 %v877
  %v4266 = vunpack.c.h.b16 %v877
  %v4267 = vunpack.c.l.b16 %v878
  %v4268 = vunpack.c.h.b16 %v878
  %v4269 = vunpack.c.l.b16 %v879
  %v4270 = vunpack.c.h.b16 %v879
  %v4271 = vunpack.c.l.b16 %v880
  %v4272 = vunpack.c.h.b16 %v880
  %v4273 = vunpack.c.l.b16 %v881
  %v4274 = vunpack.c.h.b16 %v881
  %v4275 = vunpack.c.l.b16 %v882
  %v4276 = vunpack.c.h.b16 %v882
  %v4277 = vunpack.c.l.b16 %v883
  %v4278 = vunpack.c.h.b16 %v883
  %v4279 = vunpack.c.l.b16 %v884
  %v4280 = vunpack.c.h.b16 %v884
  %v4281 = vunpack.c.l.b16 %v885
  %v4282 = vunpack.c.h.b16 %v885
  %v4283 = vunpack.c.l.b16 %v886
  %v4284 = vunpack.c.h.b16 %v886
  %v4285 = vunpack.c.l.b16 %v887
  %v4286 = vunpack.c.h.b16 %v887
  %v4287 = vunpack.c.l.b16 %v888
  %v4288 = vunpack.c.h.b16 %v888
  %v4289 = vunpack.c.l.b16 %v889
  %v4290 = vunpack.c.h.b16 %v889
  %v4291 = vunpack.c.l.b16 %v890
  %v4292 = vunpack.c.h.b16 %v890
  %v4293 = vunpack.c.l.b16 %v891
  %v4294 = vunpack.c.h.b16 %v891
  %v4295 = vunpack.c.l.b16 %v892
  %v4296 = vunpack.c.h.b16 %v892
  %v4297 = vunpack.c.l.b16 %v893
  %v4298 = vunpack.c.h.b16 %v893
  %v4299 = vunpack.c.l.b16 %v894
  %v4300 = vunpack.c.h.b16 %v894
  %v4301 = vunpack.c.l.b16 %v895
  %v4302 = vunpack.c.h.b16 %v895
  %v4303 = vunpack.c.l.b16 %v896
  %v4304 = vunpack.c.h.b16 %v896
  %v4305 = vunpack.c.l.b16 %v897
  %v4306 = vunpack.c.h.b16 %v897
  %v4307 = vunpack.c.l.b16 %v898
  %v4308 = vunpack.c.h.b16 %v898
  %v4309 = vunpack.c.l.b16 %v899
  %v4310 = vunpack.c.h.b16 %v899
  %v4311 = vunpack.c.l.b16 %v900
  %v4312 = vunpack.c.h.b16 %v900
  %v4313 = vunpack.c.l.b16 %v901
  %v4314 = vunpack.c.h.b16 %v901
  %v4315 = vunpack.c.l.b16 %v902
  %v4316 = vunpack.c.h.b16 %v902
  %v4317 = vunpack.c.l.b16 %v903
  %v4318 = vunpack.c.h.b16 %v903
  %v4319 = vunpack.c.l.b16 %v904
  %v4320 = vunpack.c.h.b16 %v904
  %v4321 = vunpack.c.l.b16 %v905
  %v4322 = vunpack.c.h.b16 %v905
  %v4323 = vunpack.c.l.b16 %v906
  %v4324 = vunpack.c.h.b16 %v906
  %v4325 = vunpack.c.l.b16 %v907
  %v4326 = vunpack.c.h.b16 %v907
  %v4327 = vunpack.c.l.b16 %v908
  %v4328 = vunpack.c.h.b16 %v908
  %v4329 = vunpack.c.l.b16 %v909
  %v4330 = vunpack.c.h.b16 %v909
  %v4331 = vunpack.c.l.b16 %v910
  %v4332 = vunpack.c.h.b16 %v910
  %v4333 = vunpack.c.l.b16 %v911
  %v4334 = vunpack.c.h.b16 %v911
  %v4335 = vunpack.c.l.b16 %v912
  %v4336 = vunpack.c.h.b16 %v912
  %v4337 = vunpack.c.l.b16 %v913
  %v4338 = vunpack.c.h.b16 %v913
  %v4339 = vunpack.c.l.b16 %v914
  %v4340 = vunpack.c.h.b16 %v914
  %v4341 = vunpack.c.l.b16 %v915
  %v4342 = vunpack.c.h.b16 %v915
  %v4343 = vunpack.c.l.b16 %v916
  %v4344 = vunpack.c.h.b16 %v916
  %v4345 = vunpack.c.l.b16 %v917
  %v4346 = vunpack.c.h.b16 %v917
  %v4347 = vunpack.c.l.b16 %v918
  %v4348 = vunpack.c.h.b16 %v918
  %v4349 = vunpack.c.l.b16 %v919
  %v4350 = vunpack.c.h.b16 %v919
  %v4351 = vunpack.c.l.b16 %v920
  %v4352 = vunpack.c.h.b16 %v920
  %v4353 = vunpack.c.l.b16 %v921
  %v4354 = vunpack.c.h.b16 %v921
  %v4355 = vunpack.c.l.b16 %v922
  %v4356 = vunpack.c.h.b16 %v922
  %v4357 = vunpack.c.l.b16 %v923
  %v4358 = vunpack.c.h.b16 %v923
  %v4359 = vunpack.c.l.b16 %v924
  %v4360 = vunpack.c.h.b16 %v924
  %v4361 = vunpack.c.l.b16 %v925
  %v4362 = vunpack.c.h.b16 %v925
  %v4363 = vunpack.c.l.b16 %v926
  %v4364 = vunpack.c.h.b16 %v926
  %v4365 = vunpack.c.l.b16 %v927
  %v4366 = vunpack.c.h.b16 %v927
  %v4367 = vunpack.c.l.b16 %v928
  %v4368 = vunpack.c.h.b16 %v928
  %v4369 = vunpack.c.l.b16 %v929
  %v4370 = vunpack.c.h.b16 %v929
  %v4371 = vunpack.c.l.b16 %v930
  %v4372 = vunpack.c.h.b16 %v930
  %v4373 = vunpack.c.l.b16 %v931
  %v4374 = vunpack.c.h.b16 %v931
  %v4375 = vunpack.c.l.b16 %v932
  %v4376 = vunpack.c.h.b16 %v932
  %v4377 = vunpack.c.l.b16 %v933
  %v4378 = vunpack.c.h.b16 %v933
  %v4379 = vunpack.c.l.b16 %v934
  %v4380 = vunpack.c.h.b16 %v934
  %v4381 = vunpack.c.l.b16 %v935
  %v4382 = vunpack.c.h.b16 %v935
  %v4383 = vunpack.c.l.b16 %v936
  %v4384 = vunpack.c.h.b16 %v936
  %v4385 = vunpack.c.l.b16 %v937
  %v4386 = vunpack.c.h.b16 %v937
  %v4387 = vunpack.c.l.b16 %v938
  %v4388 = vunpack.c.h.b16 %v938
  %v4389 = vunpack.c.l.b16 %v939
  %v4390 = vunpack.c.h.b16 %v939
  %v4391 = vunpack.c.l.b16 %v940
  %v4392 = vunpack.c.h.b16 %v940
  %v4393 = vunpack.c.l.b16 %v941
  %v4394 = vunpack.c.h.b16 %v941
  %v4395 = vunpack.c.l.b16 %v942
  %v4396 = vunpack.c.h.b16 %v942
  %v4397 = vunpack.c.l.b16 %v943
  %v4398 = vunpack.c.h.b16 %v943
  %v4399 = vunpack.c.l.b16 %v944
  %v4400 = vunpack.c.h.b16 %v944
  %v4401 = vunpack.c.l.b16 %v945
  %v4402 = vunpack.c.h.b16 %v945
  %v4403 = vunpack.c.l.b16 %v946
  %v4404 = vunpack.c.h.b16 %v946
  %v4405 = vunpack.c.l.b16 %v947
  %v4406 = vunpack.c.h.b16 %v947
  %v4407 = vunpack.c.l.b16 %v948
  %v4408 = vunpack.c.h.b16 %v948
  %v4409 = vunpack.c.l.b16 %v949
  %v4410 = vunpack.c.h.b16 %v949
  %v4411 = vunpack.c.l.b16 %v950
  %v4412 = vunpack.c.h.b16 %v950
  %v4413 = vunpack.c.l.b16 %v951
  %v4414 = vunpack.c.h.b16 %v951
  %v4415 = vunpack.c.l.b16 %v952
  %v4416 = vunpack.c.h.b16 %v952
  %v4417 = vunpack.c.l.b16 %v953
  %v4418 = vunpack.c.h.b16 %v953
  %v4419 = vunpack.c.l.b16 %v954
  %v4420 = vunpack.c.h.b16 %v954
  %v4421 = vunpack.c.l.b16 %v955
  %v4422 = vunpack.c.h.b16 %v955
  %v4423 = vunpack.c.l.b16 %v956
  %v4424 = vunpack.c.h.b16 %v956
  %v4425 = vunpack.c.l.b16 %v957
  %v4426 = vunpack.c.h.b16 %v957
  %v4427 = vunpack.c.l.b16 %v958
  %v4428 = vunpack.c.h.b16 %v958
  %v4429 = vunpack.c.l.b16 %v959
  %v4430 = vunpack.c.h.b16 %v959
  %v4431 = vunpack.c.l.b16 %v960
  %v4432 = vunpack.c.h.b16 %v960
  %v4433 = vunpack.c.l.b16 %v961
  %v4434 = vunpack.c.h.b16 %v961
  %v4435 = vunpack.c.l.b16 %v962
  %v4436 = vunpack.c.h.b16 %v962
  %v4437 = vunpack.c.l.b16 %v963
  %v4438 = vunpack.c.h.b16 %v963
  %v4439 = vunpack.c.l.b16 %v964
  %v4440 = vunpack.c.h.b16 %v964
  %v4441 = vunpack.c.l.b16 %v965
  %v4442 = vunpack.c.h.b16 %v965
  %v4443 = vunpack.c.l.b16 %v966
  %v4444 = vunpack.c.h.b16 %v966
  %v4445 = vunpack.c.l.b16 %v967
  %v4446 = vunpack.c.h.b16 %v967
  %v4447 = vunpack.c.l.b16 %v968
  %v4448 = vunpack.c.h.b16 %v968
  %v4449 = vunpack.c.l.b16 %v969
  %v4450 = vunpack.c.h.b16 %v969
  %v4451 = vunpack.c.l.b16 %v970
  %v4452 = vunpack.c.h.b16 %v970
  %v4453 = vunpack.c.l.b16 %v971
  %v4454 = vunpack.c.h.b16 %v971
  %v4455 = vunpack.c.l.b16 %v972
  %v4456 = vunpack.c.h.b16 %v972
  %v4457 = vunpack.c.l.b16 %v973
  %v4458 = vunpack.c.h.b16 %v973
  %v4459 = vunpack.c.l.b16 %v974
  %v4460 = vunpack.c.h.b16 %v974
  %v4461 = vunpack.c.l.b16 %v975
  %v4462 = vunpack.c.h.b16 %v975
  %v4463 = vunpack.c.l.b16 %v976
  %v4464 = vunpack.c.h.b16 %v976
  %v4465 = vunpack.c.l.b16 %v977
  %v4466 = vunpack.c.h.b16 %v977
  %v4467 = vunpack.c.l.b16 %v978
  %v4468 = vunpack.c.h.b16 %v978
  %v4469 = vunpack.c.l.b16 %v979
  %v4470 = vunpack.c.h.b16 %v979
  %v4471 = vunpack.c.l.b16 %v980
  %v4472 = vunpack.c.h.b16 %v980
  %v4473 = vunpack.c.l.b16 %v981
  %v4474 = vunpack.c.h.b16 %v981
  %v4475 = vunpack.c.l.b16 %v982
  %v4476 = vunpack.c.h.b16 %v982
  %v4477 = vunpack.c.l.b16 %v983
  %v4478 = vunpack.c.h.b16 %v983
  %v4479 = vunpack.c.l.b16 %v984
  %v4480 = vunpack.c.h.b16 %v984
  %v4481 = vunpack.c.l.b16 %v985
  %v4482 = vunpack.c.h.b16 %v985
  %v4483 = vunpack.c.l.b16 %v986
  %v4484 = vunpack.c.h.b16 %v986
  %v4485 = vunpack.c.l.b16 %v987
  %v4486 = vunpack.c.h.b16 %v987
  %v4487 = vunpack.c.l.b16 %v988
  %v4488 = vunpack.c.h.b16 %v988
  %v4489 = vunpack.c.l.b16 %v989
  %v4490 = vunpack.c.h.b16 %v989
  %v4491 = vunpack.c.l.b16 %v990
  %v4492 = vunpack.c.h.b16 %v990
  %v4493 = vunpack.c.l.b16 %v991
  %v4494 = vunpack.c.h.b16 %v991
  %v4495 = vunpack.c.l.b16 %v992
  %v4496 = vunpack.c.h.b16 %v992
  %v4497 = vunpack.c.l.b16 %v993
  %v4498 = vunpack.c.h.b16 %v993
  %v4499 = vunpack.c.l.b16 %v994
  %v4500 = vunpack.c.h.b16 %v994
  %v4501 = vunpack.c.l.b16 %v995
  %v4502 = vunpack.c.h.b16 %v995
  %v4503 = vunpack.c.l.b16 %v996
  %v4504 = vunpack.c.h.b16 %v996
  %v4505 = vunpack.c.l.b16 %v997
  %v4506 = vunpack.c.h.b16 %v997
  %v4507 = vunpack.c.l.b16 %v998
  %v4508 = vunpack.c.h.b16 %v998
  %v4509 = vunpack.c.l.b16 %v999
  %v4510 = vunpack.c.h.b16 %v999
  %v4511 = vunpack.c.l.b16 %v1000
  %v4512 = vunpack.c.h.b16 %v1000
  %v4513 = vunpack.c.l.b16 %v1001
  %v4514 = vunpack.c.h.b16 %v1001
  %v4515 = vunpack.c.l.b16 %v1002
  %v4516 = vunpack.c.h.b16 %v1002
  %v4517 = vunpack.c.l.b16 %v1003
  %v4518 = vunpack.c.h.b16 %v1003
  %v4519 = vunpack.c.l.b16 %v1004
  %v4520 = vunpack.c.h.b16 %v1004
  %v4521 = vunpack.c.l.b16 %v1005
  %v4522 = vunpack.c.h.b16 %v1005
  %v4523 = vunpack.c.l.b16 %v1006
  %v4524 = vunpack.c.h.b16 %v1006
  %v4525 = vunpack.c.l.b16 %v1007
  %v4526 = vunpack.c.h.b16 %v1007
  %v4527 = vunpack.c.l.b16 %v1008
  %v4528 = vunpack.c.h.b16 %v1008
  %v4529 = vunpack.c.l.b16 %v1009
  %v4530 = vunpack.c.h.b16 %v1009
  %v4531 = vunpack.c.l.b16 %v1010
  %v4532 = vunpack.c.h.b16 %v1010
  %v4533 = vunpack.c.l.b16 %v1011
  %v4534 = vunpack.c.h.b16 %v1011
  %v4535 = vunpack.c.l.b16 %v1012
  %v4536 = vunpack.c.h.b16 %v1012
  %v4537 = vunpack.c.l.b16 %v1013
  %v4538 = vunpack.c.h.b16 %v1013
  %v4539 = vunpack.c.l.b16 %v1014
  %v4540 = vunpack.c.h.b16 %v1014
  %v4541 = vunpack.c.l.b16 %v1015
  %v4542 = vunpack.c.h.b16 %v1015
  %v4543 = vunpack.c.l.b16 %v1016
  %v4544 = vunpack.c.h.b16 %v1016
  %v4545 = vunpack.c.l.b16 %v1017
  %v4546 = vunpack.c.h.b16 %v1017
  %v4547 = vunpack.c.l.b16 %v1018
  %v4548 = vunpack.c.h.b16 %v1018
  %v4549 = vunpack.c.l.b16 %v1019
  %v4550 = vunpack.c.h.b16 %v1019
  %v4551 = vunpack.c.l.b16 %v1020
  %v4552 = vunpack.c.h.b16 %v1020
  %v4553 = vunpack.c.l.b16 %v1021
  %v4554 = vunpack.c.h.b16 %v1021
  %v4555 = vunpack.c.l.b16 %v1022
  %v4556 = vunpack.c.h.b16 %v1022
  %v4557 = vunpack.c.l.b16 %v1023
  %v4558 = vunpack.c.h.b16 %v1023
  %v4559 = vunpack.c.l.b16 %v1024
  %v4560 = vunpack.c.h.b16 %v1024
  %v4561 = vunpack.c.l.b16 %v1025
  %v4562 = vunpack.c.h.b16 %v1025
  %v4563 = vunpack.c.l.b16 %v1026
  %v4564 = vunpack.c.h.b16 %v1026
  %v4565 = vunpack.c.l.b16 %v1027
  %v4566 = vunpack.c.h.b16 %v1027
  %v4567 = vunpack.c.l.b16 %v1028
  %v4568 = vunpack.c.h.b16 %v1028
  %v4569 = vunpack.c.l.b16 %v1029
  %v4570 = vunpack.c.h.b16 %v1029
  %v4571 = vunpack.c.l.b16 %v1030
  %v4572 = vunpack.c.h.b16 %v1030
  %v4573 = vunpack.c.l.b16 %v1031
  %v4574 = vunpack.c.h.b16 %v1031
  %v4575 = vunpack.c.l.b16 %v1032
  %v4576 = vunpack.c.h.b16 %v1032
  %v4577 = vunpack.c.l.b16 %v1033
  %v4578 = vunpack.c.h.b16 %v1033
  %v4579 = vunpack.c.l.b16 %v1034
  %v4580 = vunpack.c.h.b16 %v1034
  %v4581 = vunpack.c.l.b16 %v1035
  %v4582 = vunpack.c.h.b16 %v1035
  %v4583 = vunpack.c.l.b16 %v1036
  %v4584 = vunpack.c.h.b16 %v1036
  %v4585 = vunpack.c.l.b16 %v1037
  %v4586 = vunpack.c.h.b16 %v1037
  %v4587 = vunpack.c.l.b16 %v1038
  %v4588 = vunpack.c.h.b16 %v1038
  %v4589 = vunpack.c.l.b16 %v1039
  %v4590 = vunpack.c.h.b16 %v1039
  %v4591 = vunpack.c.l.b16 %v1040
  %v4592 = vunpack.c.h.b16 %v1040
  %v4593 = vunpack.c.l.b16 %v1041
  %v4594 = vunpack.c.h.b16 %v1041
  %v4595 = vunpack.c.l.b16 %v1042
  %v4596 = vunpack.c.h.b16 %v1042
  %v4597 = vunpack.c.l.b16 %v1043
  %v4598 = vunpack.c.h.b16 %v1043
  %v4599 = vunpack.c.l.b16 %v1044
  %v4600 = vunpack.c.h.b16 %v1044
  %v4601 = vunpack.c.l.b16 %v1045
  %v4602 = vunpack.c.h.b16 %v1045
  %v4603 = vunpack.c.l.b16 %v1046
  %v4604 = vunpack.c.h.b16 %v1046
  %v4605 = vunpack.c.l.b16 %v1047
  %v4606 = vunpack.c.h.b16 %v1047
  %v4607 = vunpack.c.l.b16 %v1048
  %v4608 = vunpack.c.h.b16 %v1048
  %v4609 = vunpack.c.l.b16 %v1049
  %v4610 = vunpack.c.h.b16 %v1049
  %v4611 = vunpack.c.l.b16 %v1050
  %v4612 = vunpack.c.h.b16 %v1050
  %v4613 = vunpack.c.l.b16 %v1051
  %v4614 = vunpack.c.h.b16 %v1051
  %v4615 = vunpack.c.l.b16 %v1052
  %v4616 = vunpack.c.h.b16 %v1052
  %v4617 = vunpack.c.l.b16 %v1053
  %v4618 = vunpack.c.h.b16 %v1053
  %v4619 = vunpack.c.l.b16 %v1054
  %v4620 = vunpack.c.h.b16 %v1054
  %v4621 = vunpack.c.l.b16 %v1055
  %v4622 = vunpack.c.h.b16 %v1055
  %v4623 = vunpack.c.l.b16 %v1056
  %v4624 = vunpack.c.h.b16 %v1056
  %v4625 = vunpack.c.l.b16 %v1057
  %v4626 = vunpack.c.h.b16 %v1057
  %v4627 = vunpack.c.l.b16 %v1058
  %v4628 = vunpack.c.h.b16 %v1058
  %v4629 = vunpack.c.l.b16 %v1059
  %v4630 = vunpack.c.h.b16 %v1059
  %v4631 = vunpack.c.l.b16 %v1060
  %v4632 = vunpack.c.h.b16 %v1060
  %v4633 = vunpack.c.l.b16 %v1061
  %v4634 = vunpack.c.h.b16 %v1061
  %v4635 = vunpack.c.l.b16 %v1062
  %v4636 = vunpack.c.h.b16 %v1062
  %v4637 = vunpack.c.l.b16 %v1063
  %v4638 = vunpack.c.h.b16 %v1063
  %v4639 = vunpack.c.l.b16 %v1064
  %v4640 = vunpack.c.h.b16 %v1064
  %v4641 = vunpack.c.l.b16 %v1065
  %v4642 = vunpack.c.h.b16 %v1065
  %v4643 = vunpack.c.l.b16 %v1066
  %v4644 = vunpack.c.h.b16 %v1066
  %v4645 = vunpack.c.l.b16 %v1067
  %v4646 = vunpack.c.h.b16 %v1067
  %v4647 = vunpack.c.l.b16 %v1068
  %v4648 = vunpack.c.h.b16 %v1068
  %v4649 = vunpack.c.l.b16 %v1069
  %v4650 = vunpack.c.h.b16 %v1069
  %v4651 = vunpack.c.l.b16 %v1070
  %v4652 = vunpack.c.h.b16 %v1070
  %v4653 = vunpack.c.l.b16 %v1071
  %v4654 = vunpack.c.h.b16 %v1071
  %v4655 = vunpack.c.l.b16 %v1072
  %v4656 = vunpack.c.h.b16 %v1072
  %v4657 = vunpack.c.l.b16 %v1073
  %v4658 = vunpack.c.h.b16 %v1073
  %v4659 = vunpack.c.l.b16 %v1074
  %v4660 = vunpack.c.h.b16 %v1074
  %v4661 = vunpack.c.l.b16 %v1075
  %v4662 = vunpack.c.h.b16 %v1075
  %v4663 = vunpack.c.l.b16 %v1076
  %v4664 = vunpack.c.h.b16 %v1076
  %v4665 = vunpack.c.l.b16 %v1077
  %v4666 = vunpack.c.h.b16 %v1077
  %v4667 = vunpack.c.l.b16 %v1078
  %v4668 = vunpack.c.h.b16 %v1078
  %v4669 = vunpack.c.l.b16 %v1079
  %v4670 = vunpack.c.h.b16 %v1079
  %v4671 = vunpack.c.l.b16 %v1080
  %v4672 = vunpack.c.h.b16 %v1080
  %v4673 = vunpack.c.l.b16 %v1081
  %v4674 = vunpack.c.h.b16 %v1081
  %v4675 = vunpack.c.l.b16 %v1082
  %v4676 = vunpack.c.h.b16 %v1082
  %v4677 = vunpack.c.l.b16 %v1083
  %v4678 = vunpack.c.h.b16 %v1083
  %v4679 = vunpack.c.l.b16 %v1084
  %v4680 = vunpack.c.h.b16 %v1084
  %v4681 = vunpack.c.l.b16 %v1085
  %v4682 = vunpack.c.h.b16 %v1085
  %v4683 = vunpack.c.l.b16 %v1086
  %v4684 = vunpack.c.h.b16 %v1086
  %v4685 = vunpack.c.l.b16 %v1087
  %v4686 = vunpack.c.h.b16 %v1087
  %v4687 = vunpack.c.l.b16 %v1088
  %v4688 = vunpack.c.h.b16 %v1088
  %v4689 = vunpack.c.l.b16 %v1089
  %v4690 = vunpack.c.h.b16 %v1089
  %v4691 = vunpack.c.l.b16 %v1090
  %v4692 = vunpack.c.h.b16 %v1090
  %v4693 = vunpack.c.l.b16 %v1091
  %v4694 = vunpack.c.h.b16 %v1091
  %v4695 = vunpack.c.l.b16 %v1092
  %v4696 = vunpack.c.h.b16 %v1092
  %v4697 = vunpack.c.l.b16 %v1093
  %v4698 = vunpack.c.h.b16 %v1093
  %v4699 = vunpack.c.l.b16 %v1094
  %v4700 = vunpack.c.h.b16 %v1094
  %v4701 = vunpack.c.l.b16 %v1095
  %v4702 = vunpack.c.h.b16 %v1095
  %v4703 = vunpack.c.l.b16 %v1096
  %v4704 = vunpack.c.h.b16 %v1096
  %v4705 = vunpack.c.l.b16 %v1097
  %v4706 = vunpack.c.h.b16 %v1097
  %v4707 = vunpack.c.l.b16 %v1098
  %v4708 = vunpack.c.h.b16 %v1098
  %v4709 = vunpack.c.l.b16 %v1099
  %v4710 = vunpack.c.h.b16 %v1099
  %v4711 = vunpack.c.l.b16 %v1100
  %v4712 = vunpack.c.h.b16 %v1100
  %v4713 = vunpack.c.l.b16 %v1101
  %v4714 = vunpack.c.h.b16 %v1101
  %v4715 = vunpack.c.l.b16 %v1102
  %v4716 = vunpack.c.h.b16 %v1102
  %v4717 = vunpack.c.l.b16 %v1103
  %v4718 = vunpack.c.h.b16 %v1103
  %v4719 = vunpack.c.l.b16 %v1104
  %v4720 = vunpack.c.h.b16 %v1104
  %v4721 = vunpack.c.l.b16 %v1105
  %v4722 = vunpack.c.h.b16 %v1105
  %v4723 = vunpack.c.l.b16 %v1106
  %v4724 = vunpack.c.h.b16 %v1106
  %v4725 = vunpack.c.l.b16 %v1107
  %v4726 = vunpack.c.h.b16 %v1107
  %v4727 = vunpack.c.l.b16 %v1108
  %v4728 = vunpack.c.h.b16 %v1108
  %v4729 = vunpack.c.l.b16 %v1109
  %v4730 = vunpack.c.h.b16 %v1109
  %v4731 = vunpack.c.l.b16 %v1110
  %v4732 = vunpack.c.h.b16 %v1110
  %v4733 = vunpack.c.l.b16 %v1111
  %v4734 = vunpack.c.h.b16 %v1111
  %v4735 = vunpack.c.l.b16 %v1112
  %v4736 = vunpack.c.h.b16 %v1112
  %v4737 = vunpack.c.l.b16 %v1113
  %v4738 = vunpack.c.h.b16 %v1113
  %v4739 = vunpack.c.l.b16 %v1114
  %v4740 = vunpack.c.h.b16 %v1114
  %v4741 = vunpack.c.l.b16 %v1115
  %v4742 = vunpack.c.h.b16 %v1115
  %v4743 = vunpack.c.l.b16 %v1116
  %v4744 = vunpack.c.h.b16 %v1116
  %v4745 = vunpack.c.l.b16 %v1117
  %v4746 = vunpack.c.h.b16 %v1117
  %v4747 = vunpack.c.l.b16 %v1118
  %v4748 = vunpack.c.h.b16 %v1118
  %v4749 = vunpack.c.l.b16 %v1119
  %v4750 = vunpack.c.h.b16 %v1119
  %v4751 = vunpack.c.l.b16 %v1120
  %v4752 = vunpack.c.h.b16 %v1120
  %v4753 = vunpack.c.l.b16 %v1121
  %v4754 = vunpack.c.h.b16 %v1121
  %v4755 = vunpack.c.l.b16 %v1122
  %v4756 = vunpack.c.h.b16 %v1122
  %v4757 = vunpack.c.l.b16 %v1123
  %v4758 = vunpack.c.h.b16 %v1123
  %v4759 = vunpack.c.l.b16 %v1124
  %v4760 = vunpack.c.h.b16 %v1124
  %v4761 = vunpack.c.l.b16 %v1125
  %v4762 = vunpack.c.h.b16 %v1125
  %v4763 = vunpack.c.l.b16 %v1126
  %v4764 = vunpack.c.h.b16 %v1126
  %v4765 = vunpack.c.l.b16 %v1127
  %v4766 = vunpack.c.h.b16 %v1127
  %v4767 = vunpack.c.l.b16 %v1128
  %v4768 = vunpack.c.h.b16 %v1128
  %v4769 = vunpack.c.l.b16 %v1129
  %v4770 = vunpack.c.h.b16 %v1129
  %v4771 = vunpack.c.l.b16 %v1130
  %v4772 = vunpack.c.h.b16 %v1130
  %v4773 = vunpack.c.l.b16 %v1131
  %v4774 = vunpack.c.h.b16 %v1131
  %v4775 = vunpack.c.l.b16 %v1132
  %v4776 = vunpack.c.h.b16 %v1132
  %v4777 = vunpack.c.l.b16 %v1133
  %v4778 = vunpack.c.h.b16 %v1133
  %v4779 = vunpack.c.l.b16 %v1134
  %v4780 = vunpack.c.h.b16 %v1134
  %v4781 = vunpack.c.l.b16 %v1135
  %v4782 = vunpack.c.h.b16 %v1135
  %v4783 = vunpack.c.l.b16 %v1136
  %v4784 = vunpack.c.h.b16 %v1136
  %v4785 = vunpack.c.l.b16 %v1137
  %v4786 = vunpack.c.h.b16 %v1137
  %v4787 = vunpack.c.l.b16 %v1138
  %v4788 = vunpack.c.h.b16 %v1138
  %v4789 = vunpack.c.l.b16 %v1139
  %v4790 = vunpack.c.h.b16 %v1139
  %v4791 = vunpack.c.l.b16 %v1140
  %v4792 = vunpack.c.h.b16 %v1140
  %v4793 = vunpack.c.l.b16 %v1141
  %v4794 = vunpack.c.h.b16 %v1141
  %v4795 = vunpack.c.l.b16 %v1142
  %v4796 = vunpack.c.h.b16 %v1142
  %v4797 = vunpack.c.l.b16 %v1143
  %v4798 = vunpack.c.h.b16 %v1143
  %v4799 = vunpack.c.l.b16 %v1144
  %v4800 = vunpack.c.h.b16 %v1144
  %v4801 = vunpack.c.l.b16 %v1145
  %v4802 = vunpack.c.h.b16 %v1145
  %v4803 = vunpack.c.l.b16 %v1146
  %v4804 = vunpack.c.h.b16 %v1146
  %v4805 = vunpack.c.l.b16 %v1147
  %v4806 = vunpack.c.h.b16 %v1147
  %v4807 = vunpack.c.l.b16 %v1148
  %v4808 = vunpack.c.h.b16 %v1148
  %v4809 = vunpack.c.l.b16 %v1149
  %v4810 = vunpack.c.h.b16 %v1149
  %v4811 = vunpack.c.l.b16 %v1150
  %v4812 = vunpack.c.h.b16 %v1150
  %v4813 = vunpack.c.l.b16 %v1151
  %v4814 = vunpack.c.h.b16 %v1151
  %v4815 = vunpack.c.l.b16 %v1152
  %v4816 = vunpack.c.h.b16 %v1152
  %v4817 = vunpack.c.l.b16 %v1153
  %v4818 = vunpack.c.h.b16 %v1153
  %v4819 = vunpack.c.l.b16 %v1154
  %v4820 = vunpack.c.h.b16 %v1154
  %v4821 = vunpack.c.l.b16 %v1155
  %v4822 = vunpack.c.h.b16 %v1155
  %v4823 = vunpack.c.l.b16 %v1156
  %v4824 = vunpack.c.h.b16 %v1156
  %v4825 = vunpack.c.l.b16 %v1157
  %v4826 = vunpack.c.h.b16 %v1157
  %v4827 = vunpack.c.l.b16 %v1158
  %v4828 = vunpack.c.h.b16 %v1158
  %v4829 = vunpack.c.l.b16 %v1159
  %v4830 = vunpack.c.h.b16 %v1159
  %v4831 = vunpack.c.l.b16 %v1160
  %v4832 = vunpack.c.h.b16 %v1160
  %v4833 = vunpack.c.l.b16 %v1161
  %v4834 = vunpack.c.h.b16 %v1161
  %v4835 = vunpack.c.l.b16 %v1162
  %v4836 = vunpack.c.h.b16 %v1162
  %v4837 = vunpack.c.l.b16 %v1163
  %v4838 = vunpack.c.h.b16 %v1163
  %v4839 = vunpack.c.l.b16 %v1164
  %v4840 = vunpack.c.h.b16 %v1164
  %v4841 = vunpack.c.l.b16 %v1165
  %v4842 = vunpack.c.h.b16 %v1165
  %v4843 = vunpack.c.l.b16 %v1166
  %v4844 = vunpack.c.h.b16 %v1166
  %v4845 = vunpack.c.l.b16 %v1167
  %v4846 = vunpack.c.h.b16 %v1167
  %v4847 = vunpack.c.l.b16 %v1168
  %v4848 = vunpack.c.h.b16 %v1168
  %v4849 = vunpack.c.l.b16 %v1169
  %v4850 = vunpack.c.h.b16 %v1169
  %v4851 = vunpack.c.l.b16 %v1170
  %v4852 = vunpack.c.h.b16 %v1170
  %v4853 = vunpack.c.l.b16 %v1171
  %v4854 = vunpack.c.h.b16 %v1171
  %v4855 = vunpack.c.l.b16 %v1172
  %v4856 = vunpack.c.h.b16 %v1172
  %v4857 = vunpack.c.l.b16 %v1173
  %v4858 = vunpack.c.h.b16 %v1173
  %v4859 = vunpack.c.l.b16 %v1174
  %v4860 = vunpack.c.h.b16 %v1174
  %v4861 = vunpack.c.l.b16 %v1175
  %v4862 = vunpack.c.h.b16 %v1175
  %v4863 = vunpack.c.l.b16 %v1176
  %v4864 = vunpack.c.h.b16 %v1176
  %v4865 = vunpack.c.l.b16 %v1177
  %v4866 = vunpack.c.h.b16 %v1177
  %v4867 = vunpack.c.l.b16 %v1178
  %v4868 = vunpack.c.h.b16 %v1178
  %v4869 = vunpack.c.l.b16 %v1179
  %v4870 = vunpack.c.h.b16 %v1179
  %v4871 = vunpack.c.l.b16 %v1180
  %v4872 = vunpack.c.h.b16 %v1180
  %v4873 = vunpack.c.l.b16 %v1181
  %v4874 = vunpack.c.h.b16 %v1181
  %v4875 = vunpack.c.l.b16 %v1182
  %v4876 = vunpack.c.h.b16 %v1182
  %v4877 = vunpack.c.l.b16 %v1183
  %v4878 = vunpack.c.h.b16 %v1183
  %v4879 = vunpack.c.l.b16 %v1184
  %v4880 = vunpack.c.h.b16 %v1184
  %v4881 = vunpack.c.l.b16 %v1185
  %v4882 = vunpack.c.h.b16 %v1185
  %v4883 = vunpack.c.l.b16 %v1186
  %v4884 = vunpack.c.h.b16 %v1186
  %v4885 = vunpack.c.l.b16 %v1187
  %v4886 = vunpack.c.h.b16 %v1187
  %v4887 = vunpack.c.l.b16 %v1188
  %v4888 = vunpack.c.h.b16 %v1188
  %v4889 = vunpack.c.l.b16 %v1189
  %v4890 = vunpack.c.h.b16 %v1189
  %v4891 = vunpack.c.l.b16 %v1190
  %v4892 = vunpack.c.h.b16 %v1190
  %v4893 = vunpack.c.l.b16 %v1191
  %v4894 = vunpack.c.h.b16 %v1191
  %v4895 = vunpack.c.l.b16 %v1192
  %v4896 = vunpack.c.h.b16 %v1192
  %v4897 = vunpack.c.l.b16 %v1193
  %v4898 = vunpack.c.h.b16 %v1193
  %v4899 = vunpack.c.l.b16 %v1194
  %v4900 = vunpack.c.h.b16 %v1194
  %v4901 = vunpack.c.l.b16 %v1195
  %v4902 = vunpack.c.h.b16 %v1195
  %v4903 = vunpack.c.l.b16 %v1196
  %v4904 = vunpack.c.h.b16 %v1196
  %v4905 = vunpack.c.l.b16 %v1197
  %v4906 = vunpack.c.h.b16 %v1197
  %v4907 = vunpack.c.l.b16 %v1198
  %v4908 = vunpack.c.h.b16 %v1198
  %v4909 = vunpack.c.l.b16 %v1199
  %v4910 = vunpack.c.h.b16 %v1199
  %v4911 = vunpack.c.l.b16 %v1200
  %v4912 = vunpack.c.h.b16 %v1200
  %v4913 = vunpack.c.l.b16 %v1201
  %v4914 = vunpack.c.h.b16 %v1201
  %v4915 = vunpack.c.l.b16 %v1202
  %v4916 = vunpack.c.h.b16 %v1202
  %v4917 = vunpack.c.l.b16 %v1203
  %v4918 = vunpack.c.h.b16 %v1203
  %v4919 = vunpack.c.l.b16 %v1204
  %v4920 = vunpack.c.h.b16 %v1204
  %v4921 = vunpack.c.l.b16 %v1205
  %v4922 = vunpack.c.h.b16 %v1205
  %v4923 = vunpack.c.l.b16 %v1206
  %v4924 = vunpack.c.h.b16 %v1206
  %v4925 = vunpack.c.l.b16 %v1207
  %v4926 = vunpack.c.h.b16 %v1207
  %v4927 = vunpack.c.l.b16 %v1208
  %v4928 = vunpack.c.h.b16 %v1208
  %v4929 = vpack.c.b16 %v2627, %v2625
  %v4930 = vpack.c.b16 %v2628, %v2626
  %v4931 = vpack.c.b16 %v2631, %v2629
  %v4932 = vpack.c.b16 %v2632, %v2630
  %v4933 = vpack.c.b16 %v2635, %v2633
  %v4934 = vpack.c.b16 %v2636, %v2634
  %v4935 = vpack.c.b16 %v2639, %v2637
  %v4936 = vpack.c.b16 %v2640, %v2638
  %v4937 = vpack.c.b16 %v2643, %v2641
  %v4938 = vpack.c.b16 %v2644, %v2642
  %v4939 = vpack.c.b16 %v2647, %v2645
  %v4940 = vpack.c.b16 %v2648, %v2646
  %v4941 = vpack.c.b16 %v2651, %v2649
  %v4942 = vpack.c.b16 %v2652, %v2650
  %v4943 = vpack.c.b16 %v2655, %v2653
  %v4944 = vpack.c.b16 %v2656, %v2654
  %v4945 = vpack.c.b16 %v2659, %v2657
  %v4946 = vpack.c.b16 %v2660, %v2658
  %v4947 = vpack.c.b16 %v2663, %v2661
  %v4948 = vpack.c.b16 %v2664, %v2662
  %v4949 = vpack.c.b16 %v2667, %v2665
  %v4950 = vpack.c.b16 %v2668, %v2666
  %v4951 = vpack.c.b16 %v2671, %v2669
  %v4952 = vpack.c.b16 %v2672, %v2670
  %v4953 = vpack.c.b16 %v2675, %v2673
  %v4954 = vpack.c.b16 %v2676, %v2674
  %v4955 = vpack.c.b16 %v2679, %v2677
  %v4956 = vpack.c.b16 %v2680, %v2678
  %v4957 = vpack.c.b16 %v2683, %v2681
  %v4958 = vpack.c.b16 %v2684, %v2682
  %v4959 = vpack.c.b16 %v2687, %v2685
  %v4960 = vpack.c.b16 %v2688, %v2686
  %v4961 = vpack.c.b16 %v2691, %v2689
  %v4962 = vpack.c.b16 %v2692, %v2690
  %v4963 = vpack.c.b16 %v2695, %v2693
  %v4964 = vpack.c.b16 %v2696, %v2694
  %v4965 = vpack.c.b16 %v2699, %v2697
  %v4966 = vpack.c.b16 %v2700, %v2698
  %v4967 = vpack.c.b16 %v2703, %v2701
  %v4968 = vpack.c.b16 %v2704, %v2702
  %v4969 = vpack.c.b16 %v2707, %v2705
  %v4970 = vpack.c.b16 %v2708, %v2706
  %v4971 = vpack.c.b16 %v2711, %v2709
  %v4972 = vpack.c.b16 %v2712, %v2710
  %v4973 = vpack.c.b16 %v2715, %v2713
  %v4974 = vpack.c.b16 %v2716, %v2714
  %v4975 = vpack.c.b16 %v2719, %v2717
  %v4976 = vpack.c.b16 %v2720, %v2718
  %v4977 = vpack.c.b16 %v2723, %v2721
  %v4978 = vpack.c.b16 %v2724, %v2722
  %v4979 = vpack.c.b16 %v2727, %v2725
  %v4980 = vpack.c.b16 %v2728, %v2726
  %v4981 = vpack.c.b16 %v2731, %v2729
  %v4982 = vpack.c.b16 %v2732, %v2730
  %v4983 = vpack.c.b16 %v2735, %v2733
  %v4984 = vpack.c.b16 %v2736, %v2734
  %v4985 = vpack.c.b16 %v2739, %v2737
  %v4986 = vpack.c.b16 %v2740, %v2738
  %v4987 = vpack.c.b16 %v2743, %v2741
  %v4988 = vpack.c.b16 %v2744, %v2742
  %v4989 = vpack.c.b16 %v2747, %v2745
  %v4990 = vpack.c.b16 %v2748, %v2746
  %v4991 = vpack.c.b16 %v2751, %v2749
  %v4992 = vpack.c.b16 %v2752, %v2750
  %v4993 = vpack.c.b16 %v2755, %v2753
  %v4994 = vpack.c.b16 %v2756, %v2754
  %v4995 = vpack.c.b16 %v2759, %v2757
  %v4996 = vpack.c.b16 %v2760, %v2758
  %v4997 = vpack.c.b16 %v2763, %v2761
  %v4998 = vpack.c.b16 %v2764, %v2762
  %v4999 = vpack.c.b16 %v2767, %v2765
  %v5000 = vpack.c.b16 %v2768, %v2766
  %v5001 = vpack.c.b16 %v2771, %v2769
  %v5002 = vpack.c.b16 %v2772, %v2770
  %v5003 = vpack.c.b16 %v2775, %v2773
  %v5004 = vpack.c.b16 %v2776, %v2774
  %v5005 = vpack.c.b16 %v2779, %v2777
  %v5006 = vpack.c.b16 %v2780, %v2778
  %v5007 = vpack.c.b16 %v2783, %v2781
  %v5008 = vpack.c.b16 %v2784, %v2782
  %v5009 = vpack.c.b16 %v2787, %v2785
  %v5010 = vpack.c.b16 %v2788, %v2786
  %v5011 = vpack.c.b16 %v2791, %v2789
  %v5012 = vpack.c.b16 %v2792, %v2790
  %v5013 = vpack.c.b16 %v2795, %v2793
  %v5014 = vpack.c.b16 %v2796, %v2794
  %v5015 = vpack.c.b16 %v2799, %v2797
  %v5016 = vpack.c.b16 %v2800, %v2798
  %v5017 = vpack.c.b16 %v2803, %v2801
  %v5018 = vpack.c.b16 %v2804, %v2802
  %v5019 = vpack.c.b16 %v2807, %v2805
  %v5020 = vpack.c.b16 %v2808, %v2806
  %v5021 = vpack.c.b16 %v2811, %v2809
  %v5022 = vpack.c.b16 %v2812, %v2810
  %v5023 = vpack.c.b16 %v2815, %v2813
  %v5024 = vpack.c.b16 %v2816, %v2814
  %v5025 = vpack.c.b16 %v2819, %v2817
  %v5026 = vpack.c.b16 %v2820, %v2818
  %v5027 = vpack.c.b16 %v2823, %v2821
  %v5028 = vpack.c.b16 %v2824, %v2822
  %v5029 = vpack.c.b16 %v2827, %v2825
  %v5030 = vpack.c.b16 %v2828, %v2826
  %v5031 = vpack.c.b16 %v2831, %v2829
  %v5032 = vpack.c.b16 %v2832, %v2830
  %v5033 = vpack.c.b16 %v2835, %v2833
  %v5034 = vpack.c.b16 %v2836, %v2834
  %v5035 = vpack.c.b16 %v2839, %v2837
  %v5036 = vpack.c.b16 %v2840, %v2838
  %v5037 = vpack.c.b16 %v2843, %v2841
  %v5038 = vpack.c.b16 %v2844, %v2842
  %v5039 = vpack.c.b16 %v2847, %v2845
  %v5040 = vpack.c.b16 %v2848, %v2846
  %v5041 = vpack.c.b16 %v2851, %v2849
  %v5042 = vpack.c.b16 %v2852, %v2850
  %v5043 = vpack.c.b16 %v2855, %v2853
  %v5044 = vpack.c.b16 %v2856, %v2854
  %v5045 = vpack.c.b16 %v2859, %v2857
  %v5046 = vpack.c.b16 %v2860, %v2858
  %v5047 = vpack.c.b16 %v2863, %v2861
  %v5048 = vpack.c.b16 %v2864, %v2862
  %v5049 = vpack.c.b16 %v2867, %v2865
  %v5050 = vpack.c.b16 %v2868, %v2866
  %v5051 = vpack.c.b16 %v2871, %v2869
  %v5052 = vpack.c.b16 %v2872, %v2870
  %v5053 = vpack.c.b16 %v2875, %v2873
  %v5054 = vpack.c.b16 %v2876, %v2874
  %v5055 = vpack.c.b16 %v2879, %v2877
  %v5056 = vpack.c.b16 %v2880, %v2878
  %v5057 = vpack.c.b16 %v2883, %v2881
  %v5058 = vpack.c.b16 %v2884, %v2882
  %v5059 = vpack.c.b16 %v2887, %v2885
  %v5060 = vpack.c.b16 %v2888, %v2886
  %v5061 = vpack.c.b16 %v2891, %v2889
  %v5062 = vpack.c.b16 %v2892, %v2890
  %v5063 = vpack.c.b16 %v2895, %v2893
  %v5064 = vpack.c.b16 %v2896, %v2894
  %v5065 = vpack.c.b16 %v2899, %v2897
  %v5066 = vpack.c.b16 %v2900, %v2898
  %v5067 = vpack.c.b16 %v2903, %v2901
  %v5068 = vpack.c.b16 %v2904, %v2902
  %v5069 = vpack.c.b16 %v2907, %v2905
  %v5070 = vpack.c.b16 %v2908, %v2906
  %v5071 = vpack.c.b16 %v2911, %v2909
  %v5072 = vpack.c.b16 %v2912, %v2910
  %v5073 = vpack.c.b16 %v2915, %v2913
  %v5074 = vpack.c.b16 %v2916, %v2914
  %v5075 = vpack.c.b16 %v2919, %v2917
  %v5076 = vpack.c.b16 %v2920, %v2918
  %v5077 = vpack.c.b16 %v2923, %v2921
  %v5078 = vpack.c.b16 %v2924, %v2922
  %v5079 = vpack.c.b16 %v2927, %v2925
  %v5080 = vpack.c.b16 %v2928, %v2926
  %v5081 = vpack.c.b16 %v2931, %v2929
  %v5082 = vpack.c.b16 %v2932, %v2930
  %v5083 = vpack.c.b16 %v2935, %v2933
  %v5084 = vpack.c.b16 %v2936, %v2934
  %v5085 = vpack.c.b16 %v2939, %v2937
  %v5086 = vpack.c.b16 %v2940, %v2938
  %v5087 = vpack.c.b16 %v2943, %v2941
  %v5088 = vpack.c.b16 %v2944, %v2942
  %v5089 = vpack.c.b16 %v2947, %v2945
  %v5090 = vpack.c.b16 %v2948, %v2946
  %v5091 = vpack.c.b16 %v2951, %v2949
  %v5092 = vpack.c.b16 %v2952, %v2950
  %v5093 = vpack.c.b16 %v2955, %v2953
  %v5094 = vpack.c.b16 %v2956, %v2954
  %v5095 = vpack.c.b16 %v2959, %v2957
  %v5096 = vpack.c.b16 %v2960, %v2958
  %v5097 = vpack.c.b16 %v2963, %v2961
  %v5098 = vpack.c.b16 %v2964, %v2962
  %v5099 = vpack.c.b16 %v2967, %v2965
  %v5100 = vpack.c.b16 %v2968, %v2966
  %v5101 = vpack.c.b16 %v2971, %v2969
  %v5102 = vpack.c.b16 %v2972, %v2970
  %v5103 = vpack.c.b16 %v2975, %v2973
  %v5104 = vpack.c.b16 %v2976, %v2974
  %v5105 = vpack.c.b16 %v2979, %v2977
  %v5106 = vpack.c.b16 %v2980, %v2978
  %v5107 = vpack.c.b16 %v2983, %v2981
  %v5108 = vpack.c.b16 %v2984, %v2982
  %v5109 = vpack.c.b16 %v2987, %v2985
  %v5110 = vpack.c.b16 %v2988, %v2986
  %v5111 = vpack.c.b16 %v2991, %v2989
  %v5112 = vpack.c.b16 %v2992, %v2990
  %v5113 = vpack.c.b16 %v2995, %v2993
  %v5114 = vpack.c.b16 %v2996, %v2994
  %v5115 = vpack.c.b16 %v2999, %v2997
  %v5116 = vpack.c.b16 %v3000, %v2998
  %v5117 = vpack.c.b16 %v3003, %v3001
  %v5118 = vpack.c.b16 %v3004, %v3002
  %v5119 = vpack.c.b16 %v3007, %v3005
  %v5120 = vpack.c.b16 %v3008, %v3006
  %v5121 = vpack.c.b16 %v3011, %v3009
  %v5122 = vpack.c.b16 %v3012, %v3010
  %v5123 = vpack.c.b16 %v3015, %v3013
  %v5124 = vpack.c.b16 %v3016, %v3014
  %v5125 = vpack.c.b16 %v3019, %v3017
  %v5126 = vpack.c.b16 %v3020, %v3018
  %v5127 = vpack.c.b16 %v3023, %v3021
  %v5128 = vpack.c.b16 %v3024, %v3022
  %v5129 = vpack.c.b16 %v3027, %v3025
  %v5130 = vpack.c.b16 %v3028, %v3026
  %v5131 = vpack.c.b16 %v3031, %v3029
  %v5132 = vpack.c.b16 %v3032, %v3030
  %v5133 = vpack.c.b16 %v3035, %v3033
  %v5134 = vpack.c.b16 %v3036, %v3034
  %v5135 = vpack.c.b16 %v3039, %v3037
  %v5136 = vpack.c.b16 %v3040, %v3038
  %v5137 = vpack.c.b16 %v3043, %v3041
  %v5138 = vpack.c.b16 %v3044, %v3042
  %v5139 = vpack.c.b16 %v3047, %v3045
  %v5140 = vpack.c.b16 %v3048, %v3046
  %v5141 = vpack.c.b16 %v3051, %v3049
  %v5142 = vpack.c.b16 %v3052, %v3050
  %v5143 = vpack.c.b16 %v3055, %v3053
  %v5144 = vpack.c.b16 %v3056, %v3054
  %v5145 = vpack.c.b16 %v3059, %v3057
  %v5146 = vpack.c.b16 %v3060, %v3058
  %v5147 = vpack.c.b16 %v3063, %v3061
  %v5148 = vpack.c.b16 %v3064, %v3062
  %v5149 = vpack.c.b16 %v3067, %v3065
  %v5150 = vpack.c.b16 %v3068, %v3066
  %v5151 = vpack.c.b16 %v3071, %v3069
  %v5152 = vpack.c.b16 %v3072, %v3070
  %v5153 = vpack.c.b16 %v3075, %v3073
  %v5154 = vpack.c.b16 %v3076, %v3074
  %v5155 = vpack.c.b16 %v3079, %v3077
  %v5156 = vpack.c.b16 %v3080, %v3078
  %v5157 = vpack.c.b16 %v3083, %v3081
  %v5158 = vpack.c.b16 %v3084, %v3082
  %v5159 = vpack.c.b16 %v3087, %v3085
  %v5160 = vpack.c.b16 %v3088, %v3086
  %v5161 = vpack.c.b16 %v3091, %v3089
  %v5162 = vpack.c.b16 %v3092, %v3090
  %v5163 = vpack.c.b16 %v3095, %v3093
  %v5164 = vpack.c.b16 %v3096, %v3094
  %v5165 = vpack.c.b16 %v3099, %v3097
  %v5166 = vpack.c.b16 %v3100, %v3098
  %v5167 = vpack.c.b16 %v3103, %v3101
  %v5168 = vpack.c.b16 %v3104, %v3102
  %v5169 = vpack.c.b16 %v3107, %v3105
  %v5170 = vpack.c.b16 %v3108, %v3106
  %v5171 = vpack.c.b16 %v3111, %v3109
  %v5172 = vpack.c.b16 %v3112, %v3110
  %v5173 = vpack.c.b16 %v3115, %v3113
  %v5174 = vpack.c.b16 %v3116, %v3114
  %v5175 = vpack.c.b16 %v3119, %v3117
  %v5176 = vpack.c.b16 %v3120, %v3118
  %v5177 = vpack.c.b16 %v3123, %v3121
  %v5178 = vpack.c.b16 %v3124, %v3122
  %v5179 = vpack.c.b16 %v3127, %v3125
  %v5180 = vpack.c.b16 %v3128, %v3126
  %v5181 = vpack.c.b16 %v3131, %v3129
  %v5182 = vpack.c.b16 %v3132, %v3130
  %v5183 = vpack.c.b16 %v3135, %v3133
  %v5184 = vpack.c.b16 %v3136, %v3134
  %v5185 = vpack.c.b16 %v3139, %v3137
  %v5186 = vpack.c.b16 %v3140, %v3138
  %v5187 = vpack.c.b16 %v3143, %v3141
  %v5188 = vpack.c.b16 %v3144, %v3142
  %v5189 = vpack.c.b16 %v3147, %v3145
  %v5190 = vpack.c.b16 %v3148, %v3146
  %v5191 = vpack.c.b16 %v3151, %v3149
  %v5192 = vpack.c.b16 %v3152, %v3150
  %v5193 = vpack.c.b16 %v3155, %v3153
  %v5194 = vpack.c.b16 %v3156, %v3154
  %v5195 = vpack.c.b16 %v3159, %v3157
  %v5196 = vpack.c.b16 %v3160, %v3158
  %v5197 = vpack.c.b16 %v3163, %v3161
  %v5198 = vpack.c.b16 %v3164, %v3162
  %v5199 = vpack.c.b16 %v3167, %v3165
  %v5200 = vpack.c.b16 %v3168, %v3166
  %v5201 = vpack.c.b16 %v3171, %v3169
  %v5202 = vpack.c.b16 %v3172, %v3170
  %v5203 = vpack.c.b16 %v3175, %v3173
  %v5204 = vpack.c.b16 %v3176, %v3174
  %v5205 = vpack.c.b16 %v3179, %v3177
  %v5206 = vpack.c.b16 %v3180, %v3178
  %v5207 = vpack.c.b16 %v3183, %v3181
  %v5208 = vpack.c.b16 %v3184, %v3182
  %v5209 = vpack.c.b16 %v3187, %v3185
  %v5210 = vpack.c.b16 %v3188, %v3186
  %v5211 = vpack.c.b16 %v3191, %v3189
  %v5212 = vpack.c.b16 %v3192, %v3190
  %v5213 = vpack.c.b16 %v3195, %v3193
  %v5214 = vpack.c.b16 %v3196, %v3194
  %v5215 = vpack.c.b16 %v3199, %v3197
  %v5216 = vpack.c.b16 %v3200, %v3198
  %v5217 = vpack.c.b16 %v3203, %v3201
  %v5218 = vpack.c.b16 %v3204, %v3202
  %v5219 = vpack.c.b16 %v3207, %v3205
  %v5220 = vpack.c.b16 %v3208, %v3206
  %v5221 = vpack.c.b16 %v3211, %v3209
  %v5222 = vpack.c.b16 %v3212, %v3210
  %v5223 = vpack.c.b16 %v3215, %v3213
  %v5224 = vpack.c.b16 %v3216, %v3214
  %v5225 = vpack.c.b16 %v3219, %v3217
  %v5226 = vpack.c.b16 %v3220, %v3218
  %v5227 = vpack.c.b16 %v3223, %v3221
  %v5228 = vpack.c.b16 %v3224, %v3222
  %v5229 = vpack.c.b16 %v3227, %v3225
  %v5230 = vpack.c.b16 %v3228, %v3226
  %v5231 = vpack.c.b16 %v3231, %v3229
  %v5232 = vpack.c.b16 %v3232, %v3230
  %v5233 = vpack.c.b16 %v3235, %v3233
  %v5234 = vpack.c.b16 %v3236, %v3234
  %v5235 = vpack.c.b16 %v3239, %v3237
  %v5236 = vpack.c.b16 %v3240, %v3238
  %v5237 = vpack.c.b16 %v3243, %v3241
  %v5238 = vpack.c.b16 %v3244, %v3242
  %v5239 = vpack.c.b16 %v3247, %v3245
  %v5240 = vpack.c.b16 %v3248, %v3246
  %v5241 = vpack.c.b16 %v3251, %v3249
  %v5242 = vpack.c.b16 %v3252, %v3250
  %v5243 = vpack.c.b16 %v3255, %v3253
  %v5244 = vpack.c.b16 %v3256, %v3254
  %v5245 = vpack.c.b16 %v3259, %v3257
  %v5246 = vpack.c.b16 %v3260, %v3258
  %v5247 = vpack.c.b16 %v3263, %v3261
  %v5248 = vpack.c.b16 %v3264, %v3262
  %v5249 = vpack.c.b16 %v3267, %v3265
  %v5250 = vpack.c.b16 %v3268, %v3266
  %v5251 = vpack.c.b16 %v3271, %v3269
  %v5252 = vpack.c.b16 %v3272, %v3270
  %v5253 = vpack.c.b16 %v3275, %v3273
  %v5254 = vpack.c.b16 %v3276, %v3274
  %v5255 = vpack.c.b16 %v3279, %v3277
  %v5256 = vpack.c.b16 %v3280, %v3278
  %v5257 = vpack.c.b16 %v3283, %v3281
  %v5258 = vpack.c.b16 %v3284, %v3282
  %v5259 = vpack.c.b16 %v3287, %v3285
  %v5260 = vpack.c.b16 %v3288, %v3286
  %v5261 = vpack.c.b16 %v3291, %v3289
  %v5262 = vpack.c.b16 %v3292, %v3290
  %v5263 = vpack.c.b16 %v3295, %v3293
  %v5264 = vpack.c.b16 %v3296, %v3294
  %v5265 = vpack.c.b16 %v3299, %v3297
  %v5266 = vpack.c.b16 %v3300, %v3298
  %v5267 = vpack.c.b16 %v3303, %v3301
  %v5268 = vpack.c.b16 %v3304, %v3302
  %v5269 = vpack.c.b16 %v3307, %v3305
  %v5270 = vpack.c.b16 %v3308, %v3306
  %v5271 = vpack.c.b16 %v3311, %v3309
  %v5272 = vpack.c.b16 %v3312, %v3310
  %v5273 = vpack.c.b16 %v3315, %v3313
  %v5274 = vpack.c.b16 %v3316, %v3314
  %v5275 = vpack.c.b16 %v3319, %v3317
  %v5276 = vpack.c.b16 %v3320, %v3318
  %v5277 = vpack.c.b16 %v3323, %v3321
  %v5278 = vpack.c.b16 %v3324, %v3322
  %v5279 = vpack.c.b16 %v3327, %v3325
  %v5280 = vpack.c.b16 %v3328, %v3326
  %v5281 = vpack.c.b16 %v3331, %v3329
  %v5282 = vpack.c.b16 %v3332, %v3330
  %v5283 = vpack.c.b16 %v3335, %v3333
  %v5284 = vpack.c.b16 %v3336, %v3334
  %v5285 = vpack.c.b16 %v3339, %v3337
  %v5286 = vpack.c.b16 %v3340, %v3338
  %v5287 = vpack.c.b16 %v3343, %v3341
  %v5288 = vpack.c.b16 %v3344, %v3342
  %v5289 = vpack.c.b16 %v3347, %v3345
  %v5290 = vpack.c.b16 %v3348, %v3346
  %v5291 = vpack.c.b16 %v3351, %v3349
  %v5292 = vpack.c.b16 %v3352, %v3350
  %v5293 = vpack.c.b16 %v3355, %v3353
  %v5294 = vpack.c.b16 %v3356, %v3354
  %v5295 = vpack.c.b16 %v3359, %v3357
  %v5296 = vpack.c.b16 %v3360, %v3358
  %v5297 = vpack.c.b16 %v3363, %v3361
  %v5298 = vpack.c.b16 %v3364, %v3362
  %v5299 = vpack.c.b16 %v3367, %v3365
  %v5300 = vpack.c.b16 %v3368, %v3366
  %v5301 = vpack.c.b16 %v3371, %v3369
  %v5302 = vpack.c.b16 %v3372, %v3370
  %v5303 = vpack.c.b16 %v3375, %v3373
  %v5304 = vpack.c.b16 %v3376, %v3374
  %v5305 = vpack.c.b16 %v3379, %v3377
  %v5306 = vpack.c.b16 %v3380, %v3378
  %v5307 = vpack.c.b16 %v3383, %v3381
  %v5308 = vpack.c.b16 %v3384, %v3382
  %v5309 = vpack.c.b16 %v3387, %v3385
  %v5310 = vpack.c.b16 %v3388, %v3386
  %v5311 = vpack.c.b16 %v3391, %v3389
  %v5312 = vpack.c.b16 %v3392, %v3390
  %v5313 = vpack.c.b16 %v3395, %v3393
  %v5314 = vpack.c.b16 %v3396, %v3394
  %v5315 = vpack.c.b16 %v3399, %v3397
  %v5316 = vpack.c.b16 %v3400, %v3398
  %v5317 = vpack.c.b16 %v3403, %v3401
  %v5318 = vpack.c.b16 %v3404, %v3402
  %v5319 = vpack.c.b16 %v3407, %v3405
  %v5320 = vpack.c.b16 %v3408, %v3406
  %v5321 = vpack.c.b16 %v3411, %v3409
  %v5322 = vpack.c.b16 %v3412, %v3410
  %v5323 = vpack.c.b16 %v3415, %v3413
  %v5324 = vpack.c.b16 %v3416, %v3414
  %v5325 = vpack.c.b16 %v3419, %v3417
  %v5326 = vpack.c.b16 %v3420, %v3418
  %v5327 = vpack.c.b16 %v3423, %v3421
  %v5328 = vpack.c.b16 %v3424, %v3422
  %v5329 = vpack.c.b16 %v3427, %v3425
  %v5330 = vpack.c.b16 %v3428, %v3426
  %v5331 = vpack.c.b16 %v3431, %v3429
  %v5332 = vpack.c.b16 %v3432, %v3430
  %v5333 = vpack.c.b16 %v3435, %v3433
  %v5334 = vpack.c.b16 %v3436, %v3434
  %v5335 = vpack.c.b16 %v3439, %v3437
  %v5336 = vpack.c.b16 %v3440, %v3438
  %v5337 = vpack.c.b16 %v3443, %v3441
  %v5338 = vpack.c.b16 %v3444, %v3442
  %v5339 = vpack.c.b16 %v3447, %v3445
  %v5340 = vpack.c.b16 %v3448, %v3446
  %v5341 = vpack.c.b16 %v3451, %v3449
  %v5342 = vpack.c.b16 %v3452, %v3450
  %v5343 = vpack.c.b16 %v3455, %v3453
  %v5344 = vpack.c.b16 %v3456, %v3454
  %v5345 = vpack.c.b16 %v3459, %v3457
  %v5346 = vpack.c.b16 %v3460, %v3458
  %v5347 = vpack.c.b16 %v3463, %v3461
  %v5348 = vpack.c.b16 %v3464, %v3462
  %v5349 = vpack.c.b16 %v3467, %v3465
  %v5350 = vpack.c.b16 %v3468, %v3466
  %v5351 = vpack.c.b16 %v3471, %v3469
  %v5352 = vpack.c.b16 %v3472, %v3470
  %v5353 = vpack.c.b16 %v3475, %v3473
  %v5354 = vpack.c.b16 %v3476, %v3474
  %v5355 = vpack.c.b16 %v3479, %v3477
  %v5356 = vpack.c.b16 %v3480, %v3478
  %v5357 = vpack.c.b16 %v3483, %v3481
  %v5358 = vpack.c.b16 %v3484, %v3482
  %v5359 = vpack.c.b16 %v3487, %v3485
  %v5360 = vpack.c.b16 %v3488, %v3486
  %v5361 = vpack.c.b16 %v3491, %v3489
  %v5362 = vpack.c.b16 %v3492, %v3490
  %v5363 = vpack.c.b16 %v3495, %v3493
  %v5364 = vpack.c.b16 %v3496, %v3494
  %v5365 = vpack.c.b16 %v3499, %v3497
  %v5366 = vpack.c.b16 %v3500, %v3498
  %v5367 = vpack.c.b16 %v3503, %v3501
  %v5368 = vpack.c.b16 %v3504, %v3502
  %v5369 = vpack.c.b16 %v3507, %v3505
  %v5370 = vpack.c.b16 %v3508, %v3506
  %v5371 = vpack.c.b16 %v3511, %v3509
  %v5372 = vpack.c.b16 %v3512, %v3510
  %v5373 = vpack.c.b16 %v3515, %v3513
  %v5374 = vpack.c.b16 %v3516, %v3514
  %v5375 = vpack.c.b16 %v3519, %v3517
  %v5376 = vpack.c.b16 %v3520, %v3518
  %v5377 = vpack.c.b16 %v3523, %v3521
  %v5378 = vpack.c.b16 %v3524, %v3522
  %v5379 = vpack.c.b16 %v3527, %v3525
  %v5380 = vpack.c.b16 %v3528, %v3526
  %v5381 = vpack.c.b16 %v3531, %v3529
  %v5382 = vpack.c.b16 %v3532, %v3530
  %v5383 = vpack.c.b16 %v3535, %v3533
  %v5384 = vpack.c.b16 %v3536, %v3534
  %v5385 = vpack.c.b16 %v3539, %v3537
  %v5386 = vpack.c.b16 %v3540, %v3538
  %v5387 = vpack.c.b16 %v3543, %v3541
  %v5388 = vpack.c.b16 %v3544, %v3542
  %v5389 = vpack.c.b16 %v3547, %v3545
  %v5390 = vpack.c.b16 %v3548, %v3546
  %v5391 = vpack.c.b16 %v3551, %v3549
  %v5392 = vpack.c.b16 %v3552, %v3550
  %v5393 = vpack.c.b16 %v3555, %v3553
  %v5394 = vpack.c.b16 %v3556, %v3554
  %v5395 = vpack.c.b16 %v3559, %v3557
  %v5396 = vpack.c.b16 %v3560, %v3558
  %v5397 = vpack.c.b16 %v3563, %v3561
  %v5398 = vpack.c.b16 %v3564, %v3562
  %v5399 = vpack.c.b16 %v3567, %v3565
  %v5400 = vpack.c.b16 %v3568, %v3566
  %v5401 = vpack.c.b16 %v3571, %v3569
  %v5402 = vpack.c.b16 %v3572, %v3570
  %v5403 = vpack.c.b16 %v3575, %v3573
  %v5404 = vpack.c.b16 %v3576, %v3574
  %v5405 = vpack.c.b16 %v3579, %v3577
  %v5406 = vpack.c.b16 %v3580, %v3578
  %v5407 = vpack.c.b16 %v3583, %v3581
  %v5408 = vpack.c.b16 %v3584, %v3582
  %v5409 = vpack.c.b16 %v3587, %v3585
  %v5410 = vpack.c.b16 %v3588, %v3586
  %v5411 = vpack.c.b16 %v3591, %v3589
  %v5412 = vpack.c.b16 %v3592, %v3590
  %v5413 = vpack.c.b16 %v3595, %v3593
  %v5414 = vpack.c.b16 %v3596, %v3594
  %v5415 = vpack.c.b16 %v3599, %v3597
  %v5416 = vpack.c.b16 %v3600, %v3598
  %v5417 = vpack.c.b16 %v3603, %v3601
  %v5418 = vpack.c.b16 %v3604, %v3602
  %v5419 = vpack.c.b16 %v3607, %v3605
  %v5420 = vpack.c.b16 %v3608, %v3606
  %v5421 = vpack.c.b16 %v3611, %v3609
  %v5422 = vpack.c.b16 %v3612, %v3610
  %v5423 = vpack.c.b16 %v3615, %v3613
  %v5424 = vpack.c.b16 %v3616, %v3614
  %v5425 = vpack.c.b16 %v3619, %v3617
  %v5426 = vpack.c.b16 %v3620, %v3618
  %v5427 = vpack.c.b16 %v3623, %v3621
  %v5428 = vpack.c.b16 %v3624, %v3622
  %v5429 = vpack.c.b16 %v3627, %v3625
  %v5430 = vpack.c.b16 %v3628, %v3626
  %v5431 = vpack.c.b16 %v3631, %v3629
  %v5432 = vpack.c.b16 %v3632, %v3630
  %v5433 = vpack.c.b16 %v3635, %v3633
  %v5434 = vpack.c.b16 %v3636, %v3634
  %v5435 = vpack.c.b16 %v3639, %v3637
  %v5436 = vpack.c.b16 %v3640, %v3638
  %v5437 = vpack.c.b16 %v3643, %v3641
  %v5438 = vpack.c.b16 %v3644, %v3642
  %v5439 = vpack.c.b16 %v3647, %v3645
  %v5440 = vpack.c.b16 %v3648, %v3646
  %v5441 = vpack.c.b16 %v3651, %v3649
  %v5442 = vpack.c.b16 %v3652, %v3650
  %v5443 = vpack.c.b16 %v3655, %v3653
  %v5444 = vpack.c.b16 %v3656, %v3654
  %v5445 = vpack.c.b16 %v3659, %v3657
  %v5446 = vpack.c.b16 %v3660, %v3658
  %v5447 = vpack.c.b16 %v3663, %v3661
  %v5448 = vpack.c.b16 %v3664, %v3662
  %v5449 = vpack.c.b16 %v3667, %v3665
  %v5450 = vpack.c.b16 %v3668, %v3666
  %v5451 = vpack.c.b16 %v3671, %v3669
  %v5452 = vpack.c.b16 %v3672, %v3670
  %v5453 = vpack.c.b16 %v3675, %v3673
  %v5454 = vpack.c.b16 %v3676, %v3674
  %v5455 = vpack.c.b16 %v3679, %v3677
  %v5456 = vpack.c.b16 %v3680, %v3678
  %v5457 = vpack.c.b16 %v3683, %v3681
  %v5458 = vpack.c.b16 %v3684, %v3682
  %v5459 = vpack.c.b16 %v3687, %v3685
  %v5460 = vpack.c.b16 %v3688, %v3686
  %v5461 = vpack.c.b16 %v3691, %v3689
  %v5462 = vpack.c.b16 %v3692, %v3690
  %v5463 = vpack.c.b16 %v3695, %v3693
  %v5464 = vpack.c.b16 %v3696, %v3694
  %v5465 = vpack.c.b16 %v3699, %v3697
  %v5466 = vpack.c.b16 %v3700, %v3698
  %v5467 = vpack.c.b16 %v3703, %v3701
  %v5468 = vpack.c.b16 %v3704, %v3702
  %v5469 = vpack.c.b16 %v3707, %v3705
  %v5470 = vpack.c.b16 %v3708, %v3706
  %v5471 = vpack.c.b16 %v3711, %v3709
  %v5472 = vpack.c.b16 %v3712, %v3710
  %v5473 = vpack.c.b16 %v3715, %v3713
  %v5474 = vpack.c.b16 %v3716, %v3714
  %v5475 = vpack.c.b16 %v3719, %v3717
  %v5476 = vpack.c.b16 %v3720, %v3718
  %v5477 = vpack.c.b16 %v3723, %v3721
  %v5478 = vpack.c.b16 %v3724, %v3722
  %v5479 = vpack.c.b16 %v3727, %v3725
  %v5480 = vpack.c.b16 %v3728, %v3726
  %v5481 = vpack.c.b16 %v3731, %v3729
  %v5482 = vpack.c.b16 %v3732, %v3730
  %v5483 = vpack.c.b16 %v3735, %v3733
  %v5484 = vpack.c.b16 %v3736, %v3734
  %v5485 = vpack.c.b16 %v3739, %v3737
  %v5486 = vpack.c.b16 %v3740, %v3738
  %v5487 = vpack.c.b16 %v3743, %v3741
  %v5488 = vpack.c.b16 %v3744, %v3742
  %v5489 = vpack.c.b16 %v3747, %v3745
  %v5490 = vpack.c.b16 %v3748, %v3746
  %v5491 = vpack.c.b16 %v3751, %v3749
  %v5492 = vpack.c.b16 %v3752, %v3750
  %v5493 = vpack.c.b16 %v3755, %v3753
  %v5494 = vpack.c.b16 %v3756, %v3754
  %v5495 = vpack.c.b16 %v3759, %v3757
  %v5496 = vpack.c.b16 %v3760, %v3758
  %v5497 = vpack.c.b16 %v3763, %v3761
  %v5498 = vpack.c.b16 %v3764, %v3762
  %v5499 = vpack.c.b16 %v3767, %v3765
  %v5500 = vpack.c.b16 %v3768, %v3766
  %v5501 = vpack.c.b16 %v3771, %v3769
  %v5502 = vpack.c.b16 %v3772, %v3770
  %v5503 = vpack.c.b16 %v3775, %v3773
  %v5504 = vpack.c.b16 %v3776, %v3774
  %v5505 = vpack.c.b16 %v3779, %v3777
  %v5506 = vpack.c.b16 %v3780, %v3778
  %v5507 = vpack.c.b16 %v3783, %v3781
  %v5508 = vpack.c.b16 %v3784, %v3782
  %v5509 = vpack.c.b16 %v3787, %v3785
  %v5510 = vpack.c.b16 %v3788, %v3786
  %v5511 = vpack.c.b16 %v3791, %v3789
  %v5512 = vpack.c.b16 %v3792, %v3790
  %v5513 = vpack.c.b16 %v3795, %v3793
  %v5514 = vpack.c.b16 %v3796, %v3794
  %v5515 = vpack.c.b16 %v3799, %v3797
  %v5516 = vpack.c.b16 %v3800, %v3798
  %v5517 = vpack.c.b16 %v3803, %v3801
  %v5518 = vpack.c.b16 %v3804, %v3802
  %v5519 = vpack.c.b16 %v3807, %v3805
  %v5520 = vpack.c.b16 %v3808, %v3806
  %v5521 = vpack.c.b16 %v3811, %v3809
  %v5522 = vpack.c.b16 %v3812, %v3810
  %v5523 = vpack.c.b16 %v3815, %v3813
  %v5524 = vpack.c.b16 %v3816, %v3814
  %v5525 = vpack.c.b16 %v3819, %v3817
  %v5526 = vpack.c.b16 %v3820, %v3818
  %v5527 = vpack.c.b16 %v3823, %v3821
  %v5528 = vpack.c.b16 %v3824, %v3822
  %v5529 = vpack.c.b16 %v3827, %v3825
  %v5530 = vpack.c.b16 %v3828, %v3826
  %v5531 = vpack.c.b16 %v3831, %v3829
  %v5532 = vpack.c.b16 %v3832, %v3830
  %v5533 = vpack.c.b16 %v3835, %v3833
  %v5534 = vpack.c.b16 %v3836, %v3834
  %v5535 = vpack.c.b16 %v3839, %v3837
  %v5536 = vpack.c.b16 %v3840, %v3838
  %v5537 = vpack.c.b16 %v3843, %v3841
  %v5538 = vpack.c.b16 %v3844, %v3842
  %v5539 = vpack.c.b16 %v3847, %v3845
  %v5540 = vpack.c.b16 %v3848, %v3846
  %v5541 = vpack.c.b16 %v3851, %v3849
  %v5542 = vpack.c.b16 %v3852, %v3850
  %v5543 = vpack.c.b16 %v3855, %v3853
  %v5544 = vpack.c.b16 %v3856, %v3854
  %v5545 = vpack.c.b16 %v3859, %v3857
  %v5546 = vpack.c.b16 %v3860, %v3858
  %v5547 = vpack.c.b16 %v3863, %v3861
  %v5548 = vpack.c.b16 %v3864, %v3862
  %v5549 = vpack.c.b16 %v3867, %v3865
  %v5550 = vpack.c.b16 %v3868, %v3866
  %v5551 = vpack.c.b16 %v3871, %v3869
  %v5552 = vpack.c.b16 %v3872, %v3870
  %v5553 = vpack.c.b16 %v3875, %v3873
  %v5554 = vpack.c.b16 %v3876, %v3874
  %v5555 = vpack.c.b16 %v3879, %v3877
  %v5556 = vpack.c.b16 %v3880, %v3878
  %v5557 = vpack.c.b16 %v3883, %v3881
  %v5558 = vpack.c.b16 %v3884, %v3882
  %v5559 = vpack.c.b16 %v3887, %v3885
  %v5560 = vpack.c.b16 %v3888, %v3886
  %v5561 = vpack.c.b16 %v3891, %v3889
  %v5562 = vpack.c.b16 %v3892, %v3890
  %v5563 = vpack.c.b16 %v3895, %v3893
  %v5564 = vpack.c.b16 %v3896, %v3894
  %v5565 = vpack.c.b16 %v3899, %v3897
  %v5566 = vpack.c.b16 %v3900, %v3898
  %v5567 = vpack.c.b16 %v3903, %v3901
  %v5568 = vpack.c.b16 %v3904, %v3902
  %v5569 = vpack.c.b16 %v3907, %v3905
  %v5570 = vpack.c.b16 %v3908, %v3906
  %v5571 = vpack.c.b16 %v3911, %v3909
  %v5572 = vpack.c.b16 %v3912, %v3910
  %v5573 = vpack.c.b16 %v3915, %v3913
  %v5574 = vpack.c.b16 %v3916, %v3914
  %v5575 = vpack.c.b16 %v3919, %v3917
  %v5576 = vpack.c.b16 %v3920, %v3918
  %v5577 = vpack.c.b16 %v3923, %v3921
  %v5578 = vpack.c.b16 %v3924, %v3922
  %v5579 = vpack.c.b16 %v3927, %v3925
  %v5580 = vpack.c.b16 %v3928, %v3926
  %v5581 = vpack.c.b16 %v3931, %v3929
  %v5582 = vpack.c.b16 %v3932, %v3930
  %v5583 = vpack.c.b16 %v3935, %v3933
  %v5584 = vpack.c.b16 %v3936, %v3934
  %v5585 = vpack.c.b16 %v3939, %v3937
  %v5586 = vpack.c.b16 %v3940, %v3938
  %v5587 = vpack.c.b16 %v3943, %v3941
  %v5588 = vpack.c.b16 %v3944, %v3942
  %v5589 = vpack.c.b16 %v3947, %v3945
  %v5590 = vpack.c.b16 %v3948, %v3946
  %v5591 = vpack.c.b16 %v3951, %v3949
  %v5592 = vpack.c.b16 %v3952, %v3950
  %v5593 = vpack.c.b16 %v3955, %v3953
  %v5594 = vpack.c.b16 %v3956, %v3954
  %v5595 = vpack.c.b16 %v3959, %v3957
  %v5596 = vpack.c.b16 %v3960, %v3958
  %v5597 = vpack.c.b16 %v3963, %v3961
  %v5598 = vpack.c.b16 %v3964, %v3962
  %v5599 = vpack.c.b16 %v3967, %v3965
  %v5600 = vpack.c.b16 %v3968, %v3966
  %v5601 = vpack.c.b16 %v3971, %v3969
  %v5602 = vpack.c.b16 %v3972, %v3970
  %v5603 = vpack.c.b16 %v3975, %v3973
  %v5604 = vpack.c.b16 %v3976, %v3974
  %v5605 = vpack.c.b16 %v3979, %v3977
  %v5606 = vpack.c.b16 %v3980, %v3978
  %v5607 = vpack.c.b16 %v3983, %v3981
  %v5608 = vpack.c.b16 %v3984, %v3982
  %v5609 = vpack.c.b16 %v3987, %v3985
  %v5610 = vpack.c.b16 %v3988, %v3986
  %v5611 = vpack.c.b16 %v3991, %v3989
  %v5612 = vpack.c.b16 %v3992, %v3990
  %v5613 = vpack.c.b16 %v3995, %v3993
  %v5614 = vpack.c.b16 %v3996, %v3994
  %v5615 = vpack.c.b16 %v3999, %v3997
  %v5616 = vpack.c.b16 %v4000, %v3998
  %v5617 = vpack.c.b16 %v4003, %v4001
  %v5618 = vpack.c.b16 %v4004, %v4002
  %v5619 = vpack.c.b16 %v4007, %v4005
  %v5620 = vpack.c.b16 %v4008, %v4006
  %v5621 = vpack.c.b16 %v4011, %v4009
  %v5622 = vpack.c.b16 %v4012, %v4010
  %v5623 = vpack.c.b16 %v4015, %v4013
  %v5624 = vpack.c.b16 %v4016, %v4014
  %v5625 = vpack.c.b16 %v4019, %v4017
  %v5626 = vpack.c.b16 %v4020, %v4018
  %v5627 = vpack.c.b16 %v4023, %v4021
  %v5628 = vpack.c.b16 %v4024, %v4022
  %v5629 = vpack.c.b16 %v4027, %v4025
  %v5630 = vpack.c.b16 %v4028, %v4026
  %v5631 = vpack.c.b16 %v4031, %v4029
  %v5632 = vpack.c.b16 %v4032, %v4030
  %v5633 = vpack.c.b16 %v4035, %v4033
  %v5634 = vpack.c.b16 %v4036, %v4034
  %v5635 = vpack.c.b16 %v4039, %v4037
  %v5636 = vpack.c.b16 %v4040, %v4038
  %v5637 = vpack.c.b16 %v4043, %v4041
  %v5638 = vpack.c.b16 %v4044, %v4042
  %v5639 = vpack.c.b16 %v4047, %v4045
  %v5640 = vpack.c.b16 %v4048, %v4046
  %v5641 = vpack.c.b16 %v4051, %v4049
  %v5642 = vpack.c.b16 %v4052, %v4050
  %v5643 = vpack.c.b16 %v4055, %v4053
  %v5644 = vpack.c.b16 %v4056, %v4054
  %v5645 = vpack.c.b16 %v4059, %v4057
  %v5646 = vpack.c.b16 %v4060, %v4058
  %v5647 = vpack.c.b16 %v4063, %v4061
  %v5648 = vpack.c.b16 %v4064, %v4062
  %v5649 = vpack.c.b16 %v4067, %v4065
  %v5650 = vpack.c.b16 %v4068, %v4066
  %v5651 = vpack.c.b16 %v4071, %v4069
  %v5652 = vpack.c.b16 %v4072, %v4070
  %v5653 = vpack.c.b16 %v4075, %v4073
  %v5654 = vpack.c.b16 %v4076, %v4074
  %v5655 = vpack.c.b16 %v4079, %v4077
  %v5656 = vpack.c.b16 %v4080, %v4078
  %v5657 = vpack.c.b16 %v4083, %v4081
  %v5658 = vpack.c.b16 %v4084, %v4082
  %v5659 = vpack.c.b16 %v4087, %v4085
  %v5660 = vpack.c.b16 %v4088, %v4086
  %v5661 = vpack.c.b16 %v4091, %v4089
  %v5662 = vpack.c.b16 %v4092, %v4090
  %v5663 = vpack.c.b16 %v4095, %v4093
  %v5664 = vpack.c.b16 %v4096, %v4094
  %v5665 = vpack.c.b16 %v4099, %v4097
  %v5666 = vpack.c.b16 %v4100, %v4098
  %v5667 = vpack.c.b16 %v4103, %v4101
  %v5668 = vpack.c.b16 %v4104, %v4102
  %v5669 = vpack.c.b16 %v4107, %v4105
  %v5670 = vpack.c.b16 %v4108, %v4106
  %v5671 = vpack.c.b16 %v4111, %v4109
  %v5672 = vpack.c.b16 %v4112, %v4110
  %v5673 = vpack.c.b16 %v4115, %v4113
  %v5674 = vpack.c.b16 %v4116, %v4114
  %v5675 = vpack.c.b16 %v4119, %v4117
  %v5676 = vpack.c.b16 %v4120, %v4118
  %v5677 = vpack.c.b16 %v4123, %v4121
  %v5678 = vpack.c.b16 %v4124, %v4122
  %v5679 = vpack.c.b16 %v4127, %v4125
  %v5680 = vpack.c.b16 %v4128, %v4126
  %v5681 = vpack.c.b16 %v4131, %v4129
  %v5682 = vpack.c.b16 %v4132, %v4130
  %v5683 = vpack.c.b16 %v4135, %v4133
  %v5684 = vpack.c.b16 %v4136, %v4134
  %v5685 = vpack.c.b16 %v4139, %v4137
  %v5686 = vpack.c.b16 %v4140, %v4138
  %v5687 = vpack.c.b16 %v4143, %v4141
  %v5688 = vpack.c.b16 %v4144, %v4142
  %v5689 = vpack.c.b16 %v4147, %v4145
  %v5690 = vpack.c.b16 %v4148, %v4146
  %v5691 = vpack.c.b16 %v4151, %v4149
  %v5692 = vpack.c.b16 %v4152, %v4150
  %v5693 = vpack.c.b16 %v4155, %v4153
  %v5694 = vpack.c.b16 %v4156, %v4154
  %v5695 = vpack.c.b16 %v4159, %v4157
  %v5696 = vpack.c.b16 %v4160, %v4158
  %v5697 = vpack.c.b16 %v4163, %v4161
  %v5698 = vpack.c.b16 %v4164, %v4162
  %v5699 = vpack.c.b16 %v4167, %v4165
  %v5700 = vpack.c.b16 %v4168, %v4166
  %v5701 = vpack.c.b16 %v4171, %v4169
  %v5702 = vpack.c.b16 %v4172, %v4170
  %v5703 = vpack.c.b16 %v4175, %v4173
  %v5704 = vpack.c.b16 %v4176, %v4174
  %v5705 = vpack.c.b16 %v4179, %v4177
  %v5706 = vpack.c.b16 %v4180, %v4178
  %v5707 = vpack.c.b16 %v4183, %v4181
  %v5708 = vpack.c.b16 %v4184, %v4182
  %v5709 = vpack.c.b16 %v4187, %v4185
  %v5710 = vpack.c.b16 %v4188, %v4186
  %v5711 = vpack.c.b16 %v4191, %v4189
  %v5712 = vpack.c.b16 %v4192, %v4190
  %v5713 = vpack.c.b16 %v4195, %v4193
  %v5714 = vpack.c.b16 %v4196, %v4194
  %v5715 = vpack.c.b16 %v4199, %v4197
  %v5716 = vpack.c.b16 %v4200, %v4198
  %v5717 = vpack.c.b16 %v4203, %v4201
  %v5718 = vpack.c.b16 %v4204, %v4202
  %v5719 = vpack.c.b16 %v4207, %v4205
  %v5720 = vpack.c.b16 %v4208, %v4206
  %v5721 = vpack.c.b16 %v4211, %v4209
  %v5722 = vpack.c.b16 %v4212, %v4210
  %v5723 = vpack.c.b16 %v4215, %v4213
  %v5724 = vpack.c.b16 %v4216, %v4214
  %v5725 = vpack.c.b16 %v4219, %v4217
  %v5726 = vpack.c.b16 %v4220, %v4218
  %v5727 = vpack.c.b16 %v4223, %v4221
  %v5728 = vpack.c.b16 %v4224, %v4222
  %v5729 = vpack.c.b16 %v4227, %v4225
  %v5730 = vpack.c.b16 %v4228, %v4226
  %v5731 = vpack.c.b16 %v4231, %v4229
  %v5732 = vpack.c.b16 %v4232, %v4230
  %v5733 = vpack.c.b16 %v4235, %v4233
  %v5734 = vpack.c.b16 %v4236, %v4234
  %v5735 = vpack.c.b16 %v4239, %v4237
  %v5736 = vpack.c.b16 %v4240, %v4238
  %v5737 = vpack.c.b16 %v4243, %v4241
  %v5738 = vpack.c.b16 %v4244, %v4242
  %v5739 = vpack.c.b16 %v4247, %v4245
  %v5740 = vpack.c.b16 %v4248, %v4246
  %v5741 = vpack.c.b16 %v4251, %v4249
  %v5742 = vpack.c.b16 %v4252, %v4250
  %v5743 = vpack.c.b16 %v4255, %v4253
  %v5744 = vpack.c.b16 %v4256, %v4254
  %v5745 = vpack.c.b16 %v4259, %v4257
  %v5746 = vpack.c.b16 %v4260, %v4258
  %v5747 = vpack.c.b16 %v4263, %v4261
  %v5748 = vpack.c.b16 %v4264, %v4262
  %v5749 = vpack.c.b16 %v4267, %v4265
  %v5750 = vpack.c.b16 %v4268, %v4266
  %v5751 = vpack.c.b16 %v4271, %v4269
  %v5752 = vpack.c.b16 %v4272, %v4270
  %v5753 = vpack.c.b16 %v4275, %v4273
  %v5754 = vpack.c.b16 %v4276, %v4274
  %v5755 = vpack.c.b16 %v4279, %v4277
  %v5756 = vpack.c.b16 %v4280, %v4278
  %v5757 = vpack.c.b16 %v4283, %v4281
  %v5758 = vpack.c.b16 %v4284, %v4282
  %v5759 = vpack.c.b16 %v4287, %v4285
  %v5760 = vpack.c.b16 %v4288, %v4286
  %v5761 = vpack.c.b16 %v4291, %v4289
  %v5762 = vpack.c.b16 %v4292, %v4290
  %v5763 = vpack.c.b16 %v4295, %v4293
  %v5764 = vpack.c.b16 %v4296, %v4294
  %v5765 = vpack.c.b16 %v4299, %v4297
  %v5766 = vpack.c.b16 %v4300, %v4298
  %v5767 = vpack.c.b16 %v4303, %v4301
  %v5768 = vpack.c.b16 %v4304, %v4302
  %v5769 = vpack.c.b16 %v4307, %v4305
  %v5770 = vpack.c.b16 %v4308, %v4306
  %v5771 = vpack.c.b16 %v4311, %v4309
  %v5772 = vpack.c.b16 %v4312, %v4310
  %v5773 = vpack.c.b16 %v4315, %v4313
  %v5774 = vpack.c.b16 %v4316, %v4314
  %v5775 = vpack.c.b16 %v4319, %v4317
  %v5776 = vpack.c.b16 %v4320, %v4318
  %v5777 = vpack.c.b16 %v4323, %v4321
  %v5778 = vpack.c.b16 %v4324, %v4322
  %v5779 = vpack.c.b16 %v4327, %v4325
  %v5780 = vpack.c.b16 %v4328, %v4326
  %v5781 = vpack.c.b16 %v4331, %v4329
  %v5782 = vpack.c.b16 %v4332, %v4330
  %v5783 = vpack.c.b16 %v4335, %v4333
  %v5784 = vpack.c.b16 %v4336, %v4334
  %v5785 = vpack.c.b16 %v4339, %v4337
  %v5786 = vpack.c.b16 %v4340, %v4338
  %v5787 = vpack.c.b16 %v4343, %v4341
  %v5788 = vpack.c.b16 %v4344, %v4342
  %v5789 = vpack.c.b16 %v4347, %v4345
  %v5790 = vpack.c.b16 %v4348, %v4346
  %v5791 = vpack.c.b16 %v4351, %v4349
  %v5792 = vpack.c.b16 %v4352, %v4350
  %v5793 = vpack.c.b16 %v4355, %v4353
  %v5794 = vpack.c.b16 %v4356, %v4354
  %v5795 = vpack.c.b16 %v4359, %v4357
  %v5796 = vpack.c.b16 %v4360, %v4358
  %v5797 = vpack.c.b16 %v4363, %v4361
  %v5798 = vpack.c.b16 %v4364, %v4362
  %v5799 = vpack.c.b16 %v4367, %v4365
  %v5800 = vpack.c.b16 %v4368, %v4366
  %v5801 = vpack.c.b16 %v4371, %v4369
  %v5802 = vpack.c.b16 %v4372, %v4370
  %v5803 = vpack.c.b16 %v4375, %v4373
  %v5804 = vpack.c.b16 %v4376, %v4374
  %v5805 = vpack.c.b16 %v4379, %v4377
  %v5806 = vpack.c.b16 %v4380, %v4378
  %v5807 = vpack.c.b16 %v4383, %v4381
  %v5808 = vpack.c.b16 %v4384, %v4382
  %v5809 = vpack.c.b16 %v4387, %v4385
  %v5810 = vpack.c.b16 %v4388, %v4386
  %v5811 = vpack.c.b16 %v4391, %v4389
  %v5812 = vpack.c.b16 %v4392, %v4390
  %v5813 = vpack.c.b16 %v4395, %v4393
  %v5814 = vpack.c.b16 %v4396, %v4394
  %v5815 = vpack.c.b16 %v4399, %v4397
  %v5816 = vpack.c.b16 %v4400, %v4398
  %v5817 = vpack.c.b16 %v4403, %v4401
  %v5818 = vpack.c.b16 %v4404, %v4402
  %v5819 = vpack.c.b16 %v4407, %v4405
  %v5820 = vpack.c.b16 %v4408, %v4406
  %v5821 = vpack.c.b16 %v4411, %v4409
  %v5822 = vpack.c.b16 %v4412, %v4410
  %v5823 = vpack.c.b16 %v4415, %v4413
  %v5824 = vpack.c.b16 %v4416, %v4414
  %v5825 = vpack.c.b16 %v4419, %v4417
  %v5826 = vpack.c.b16 %v4420, %v4418
  %v5827 = vpack.c.b16 %v4423, %v4421
  %v5828 = vpack.c.b16 %v4424, %v4422
  %v5829 = vpack.c.b16 %v4427, %v4425
  %v5830 = vpack.c.b16 %v4428, %v4426
  %v5831 = vpack.c.b16 %v4431, %v4429
  %v5832 = vpack.c.b16 %v4432, %v4430
  %v5833 = vpack.c.b16 %v4435, %v4433
  %v5834 = vpack.c.b16 %v4436, %v4434
  %v5835 = vpack.c.b16 %v4439, %v4437
  %v5836 = vpack.c.b16 %v4440, %v4438
  %v5837 = vpack.c.b16 %v4443, %v4441
  %v5838 = vpack.c.b16 %v4444, %v4442
  %v5839 = vpack.c.b16 %v4447, %v4445
  %v5840 = vpack.c.b16 %v4448, %v4446
  %v5841 = vpack.c.b16 %v4451, %v4449
  %v5842 = vpack.c.b16 %v4452, %v4450
  %v5843 = vpack.c.b16 %v4455, %v4453
  %v5844 = vpack.c.b16 %v4456, %v4454
  %v5845 = vpack.c.b16 %v4459, %v4457
  %v5846 = vpack.c.b16 %v4460, %v4458
  %v5847 = vpack.c.b16 %v4463, %v4461
  %v5848 = vpack.c.b16 %v4464, %v4462
  %v5849 = vpack.c.b16 %v4467, %v4465
  %v5850 = vpack.c.b16 %v4468, %v4466
  %v5851 = vpack.c.b16 %v4471, %v4469
  %v5852 = vpack.c.b16 %v4472, %v4470
  %v5853 = vpack.c.b16 %v4475, %v4473
  %v5854 = vpack.c.b16 %v4476, %v4474
  %v5855 = vpack.c.b16 %v4479, %v4477
  %v5856 = vpack.c.b16 %v4480, %v4478
  %v5857 = vpack.c.b16 %v4483, %v4481
  %v5858 = vpack.c.b16 %v4484, %v4482
  %v5859 = vpack.c.b16 %v4487, %v4485
  %v5860 = vpack.c.b16 %v4488, %v4486
  %v5861 = vpack.c.b16 %v4491, %v4489
  %v5862 = vpack.c.b16 %v4492, %v4490
  %v5863 = vpack.c.b16 %v4495, %v4493
  %v5864 = vpack.c.b16 %v4496, %v4494
  %v5865 = vpack.c.b16 %v4499, %v4497
  %v5866 = vpack.c.b16 %v4500, %v4498
  %v5867 = vpack.c.b16 %v4503, %v4501
  %v5868 = vpack.c.b16 %v4504, %v4502
  %v5869 = vpack.c.b16 %v4507, %v4505
  %v5870 = vpack.c.b16 %v4508, %v4506
  %v5871 = vpack.c.b16 %v4511, %v4509
  %v5872 = vpack.c.b16 %v4512, %v4510
  %v5873 = vpack.c.b16 %v4515, %v4513
  %v5874 = vpack.c.b16 %v4516, %v4514
  %v5875 = vpack.c.b16 %v4519, %v4517
  %v5876 = vpack.c.b16 %v4520, %v4518
  %v5877 = vpack.c.b16 %v4523, %v4521
  %v5878 = vpack.c.b16 %v4524, %v4522
  %v5879 = vpack.c.b16 %v4527, %v4525
  %v5880 = vpack.c.b16 %v4528, %v4526
  %v5881 = vpack.c.b16 %v4531, %v4529
  %v5882 = vpack.c.b16 %v4532, %v4530
  %v5883 = vpack.c.b16 %v4535, %v4533
  %v5884 = vpack.c.b16 %v4536, %v4534
  %v5885 = vpack.c.b16 %v4539, %v4537
  %v5886 = vpack.c.b16 %v4540, %v4538
  %v5887 = vpack.c.b16 %v4543, %v4541
  %v5888 = vpack.c.b16 %v4544, %v4542
  %v5889 = vpack.c.b16 %v4547, %v4545
  %v5890 = vpack.c.b16 %v4548, %v4546
  %v5891 = vpack.c.b16 %v4551, %v4549
  %v5892 = vpack.c.b16 %v4552, %v4550
  %v5893 = vpack.c.b16 %v4555, %v4553
  %v5894 = vpack.c.b16 %v4556, %v4554
  %v5895 = vpack.c.b16 %v4559, %v4557
  %v5896 = vpack.c.b16 %v4560, %v4558
  %v5897 = vpack.c.b16 %v4563, %v4561
  %v5898 = vpack.c.b16 %v4564, %v4562
  %v5899 = vpack.c.b16 %v4567, %v4565
  %v5900 = vpack.c.b16 %v4568, %v4566
  %v5901 = vpack.c.b16 %v4571, %v4569
  %v5902 = vpack.c.b16 %v4572, %v4570
  %v5903 = vpack.c.b16 %v4575, %v4573
  %v5904 = vpack.c.b16 %v4576, %v4574
  %v5905 = vpack.c.b16 %v4579, %v4577
  %v5906 = vpack.c.b16 %v4580, %v4578
  %v5907 = vpack.c.b16 %v4583, %v4581
  %v5908 = vpack.c.b16 %v4584, %v4582
  %v5909 = vpack.c.b16 %v4587, %v4585
  %v5910 = vpack.c.b16 %v4588, %v4586
  %v5911 = vpack.c.b16 %v4591, %v4589
  %v5912 = vpack.c.b16 %v4592, %v4590
  %v5913 = vpack.c.b16 %v4595, %v4593
  %v5914 = vpack.c.b16 %v4596, %v4594
  %v5915 = vpack.c.b16 %v4599, %v4597
  %v5916 = vpack.c.b16 %v4600, %v4598
  %v5917 = vpack.c.b16 %v4603, %v4601
  %v5918 = vpack.c.b16 %v4604, %v4602
  %v5919 = vpack.c.b16 %v4607, %v4605
  %v5920 = vpack.c.b16 %v4608, %v4606
  %v5921 = vpack.c.b16 %v4611, %v4609
  %v5922 = vpack.c.b16 %v4612, %v4610
  %v5923 = vpack.c.b16 %v4615, %v4613
  %v5924 = vpack.c.b16 %v4616, %v4614
  %v5925 = vpack.c.b16 %v4619, %v4617
  %v5926 = vpack.c.b16 %v4620, %v4618
  %v5927 = vpack.c.b16 %v4623, %v4621
  %v5928 = vpack.c.b16 %v4624, %v4622
  %v5929 = vpack.c.b16 %v4627, %v4625
  %v5930 = vpack.c.b16 %v4628, %v4626
  %v5931 = vpack.c.b16 %v4631, %v4629
  %v5932 = vpack.c.b16 %v4632, %v4630
  %v5933 = vpack.c.b16 %v4635, %v4633
  %v5934 = vpack.c.b16 %v4636, %v4634
  %v5935 = vpack.c.b16 %v4639, %v4637
  %v5936 = vpack.c.b16 %v4640, %v4638
  %v5937 = vpack.c.b16 %v4643, %v4641
  %v5938 = vpack.c.b16 %v4644, %v4642
  %v5939 = vpack.c.b16 %v4647, %v4645
  %v5940 = vpack.c.b16 %v4648, %v4646
  %v5941 = vpack.c.b16 %v4651, %v4649
  %v5942 = vpack.c.b16 %v4652, %v4650
  %v5943 = vpack.c.b16 %v4655, %v4653
  %v5944 = vpack.c.b16 %v4656, %v4654
  %v5945 = vpack.c.b16 %v4659, %v4657
  %v5946 = vpack.c.b16 %v4660, %v4658
  %v5947 = vpack.c.b16 %v4663, %v4661
  %v5948 = vpack.c.b16 %v4664, %v4662
  %v5949 = vpack.c.b16 %v4667, %v4665
  %v5950 = vpack.c.b16 %v4668, %v4666
  %v5951 = vpack.c.b16 %v4671, %v4669
  %v5952 = vpack.c.b16 %v4672, %v4670
  %v5953 = vpack.c.b16 %v4675, %v4673
  %v5954 = vpack.c.b16 %v4676, %v4674
  %v5955 = vpack.c.b16 %v4679, %v4677
  %v5956 = vpack.c.b16 %v4680, %v4678
  %v5957 = vpack.c.b16 %v4683, %v4681
  %v5958 = vpack.c.b16 %v4684, %v4682
  %v5959 = vpack.c.b16 %v4687, %v4685
  %v5960 = vpack.c.b16 %v4688, %v4686
  %v5961 = vpack.c.b16 %v4691, %v4689
  %v5962 = vpack.c.b16 %v4692, %v4690
  %v5963 = vpack.c.b16 %v4695, %v4693
  %v5964 = vpack.c.b16 %v4696, %v4694
  %v5965 = vpack.c.b16 %v4699, %v4697
  %v5966 = vpack.c.b16 %v4700, %v4698
  %v5967 = vpack.c.b16 %v4703, %v4701
  %v5968 = vpack.c.b16 %v4704, %v4702
  %v5969 = vpack.c.b16 %v4707, %v4705
  %v5970 = vpack.c.b16 %v4708, %v4706
  %v5971 = vpack.c.b16 %v4711, %v4709
  %v5972 = vpack.c.b16 %v4712, %v4710
  %v5973 = vpack.c.b16 %v4715, %v4713
  %v5974 = vpack.c.b16 %v4716, %v4714
  %v5975 = vpack.c.b16 %v4719, %v4717
  %v5976 = vpack.c.b16 %v4720, %v4718
  %v5977 = vpack.c.b16 %v4723, %v4721
  %v5978 = vpack.c.b16 %v4724, %v4722
  %v5979 = vpack.c.b16 %v4727, %v4725
  %v5980 = vpack.c.b16 %v4728, %v4726
  %v5981 = vpack.c.b16 %v4731, %v4729
  %v5982 = vpack.c.b16 %v4732, %v4730
  %v5983 = vpack.c.b16 %v4735, %v4733
  %v5984 = vpack.c.b16 %v4736, %v4734
  %v5985 = vpack.c.b16 %v4739, %v4737
  %v5986 = vpack.c.b16 %v4740, %v4738
  %v5987 = vpack.c.b16 %v4743, %v4741
  %v5988 = vpack.c.b16 %v4744, %v4742
  %v5989 = vpack.c.b16 %v4747, %v4745
  %v5990 = vpack.c.b16 %v4748, %v4746
  %v5991 = vpack.c.b16 %v4751, %v4749
  %v5992 = vpack.c.b16 %v4752, %v4750
  %v5993 = vpack.c.b16 %v4755, %v4753
  %v5994 = vpack.c.b16 %v4756, %v4754
  %v5995 = vpack.c.b16 %v4759, %v4757
  %v5996 = vpack.c.b16 %v4760, %v4758
  %v5997 = vpack.c.b16 %v4763, %v4761
  %v5998 = vpack.c.b16 %v4764, %v4762
  %v5999 = vpack.c.b16 %v4767, %v4765
  %v6000 = vpack.c.b16 %v4768, %v4766
  %v6001 = vpack.c.b16 %v4771, %v4769
  %v6002 = vpack.c.b16 %v4772, %v4770
  %v6003 = vpack.c.b16 %v4775, %v4773
  %v6004 = vpack.c.b16 %v4776, %v4774
  %v6005 = vpack.c.b16 %v4779, %v4777
  %v6006 = vpack.c.b16 %v4780, %v4778
  %v6007 = vpack.c.b16 %v4783, %v4781
  %v6008 = vpack.c.b16 %v4784, %v4782
  %v6009 = vpack.c.b16 %v4787, %v4785
  %v6010 = vpack.c.b16 %v4788, %v4786
  %v6011 = vpack.c.b16 %v4791, %v4789
  %v6012 = vpack.c.b16 %v4792, %v4790
  %v6013 = vpack.c.b16 %v4795, %v4793
  %v6014 = vpack.c.b16 %v4796, %v4794
  %v6015 = vpack.c.b16 %v4799, %v4797
  %v6016 = vpack.c.b16 %v4800, %v4798
  %v6017 = vpack.c.b16 %v4803, %v4801
  %v6018 = vpack.c.b16 %v4804, %v4802
  %v6019 = vpack.c.b16 %v4807, %v4805
  %v6020 = vpack.c.b16 %v4808, %v4806
  %v6021 = vpack.c.b16 %v4811, %v4809
  %v6022 = vpack.c.b16 %v4812, %v4810
  %v6023 = vpack.c.b16 %v4815, %v4813
  %v6024 = vpack.c.b16 %v4816, %v4814
  %v6025 = vpack.c.b16 %v4819, %v4817
  %v6026 = vpack.c.b16 %v4820, %v4818
  %v6027 = vpack.c.b16 %v4823, %v4821
  %v6028 = vpack.c.b16 %v4824, %v4822
  %v6029 = vpack.c.b16 %v4827, %v4825
  %v6030 = vpack.c.b16 %v4828, %v4826
  %v6031 = vpack.c.b16 %v4831, %v4829
  %v6032 = vpack.c.b16 %v4832, %v4830
  %v6033 = vpack.c.b16 %v4835, %v4833
  %v6034 = vpack.c.b16 %v4836, %v4834
  %v6035 = vpack.c.b16 %v4839, %v4837
  %v6036 = vpack.c.b16 %v4840, %v4838
  %v6037 = vpack.c.b16 %v4843, %v4841
  %v6038 = vpack.c.b16 %v4844, %v4842
  %v6039 = vpack.c.b16 %v4847, %v4845
  %v6040 = vpack.c.b16 %v4848, %v4846
  %v6041 = vpack.c.b16 %v4851, %v4849
  %v6042 = vpack.c.b16 %v4852, %v4850
  %v6043 = vpack.c.b16 %v4855, %v4853
  %v6044 = vpack.c.b16 %v4856, %v4854
  %v6045 = vpack.c.b16 %v4859, %v4857
  %v6046 = vpack.c.b16 %v4860, %v4858
  %v6047 = vpack.c.b16 %v4863, %v4861
  %v6048 = vpack.c.b16 %v4864, %v4862
  %v6049 = vpack.c.b16 %v4867, %v4865
  %v6050 = vpack.c.b16 %v4868, %v4866
  %v6051 = vpack.c.b16 %v4871, %v4869
  %v6052 = vpack.c.b16 %v4872, %v4870
  %v6053 = vpack.c.b16 %v4875, %v4873
  %v6054 = vpack.c.b16 %v4876, %v4874
  %v6055 = vpack.c.b16 %v4879, %v4877
  %v6056 = vpack.c.b16 %v4880, %v4878
  %v6057 = vpack.c.b16 %v4883, %v4881
  %v6058 = vpack.c.b16 %v4884, %v4882
  %v6059 = vpack.c.b16 %v4887, %v4885
  %v6060 = vpack.c.b16 %v4888, %v4886
  %v6061 = vpack.c.b16 %v4891, %v4889
  %v6062 = vpack.c.b16 %v4892, %v4890
  %v6063 = vpack.c.b16 %v4895, %v4893
  %v6064 = vpack.c.b16 %v4896, %v4894
  %v6065 = vpack.c.b16 %v4899, %v4897
  %v6066 = vpack.c.b16 %v4900, %v4898
  %v6067 = vpack.c.b16 %v4903, %v4901
  %v6068 = vpack.c.b16 %v4904, %v4902
  %v6069 = vpack.c.b16 %v4907, %v4905
  %v6070 = vpack.c.b16 %v4908, %v4906
  %v6071 = vpack.c.b16 %v4911, %v4909
  %v6072 = vpack.c.b16 %v4912, %v4910
  %v6073 = vpack.c.b16 %v4915, %v4913
  %v6074 = vpack.c.b16 %v4916, %v4914
  %v6075 = vpack.c.b16 %v4919, %v4917
  %v6076 = vpack.c.b16 %v4920, %v4918
  %v6077 = vpack.c.b16 %v4923, %v4921
  %v6078 = vpack.c.b16 %v4924, %v4922
  %v6079 = vpack.c.b16 %v4927, %v4925
  %v6080 = vpack.c.b16 %v4928, %v4926
  %7233 = vmatprep.subr.bf16.mxu0 %v4944
  %7234 = vmatpush1.bf16.msra.mxu0 %v4943
  %7235 = vmatprep.subr.bf16.mxu0 %v4942
  %7236 = vmatpush1.bf16.msra.mxu0 %v4941
  %7237 = vmatprep.subr.bf16.mxu0 %v4940
  %7238 = vmatpush1.bf16.msra.mxu0 %v4939
  %7239 = vmatprep.subr.bf16.mxu0 %v4938
  %7240 = vmatpush1.bf16.msra.mxu0 %v4937
  %7241 = vmatprep.subr.bf16.mxu0 %v4936
  %7242 = vmatpush1.bf16.msra.mxu0 %v4935
  %7243 = vmatprep.subr.bf16.mxu0 %v4934
  %7244 = vmatpush1.bf16.msra.mxu0 %v4933
  %7245 = vmatprep.subr.bf16.mxu0 %v4932
  %7246 = vmatpush1.bf16.msra.mxu0 %v4931
  %7247 = vmatprep.subr.bf16.mxu0 %v4930
  %7248 = vmatpush1.bf16.msra.mxu0 %v4929
  %7249 = vmatprep.subr.bf16.mxu0 %v4960
  %7250 = vmatpush2.bf16.msra.mxu0 %v4959
  %7251 = vmatprep.subr.bf16.mxu0 %v4958
  %7252 = vmatpush2.bf16.msra.mxu0 %v4957
  %7253 = vmatprep.subr.bf16.mxu0 %v4956
  %7254 = vmatpush2.bf16.msra.mxu0 %v4955
  %7255 = vmatprep.subr.bf16.mxu0 %v4954
  %7256 = vmatpush2.bf16.msra.mxu0 %v4953
  %7257 = vmatprep.subr.bf16.mxu0 %v4952
  %7258 = vmatpush2.bf16.msra.mxu0 %v4951
  %7259 = vmatprep.subr.bf16.mxu0 %v4950
  %7260 = vmatpush2.bf16.msra.mxu0 %v4949
  %7261 = vmatprep.subr.bf16.mxu0 %v4948
  %7262 = vmatpush2.bf16.msra.mxu0 %v4947
  %7263 = vmatprep.subr.bf16.mxu0 %v4946
  %7264 = vmatpush2.bf16.msra.mxu0 %v4945
  %7265 = vmatprep.mubr.bf16.mxu0 %v1330
  %7266 = vmatmul.mubr.bf16.gmra.mxu0 %v1329
  %v7267 = vpop.f32.mrf.mxu0
  %v7268 = vadd.f32 %v1214, %v7267
  %v7269 = vpop.f32.mrf.mxu0
  %v7270 = vadd.f32 %v1218, %v7269
  %v7271 = vpop.f32.mrf.mxu0
  %v7272 = vpop.f32.mrf.mxu0
  %7273 = vdwg.mxu0
  %7274 = vmatprep.subr.bf16.mxu0 %v4976
  %7275 = vmatpush1.bf16.msra.mxu0 %v4975
  %7276 = vmatprep.subr.bf16.mxu0 %v4974
  %7277 = vmatpush1.bf16.msra.mxu0 %v4973
  %7278 = vmatprep.subr.bf16.mxu0 %v4972
  %7279 = vmatpush1.bf16.msra.mxu0 %v4971
  %7280 = vmatprep.subr.bf16.mxu0 %v4970
  %7281 = vmatpush1.bf16.msra.mxu0 %v4969
  %7282 = vmatprep.subr.bf16.mxu0 %v4968
  %7283 = vmatpush1.bf16.msra.mxu0 %v4967
  %7284 = vmatprep.subr.bf16.mxu0 %v4966
  %7285 = vmatpush1.bf16.msra.mxu0 %v4965
  %7286 = vmatprep.subr.bf16.mxu0 %v4964
  %7287 = vmatpush1.bf16.msra.mxu0 %v4963
  %7288 = vmatprep.subr.bf16.mxu0 %v4962
  %7289 = vmatpush1.bf16.msra.mxu0 %v4961
  %7290 = vmatprep.subr.bf16.mxu0 %v4992
  %7291 = vmatpush2.bf16.msra.mxu0 %v4991
  %7292 = vmatprep.subr.bf16.mxu0 %v4990
  %7293 = vmatpush2.bf16.msra.mxu0 %v4989
  %7294 = vmatprep.subr.bf16.mxu0 %v4988
  %7295 = vmatpush2.bf16.msra.mxu0 %v4987
  %7296 = vmatprep.subr.bf16.mxu0 %v4986
  %7297 = vmatpush2.bf16.msra.mxu0 %v4985
  %7298 = vmatprep.subr.bf16.mxu0 %v4984
  %7299 = vmatpush2.bf16.msra.mxu0 %v4983
  %7300 = vmatprep.subr.bf16.mxu0 %v4982
  %7301 = vmatpush2.bf16.msra.mxu0 %v4981
  %7302 = vmatprep.subr.bf16.mxu0 %v4980
  %7303 = vmatpush2.bf16.msra.mxu0 %v4979
  %7304 = vmatprep.subr.bf16.mxu0 %v4978
  %7305 = vmatpush2.bf16.msra.mxu0 %v4977
  %7306 = vmatprep.mubr.bf16.mxu0 %v1332
  %7307 = vmatmul.mubr.bf16.gmra.mxu0 %v1331
  %v7308 = vpop.f32.mrf.mxu0
  %v7309 = vadd.f32 %v7268, %v7308
  %v7310 = vpop.f32.mrf.mxu0
  %v7311 = vadd.f32 %v7270, %v7310
  %v7312 = vpop.f32.mrf.mxu0
  %v7313 = vpop.f32.mrf.mxu0
  %7314 = vdwg.mxu0
  %7315 = vmatprep.subr.bf16.mxu0 %v5008
  %7316 = vmatpush1.bf16.msra.mxu0 %v5007
  %7317 = vmatprep.subr.bf16.mxu0 %v5006
  %7318 = vmatpush1.bf16.msra.mxu0 %v5005
  %7319 = vmatprep.subr.bf16.mxu0 %v5004
  %7320 = vmatpush1.bf16.msra.mxu0 %v5003
  %7321 = vmatprep.subr.bf16.mxu0 %v5002
  %7322 = vmatpush1.bf16.msra.mxu0 %v5001
  %7323 = vmatprep.subr.bf16.mxu0 %v5000
  %7324 = vmatpush1.bf16.msra.mxu0 %v4999
  %7325 = vmatprep.subr.bf16.mxu0 %v4998
  %7326 = vmatpush1.bf16.msra.mxu0 %v4997
  %7327 = vmatprep.subr.bf16.mxu0 %v4996
  %7328 = vmatpush1.bf16.msra.mxu0 %v4995
  %7329 = vmatprep.subr.bf16.mxu0 %v4994
  %7330 = vmatpush1.bf16.msra.mxu0 %v4993
  %7331 = vmatprep.subr.bf16.mxu0 %v5024
  %7332 = vmatpush2.bf16.msra.mxu0 %v5023
  %7333 = vmatprep.subr.bf16.mxu0 %v5022
  %7334 = vmatpush2.bf16.msra.mxu0 %v5021
  %7335 = vmatprep.subr.bf16.mxu0 %v5020
  %7336 = vmatpush2.bf16.msra.mxu0 %v5019
  %7337 = vmatprep.subr.bf16.mxu0 %v5018
  %7338 = vmatpush2.bf16.msra.mxu0 %v5017
  %7339 = vmatprep.subr.bf16.mxu0 %v5016
  %7340 = vmatpush2.bf16.msra.mxu0 %v5015
  %7341 = vmatprep.subr.bf16.mxu0 %v5014
  %7342 = vmatpush2.bf16.msra.mxu0 %v5013
  %7343 = vmatprep.subr.bf16.mxu0 %v5012
  %7344 = vmatpush2.bf16.msra.mxu0 %v5011
  %7345 = vmatprep.subr.bf16.mxu0 %v5010
  %7346 = vmatpush2.bf16.msra.mxu0 %v5009
  %7347 = vmatprep.mubr.bf16.mxu0 %v1334
  %7348 = vmatmul.mubr.bf16.gmra.mxu0 %v1333
  %v7349 = vpop.f32.mrf.mxu0
  %v7350 = vadd.f32 %v7309, %v7349
  %v7351 = vpop.f32.mrf.mxu0
  %v7352 = vadd.f32 %v7311, %v7351
  %v7353 = vpop.f32.mrf.mxu0
  %v7354 = vpop.f32.mrf.mxu0
  %7355 = vdwg.mxu0
  %7356 = vmatprep.subr.bf16.mxu0 %v5040
  %7357 = vmatpush1.bf16.msra.mxu0 %v5039
  %7358 = vmatprep.subr.bf16.mxu0 %v5038
  %7359 = vmatpush1.bf16.msra.mxu0 %v5037
  %7360 = vmatprep.subr.bf16.mxu0 %v5036
  %7361 = vmatpush1.bf16.msra.mxu0 %v5035
  %7362 = vmatprep.subr.bf16.mxu0 %v5034
  %7363 = vmatpush1.bf16.msra.mxu0 %v5033
  %7364 = vmatprep.subr.bf16.mxu0 %v5032
  %7365 = vmatpush1.bf16.msra.mxu0 %v5031
  %7366 = vmatprep.subr.bf16.mxu0 %v5030
  %7367 = vmatpush1.bf16.msra.mxu0 %v5029
  %7368 = vmatprep.subr.bf16.mxu0 %v5028
  %7369 = vmatpush1.bf16.msra.mxu0 %v5027
  %7370 = vmatprep.subr.bf16.mxu0 %v5026
  %7371 = vmatpush1.bf16.msra.mxu0 %v5025
  %7372 = vmatprep.subr.bf16.mxu0 %v5056
  %7373 = vmatpush2.bf16.msra.mxu0 %v5055
  %7374 = vmatprep.subr.bf16.mxu0 %v5054
  %7375 = vmatpush2.bf16.msra.mxu0 %v5053
  %7376 = vmatprep.subr.bf16.mxu0 %v5052
  %7377 = vmatpush2.bf16.msra.mxu0 %v5051
  %7378 = vmatprep.subr.bf16.mxu0 %v5050
  %7379 = vmatpush2.bf16.msra.mxu0 %v5049
  %7380 = vmatprep.subr.bf16.mxu0 %v5048
  %7381 = vmatpush2.bf16.msra.mxu0 %v5047
  %7382 = vmatprep.subr.bf16.mxu0 %v5046
  %7383 = vmatpush2.bf16.msra.mxu0 %v5045
  %7384 = vmatprep.subr.bf16.mxu0 %v5044
  %7385 = vmatpush2.bf16.msra.mxu0 %v5043
  %7386 = vmatprep.subr.bf16.mxu0 %v5042
  %7387 = vmatpush2.bf16.msra.mxu0 %v5041
  %7388 = vmatprep.mubr.bf16.mxu0 %v1336
  %7389 = vmatmul.mubr.bf16.gmra.mxu0 %v1335
  %v7390 = vpop.f32.mrf.mxu0
  %v7391 = vadd.f32 %v7350, %v7390
  %v7392 = vpop.f32.mrf.mxu0
  %v7393 = vadd.f32 %v7352, %v7392
  %v7394 = vpop.f32.mrf.mxu0
  %v7395 = vpop.f32.mrf.mxu0
  %7396 = vdwg.mxu0
  %7397 = vmatprep.subr.bf16.mxu0 %v5072
  %7398 = vmatpush1.bf16.msra.mxu0 %v5071
  %7399 = vmatprep.subr.bf16.mxu0 %v5070
  %7400 = vmatpush1.bf16.msra.mxu0 %v5069
  %7401 = vmatprep.subr.bf16.mxu0 %v5068
  %7402 = vmatpush1.bf16.msra.mxu0 %v5067
  %7403 = vmatprep.subr.bf16.mxu0 %v5066
  %7404 = vmatpush1.bf16.msra.mxu0 %v5065
  %7405 = vmatprep.subr.bf16.mxu0 %v5064
  %7406 = vmatpush1.bf16.msra.mxu0 %v5063
  %7407 = vmatprep.subr.bf16.mxu0 %v5062
  %7408 = vmatpush1.bf16.msra.mxu0 %v5061
  %7409 = vmatprep.subr.bf16.mxu0 %v5060
  %7410 = vmatpush1.bf16.msra.mxu0 %v5059
  %7411 = vmatprep.subr.bf16.mxu0 %v5058
  %7412 = vmatpush1.bf16.msra.mxu0 %v5057
  %7413 = vmatprep.subr.bf16.mxu0 %v5088
  %7414 = vmatpush2.bf16.msra.mxu0 %v5087
  %7415 = vmatprep.subr.bf16.mxu0 %v5086
  %7416 = vmatpush2.bf16.msra.mxu0 %v5085
  %7417 = vmatprep.subr.bf16.mxu0 %v5084
  %7418 = vmatpush2.bf16.msra.mxu0 %v5083
  %7419 = vmatprep.subr.bf16.mxu0 %v5082
  %7420 = vmatpush2.bf16.msra.mxu0 %v5081
  %7421 = vmatprep.subr.bf16.mxu0 %v5080
  %7422 = vmatpush2.bf16.msra.mxu0 %v5079
  %7423 = vmatprep.subr.bf16.mxu0 %v5078
  %7424 = vmatpush2.bf16.msra.mxu0 %v5077
  %7425 = vmatprep.subr.bf16.mxu0 %v5076
  %7426 = vmatpush2.bf16.msra.mxu0 %v5075
  %7427 = vmatprep.subr.bf16.mxu0 %v5074
  %7428 = vmatpush2.bf16.msra.mxu0 %v5073
  %7429 = vmatprep.mubr.bf16.mxu0 %v1338
  %7430 = vmatmul.mubr.bf16.gmra.mxu0 %v1337
  %v7431 = vpop.f32.mrf.mxu0
  %v7432 = vadd.f32 %v7391, %v7431
  %v7433 = vpop.f32.mrf.mxu0
  %v7434 = vadd.f32 %v7393, %v7433
  %v7435 = vpop.f32.mrf.mxu0
  %v7436 = vpop.f32.mrf.mxu0
  %7437 = vdwg.mxu0
  %7438 = vmatprep.subr.bf16.mxu0 %v5104
  %7439 = vmatpush1.bf16.msra.mxu0 %v5103
  %7440 = vmatprep.subr.bf16.mxu0 %v5102
  %7441 = vmatpush1.bf16.msra.mxu0 %v5101
  %7442 = vmatprep.subr.bf16.mxu0 %v5100
  %7443 = vmatpush1.bf16.msra.mxu0 %v5099
  %7444 = vmatprep.subr.bf16.mxu0 %v5098
  %7445 = vmatpush1.bf16.msra.mxu0 %v5097
  %7446 = vmatprep.subr.bf16.mxu0 %v5096
  %7447 = vmatpush1.bf16.msra.mxu0 %v5095
  %7448 = vmatprep.subr.bf16.mxu0 %v5094
  %7449 = vmatpush1.bf16.msra.mxu0 %v5093
  %7450 = vmatprep.subr.bf16.mxu0 %v5092
  %7451 = vmatpush1.bf16.msra.mxu0 %v5091
  %7452 = vmatprep.subr.bf16.mxu0 %v5090
  %7453 = vmatpush1.bf16.msra.mxu0 %v5089
  %7454 = vmatprep.subr.bf16.mxu0 %v5120
  %7455 = vmatpush2.bf16.msra.mxu0 %v5119
  %7456 = vmatprep.subr.bf16.mxu0 %v5118
  %7457 = vmatpush2.bf16.msra.mxu0 %v5117
  %7458 = vmatprep.subr.bf16.mxu0 %v5116
  %7459 = vmatpush2.bf16.msra.mxu0 %v5115
  %7460 = vmatprep.subr.bf16.mxu0 %v5114
  %7461 = vmatpush2.bf16.msra.mxu0 %v5113
  %7462 = vmatprep.subr.bf16.mxu0 %v5112
  %7463 = vmatpush2.bf16.msra.mxu0 %v5111
  %7464 = vmatprep.subr.bf16.mxu0 %v5110
  %7465 = vmatpush2.bf16.msra.mxu0 %v5109
  %7466 = vmatprep.subr.bf16.mxu0 %v5108
  %7467 = vmatpush2.bf16.msra.mxu0 %v5107
  %7468 = vmatprep.subr.bf16.mxu0 %v5106
  %7469 = vmatpush2.bf16.msra.mxu0 %v5105
  %7470 = vmatprep.mubr.bf16.mxu0 %v1340
  %7471 = vmatmul.mubr.bf16.gmra.mxu0 %v1339
  %v7472 = vpop.f32.mrf.mxu0
  %v7473 = vadd.f32 %v7432, %v7472
  %v7474 = vpop.f32.mrf.mxu0
  %v7475 = vadd.f32 %v7434, %v7474
  %v7476 = vpop.f32.mrf.mxu0
  %v7477 = vpop.f32.mrf.mxu0
  %7478 = vdwg.mxu0
  %7479 = vmatprep.subr.bf16.mxu0 %v5136
  %7480 = vmatpush1.bf16.msra.mxu0 %v5135
  %7481 = vmatprep.subr.bf16.mxu0 %v5134
  %7482 = vmatpush1.bf16.msra.mxu0 %v5133
  %7483 = vmatprep.subr.bf16.mxu0 %v5132
  %7484 = vmatpush1.bf16.msra.mxu0 %v5131
  %7485 = vmatprep.subr.bf16.mxu0 %v5130
  %7486 = vmatpush1.bf16.msra.mxu0 %v5129
  %7487 = vmatprep.subr.bf16.mxu0 %v5128
  %7488 = vmatpush1.bf16.msra.mxu0 %v5127
  %7489 = vmatprep.subr.bf16.mxu0 %v5126
  %7490 = vmatpush1.bf16.msra.mxu0 %v5125
  %7491 = vmatprep.subr.bf16.mxu0 %v5124
  %7492 = vmatpush1.bf16.msra.mxu0 %v5123
  %7493 = vmatprep.subr.bf16.mxu0 %v5122
  %7494 = vmatpush1.bf16.msra.mxu0 %v5121
  %7495 = vmatprep.subr.bf16.mxu0 %v5152
  %7496 = vmatpush2.bf16.msra.mxu0 %v5151
  %7497 = vmatprep.subr.bf16.mxu0 %v5150
  %7498 = vmatpush2.bf16.msra.mxu0 %v5149
  %7499 = vmatprep.subr.bf16.mxu0 %v5148
  %7500 = vmatpush2.bf16.msra.mxu0 %v5147
  %7501 = vmatprep.subr.bf16.mxu0 %v5146
  %7502 = vmatpush2.bf16.msra.mxu0 %v5145
  %7503 = vmatprep.subr.bf16.mxu0 %v5144
  %7504 = vmatpush2.bf16.msra.mxu0 %v5143
  %7505 = vmatprep.subr.bf16.mxu0 %v5142
  %7506 = vmatpush2.bf16.msra.mxu0 %v5141
  %7507 = vmatprep.subr.bf16.mxu0 %v5140
  %7508 = vmatpush2.bf16.msra.mxu0 %v5139
  %7509 = vmatprep.subr.bf16.mxu0 %v5138
  %7510 = vmatpush2.bf16.msra.mxu0 %v5137
  %7511 = vmatprep.mubr.bf16.mxu0 %v1342
  %7512 = vmatmul.mubr.bf16.gmra.mxu0 %v1341
  %v7513 = vpop.f32.mrf.mxu0
  %v7514 = vadd.f32 %v7473, %v7513
  %v7515 = vpop.f32.mrf.mxu0
  %v7516 = vadd.f32 %v7475, %v7515
  %v7517 = vpop.f32.mrf.mxu0
  %v7518 = vpop.f32.mrf.mxu0
  %7519 = vdwg.mxu0
  %7520 = vmatprep.subr.bf16.mxu0 %v5168
  %7521 = vmatpush1.bf16.msra.mxu0 %v5167
  %7522 = vmatprep.subr.bf16.mxu0 %v5166
  %7523 = vmatpush1.bf16.msra.mxu0 %v5165
  %7524 = vmatprep.subr.bf16.mxu0 %v5164
  %7525 = vmatpush1.bf16.msra.mxu0 %v5163
  %7526 = vmatprep.subr.bf16.mxu0 %v5162
  %7527 = vmatpush1.bf16.msra.mxu0 %v5161
  %7528 = vmatprep.subr.bf16.mxu0 %v5160
  %7529 = vmatpush1.bf16.msra.mxu0 %v5159
  %7530 = vmatprep.subr.bf16.mxu0 %v5158
  %7531 = vmatpush1.bf16.msra.mxu0 %v5157
  %7532 = vmatprep.subr.bf16.mxu0 %v5156
  %7533 = vmatpush1.bf16.msra.mxu0 %v5155
  %7534 = vmatprep.subr.bf16.mxu0 %v5154
  %7535 = vmatpush1.bf16.msra.mxu0 %v5153
  %7536 = vmatprep.subr.bf16.mxu0 %v5184
  %7537 = vmatpush2.bf16.msra.mxu0 %v5183
  %7538 = vmatprep.subr.bf16.mxu0 %v5182
  %7539 = vmatpush2.bf16.msra.mxu0 %v5181
  %7540 = vmatprep.subr.bf16.mxu0 %v5180
  %7541 = vmatpush2.bf16.msra.mxu0 %v5179
  %7542 = vmatprep.subr.bf16.mxu0 %v5178
  %7543 = vmatpush2.bf16.msra.mxu0 %v5177
  %7544 = vmatprep.subr.bf16.mxu0 %v5176
  %7545 = vmatpush2.bf16.msra.mxu0 %v5175
  %7546 = vmatprep.subr.bf16.mxu0 %v5174
  %7547 = vmatpush2.bf16.msra.mxu0 %v5173
  %7548 = vmatprep.subr.bf16.mxu0 %v5172
  %7549 = vmatpush2.bf16.msra.mxu0 %v5171
  %7550 = vmatprep.subr.bf16.mxu0 %v5170
  %7551 = vmatpush2.bf16.msra.mxu0 %v5169
  %7552 = vmatprep.mubr.bf16.mxu0 %v1344
  %7553 = vmatmul.mubr.bf16.gmra.mxu0 %v1343
  %v7554 = vpop.f32.mrf.mxu0
  %v7555 = vadd.f32 %v7514, %v7554
  %v7556 = vpop.f32.mrf.mxu0
  %v7557 = vadd.f32 %v7516, %v7556
  %v7558 = vpop.f32.mrf.mxu0
  %v7559 = vpop.f32.mrf.mxu0
  %7560 = vdwg.mxu0
  %7561 = vmatprep.subr.bf16.mxu0 %v5200
  %7562 = vmatpush1.bf16.msra.mxu0 %v5199
  %7563 = vmatprep.subr.bf16.mxu0 %v5198
  %7564 = vmatpush1.bf16.msra.mxu0 %v5197
  %7565 = vmatprep.subr.bf16.mxu0 %v5196
  %7566 = vmatpush1.bf16.msra.mxu0 %v5195
  %7567 = vmatprep.subr.bf16.mxu0 %v5194
  %7568 = vmatpush1.bf16.msra.mxu0 %v5193
  %7569 = vmatprep.subr.bf16.mxu0 %v5192
  %7570 = vmatpush1.bf16.msra.mxu0 %v5191
  %7571 = vmatprep.subr.bf16.mxu0 %v5190
  %7572 = vmatpush1.bf16.msra.mxu0 %v5189
  %7573 = vmatprep.subr.bf16.mxu0 %v5188
  %7574 = vmatpush1.bf16.msra.mxu0 %v5187
  %7575 = vmatprep.subr.bf16.mxu0 %v5186
  %7576 = vmatpush1.bf16.msra.mxu0 %v5185
  %7577 = vmatprep.subr.bf16.mxu0 %v5216
  %7578 = vmatpush2.bf16.msra.mxu0 %v5215
  %7579 = vmatprep.subr.bf16.mxu0 %v5214
  %7580 = vmatpush2.bf16.msra.mxu0 %v5213
  %7581 = vmatprep.subr.bf16.mxu0 %v5212
  %7582 = vmatpush2.bf16.msra.mxu0 %v5211
  %7583 = vmatprep.subr.bf16.mxu0 %v5210
  %7584 = vmatpush2.bf16.msra.mxu0 %v5209
  %7585 = vmatprep.subr.bf16.mxu0 %v5208
  %7586 = vmatpush2.bf16.msra.mxu0 %v5207
  %7587 = vmatprep.subr.bf16.mxu0 %v5206
  %7588 = vmatpush2.bf16.msra.mxu0 %v5205
  %7589 = vmatprep.subr.bf16.mxu0 %v5204
  %7590 = vmatpush2.bf16.msra.mxu0 %v5203
  %7591 = vmatprep.subr.bf16.mxu0 %v5202
  %7592 = vmatpush2.bf16.msra.mxu0 %v5201
  %7593 = vmatprep.mubr.bf16.mxu0 %v1346
  %7594 = vmatmul.mubr.bf16.gmra.mxu0 %v1345
  %v7595 = vpop.f32.mrf.mxu0
  %v7596 = vadd.f32 %v7555, %v7595
  %v7597 = vpop.f32.mrf.mxu0
  %v7598 = vadd.f32 %v7557, %v7597
  %v7599 = vpop.f32.mrf.mxu0
  %v7600 = vpop.f32.mrf.mxu0
  %7601 = vdwg.mxu0
  %7602 = vmatprep.subr.bf16.mxu0 %v5232
  %7603 = vmatpush1.bf16.msra.mxu0 %v5231
  %7604 = vmatprep.subr.bf16.mxu0 %v5230
  %7605 = vmatpush1.bf16.msra.mxu0 %v5229
  %7606 = vmatprep.subr.bf16.mxu0 %v5228
  %7607 = vmatpush1.bf16.msra.mxu0 %v5227
  %7608 = vmatprep.subr.bf16.mxu0 %v5226
  %7609 = vmatpush1.bf16.msra.mxu0 %v5225
  %7610 = vmatprep.subr.bf16.mxu0 %v5224
  %7611 = vmatpush1.bf16.msra.mxu0 %v5223
  %7612 = vmatprep.subr.bf16.mxu0 %v5222
  %7613 = vmatpush1.bf16.msra.mxu0 %v5221
  %7614 = vmatprep.subr.bf16.mxu0 %v5220
  %7615 = vmatpush1.bf16.msra.mxu0 %v5219
  %7616 = vmatprep.subr.bf16.mxu0 %v5218
  %7617 = vmatpush1.bf16.msra.mxu0 %v5217
  %7618 = vmatprep.subr.bf16.mxu0 %v5248
  %7619 = vmatpush2.bf16.msra.mxu0 %v5247
  %7620 = vmatprep.subr.bf16.mxu0 %v5246
  %7621 = vmatpush2.bf16.msra.mxu0 %v5245
  %7622 = vmatprep.subr.bf16.mxu0 %v5244
  %7623 = vmatpush2.bf16.msra.mxu0 %v5243
  %7624 = vmatprep.subr.bf16.mxu0 %v5242
  %7625 = vmatpush2.bf16.msra.mxu0 %v5241
  %7626 = vmatprep.subr.bf16.mxu0 %v5240
  %7627 = vmatpush2.bf16.msra.mxu0 %v5239
  %7628 = vmatprep.subr.bf16.mxu0 %v5238
  %7629 = vmatpush2.bf16.msra.mxu0 %v5237
  %7630 = vmatprep.subr.bf16.mxu0 %v5236
  %7631 = vmatpush2.bf16.msra.mxu0 %v5235
  %7632 = vmatprep.subr.bf16.mxu0 %v5234
  %7633 = vmatpush2.bf16.msra.mxu0 %v5233
  %7634 = vmatprep.mubr.bf16.mxu0 %v1348
  %7635 = vmatmul.mubr.bf16.gmra.mxu0 %v1347
  %v7636 = vpop.f32.mrf.mxu0
  %v7637 = vadd.f32 %v7596, %v7636
  %v7638 = vpop.f32.mrf.mxu0
  %v7639 = vadd.f32 %v7598, %v7638
  %v7640 = vpop.f32.mrf.mxu0
  %v7641 = vpop.f32.mrf.mxu0
  %7642 = vdwg.mxu0
  %7643 = vmatprep.subr.bf16.mxu0 %v5264
  %7644 = vmatpush1.bf16.msra.mxu0 %v5263
  %7645 = vmatprep.subr.bf16.mxu0 %v5262
  %7646 = vmatpush1.bf16.msra.mxu0 %v5261
  %7647 = vmatprep.subr.bf16.mxu0 %v5260
  %7648 = vmatpush1.bf16.msra.mxu0 %v5259
  %7649 = vmatprep.subr.bf16.mxu0 %v5258
  %7650 = vmatpush1.bf16.msra.mxu0 %v5257
  %7651 = vmatprep.subr.bf16.mxu0 %v5256
  %7652 = vmatpush1.bf16.msra.mxu0 %v5255
  %7653 = vmatprep.subr.bf16.mxu0 %v5254
  %7654 = vmatpush1.bf16.msra.mxu0 %v5253
  %7655 = vmatprep.subr.bf16.mxu0 %v5252
  %7656 = vmatpush1.bf16.msra.mxu0 %v5251
  %7657 = vmatprep.subr.bf16.mxu0 %v5250
  %7658 = vmatpush1.bf16.msra.mxu0 %v5249
  %7659 = vmatprep.subr.bf16.mxu0 %v5280
  %7660 = vmatpush2.bf16.msra.mxu0 %v5279
  %7661 = vmatprep.subr.bf16.mxu0 %v5278
  %7662 = vmatpush2.bf16.msra.mxu0 %v5277
  %7663 = vmatprep.subr.bf16.mxu0 %v5276
  %7664 = vmatpush2.bf16.msra.mxu0 %v5275
  %7665 = vmatprep.subr.bf16.mxu0 %v5274
  %7666 = vmatpush2.bf16.msra.mxu0 %v5273
  %7667 = vmatprep.subr.bf16.mxu0 %v5272
  %7668 = vmatpush2.bf16.msra.mxu0 %v5271
  %7669 = vmatprep.subr.bf16.mxu0 %v5270
  %7670 = vmatpush2.bf16.msra.mxu0 %v5269
  %7671 = vmatprep.subr.bf16.mxu0 %v5268
  %7672 = vmatpush2.bf16.msra.mxu0 %v5267
  %7673 = vmatprep.subr.bf16.mxu0 %v5266
  %7674 = vmatpush2.bf16.msra.mxu0 %v5265
  %7675 = vmatprep.mubr.bf16.mxu0 %v1350
  %7676 = vmatmul.mubr.bf16.gmra.mxu0 %v1349
  %v7677 = vpop.f32.mrf.mxu0
  %v7678 = vadd.f32 %v7637, %v7677
  %v7679 = vpop.f32.mrf.mxu0
  %v7680 = vadd.f32 %v7639, %v7679
  %v7681 = vpop.f32.mrf.mxu0
  %v7682 = vpop.f32.mrf.mxu0
  %7683 = vdwg.mxu0
  %7684 = vmatprep.subr.bf16.mxu0 %v5296
  %7685 = vmatpush1.bf16.msra.mxu0 %v5295
  %7686 = vmatprep.subr.bf16.mxu0 %v5294
  %7687 = vmatpush1.bf16.msra.mxu0 %v5293
  %7688 = vmatprep.subr.bf16.mxu0 %v5292
  %7689 = vmatpush1.bf16.msra.mxu0 %v5291
  %7690 = vmatprep.subr.bf16.mxu0 %v5290
  %7691 = vmatpush1.bf16.msra.mxu0 %v5289
  %7692 = vmatprep.subr.bf16.mxu0 %v5288
  %7693 = vmatpush1.bf16.msra.mxu0 %v5287
  %7694 = vmatprep.subr.bf16.mxu0 %v5286
  %7695 = vmatpush1.bf16.msra.mxu0 %v5285
  %7696 = vmatprep.subr.bf16.mxu0 %v5284
  %7697 = vmatpush1.bf16.msra.mxu0 %v5283
  %7698 = vmatprep.subr.bf16.mxu0 %v5282
  %7699 = vmatpush1.bf16.msra.mxu0 %v5281
  %7700 = vmatprep.subr.bf16.mxu0 %v5312
  %7701 = vmatpush2.bf16.msra.mxu0 %v5311
  %7702 = vmatprep.subr.bf16.mxu0 %v5310
  %7703 = vmatpush2.bf16.msra.mxu0 %v5309
  %7704 = vmatprep.subr.bf16.mxu0 %v5308
  %7705 = vmatpush2.bf16.msra.mxu0 %v5307
  %7706 = vmatprep.subr.bf16.mxu0 %v5306
  %7707 = vmatpush2.bf16.msra.mxu0 %v5305
  %7708 = vmatprep.subr.bf16.mxu0 %v5304
  %7709 = vmatpush2.bf16.msra.mxu0 %v5303
  %7710 = vmatprep.subr.bf16.mxu0 %v5302
  %7711 = vmatpush2.bf16.msra.mxu0 %v5301
  %7712 = vmatprep.subr.bf16.mxu0 %v5300
  %7713 = vmatpush2.bf16.msra.mxu0 %v5299
  %7714 = vmatprep.subr.bf16.mxu0 %v5298
  %7715 = vmatpush2.bf16.msra.mxu0 %v5297
  %7716 = vmatprep.mubr.bf16.mxu0 %v1352
  %7717 = vmatmul.mubr.bf16.gmra.mxu0 %v1351
  %v7718 = vpop.f32.mrf.mxu0
  %v7719 = vadd.f32 %v7678, %v7718
  %v7720 = vpop.f32.mrf.mxu0
  %v7721 = vadd.f32 %v7680, %v7720
  %v7722 = vpop.f32.mrf.mxu0
  %v7723 = vpop.f32.mrf.mxu0
  %7724 = vdwg.mxu0
  %7725 = vmatprep.subr.bf16.mxu0 %v5328
  %7726 = vmatpush1.bf16.msra.mxu0 %v5327
  %7727 = vmatprep.subr.bf16.mxu0 %v5326
  %7728 = vmatpush1.bf16.msra.mxu0 %v5325
  %7729 = vmatprep.subr.bf16.mxu0 %v5324
  %7730 = vmatpush1.bf16.msra.mxu0 %v5323
  %7731 = vmatprep.subr.bf16.mxu0 %v5322
  %7732 = vmatpush1.bf16.msra.mxu0 %v5321
  %7733 = vmatprep.subr.bf16.mxu0 %v5320
  %7734 = vmatpush1.bf16.msra.mxu0 %v5319
  %7735 = vmatprep.subr.bf16.mxu0 %v5318
  %7736 = vmatpush1.bf16.msra.mxu0 %v5317
  %7737 = vmatprep.subr.bf16.mxu0 %v5316
  %7738 = vmatpush1.bf16.msra.mxu0 %v5315
  %7739 = vmatprep.subr.bf16.mxu0 %v5314
  %7740 = vmatpush1.bf16.msra.mxu0 %v5313
  %7741 = vmatprep.subr.bf16.mxu0 %v5344
  %7742 = vmatpush2.bf16.msra.mxu0 %v5343
  %7743 = vmatprep.subr.bf16.mxu0 %v5342
  %7744 = vmatpush2.bf16.msra.mxu0 %v5341
  %7745 = vmatprep.subr.bf16.mxu0 %v5340
  %7746 = vmatpush2.bf16.msra.mxu0 %v5339
  %7747 = vmatprep.subr.bf16.mxu0 %v5338
  %7748 = vmatpush2.bf16.msra.mxu0 %v5337
  %7749 = vmatprep.subr.bf16.mxu0 %v5336
  %7750 = vmatpush2.bf16.msra.mxu0 %v5335
  %7751 = vmatprep.subr.bf16.mxu0 %v5334
  %7752 = vmatpush2.bf16.msra.mxu0 %v5333
  %7753 = vmatprep.subr.bf16.mxu0 %v5332
  %7754 = vmatpush2.bf16.msra.mxu0 %v5331
  %7755 = vmatprep.subr.bf16.mxu0 %v5330
  %7756 = vmatpush2.bf16.msra.mxu0 %v5329
  %7757 = vmatprep.mubr.bf16.mxu0 %v1354
  %7758 = vmatmul.mubr.bf16.gmra.mxu0 %v1353
  %v7759 = vpop.f32.mrf.mxu0
  %v7760 = vadd.f32 %v7719, %v7759
  %v7761 = vpop.f32.mrf.mxu0
  %v7762 = vadd.f32 %v7721, %v7761
  %v7763 = vpop.f32.mrf.mxu0
  %v7764 = vpop.f32.mrf.mxu0
  %7765 = vdwg.mxu0
  %7766 = vmatprep.subr.bf16.mxu0 %v5360
  %7767 = vmatpush1.bf16.msra.mxu0 %v5359
  %7768 = vmatprep.subr.bf16.mxu0 %v5358
  %7769 = vmatpush1.bf16.msra.mxu0 %v5357
  %7770 = vmatprep.subr.bf16.mxu0 %v5356
  %7771 = vmatpush1.bf16.msra.mxu0 %v5355
  %7772 = vmatprep.subr.bf16.mxu0 %v5354
  %7773 = vmatpush1.bf16.msra.mxu0 %v5353
  %7774 = vmatprep.subr.bf16.mxu0 %v5352
  %7775 = vmatpush1.bf16.msra.mxu0 %v5351
  %7776 = vmatprep.subr.bf16.mxu0 %v5350
  %7777 = vmatpush1.bf16.msra.mxu0 %v5349
  %7778 = vmatprep.subr.bf16.mxu0 %v5348
  %7779 = vmatpush1.bf16.msra.mxu0 %v5347
  %7780 = vmatprep.subr.bf16.mxu0 %v5346
  %7781 = vmatpush1.bf16.msra.mxu0 %v5345
  %7782 = vmatprep.subr.bf16.mxu0 %v5376
  %7783 = vmatpush2.bf16.msra.mxu0 %v5375
  %7784 = vmatprep.subr.bf16.mxu0 %v5374
  %7785 = vmatpush2.bf16.msra.mxu0 %v5373
  %7786 = vmatprep.subr.bf16.mxu0 %v5372
  %7787 = vmatpush2.bf16.msra.mxu0 %v5371
  %7788 = vmatprep.subr.bf16.mxu0 %v5370
  %7789 = vmatpush2.bf16.msra.mxu0 %v5369
  %7790 = vmatprep.subr.bf16.mxu0 %v5368
  %7791 = vmatpush2.bf16.msra.mxu0 %v5367
  %7792 = vmatprep.subr.bf16.mxu0 %v5366
  %7793 = vmatpush2.bf16.msra.mxu0 %v5365
  %7794 = vmatprep.subr.bf16.mxu0 %v5364
  %7795 = vmatpush2.bf16.msra.mxu0 %v5363
  %7796 = vmatprep.subr.bf16.mxu0 %v5362
  %7797 = vmatpush2.bf16.msra.mxu0 %v5361
  %7798 = vmatprep.mubr.bf16.mxu0 %v1356
  %7799 = vmatmul.mubr.bf16.gmra.mxu0 %v1355
  %v7800 = vpop.f32.mrf.mxu0
  %v7801 = vadd.f32 %v7760, %v7800
  %v7802 = vpop.f32.mrf.mxu0
  %v7803 = vadd.f32 %v7762, %v7802
  %v7804 = vpop.f32.mrf.mxu0
  %v7805 = vpop.f32.mrf.mxu0
  %7806 = vdwg.mxu0
  %7807 = vmatprep.subr.bf16.mxu0 %v5392
  %7808 = vmatpush1.bf16.msra.mxu0 %v5391
  %7809 = vmatprep.subr.bf16.mxu0 %v5390
  %7810 = vmatpush1.bf16.msra.mxu0 %v5389
  %7811 = vmatprep.subr.bf16.mxu0 %v5388
  %7812 = vmatpush1.bf16.msra.mxu0 %v5387
  %7813 = vmatprep.subr.bf16.mxu0 %v5386
  %7814 = vmatpush1.bf16.msra.mxu0 %v5385
  %7815 = vmatprep.subr.bf16.mxu0 %v5384
  %7816 = vmatpush1.bf16.msra.mxu0 %v5383
  %7817 = vmatprep.subr.bf16.mxu0 %v5382
  %7818 = vmatpush1.bf16.msra.mxu0 %v5381
  %7819 = vmatprep.subr.bf16.mxu0 %v5380
  %7820 = vmatpush1.bf16.msra.mxu0 %v5379
  %7821 = vmatprep.subr.bf16.mxu0 %v5378
  %7822 = vmatpush1.bf16.msra.mxu0 %v5377
  %7823 = vmatprep.subr.bf16.mxu0 %v5408
  %7824 = vmatpush2.bf16.msra.mxu0 %v5407
  %7825 = vmatprep.subr.bf16.mxu0 %v5406
  %7826 = vmatpush2.bf16.msra.mxu0 %v5405
  %7827 = vmatprep.subr.bf16.mxu0 %v5404
  %7828 = vmatpush2.bf16.msra.mxu0 %v5403
  %7829 = vmatprep.subr.bf16.mxu0 %v5402
  %7830 = vmatpush2.bf16.msra.mxu0 %v5401
  %7831 = vmatprep.subr.bf16.mxu0 %v5400
  %7832 = vmatpush2.bf16.msra.mxu0 %v5399
  %7833 = vmatprep.subr.bf16.mxu0 %v5398
  %7834 = vmatpush2.bf16.msra.mxu0 %v5397
  %7835 = vmatprep.subr.bf16.mxu0 %v5396
  %7836 = vmatpush2.bf16.msra.mxu0 %v5395
  %7837 = vmatprep.subr.bf16.mxu0 %v5394
  %7838 = vmatpush2.bf16.msra.mxu0 %v5393
  %7839 = vmatprep.mubr.bf16.mxu0 %v1358
  %7840 = vmatmul.mubr.bf16.gmra.mxu0 %v1357
  %v7841 = vpop.f32.mrf.mxu0
  %v7842 = vadd.f32 %v7801, %v7841
  %v7843 = vpop.f32.mrf.mxu0
  %v7844 = vadd.f32 %v7803, %v7843
  %v7845 = vpop.f32.mrf.mxu0
  %v7846 = vpop.f32.mrf.mxu0
  %7847 = vdwg.mxu0
  %7848 = vmatprep.subr.bf16.mxu0 %v5424
  %7849 = vmatpush1.bf16.msra.mxu0 %v5423
  %7850 = vmatprep.subr.bf16.mxu0 %v5422
  %7851 = vmatpush1.bf16.msra.mxu0 %v5421
  %7852 = vmatprep.subr.bf16.mxu0 %v5420
  %7853 = vmatpush1.bf16.msra.mxu0 %v5419
  %7854 = vmatprep.subr.bf16.mxu0 %v5418
  %7855 = vmatpush1.bf16.msra.mxu0 %v5417
  %7856 = vmatprep.subr.bf16.mxu0 %v5416
  %7857 = vmatpush1.bf16.msra.mxu0 %v5415
  %7858 = vmatprep.subr.bf16.mxu0 %v5414
  %7859 = vmatpush1.bf16.msra.mxu0 %v5413
  %7860 = vmatprep.subr.bf16.mxu0 %v5412
  %7861 = vmatpush1.bf16.msra.mxu0 %v5411
  %7862 = vmatprep.subr.bf16.mxu0 %v5410
  %7863 = vmatpush1.bf16.msra.mxu0 %v5409
  %7864 = vmatprep.subr.bf16.mxu0 %v5440
  %7865 = vmatpush2.bf16.msra.mxu0 %v5439
  %7866 = vmatprep.subr.bf16.mxu0 %v5438
  %7867 = vmatpush2.bf16.msra.mxu0 %v5437
  %7868 = vmatprep.subr.bf16.mxu0 %v5436
  %7869 = vmatpush2.bf16.msra.mxu0 %v5435
  %7870 = vmatprep.subr.bf16.mxu0 %v5434
  %7871 = vmatpush2.bf16.msra.mxu0 %v5433
  %7872 = vmatprep.subr.bf16.mxu0 %v5432
  %7873 = vmatpush2.bf16.msra.mxu0 %v5431
  %7874 = vmatprep.subr.bf16.mxu0 %v5430
  %7875 = vmatpush2.bf16.msra.mxu0 %v5429
  %7876 = vmatprep.subr.bf16.mxu0 %v5428
  %7877 = vmatpush2.bf16.msra.mxu0 %v5427
  %7878 = vmatprep.subr.bf16.mxu0 %v5426
  %7879 = vmatpush2.bf16.msra.mxu0 %v5425
  %7880 = vmatprep.mubr.bf16.mxu0 %v1360
  %7881 = vmatmul.mubr.bf16.gmra.mxu0 %v1359
  %v7882 = vpop.f32.mrf.mxu0
  %v7883 = vadd.f32 %v7842, %v7882
  %v7884 = vpop.f32.mrf.mxu0
  %v7885 = vadd.f32 %v7844, %v7884
  %v7886 = vpop.f32.mrf.mxu0
  %v7887 = vpop.f32.mrf.mxu0
  %7888 = vdwg.mxu0
  %7889 = vmatprep.subr.bf16.mxu0 %v5456
  %7890 = vmatpush1.bf16.msra.mxu0 %v5455
  %7891 = vmatprep.subr.bf16.mxu0 %v5454
  %7892 = vmatpush1.bf16.msra.mxu0 %v5453
  %7893 = vmatprep.subr.bf16.mxu0 %v5452
  %7894 = vmatpush1.bf16.msra.mxu0 %v5451
  %7895 = vmatprep.subr.bf16.mxu0 %v5450
  %7896 = vmatpush1.bf16.msra.mxu0 %v5449
  %7897 = vmatprep.subr.bf16.mxu0 %v5448
  %7898 = vmatpush1.bf16.msra.mxu0 %v5447
  %7899 = vmatprep.subr.bf16.mxu0 %v5446
  %7900 = vmatpush1.bf16.msra.mxu0 %v5445
  %7901 = vmatprep.subr.bf16.mxu0 %v5444
  %7902 = vmatpush1.bf16.msra.mxu0 %v5443
  %7903 = vmatprep.subr.bf16.mxu0 %v5442
  %7904 = vmatpush1.bf16.msra.mxu0 %v5441
  %7905 = vmatprep.subr.bf16.mxu0 %v5472
  %7906 = vmatpush2.bf16.msra.mxu0 %v5471
  %7907 = vmatprep.subr.bf16.mxu0 %v5470
  %7908 = vmatpush2.bf16.msra.mxu0 %v5469
  %7909 = vmatprep.subr.bf16.mxu0 %v5468
  %7910 = vmatpush2.bf16.msra.mxu0 %v5467
  %7911 = vmatprep.subr.bf16.mxu0 %v5466
  %7912 = vmatpush2.bf16.msra.mxu0 %v5465
  %7913 = vmatprep.subr.bf16.mxu0 %v5464
  %7914 = vmatpush2.bf16.msra.mxu0 %v5463
  %7915 = vmatprep.subr.bf16.mxu0 %v5462
  %7916 = vmatpush2.bf16.msra.mxu0 %v5461
  %7917 = vmatprep.subr.bf16.mxu0 %v5460
  %7918 = vmatpush2.bf16.msra.mxu0 %v5459
  %7919 = vmatprep.subr.bf16.mxu0 %v5458
  %7920 = vmatpush2.bf16.msra.mxu0 %v5457
  %7921 = vmatprep.mubr.bf16.mxu0 %v1362
  %7922 = vmatmul.mubr.bf16.gmra.mxu0 %v1361
  %v7923 = vpop.f32.mrf.mxu0
  %v7924 = vadd.f32 %v7883, %v7923
  %v7925 = vpop.f32.mrf.mxu0
  %v7926 = vadd.f32 %v7885, %v7925
  %v7927 = vpop.f32.mrf.mxu0
  %v7928 = vpop.f32.mrf.mxu0
  %7929 = vdwg.mxu0
  %7930 = vmatprep.subr.bf16.mxu0 %v5488
  %7931 = vmatpush1.bf16.msra.mxu0 %v5487
  %7932 = vmatprep.subr.bf16.mxu0 %v5486
  %7933 = vmatpush1.bf16.msra.mxu0 %v5485
  %7934 = vmatprep.subr.bf16.mxu0 %v5484
  %7935 = vmatpush1.bf16.msra.mxu0 %v5483
  %7936 = vmatprep.subr.bf16.mxu0 %v5482
  %7937 = vmatpush1.bf16.msra.mxu0 %v5481
  %7938 = vmatprep.subr.bf16.mxu0 %v5480
  %7939 = vmatpush1.bf16.msra.mxu0 %v5479
  %7940 = vmatprep.subr.bf16.mxu0 %v5478
  %7941 = vmatpush1.bf16.msra.mxu0 %v5477
  %7942 = vmatprep.subr.bf16.mxu0 %v5476
  %7943 = vmatpush1.bf16.msra.mxu0 %v5475
  %7944 = vmatprep.subr.bf16.mxu0 %v5474
  %7945 = vmatpush1.bf16.msra.mxu0 %v5473
  %7946 = vmatprep.subr.bf16.mxu0 %v5504
  %7947 = vmatpush2.bf16.msra.mxu0 %v5503
  %7948 = vmatprep.subr.bf16.mxu0 %v5502
  %7949 = vmatpush2.bf16.msra.mxu0 %v5501
  %7950 = vmatprep.subr.bf16.mxu0 %v5500
  %7951 = vmatpush2.bf16.msra.mxu0 %v5499
  %7952 = vmatprep.subr.bf16.mxu0 %v5498
  %7953 = vmatpush2.bf16.msra.mxu0 %v5497
  %7954 = vmatprep.subr.bf16.mxu0 %v5496
  %7955 = vmatpush2.bf16.msra.mxu0 %v5495
  %7956 = vmatprep.subr.bf16.mxu0 %v5494
  %7957 = vmatpush2.bf16.msra.mxu0 %v5493
  %7958 = vmatprep.subr.bf16.mxu0 %v5492
  %7959 = vmatpush2.bf16.msra.mxu0 %v5491
  %7960 = vmatprep.subr.bf16.mxu0 %v5490
  %7961 = vmatpush2.bf16.msra.mxu0 %v5489
  %7962 = vmatprep.mubr.bf16.mxu0 %v1364
  %7963 = vmatmul.mubr.bf16.gmra.mxu0 %v1363
  %v7964 = vpop.f32.mrf.mxu0
  %v7965 = vadd.f32 %v7924, %v7964
  %v7966 = vpop.f32.mrf.mxu0
  %v7967 = vadd.f32 %v7926, %v7966
  %v7968 = vpop.f32.mrf.mxu0
  %v7969 = vpop.f32.mrf.mxu0
  %7970 = vdwg.mxu0
  %7971 = vmatprep.subr.bf16.mxu0 %v5520
  %7972 = vmatpush1.bf16.msra.mxu0 %v5519
  %7973 = vmatprep.subr.bf16.mxu0 %v5518
  %7974 = vmatpush1.bf16.msra.mxu0 %v5517
  %7975 = vmatprep.subr.bf16.mxu0 %v5516
  %7976 = vmatpush1.bf16.msra.mxu0 %v5515
  %7977 = vmatprep.subr.bf16.mxu0 %v5514
  %7978 = vmatpush1.bf16.msra.mxu0 %v5513
  %7979 = vmatprep.subr.bf16.mxu0 %v5512
  %7980 = vmatpush1.bf16.msra.mxu0 %v5511
  %7981 = vmatprep.subr.bf16.mxu0 %v5510
  %7982 = vmatpush1.bf16.msra.mxu0 %v5509
  %7983 = vmatprep.subr.bf16.mxu0 %v5508
  %7984 = vmatpush1.bf16.msra.mxu0 %v5507
  %7985 = vmatprep.subr.bf16.mxu0 %v5506
  %7986 = vmatpush1.bf16.msra.mxu0 %v5505
  %7987 = vmatprep.subr.bf16.mxu0 %v5536
  %7988 = vmatpush2.bf16.msra.mxu0 %v5535
  %7989 = vmatprep.subr.bf16.mxu0 %v5534
  %7990 = vmatpush2.bf16.msra.mxu0 %v5533
  %7991 = vmatprep.subr.bf16.mxu0 %v5532
  %7992 = vmatpush2.bf16.msra.mxu0 %v5531
  %7993 = vmatprep.subr.bf16.mxu0 %v5530
  %7994 = vmatpush2.bf16.msra.mxu0 %v5529
  %7995 = vmatprep.subr.bf16.mxu0 %v5528
  %7996 = vmatpush2.bf16.msra.mxu0 %v5527
  %7997 = vmatprep.subr.bf16.mxu0 %v5526
  %7998 = vmatpush2.bf16.msra.mxu0 %v5525
  %7999 = vmatprep.subr.bf16.mxu0 %v5524
  %8000 = vmatpush2.bf16.msra.mxu0 %v5523
  %8001 = vmatprep.subr.bf16.mxu0 %v5522
  %8002 = vmatpush2.bf16.msra.mxu0 %v5521
  %8003 = vmatprep.mubr.bf16.mxu0 %v1366
  %8004 = vmatmul.mubr.bf16.gmra.mxu0 %v1365
  %v8005 = vpop.f32.mrf.mxu0
  %v8006 = vadd.f32 %v7965, %v8005
  %v8007 = vpop.f32.mrf.mxu0
  %v8008 = vadd.f32 %v7967, %v8007
  %v8009 = vpop.f32.mrf.mxu0
  %v8010 = vpop.f32.mrf.mxu0
  %8011 = vdwg.mxu0
  %8012 = vmatprep.subr.bf16.mxu0 %v5552
  %8013 = vmatpush1.bf16.msra.mxu0 %v5551
  %8014 = vmatprep.subr.bf16.mxu0 %v5550
  %8015 = vmatpush1.bf16.msra.mxu0 %v5549
  %8016 = vmatprep.subr.bf16.mxu0 %v5548
  %8017 = vmatpush1.bf16.msra.mxu0 %v5547
  %8018 = vmatprep.subr.bf16.mxu0 %v5546
  %8019 = vmatpush1.bf16.msra.mxu0 %v5545
  %8020 = vmatprep.subr.bf16.mxu0 %v5544
  %8021 = vmatpush1.bf16.msra.mxu0 %v5543
  %8022 = vmatprep.subr.bf16.mxu0 %v5542
  %8023 = vmatpush1.bf16.msra.mxu0 %v5541
  %8024 = vmatprep.subr.bf16.mxu0 %v5540
  %8025 = vmatpush1.bf16.msra.mxu0 %v5539
  %8026 = vmatprep.subr.bf16.mxu0 %v5538
  %8027 = vmatpush1.bf16.msra.mxu0 %v5537
  %8028 = vmatprep.subr.bf16.mxu0 %v5568
  %8029 = vmatpush2.bf16.msra.mxu0 %v5567
  %8030 = vmatprep.subr.bf16.mxu0 %v5566
  %8031 = vmatpush2.bf16.msra.mxu0 %v5565
  %8032 = vmatprep.subr.bf16.mxu0 %v5564
  %8033 = vmatpush2.bf16.msra.mxu0 %v5563
  %8034 = vmatprep.subr.bf16.mxu0 %v5562
  %8035 = vmatpush2.bf16.msra.mxu0 %v5561
  %8036 = vmatprep.subr.bf16.mxu0 %v5560
  %8037 = vmatpush2.bf16.msra.mxu0 %v5559
  %8038 = vmatprep.subr.bf16.mxu0 %v5558
  %8039 = vmatpush2.bf16.msra.mxu0 %v5557
  %8040 = vmatprep.subr.bf16.mxu0 %v5556
  %8041 = vmatpush2.bf16.msra.mxu0 %v5555
  %8042 = vmatprep.subr.bf16.mxu0 %v5554
  %8043 = vmatpush2.bf16.msra.mxu0 %v5553
  %8044 = vmatprep.mubr.bf16.mxu0 %v1368
  %8045 = vmatmul.mubr.bf16.gmra.mxu0 %v1367
  %v8046 = vpop.f32.mrf.mxu0
  %v8047 = vadd.f32 %v8006, %v8046
  %v8048 = vpop.f32.mrf.mxu0
  %v8049 = vadd.f32 %v8008, %v8048
  %v8050 = vpop.f32.mrf.mxu0
  %v8051 = vpop.f32.mrf.mxu0
  %8052 = vdwg.mxu0
  %8053 = vmatprep.subr.bf16.mxu0 %v5584
  %8054 = vmatpush1.bf16.msra.mxu0 %v5583
  %8055 = vmatprep.subr.bf16.mxu0 %v5582
  %8056 = vmatpush1.bf16.msra.mxu0 %v5581
  %8057 = vmatprep.subr.bf16.mxu0 %v5580
  %8058 = vmatpush1.bf16.msra.mxu0 %v5579
  %8059 = vmatprep.subr.bf16.mxu0 %v5578
  %8060 = vmatpush1.bf16.msra.mxu0 %v5577
  %8061 = vmatprep.subr.bf16.mxu0 %v5576
  %8062 = vmatpush1.bf16.msra.mxu0 %v5575
  %8063 = vmatprep.subr.bf16.mxu0 %v5574
  %8064 = vmatpush1.bf16.msra.mxu0 %v5573
  %8065 = vmatprep.subr.bf16.mxu0 %v5572
  %8066 = vmatpush1.bf16.msra.mxu0 %v5571
  %8067 = vmatprep.subr.bf16.mxu0 %v5570
  %8068 = vmatpush1.bf16.msra.mxu0 %v5569
  %8069 = vmatprep.subr.bf16.mxu0 %v5600
  %8070 = vmatpush2.bf16.msra.mxu0 %v5599
  %8071 = vmatprep.subr.bf16.mxu0 %v5598
  %8072 = vmatpush2.bf16.msra.mxu0 %v5597
  %8073 = vmatprep.subr.bf16.mxu0 %v5596
  %8074 = vmatpush2.bf16.msra.mxu0 %v5595
  %8075 = vmatprep.subr.bf16.mxu0 %v5594
  %8076 = vmatpush2.bf16.msra.mxu0 %v5593
  %8077 = vmatprep.subr.bf16.mxu0 %v5592
  %8078 = vmatpush2.bf16.msra.mxu0 %v5591
  %8079 = vmatprep.subr.bf16.mxu0 %v5590
  %8080 = vmatpush2.bf16.msra.mxu0 %v5589
  %8081 = vmatprep.subr.bf16.mxu0 %v5588
  %8082 = vmatpush2.bf16.msra.mxu0 %v5587
  %8083 = vmatprep.subr.bf16.mxu0 %v5586
  %8084 = vmatpush2.bf16.msra.mxu0 %v5585
  %8085 = vmatprep.mubr.bf16.mxu0 %v1370
  %8086 = vmatmul.mubr.bf16.gmra.mxu0 %v1369
  %v8087 = vpop.f32.mrf.mxu0
  %v8088 = vadd.f32 %v8047, %v8087
  %v8089 = vpop.f32.mrf.mxu0
  %v8090 = vadd.f32 %v8049, %v8089
  %v8091 = vpop.f32.mrf.mxu0
  %v8092 = vpop.f32.mrf.mxu0
  %8093 = vdwg.mxu0
  %8094 = vmatprep.subr.bf16.mxu0 %v5616
  %8095 = vmatpush1.bf16.msra.mxu0 %v5615
  %8096 = vmatprep.subr.bf16.mxu0 %v5614
  %8097 = vmatpush1.bf16.msra.mxu0 %v5613
  %8098 = vmatprep.subr.bf16.mxu0 %v5612
  %8099 = vmatpush1.bf16.msra.mxu0 %v5611
  %8100 = vmatprep.subr.bf16.mxu0 %v5610
  %8101 = vmatpush1.bf16.msra.mxu0 %v5609
  %8102 = vmatprep.subr.bf16.mxu0 %v5608
  %8103 = vmatpush1.bf16.msra.mxu0 %v5607
  %8104 = vmatprep.subr.bf16.mxu0 %v5606
  %8105 = vmatpush1.bf16.msra.mxu0 %v5605
  %8106 = vmatprep.subr.bf16.mxu0 %v5604
  %8107 = vmatpush1.bf16.msra.mxu0 %v5603
  %8108 = vmatprep.subr.bf16.mxu0 %v5602
  %8109 = vmatpush1.bf16.msra.mxu0 %v5601
  %8110 = vmatprep.subr.bf16.mxu0 %v5632
  %8111 = vmatpush2.bf16.msra.mxu0 %v5631
  %8112 = vmatprep.subr.bf16.mxu0 %v5630
  %8113 = vmatpush2.bf16.msra.mxu0 %v5629
  %8114 = vmatprep.subr.bf16.mxu0 %v5628
  %8115 = vmatpush2.bf16.msra.mxu0 %v5627
  %8116 = vmatprep.subr.bf16.mxu0 %v5626
  %8117 = vmatpush2.bf16.msra.mxu0 %v5625
  %8118 = vmatprep.subr.bf16.mxu0 %v5624
  %8119 = vmatpush2.bf16.msra.mxu0 %v5623
  %8120 = vmatprep.subr.bf16.mxu0 %v5622
  %8121 = vmatpush2.bf16.msra.mxu0 %v5621
  %8122 = vmatprep.subr.bf16.mxu0 %v5620
  %8123 = vmatpush2.bf16.msra.mxu0 %v5619
  %8124 = vmatprep.subr.bf16.mxu0 %v5618
  %8125 = vmatpush2.bf16.msra.mxu0 %v5617
  %8126 = vmatprep.mubr.bf16.mxu0 %v1372
  %8127 = vmatmul.mubr.bf16.gmra.mxu0 %v1371
  %v8128 = vpop.f32.mrf.mxu0
  %v8129 = vadd.f32 %v8088, %v8128
  %v8130 = vpop.f32.mrf.mxu0
  %v8131 = vadd.f32 %v8090, %v8130
  %v8132 = vpop.f32.mrf.mxu0
  %v8133 = vpop.f32.mrf.mxu0
  %8134 = vdwg.mxu0
  %8135 = vmatprep.subr.bf16.mxu0 %v5648
  %8136 = vmatpush1.bf16.msra.mxu0 %v5647
  %8137 = vmatprep.subr.bf16.mxu0 %v5646
  %8138 = vmatpush1.bf16.msra.mxu0 %v5645
  %8139 = vmatprep.subr.bf16.mxu0 %v5644
  %8140 = vmatpush1.bf16.msra.mxu0 %v5643
  %8141 = vmatprep.subr.bf16.mxu0 %v5642
  %8142 = vmatpush1.bf16.msra.mxu0 %v5641
  %8143 = vmatprep.subr.bf16.mxu0 %v5640
  %8144 = vmatpush1.bf16.msra.mxu0 %v5639
  %8145 = vmatprep.subr.bf16.mxu0 %v5638
  %8146 = vmatpush1.bf16.msra.mxu0 %v5637
  %8147 = vmatprep.subr.bf16.mxu0 %v5636
  %8148 = vmatpush1.bf16.msra.mxu0 %v5635
  %8149 = vmatprep.subr.bf16.mxu0 %v5634
  %8150 = vmatpush1.bf16.msra.mxu0 %v5633
  %8151 = vmatprep.subr.bf16.mxu0 %v5664
  %8152 = vmatpush2.bf16.msra.mxu0 %v5663
  %8153 = vmatprep.subr.bf16.mxu0 %v5662
  %8154 = vmatpush2.bf16.msra.mxu0 %v5661
  %8155 = vmatprep.subr.bf16.mxu0 %v5660
  %8156 = vmatpush2.bf16.msra.mxu0 %v5659
  %8157 = vmatprep.subr.bf16.mxu0 %v5658
  %8158 = vmatpush2.bf16.msra.mxu0 %v5657
  %8159 = vmatprep.subr.bf16.mxu0 %v5656
  %8160 = vmatpush2.bf16.msra.mxu0 %v5655
  %8161 = vmatprep.subr.bf16.mxu0 %v5654
  %8162 = vmatpush2.bf16.msra.mxu0 %v5653
  %8163 = vmatprep.subr.bf16.mxu0 %v5652
  %8164 = vmatpush2.bf16.msra.mxu0 %v5651
  %8165 = vmatprep.subr.bf16.mxu0 %v5650
  %8166 = vmatpush2.bf16.msra.mxu0 %v5649
  %8167 = vmatprep.mubr.bf16.mxu0 %v1374
  %8168 = vmatmul.mubr.bf16.gmra.mxu0 %v1373
  %v8169 = vpop.f32.mrf.mxu0
  %v8170 = vadd.f32 %v8129, %v8169
  %v8171 = vpop.f32.mrf.mxu0
  %v8172 = vadd.f32 %v8131, %v8171
  %v8173 = vpop.f32.mrf.mxu0
  %v8174 = vpop.f32.mrf.mxu0
  %8175 = vdwg.mxu0
  %8176 = vmatprep.subr.bf16.mxu0 %v5680
  %8177 = vmatpush1.bf16.msra.mxu0 %v5679
  %8178 = vmatprep.subr.bf16.mxu0 %v5678
  %8179 = vmatpush1.bf16.msra.mxu0 %v5677
  %8180 = vmatprep.subr.bf16.mxu0 %v5676
  %8181 = vmatpush1.bf16.msra.mxu0 %v5675
  %8182 = vmatprep.subr.bf16.mxu0 %v5674
  %8183 = vmatpush1.bf16.msra.mxu0 %v5673
  %8184 = vmatprep.subr.bf16.mxu0 %v5672
  %8185 = vmatpush1.bf16.msra.mxu0 %v5671
  %8186 = vmatprep.subr.bf16.mxu0 %v5670
  %8187 = vmatpush1.bf16.msra.mxu0 %v5669
  %8188 = vmatprep.subr.bf16.mxu0 %v5668
  %8189 = vmatpush1.bf16.msra.mxu0 %v5667
  %8190 = vmatprep.subr.bf16.mxu0 %v5666
  %8191 = vmatpush1.bf16.msra.mxu0 %v5665
  %8192 = vmatprep.subr.bf16.mxu0 %v5696
  %8193 = vmatpush2.bf16.msra.mxu0 %v5695
  %8194 = vmatprep.subr.bf16.mxu0 %v5694
  %8195 = vmatpush2.bf16.msra.mxu0 %v5693
  %8196 = vmatprep.subr.bf16.mxu0 %v5692
  %8197 = vmatpush2.bf16.msra.mxu0 %v5691
  %8198 = vmatprep.subr.bf16.mxu0 %v5690
  %8199 = vmatpush2.bf16.msra.mxu0 %v5689
  %8200 = vmatprep.subr.bf16.mxu0 %v5688
  %8201 = vmatpush2.bf16.msra.mxu0 %v5687
  %8202 = vmatprep.subr.bf16.mxu0 %v5686
  %8203 = vmatpush2.bf16.msra.mxu0 %v5685
  %8204 = vmatprep.subr.bf16.mxu0 %v5684
  %8205 = vmatpush2.bf16.msra.mxu0 %v5683
  %8206 = vmatprep.subr.bf16.mxu0 %v5682
  %8207 = vmatpush2.bf16.msra.mxu0 %v5681
  %8208 = vmatprep.mubr.bf16.mxu0 %v1376
  %8209 = vmatmul.mubr.bf16.gmra.mxu0 %v1375
  %v8210 = vpop.f32.mrf.mxu0
  %v8211 = vadd.f32 %v8170, %v8210
  %v8212 = vpop.f32.mrf.mxu0
  %v8213 = vadd.f32 %v8172, %v8212
  %v8214 = vpop.f32.mrf.mxu0
  %v8215 = vpop.f32.mrf.mxu0
  %8216 = vdwg.mxu0
  %8217 = vmatprep.subr.bf16.mxu0 %v5712
  %8218 = vmatpush1.bf16.msra.mxu0 %v5711
  %8219 = vmatprep.subr.bf16.mxu0 %v5710
  %8220 = vmatpush1.bf16.msra.mxu0 %v5709
  %8221 = vmatprep.subr.bf16.mxu0 %v5708
  %8222 = vmatpush1.bf16.msra.mxu0 %v5707
  %8223 = vmatprep.subr.bf16.mxu0 %v5706
  %8224 = vmatpush1.bf16.msra.mxu0 %v5705
  %8225 = vmatprep.subr.bf16.mxu0 %v5704
  %8226 = vmatpush1.bf16.msra.mxu0 %v5703
  %8227 = vmatprep.subr.bf16.mxu0 %v5702
  %8228 = vmatpush1.bf16.msra.mxu0 %v5701
  %8229 = vmatprep.subr.bf16.mxu0 %v5700
  %8230 = vmatpush1.bf16.msra.mxu0 %v5699
  %8231 = vmatprep.subr.bf16.mxu0 %v5698
  %8232 = vmatpush1.bf16.msra.mxu0 %v5697
  %8233 = vmatprep.subr.bf16.mxu0 %v5728
  %8234 = vmatpush2.bf16.msra.mxu0 %v5727
  %8235 = vmatprep.subr.bf16.mxu0 %v5726
  %8236 = vmatpush2.bf16.msra.mxu0 %v5725
  %8237 = vmatprep.subr.bf16.mxu0 %v5724
  %8238 = vmatpush2.bf16.msra.mxu0 %v5723
  %8239 = vmatprep.subr.bf16.mxu0 %v5722
  %8240 = vmatpush2.bf16.msra.mxu0 %v5721
  %8241 = vmatprep.subr.bf16.mxu0 %v5720
  %8242 = vmatpush2.bf16.msra.mxu0 %v5719
  %8243 = vmatprep.subr.bf16.mxu0 %v5718
  %8244 = vmatpush2.bf16.msra.mxu0 %v5717
  %8245 = vmatprep.subr.bf16.mxu0 %v5716
  %8246 = vmatpush2.bf16.msra.mxu0 %v5715
  %8247 = vmatprep.subr.bf16.mxu0 %v5714
  %8248 = vmatpush2.bf16.msra.mxu0 %v5713
  %8249 = vmatprep.mubr.bf16.mxu0 %v1378
  %8250 = vmatmul.mubr.bf16.gmra.mxu0 %v1377
  %v8251 = vpop.f32.mrf.mxu0
  %v8252 = vadd.f32 %v8211, %v8251
  %v8253 = vpop.f32.mrf.mxu0
  %v8254 = vadd.f32 %v8213, %v8253
  %v8255 = vpop.f32.mrf.mxu0
  %v8256 = vpop.f32.mrf.mxu0
  %8257 = vdwg.mxu0
  %8258 = vmatprep.subr.bf16.mxu0 %v5744
  %8259 = vmatpush1.bf16.msra.mxu0 %v5743
  %8260 = vmatprep.subr.bf16.mxu0 %v5742
  %8261 = vmatpush1.bf16.msra.mxu0 %v5741
  %8262 = vmatprep.subr.bf16.mxu0 %v5740
  %8263 = vmatpush1.bf16.msra.mxu0 %v5739
  %8264 = vmatprep.subr.bf16.mxu0 %v5738
  %8265 = vmatpush1.bf16.msra.mxu0 %v5737
  %8266 = vmatprep.subr.bf16.mxu0 %v5736
  %8267 = vmatpush1.bf16.msra.mxu0 %v5735
  %8268 = vmatprep.subr.bf16.mxu0 %v5734
  %8269 = vmatpush1.bf16.msra.mxu0 %v5733
  %8270 = vmatprep.subr.bf16.mxu0 %v5732
  %8271 = vmatpush1.bf16.msra.mxu0 %v5731
  %8272 = vmatprep.subr.bf16.mxu0 %v5730
  %8273 = vmatpush1.bf16.msra.mxu0 %v5729
  %8274 = vmatprep.subr.bf16.mxu0 %v5760
  %8275 = vmatpush2.bf16.msra.mxu0 %v5759
  %8276 = vmatprep.subr.bf16.mxu0 %v5758
  %8277 = vmatpush2.bf16.msra.mxu0 %v5757
  %8278 = vmatprep.subr.bf16.mxu0 %v5756
  %8279 = vmatpush2.bf16.msra.mxu0 %v5755
  %8280 = vmatprep.subr.bf16.mxu0 %v5754
  %8281 = vmatpush2.bf16.msra.mxu0 %v5753
  %8282 = vmatprep.subr.bf16.mxu0 %v5752
  %8283 = vmatpush2.bf16.msra.mxu0 %v5751
  %8284 = vmatprep.subr.bf16.mxu0 %v5750
  %8285 = vmatpush2.bf16.msra.mxu0 %v5749
  %8286 = vmatprep.subr.bf16.mxu0 %v5748
  %8287 = vmatpush2.bf16.msra.mxu0 %v5747
  %8288 = vmatprep.subr.bf16.mxu0 %v5746
  %8289 = vmatpush2.bf16.msra.mxu0 %v5745
  %8290 = vmatprep.mubr.bf16.mxu0 %v1380
  %8291 = vmatmul.mubr.bf16.gmra.mxu0 %v1379
  %v8292 = vpop.f32.mrf.mxu0
  %v8293 = vadd.f32 %v8252, %v8292
  %v8294 = vpop.f32.mrf.mxu0
  %v8295 = vadd.f32 %v8254, %v8294
  %v8296 = vpop.f32.mrf.mxu0
  %v8297 = vpop.f32.mrf.mxu0
  %8298 = vdwg.mxu0
  %8299 = vmatprep.subr.bf16.mxu0 %v5776
  %8300 = vmatpush1.bf16.msra.mxu0 %v5775
  %8301 = vmatprep.subr.bf16.mxu0 %v5774
  %8302 = vmatpush1.bf16.msra.mxu0 %v5773
  %8303 = vmatprep.subr.bf16.mxu0 %v5772
  %8304 = vmatpush1.bf16.msra.mxu0 %v5771
  %8305 = vmatprep.subr.bf16.mxu0 %v5770
  %8306 = vmatpush1.bf16.msra.mxu0 %v5769
  %8307 = vmatprep.subr.bf16.mxu0 %v5768
  %8308 = vmatpush1.bf16.msra.mxu0 %v5767
  %8309 = vmatprep.subr.bf16.mxu0 %v5766
  %8310 = vmatpush1.bf16.msra.mxu0 %v5765
  %8311 = vmatprep.subr.bf16.mxu0 %v5764
  %8312 = vmatpush1.bf16.msra.mxu0 %v5763
  %8313 = vmatprep.subr.bf16.mxu0 %v5762
  %8314 = vmatpush1.bf16.msra.mxu0 %v5761
  %8315 = vmatprep.subr.bf16.mxu0 %v5792
  %8316 = vmatpush2.bf16.msra.mxu0 %v5791
  %8317 = vmatprep.subr.bf16.mxu0 %v5790
  %8318 = vmatpush2.bf16.msra.mxu0 %v5789
  %8319 = vmatprep.subr.bf16.mxu0 %v5788
  %8320 = vmatpush2.bf16.msra.mxu0 %v5787
  %8321 = vmatprep.subr.bf16.mxu0 %v5786
  %8322 = vmatpush2.bf16.msra.mxu0 %v5785
  %8323 = vmatprep.subr.bf16.mxu0 %v5784
  %8324 = vmatpush2.bf16.msra.mxu0 %v5783
  %8325 = vmatprep.subr.bf16.mxu0 %v5782
  %8326 = vmatpush2.bf16.msra.mxu0 %v5781
  %8327 = vmatprep.subr.bf16.mxu0 %v5780
  %8328 = vmatpush2.bf16.msra.mxu0 %v5779
  %8329 = vmatprep.subr.bf16.mxu0 %v5778
  %8330 = vmatpush2.bf16.msra.mxu0 %v5777
  %8331 = vmatprep.mubr.bf16.mxu0 %v1382
  %8332 = vmatmul.mubr.bf16.gmra.mxu0 %v1381
  %v8333 = vpop.f32.mrf.mxu0
  %v8334 = vadd.f32 %v8293, %v8333
  %v8335 = vpop.f32.mrf.mxu0
  %v8336 = vadd.f32 %v8295, %v8335
  %v8337 = vpop.f32.mrf.mxu0
  %v8338 = vpop.f32.mrf.mxu0
  %8339 = vdwg.mxu0
  %8340 = vmatprep.subr.bf16.mxu0 %v5808
  %8341 = vmatpush1.bf16.msra.mxu0 %v5807
  %8342 = vmatprep.subr.bf16.mxu0 %v5806
  %8343 = vmatpush1.bf16.msra.mxu0 %v5805
  %8344 = vmatprep.subr.bf16.mxu0 %v5804
  %8345 = vmatpush1.bf16.msra.mxu0 %v5803
  %8346 = vmatprep.subr.bf16.mxu0 %v5802
  %8347 = vmatpush1.bf16.msra.mxu0 %v5801
  %8348 = vmatprep.subr.bf16.mxu0 %v5800
  %8349 = vmatpush1.bf16.msra.mxu0 %v5799
  %8350 = vmatprep.subr.bf16.mxu0 %v5798
  %8351 = vmatpush1.bf16.msra.mxu0 %v5797
  %8352 = vmatprep.subr.bf16.mxu0 %v5796
  %8353 = vmatpush1.bf16.msra.mxu0 %v5795
  %8354 = vmatprep.subr.bf16.mxu0 %v5794
  %8355 = vmatpush1.bf16.msra.mxu0 %v5793
  %8356 = vmatprep.subr.bf16.mxu0 %v5824
  %8357 = vmatpush2.bf16.msra.mxu0 %v5823
  %8358 = vmatprep.subr.bf16.mxu0 %v5822
  %8359 = vmatpush2.bf16.msra.mxu0 %v5821
  %8360 = vmatprep.subr.bf16.mxu0 %v5820
  %8361 = vmatpush2.bf16.msra.mxu0 %v5819
  %8362 = vmatprep.subr.bf16.mxu0 %v5818
  %8363 = vmatpush2.bf16.msra.mxu0 %v5817
  %8364 = vmatprep.subr.bf16.mxu0 %v5816
  %8365 = vmatpush2.bf16.msra.mxu0 %v5815
  %8366 = vmatprep.subr.bf16.mxu0 %v5814
  %8367 = vmatpush2.bf16.msra.mxu0 %v5813
  %8368 = vmatprep.subr.bf16.mxu0 %v5812
  %8369 = vmatpush2.bf16.msra.mxu0 %v5811
  %8370 = vmatprep.subr.bf16.mxu0 %v5810
  %8371 = vmatpush2.bf16.msra.mxu0 %v5809
  %8372 = vmatprep.mubr.bf16.mxu0 %v1384
  %8373 = vmatmul.mubr.bf16.gmra.mxu0 %v1383
  %v8374 = vpop.f32.mrf.mxu0
  %v8375 = vadd.f32 %v8334, %v8374
  %v8376 = vpop.f32.mrf.mxu0
  %v8377 = vadd.f32 %v8336, %v8376
  %v8378 = vpop.f32.mrf.mxu0
  %v8379 = vpop.f32.mrf.mxu0
  %8380 = vdwg.mxu0
  %8381 = vmatprep.subr.bf16.mxu0 %v5840
  %8382 = vmatpush1.bf16.msra.mxu0 %v5839
  %8383 = vmatprep.subr.bf16.mxu0 %v5838
  %8384 = vmatpush1.bf16.msra.mxu0 %v5837
  %8385 = vmatprep.subr.bf16.mxu0 %v5836
  %8386 = vmatpush1.bf16.msra.mxu0 %v5835
  %8387 = vmatprep.subr.bf16.mxu0 %v5834
  %8388 = vmatpush1.bf16.msra.mxu0 %v5833
  %8389 = vmatprep.subr.bf16.mxu0 %v5832
  %8390 = vmatpush1.bf16.msra.mxu0 %v5831
  %8391 = vmatprep.subr.bf16.mxu0 %v5830
  %8392 = vmatpush1.bf16.msra.mxu0 %v5829
  %8393 = vmatprep.subr.bf16.mxu0 %v5828
  %8394 = vmatpush1.bf16.msra.mxu0 %v5827
  %8395 = vmatprep.subr.bf16.mxu0 %v5826
  %8396 = vmatpush1.bf16.msra.mxu0 %v5825
  %8397 = vmatprep.subr.bf16.mxu0 %v5856
  %8398 = vmatpush2.bf16.msra.mxu0 %v5855
  %8399 = vmatprep.subr.bf16.mxu0 %v5854
  %8400 = vmatpush2.bf16.msra.mxu0 %v5853
  %8401 = vmatprep.subr.bf16.mxu0 %v5852
  %8402 = vmatpush2.bf16.msra.mxu0 %v5851
  %8403 = vmatprep.subr.bf16.mxu0 %v5850
  %8404 = vmatpush2.bf16.msra.mxu0 %v5849
  %8405 = vmatprep.subr.bf16.mxu0 %v5848
  %8406 = vmatpush2.bf16.msra.mxu0 %v5847
  %8407 = vmatprep.subr.bf16.mxu0 %v5846
  %8408 = vmatpush2.bf16.msra.mxu0 %v5845
  %8409 = vmatprep.subr.bf16.mxu0 %v5844
  %8410 = vmatpush2.bf16.msra.mxu0 %v5843
  %8411 = vmatprep.subr.bf16.mxu0 %v5842
  %8412 = vmatpush2.bf16.msra.mxu0 %v5841
  %8413 = vmatprep.mubr.bf16.mxu0 %v1386
  %8414 = vmatmul.mubr.bf16.gmra.mxu0 %v1385
  %v8415 = vpop.f32.mrf.mxu0
  %v8416 = vadd.f32 %v8375, %v8415
  %v8417 = vpop.f32.mrf.mxu0
  %v8418 = vadd.f32 %v8377, %v8417
  %v8419 = vpop.f32.mrf.mxu0
  %v8420 = vpop.f32.mrf.mxu0
  %8421 = vdwg.mxu0
  %8422 = vmatprep.subr.bf16.mxu0 %v5872
  %8423 = vmatpush1.bf16.msra.mxu0 %v5871
  %8424 = vmatprep.subr.bf16.mxu0 %v5870
  %8425 = vmatpush1.bf16.msra.mxu0 %v5869
  %8426 = vmatprep.subr.bf16.mxu0 %v5868
  %8427 = vmatpush1.bf16.msra.mxu0 %v5867
  %8428 = vmatprep.subr.bf16.mxu0 %v5866
  %8429 = vmatpush1.bf16.msra.mxu0 %v5865
  %8430 = vmatprep.subr.bf16.mxu0 %v5864
  %8431 = vmatpush1.bf16.msra.mxu0 %v5863
  %8432 = vmatprep.subr.bf16.mxu0 %v5862
  %8433 = vmatpush1.bf16.msra.mxu0 %v5861
  %8434 = vmatprep.subr.bf16.mxu0 %v5860
  %8435 = vmatpush1.bf16.msra.mxu0 %v5859
  %8436 = vmatprep.subr.bf16.mxu0 %v5858
  %8437 = vmatpush1.bf16.msra.mxu0 %v5857
  %8438 = vmatprep.subr.bf16.mxu0 %v5888
  %8439 = vmatpush2.bf16.msra.mxu0 %v5887
  %8440 = vmatprep.subr.bf16.mxu0 %v5886
  %8441 = vmatpush2.bf16.msra.mxu0 %v5885
  %8442 = vmatprep.subr.bf16.mxu0 %v5884
  %8443 = vmatpush2.bf16.msra.mxu0 %v5883
  %8444 = vmatprep.subr.bf16.mxu0 %v5882
  %8445 = vmatpush2.bf16.msra.mxu0 %v5881
  %8446 = vmatprep.subr.bf16.mxu0 %v5880
  %8447 = vmatpush2.bf16.msra.mxu0 %v5879
  %8448 = vmatprep.subr.bf16.mxu0 %v5878
  %8449 = vmatpush2.bf16.msra.mxu0 %v5877
  %8450 = vmatprep.subr.bf16.mxu0 %v5876
  %8451 = vmatpush2.bf16.msra.mxu0 %v5875
  %8452 = vmatprep.subr.bf16.mxu0 %v5874
  %8453 = vmatpush2.bf16.msra.mxu0 %v5873
  %8454 = vmatprep.mubr.bf16.mxu0 %v1388
  %8455 = vmatmul.mubr.bf16.gmra.mxu0 %v1387
  %v8456 = vpop.f32.mrf.mxu0
  %v8457 = vadd.f32 %v8416, %v8456
  %v8458 = vpop.f32.mrf.mxu0
  %v8459 = vadd.f32 %v8418, %v8458
  %v8460 = vpop.f32.mrf.mxu0
  %v8461 = vpop.f32.mrf.mxu0
  %8462 = vdwg.mxu0
  %8463 = vmatprep.subr.bf16.mxu0 %v5904
  %8464 = vmatpush1.bf16.msra.mxu0 %v5903
  %8465 = vmatprep.subr.bf16.mxu0 %v5902
  %8466 = vmatpush1.bf16.msra.mxu0 %v5901
  %8467 = vmatprep.subr.bf16.mxu0 %v5900
  %8468 = vmatpush1.bf16.msra.mxu0 %v5899
  %8469 = vmatprep.subr.bf16.mxu0 %v5898
  %8470 = vmatpush1.bf16.msra.mxu0 %v5897
  %8471 = vmatprep.subr.bf16.mxu0 %v5896
  %8472 = vmatpush1.bf16.msra.mxu0 %v5895
  %8473 = vmatprep.subr.bf16.mxu0 %v5894
  %8474 = vmatpush1.bf16.msra.mxu0 %v5893
  %8475 = vmatprep.subr.bf16.mxu0 %v5892
  %8476 = vmatpush1.bf16.msra.mxu0 %v5891
  %8477 = vmatprep.subr.bf16.mxu0 %v5890
  %8478 = vmatpush1.bf16.msra.mxu0 %v5889
  %8479 = vmatprep.subr.bf16.mxu0 %v5920
  %8480 = vmatpush2.bf16.msra.mxu0 %v5919
  %8481 = vmatprep.subr.bf16.mxu0 %v5918
  %8482 = vmatpush2.bf16.msra.mxu0 %v5917
  %8483 = vmatprep.subr.bf16.mxu0 %v5916
  %8484 = vmatpush2.bf16.msra.mxu0 %v5915
  %8485 = vmatprep.subr.bf16.mxu0 %v5914
  %8486 = vmatpush2.bf16.msra.mxu0 %v5913
  %8487 = vmatprep.subr.bf16.mxu0 %v5912
  %8488 = vmatpush2.bf16.msra.mxu0 %v5911
  %8489 = vmatprep.subr.bf16.mxu0 %v5910
  %8490 = vmatpush2.bf16.msra.mxu0 %v5909
  %8491 = vmatprep.subr.bf16.mxu0 %v5908
  %8492 = vmatpush2.bf16.msra.mxu0 %v5907
  %8493 = vmatprep.subr.bf16.mxu0 %v5906
  %8494 = vmatpush2.bf16.msra.mxu0 %v5905
  %8495 = vmatprep.mubr.bf16.mxu0 %v1390
  %8496 = vmatmul.mubr.bf16.gmra.mxu0 %v1389
  %v8497 = vpop.f32.mrf.mxu0
  %v8498 = vadd.f32 %v8457, %v8497
  %v8499 = vpop.f32.mrf.mxu0
  %v8500 = vadd.f32 %v8459, %v8499
  %v8501 = vpop.f32.mrf.mxu0
  %v8502 = vpop.f32.mrf.mxu0
  %8503 = vdwg.mxu0
  %8504 = vmatprep.subr.bf16.mxu0 %v5936
  %8505 = vmatpush1.bf16.msra.mxu0 %v5935
  %8506 = vmatprep.subr.bf16.mxu0 %v5934
  %8507 = vmatpush1.bf16.msra.mxu0 %v5933
  %8508 = vmatprep.subr.bf16.mxu0 %v5932
  %8509 = vmatpush1.bf16.msra.mxu0 %v5931
  %8510 = vmatprep.subr.bf16.mxu0 %v5930
  %8511 = vmatpush1.bf16.msra.mxu0 %v5929
  %8512 = vmatprep.subr.bf16.mxu0 %v5928
  %8513 = vmatpush1.bf16.msra.mxu0 %v5927
  %8514 = vmatprep.subr.bf16.mxu0 %v5926
  %8515 = vmatpush1.bf16.msra.mxu0 %v5925
  %8516 = vmatprep.subr.bf16.mxu0 %v5924
  %8517 = vmatpush1.bf16.msra.mxu0 %v5923
  %8518 = vmatprep.subr.bf16.mxu0 %v5922
  %8519 = vmatpush1.bf16.msra.mxu0 %v5921
  %8520 = vmatprep.subr.bf16.mxu0 %v5952
  %8521 = vmatpush2.bf16.msra.mxu0 %v5951
  %8522 = vmatprep.subr.bf16.mxu0 %v5950
  %8523 = vmatpush2.bf16.msra.mxu0 %v5949
  %8524 = vmatprep.subr.bf16.mxu0 %v5948
  %8525 = vmatpush2.bf16.msra.mxu0 %v5947
  %8526 = vmatprep.subr.bf16.mxu0 %v5946
  %8527 = vmatpush2.bf16.msra.mxu0 %v5945
  %8528 = vmatprep.subr.bf16.mxu0 %v5944
  %8529 = vmatpush2.bf16.msra.mxu0 %v5943
  %8530 = vmatprep.subr.bf16.mxu0 %v5942
  %8531 = vmatpush2.bf16.msra.mxu0 %v5941
  %8532 = vmatprep.subr.bf16.mxu0 %v5940
  %8533 = vmatpush2.bf16.msra.mxu0 %v5939
  %8534 = vmatprep.subr.bf16.mxu0 %v5938
  %8535 = vmatpush2.bf16.msra.mxu0 %v5937
  %8536 = vmatprep.mubr.bf16.mxu0 %v1392
  %8537 = vmatmul.mubr.bf16.gmra.mxu0 %v1391
  %v8538 = vpop.f32.mrf.mxu0
  %v8539 = vadd.f32 %v8498, %v8538
  %v8540 = vpop.f32.mrf.mxu0
  %v8541 = vadd.f32 %v8500, %v8540
  %v8542 = vpop.f32.mrf.mxu0
  %v8543 = vpop.f32.mrf.mxu0
  %8544 = vdwg.mxu0
  %8545 = vmatprep.subr.bf16.mxu0 %v5968
  %8546 = vmatpush1.bf16.msra.mxu0 %v5967
  %8547 = vmatprep.subr.bf16.mxu0 %v5966
  %8548 = vmatpush1.bf16.msra.mxu0 %v5965
  %8549 = vmatprep.subr.bf16.mxu0 %v5964
  %8550 = vmatpush1.bf16.msra.mxu0 %v5963
  %8551 = vmatprep.subr.bf16.mxu0 %v5962
  %8552 = vmatpush1.bf16.msra.mxu0 %v5961
  %8553 = vmatprep.subr.bf16.mxu0 %v5960
  %8554 = vmatpush1.bf16.msra.mxu0 %v5959
  %8555 = vmatprep.subr.bf16.mxu0 %v5958
  %8556 = vmatpush1.bf16.msra.mxu0 %v5957
  %8557 = vmatprep.subr.bf16.mxu0 %v5956
  %8558 = vmatpush1.bf16.msra.mxu0 %v5955
  %8559 = vmatprep.subr.bf16.mxu0 %v5954
  %8560 = vmatpush1.bf16.msra.mxu0 %v5953
  %8561 = vmatprep.subr.bf16.mxu0 %v5984
  %8562 = vmatpush2.bf16.msra.mxu0 %v5983
  %8563 = vmatprep.subr.bf16.mxu0 %v5982
  %8564 = vmatpush2.bf16.msra.mxu0 %v5981
  %8565 = vmatprep.subr.bf16.mxu0 %v5980
  %8566 = vmatpush2.bf16.msra.mxu0 %v5979
  %8567 = vmatprep.subr.bf16.mxu0 %v5978
  %8568 = vmatpush2.bf16.msra.mxu0 %v5977
  %8569 = vmatprep.subr.bf16.mxu0 %v5976
  %8570 = vmatpush2.bf16.msra.mxu0 %v5975
  %8571 = vmatprep.subr.bf16.mxu0 %v5974
  %8572 = vmatpush2.bf16.msra.mxu0 %v5973
  %8573 = vmatprep.subr.bf16.mxu0 %v5972
  %8574 = vmatpush2.bf16.msra.mxu0 %v5971
  %8575 = vmatprep.subr.bf16.mxu0 %v5970
  %8576 = vmatpush2.bf16.msra.mxu0 %v5969
  %8577 = vmatprep.mubr.bf16.mxu0 %v1394
  %8578 = vmatmul.mubr.bf16.gmra.mxu0 %v1393
  %v8579 = vpop.f32.mrf.mxu0
  %v8580 = vadd.f32 %v8539, %v8579
  %v8581 = vpop.f32.mrf.mxu0
  %v8582 = vadd.f32 %v8541, %v8581
  %v8583 = vpop.f32.mrf.mxu0
  %v8584 = vpop.f32.mrf.mxu0
  %8585 = vdwg.mxu0
  %8586 = vmatprep.subr.bf16.mxu0 %v6000
  %8587 = vmatpush1.bf16.msra.mxu0 %v5999
  %8588 = vmatprep.subr.bf16.mxu0 %v5998
  %8589 = vmatpush1.bf16.msra.mxu0 %v5997
  %8590 = vmatprep.subr.bf16.mxu0 %v5996
  %8591 = vmatpush1.bf16.msra.mxu0 %v5995
  %8592 = vmatprep.subr.bf16.mxu0 %v5994
  %8593 = vmatpush1.bf16.msra.mxu0 %v5993
  %8594 = vmatprep.subr.bf16.mxu0 %v5992
  %8595 = vmatpush1.bf16.msra.mxu0 %v5991
  %8596 = vmatprep.subr.bf16.mxu0 %v5990
  %8597 = vmatpush1.bf16.msra.mxu0 %v5989
  %8598 = vmatprep.subr.bf16.mxu0 %v5988
  %8599 = vmatpush1.bf16.msra.mxu0 %v5987
  %8600 = vmatprep.subr.bf16.mxu0 %v5986
  %8601 = vmatpush1.bf16.msra.mxu0 %v5985
  %8602 = vmatprep.subr.bf16.mxu0 %v6016
  %8603 = vmatpush2.bf16.msra.mxu0 %v6015
  %8604 = vmatprep.subr.bf16.mxu0 %v6014
  %8605 = vmatpush2.bf16.msra.mxu0 %v6013
  %8606 = vmatprep.subr.bf16.mxu0 %v6012
  %8607 = vmatpush2.bf16.msra.mxu0 %v6011
  %8608 = vmatprep.subr.bf16.mxu0 %v6010
  %8609 = vmatpush2.bf16.msra.mxu0 %v6009
  %8610 = vmatprep.subr.bf16.mxu0 %v6008
  %8611 = vmatpush2.bf16.msra.mxu0 %v6007
  %8612 = vmatprep.subr.bf16.mxu0 %v6006
  %8613 = vmatpush2.bf16.msra.mxu0 %v6005
  %8614 = vmatprep.subr.bf16.mxu0 %v6004
  %8615 = vmatpush2.bf16.msra.mxu0 %v6003
  %8616 = vmatprep.subr.bf16.mxu0 %v6002
  %8617 = vmatpush2.bf16.msra.mxu0 %v6001
  %8618 = vmatprep.mubr.bf16.mxu0 %v1396
  %8619 = vmatmul.mubr.bf16.gmra.mxu0 %v1395
  %v8620 = vpop.f32.mrf.mxu0
  %v8621 = vadd.f32 %v8580, %v8620
  %v8622 = vpop.f32.mrf.mxu0
  %v8623 = vadd.f32 %v8582, %v8622
  %v8624 = vpop.f32.mrf.mxu0
  %v8625 = vpop.f32.mrf.mxu0
  %8626 = vdwg.mxu0
  %8627 = vmatprep.subr.bf16.mxu0 %v6032
  %8628 = vmatpush1.bf16.msra.mxu0 %v6031
  %8629 = vmatprep.subr.bf16.mxu0 %v6030
  %8630 = vmatpush1.bf16.msra.mxu0 %v6029
  %8631 = vmatprep.subr.bf16.mxu0 %v6028
  %8632 = vmatpush1.bf16.msra.mxu0 %v6027
  %8633 = vmatprep.subr.bf16.mxu0 %v6026
  %8634 = vmatpush1.bf16.msra.mxu0 %v6025
  %8635 = vmatprep.subr.bf16.mxu0 %v6024
  %8636 = vmatpush1.bf16.msra.mxu0 %v6023
  %8637 = vmatprep.subr.bf16.mxu0 %v6022
  %8638 = vmatpush1.bf16.msra.mxu0 %v6021
  %8639 = vmatprep.subr.bf16.mxu0 %v6020
  %8640 = vmatpush1.bf16.msra.mxu0 %v6019
  %8641 = vmatprep.subr.bf16.mxu0 %v6018
  %8642 = vmatpush1.bf16.msra.mxu0 %v6017
  %8643 = vmatprep.subr.bf16.mxu0 %v6048
  %8644 = vmatpush2.bf16.msra.mxu0 %v6047
  %8645 = vmatprep.subr.bf16.mxu0 %v6046
  %8646 = vmatpush2.bf16.msra.mxu0 %v6045
  %8647 = vmatprep.subr.bf16.mxu0 %v6044
  %8648 = vmatpush2.bf16.msra.mxu0 %v6043
  %8649 = vmatprep.subr.bf16.mxu0 %v6042
  %8650 = vmatpush2.bf16.msra.mxu0 %v6041
  %8651 = vmatprep.subr.bf16.mxu0 %v6040
  %8652 = vmatpush2.bf16.msra.mxu0 %v6039
  %8653 = vmatprep.subr.bf16.mxu0 %v6038
  %8654 = vmatpush2.bf16.msra.mxu0 %v6037
  %8655 = vmatprep.subr.bf16.mxu0 %v6036
  %8656 = vmatpush2.bf16.msra.mxu0 %v6035
  %8657 = vmatprep.subr.bf16.mxu0 %v6034
  %8658 = vmatpush2.bf16.msra.mxu0 %v6033
  %8659 = vmatprep.mubr.bf16.mxu0 %v1398
  %8660 = vmatmul.mubr.bf16.gmra.mxu0 %v1397
  %v8661 = vpop.f32.mrf.mxu0
  %v8662 = vadd.f32 %v8621, %v8661
  %v8663 = vpop.f32.mrf.mxu0
  %v8664 = vadd.f32 %v8623, %v8663
  %v8665 = vpop.f32.mrf.mxu0
  %v8666 = vpop.f32.mrf.mxu0
  %8667 = vdwg.mxu0
  %8668 = vmatprep.subr.bf16.mxu0 %v6064
  %8669 = vmatpush1.bf16.msra.mxu0 %v6063
  %8670 = vmatprep.subr.bf16.mxu0 %v6062
  %8671 = vmatpush1.bf16.msra.mxu0 %v6061
  %8672 = vmatprep.subr.bf16.mxu0 %v6060
  %8673 = vmatpush1.bf16.msra.mxu0 %v6059
  %8674 = vmatprep.subr.bf16.mxu0 %v6058
  %8675 = vmatpush1.bf16.msra.mxu0 %v6057
  %8676 = vmatprep.subr.bf16.mxu0 %v6056
  %8677 = vmatpush1.bf16.msra.mxu0 %v6055
  %8678 = vmatprep.subr.bf16.mxu0 %v6054
  %8679 = vmatpush1.bf16.msra.mxu0 %v6053
  %8680 = vmatprep.subr.bf16.mxu0 %v6052
  %8681 = vmatpush1.bf16.msra.mxu0 %v6051
  %8682 = vmatprep.subr.bf16.mxu0 %v6050
  %8683 = vmatpush1.bf16.msra.mxu0 %v6049
  %8684 = vmatprep.subr.bf16.mxu0 %v6080
  %8685 = vmatpush2.bf16.msra.mxu0 %v6079
  %8686 = vmatprep.subr.bf16.mxu0 %v6078
  %8687 = vmatpush2.bf16.msra.mxu0 %v6077
  %8688 = vmatprep.subr.bf16.mxu0 %v6076
  %8689 = vmatpush2.bf16.msra.mxu0 %v6075
  %8690 = vmatprep.subr.bf16.mxu0 %v6074
  %8691 = vmatpush2.bf16.msra.mxu0 %v6073
  %8692 = vmatprep.subr.bf16.mxu0 %v6072
  %8693 = vmatpush2.bf16.msra.mxu0 %v6071
  %8694 = vmatprep.subr.bf16.mxu0 %v6070
  %8695 = vmatpush2.bf16.msra.mxu0 %v6069
  %8696 = vmatprep.subr.bf16.mxu0 %v6068
  %8697 = vmatpush2.bf16.msra.mxu0 %v6067
  %8698 = vmatprep.subr.bf16.mxu0 %v6066
  %8699 = vmatpush2.bf16.msra.mxu0 %v6065
  %8700 = vmatprep.mubr.bf16.mxu0 %v1400
  %8701 = vmatmul.mubr.bf16.gmra.mxu0 %v1399
  %v8702 = vpop.f32.mrf.mxu0
  %v8703 = vadd.f32 %v8662, %v8702
  %v8704 = vpop.f32.mrf.mxu0
  %v8705 = vadd.f32 %v8664, %v8704
  %v8706 = vpop.f32.mrf.mxu0
  %v8707 = vpop.f32.mrf.mxu0
  %8708 = vdwg.mxu0
  %v8709 = vmax.f32 %v8703, 0.0
  %v8710 = vmax.f32 %v8705, 0.0
  %v8711 = vpack.c.bf16 %v8709, %v8709
  %v8712 = vpack.c.bf16 %v8710, %v8710
  %v8713 = vld [vmem:[%s3] sm:$0xf]
  %v8714 = vld [vmem:[%s3 + $0x4] sm:$0xf]
  %v8715 = vld [vmem:[%s3 + $0x8] sm:$0xf]
  %v8716 = vld [vmem:[%s3 + $0xc] sm:$0xf]
  %v8717 = vld [vmem:[%s3 + $0x10] sm:$0xf]
  %v8718 = vld [vmem:[%s3 + $0x14] sm:$0xf]
  %v8719 = vld [vmem:[%s3 + $0x18] sm:$0xf]
  %v8720 = vld [vmem:[%s3 + $0x1c] sm:$0xf]
  %v8721 = vld [vmem:[%s3 + $0x20] sm:$0xf]
  %v8722 = vld [vmem:[%s3 + $0x24] sm:$0xf]
  %v8723 = vld [vmem:[%s3 + $0x28] sm:$0xf]
  %v8724 = vld [vmem:[%s3 + $0x2c] sm:$0xf]
  %v8725 = vld [vmem:[%s3 + $0x30] sm:$0xf]
  %v8726 = vld [vmem:[%s3 + $0x34] sm:$0xf]
  %v8727 = vld [vmem:[%s3 + $0x38] sm:$0xf]
  %v8728 = vld [vmem:[%s3 + $0x3c] sm:$0xf]
  %v8729 = vld [vmem:[%s3 + $0x40] sm:$0xf]
  %v8730 = vld [vmem:[%s3 + $0x44] sm:$0xf]
  %v8731 = vld [vmem:[%s3 + $0x48] sm:$0xf]
  %v8732 = vld [vmem:[%s3 + $0x4c] sm:$0xf]
  %v8733 = vld [vmem:[%s3 + $0x50] sm:$0xf]
  %v8734 = vld [vmem:[%s3 + $0x54] sm:$0xf]
  %v8735 = vld [vmem:[%s3 + $0x58] sm:$0xf]
  %v8736 = vld [vmem:[%s3 + $0x5c] sm:$0xf]
  %v8737 = vld [vmem:[%s3 + $0x60] sm:$0xf]
  %v8738 = vld [vmem:[%s3 + $0x64] sm:$0xf]
  %v8739 = vld [vmem:[%s3 + $0x68] sm:$0xf]
  %v8740 = vld [vmem:[%s3 + $0x6c] sm:$0xf]
  %v8741 = vld [vmem:[%s3 + $0x70] sm:$0xf]
  %v8742 = vld [vmem:[%s3 + $0x74] sm:$0xf]
  %v8743 = vld [vmem:[%s3 + $0x78] sm:$0xf]
  %v8744 = vld [vmem:[%s3 + $0x7c] sm:$0xf]
  %v8745 = vld [vmem:[%s4] sm:$0x1]
  %v8747 = vlaneseq
  %v8748 = vshrl.u32 %v8747, 7
  %v8749 = vsub.s32 0, %v8748
  %v8750 = vrot.slane %v8745, %v8749
  %v8784 = vunpack.c.l.b16 %v8713
  %v8785 = vunpack.c.l.b16 %v8714
  %v8786 = vunpack.c.l.b16 %v8715
  %v8787 = vunpack.c.l.b16 %v8716
  %v8788 = vunpack.c.l.b16 %v8717
  %v8789 = vunpack.c.l.b16 %v8718
  %v8790 = vunpack.c.l.b16 %v8719
  %v8791 = vunpack.c.l.b16 %v8720
  %v8792 = vunpack.c.l.b16 %v8721
  %v8793 = vunpack.c.l.b16 %v8722
  %v8794 = vunpack.c.l.b16 %v8723
  %v8795 = vunpack.c.l.b16 %v8724
  %v8796 = vunpack.c.l.b16 %v8725
  %v8797 = vunpack.c.l.b16 %v8726
  %v8798 = vunpack.c.l.b16 %v8727
  %v8799 = vunpack.c.l.b16 %v8728
  %v8800 = vunpack.c.l.b16 %v8729
  %v8801 = vunpack.c.l.b16 %v8730
  %v8802 = vunpack.c.l.b16 %v8731
  %v8803 = vunpack.c.l.b16 %v8732
  %v8804 = vunpack.c.l.b16 %v8733
  %v8805 = vunpack.c.l.b16 %v8734
  %v8806 = vunpack.c.l.b16 %v8735
  %v8807 = vunpack.c.l.b16 %v8736
  %v8808 = vunpack.c.l.b16 %v8737
  %v8809 = vunpack.c.l.b16 %v8738
  %v8810 = vunpack.c.l.b16 %v8739
  %v8811 = vunpack.c.l.b16 %v8740
  %v8812 = vunpack.c.l.b16 %v8741
  %v8813 = vunpack.c.l.b16 %v8742
  %v8814 = vunpack.c.l.b16 %v8743
  %v8815 = vunpack.c.l.b16 %v8744
  %v8816 = vpack.c.b16 %v8785, %v8784
  %v8817 = vpack.c.b16 %v8787, %v8786
  %v8818 = vpack.c.b16 %v8789, %v8788
  %v8819 = vpack.c.b16 %v8791, %v8790
  %v8820 = vpack.c.b16 %v8793, %v8792
  %v8821 = vpack.c.b16 %v8795, %v8794
  %v8822 = vpack.c.b16 %v8797, %v8796
  %v8823 = vpack.c.b16 %v8799, %v8798
  %v8824 = vpack.c.b16 %v8801, %v8800
  %v8825 = vpack.c.b16 %v8803, %v8802
  %v8826 = vpack.c.b16 %v8805, %v8804
  %v8827 = vpack.c.b16 %v8807, %v8806
  %v8828 = vpack.c.b16 %v8809, %v8808
  %v8829 = vpack.c.b16 %v8811, %v8810
  %v8830 = vpack.c.b16 %v8813, %v8812
  %v8831 = vpack.c.b16 %v8815, %v8814
  %8848 = vmatprep.subr.bf16.mxu0 0
  %8849 = vmatpush1.bf16.msra.mxu0 %v8823
  %8850 = vmatprep.subr.bf16.mxu0 0
  %8851 = vmatpush1.bf16.msra.mxu0 %v8822
  %8852 = vmatprep.subr.bf16.mxu0 0
  %8853 = vmatpush1.bf16.msra.mxu0 %v8821
  %8854 = vmatprep.subr.bf16.mxu0 0
  %8855 = vmatpush1.bf16.msra.mxu0 %v8820
  %8856 = vmatprep.subr.bf16.mxu0 0
  %8857 = vmatpush1.bf16.msra.mxu0 %v8819
  %8858 = vmatprep.subr.bf16.mxu0 0
  %8859 = vmatpush1.bf16.msra.mxu0 %v8818
  %8860 = vmatprep.subr.bf16.mxu0 0
  %8861 = vmatpush1.bf16.msra.mxu0 %v8817
  %8862 = vmatprep.subr.bf16.mxu0 0
  %8863 = vmatpush1.bf16.msra.mxu0 %v8816
  %8864 = vmatprep.subr.bf16.mxu0 0
  %8865 = vmatpush2.bf16.msra.mxu0 %v8831
  %8866 = vmatprep.subr.bf16.mxu0 0
  %8867 = vmatpush2.bf16.msra.mxu0 %v8830
  %8868 = vmatprep.subr.bf16.mxu0 0
  %8869 = vmatpush2.bf16.msra.mxu0 %v8829
  %8870 = vmatprep.subr.bf16.mxu0 0
  %8871 = vmatpush2.bf16.msra.mxu0 %v8828
  %8872 = vmatprep.subr.bf16.mxu0 0
  %8873 = vmatpush2.bf16.msra.mxu0 %v8827
  %8874 = vmatprep.subr.bf16.mxu0 0
  %8875 = vmatpush2.bf16.msra.mxu0 %v8826
  %8876 = vmatprep.subr.bf16.mxu0 0
  %8877 = vmatpush2.bf16.msra.mxu0 %v8825
  %8878 = vmatprep.subr.bf16.mxu0 0
  %8879 = vmatpush2.bf16.msra.mxu0 %v8824
  %8880 = vmatprep.mubr.bf16.mxu0 %v8712
  %8881 = vmatmul.mubr.bf16.gmra.mxu0 %v8711
  %v8882 = vpop.f32.mrf.mxu0
  %v8883 = vadd.f32 %v8750, %v8882
  %v8884 = vpop.f32.mrf.mxu0
  %v8885 = vpop.f32.mrf.mxu0
  %v8886 = vpop.f32.mrf.mxu0
  %8887 = vdwg.mxu0
  %vm8888 = vcmask 31744
  %8889 = vst.msk [vmem:[%s5] sm:$0xff] %vm8888, %v8883
  // Predicated region
  $region22: #{cnn_forward.3} parent=0 // pred_check
    _
  $region23: #{cnn_forward.3} parent=0 // pred_check_branch
    %8891 = sbr.rel (0) target = $region25
  $region24: #{cnn_forward.3} parent=0 // pred_region
    _
  $region25: #{cnn_forward.3} parent=0 // pred_fallthru
    _
  // Predicated region
  $region26: #{cnn_forward.3} parent=0 // pred_check
    _
  $region27: #{cnn_forward.3} parent=0 // pred_check_branch
    %8893 = sbr.rel (0) target = $region29
  $region28: #{cnn_forward.3} parent=0 // pred_region
    _
  $region29: #{cnn_forward.3} parent=0 // pred_fallthru
    _

</llo_original>
